<compile_context>
chip_gen: v7x
topology: tpu7x:2x2x1
jax: 0.10.0
libtpu: 0.0.40
codegen_flags: <defaults>
</compile_context>

<pallas_src>
import functools

import jax
import jax.numpy as jnp
from jax.experimental import pallas as pl
from jax.experimental.pallas import tpu as pltpu

_LANE = 128
_SUBLANE = 8
_QUANT = _LANE * _SUBLANE  # batch elements that exactly fill one (8,128) vreg


def _cnn_kernel(x_ref, p_ref, o_ref, *, c_in, c_out, k_size, l_out):
    # x_ref: (C_in, L, Bs, 128)  VMEM  -- batch dense on sublanes + lanes
    # p_ref: (P,)                SMEM  -- [conv_w | conv_b | lin_w/L_out | lin_b]
    # o_ref: (Bs, 128)           VMEM  -- per-block output, lane dense
    bs, ln = o_ref.shape
    n_conv = c_out * c_in * k_size

    # Hoist all scalar parameter reads out of the loops (sregs / cheap sld).
    wc = [p_ref[i] for i in range(n_conv)]                     # conv weights
    bc = [p_ref[n_conv + co] for co in range(c_out)]           # conv bias
    wl = [p_ref[n_conv + c_out + co] for co in range(c_out)]   # lin_w / L_out
    bl = p_ref[n_conv + 2 * c_out]                             # linear bias

    acc = jnp.zeros((bs, ln), jnp.float32)
    for t in range(l_out):
        # Load the K*C_in input slabs of this conv window once; reuse them
        # across all output channels (scalar-splat MACs on packed vregs).
        xs = [[x_ref[ci, t + k] for k in range(k_size)] for ci in range(c_in)]
        for co in range(c_out):
            conv = None
            for ci in range(c_in):
                for k in range(k_size):
                    term = xs[ci][k] * wc[(co * c_in + ci) * k_size + k]
                    conv = term if conv is None else conv + term
            conv = conv + bc[co]
            # Fused ReLU + mean-pool + Linear: stream into one accumulator.
            acc = acc + jnp.maximum(conv, 0.0) * wl[co]
    o_ref[...] = (acc + bl).astype(o_ref.dtype)


def cnn_model_forward(x, conv_w, conv_b, lin_w, lin_b, *, max_batch_block=4096):
    """x: (B, L, C_in) float32.  Returns (B, 1) -- matches CNNModel.forward."""
    B, L, C_in = x.shape
    C_out, C_in_w, K = conv_w.shape
    assert C_in_w == C_in
    assert L >= K, "sequence length must be >= kernel_size (valid conv)"
    L_out = L - K + 1

    # ---- batch blocking: multiples of 1024 so batch fills (8,128) vregs ----
    max_batch_block = max(_QUANT, (max_batch_block // _QUANT) * _QUANT)
    work_quanta = pl.cdiv(B, _QUANT)
    if work_quanta <= 1:
        b_blk = _QUANT
    else:
        max_quanta = max_batch_block // _QUANT
        # >=2 parallel grid blocks when there is enough work (both v7x TCs);
        # otherwise fewest/largest blocks to amortize ~0.35us/step overhead.
        n_blocks = max(2, pl.cdiv(work_quanta, max_quanta))
        b_blk = pl.cdiv(work_quanta, n_blocks) * _QUANT
    b_pad = pl.cdiv(B, b_blk) * b_blk
    g = b_pad // b_blk
    bs = b_blk // _LANE  # sublane rows per block (multiple of 8)

    # ---- layout plumbing (plain JAX glue outside the kernel) ----
    xt = jnp.transpose(x, (2, 1, 0))                       # (C_in, L, B)
    if b_pad != B:
        xt = jnp.pad(xt, ((0, 0), (0, 0), (0, b_pad - B)))
    xt = xt.reshape(C_in, L, b_pad // _LANE, _LANE)        # batch -> (rows, lanes)

    # Flat scalar parameter vector for SMEM; pool's 1/L_out folded into lin_w.
    params = jnp.concatenate([
        conv_w.reshape(-1).astype(jnp.float32),            # row = co*C_in*K + ci*K + k
        conv_b.reshape(-1).astype(jnp.float32),
        (lin_w.reshape(-1) * (1.0 / L_out)).astype(jnp.float32),
        lin_b.reshape(-1).astype(jnp.float32),
    ])

    kernel = functools.partial(
        _cnn_kernel, c_in=C_in, c_out=C_out, k_size=K, l_out=L_out)

    out = pl.pallas_call(
        kernel,
        out_shape=jax.ShapeDtypeStruct((b_pad // _LANE, _LANE), jnp.float32),
        grid=(g,),
        in_specs=[
            pl.BlockSpec((C_in, L, bs, _LANE), lambda i: (0, 0, i, 0)),
            pl.BlockSpec(memory_space=pltpu.MemorySpace.SMEM),
        ],
        out_specs=pl.BlockSpec((bs, _LANE), lambda i: (i, 0)),
        compiler_params=pltpu.CompilerParams(
            dimension_semantics=("parallel",)),
    )(xt, params)

    return out.reshape(b_pad, 1)[:B]


def reference_forward(x, conv_w, conv_b, lin_w, lin_b):
    """Pure-JAX reference with PyTorch semantics (NCH conv after transpose)."""
    xt = jnp.transpose(x, (0, 2, 1))                       # (B, C_in, L)
    conv = jax.lax.conv_general_dilated(
        xt, conv_w, window_strides=(1,), padding="VALID",
        dimension_numbers=("NCH", "OIH", "NCH"))           # (B, C_out, L_out)
    conv = conv + conv_b[None, :, None]
    act = jnp.maximum(conv, 0.0)
    pooled = jnp.mean(act, axis=-1)                        # (B, C_out)
    return pooled @ lin_w.T + lin_b                        # (B, 1)


if __name__ == "__main__":
    # Shapes implied by the module: input_size(C_in)=1, out_channels=16, K=3.
    B, L, C_in, C_out, K = 2, 16, 1, 16, 3

    key = jax.random.PRNGKey(0)
    k1, k2, k3, k4, k5 = jax.random.split(key, 5)
    x = jax.random.normal(k1, (B, L, C_in), jnp.float32)
    conv_w = 0.1 * jax.random.normal(k2, (C_out, C_in, K), jnp.float32)
    conv_b = 0.1 * jax.random.normal(k3, (C_out,), jnp.float32)
    lin_w = 0.1 * jax.random.normal(k4, (1, C_out), jnp.float32)
    lin_b = 0.1 * jax.random.normal(k5, (1,), jnp.float32)

    out = cnn_model_forward(x, conv_w, conv_b, lin_w, lin_b)
    jax.block_until_ready(out)

    ref = reference_forward(x, conv_w, conv_b, lin_w, lin_b)
    assert out.shape == (B, 1)
    assert jnp.allclose(out, ref, atol=1e-5, rtol=1e-5)
    print("KERNEL_OK")
</pallas_src>

<mosaic_0001>
module attributes {stable_mosaic.version = 11 : i64} {
  func.func @_cnn_kernel(%arg0: i32, %arg1: memref<1x16x8x128xf32, #tpu.memory_space<vmem>>, %arg2: memref<81xf32, #tpu.memory_space<smem>>, %arg3: memref<8x128xf32, #tpu.memory_space<vmem>>) attributes {dimension_semantics = [#tpu.dimension_semantics<parallel>], iteration_bounds = array<i64: 1>, scalar_prefetch = 0 : i64, scratch_operands = 0 : i64, tpu.core_type = #tpu.core_type<tc>, window_params = [{transform_indices = @transform_0, window_bounds = array<i64: 1, 16, 8, 128>}, {transform_indices = @transform_1, window_bounds = array<i64: 81>}, {transform_indices = @transform_2, window_bounds = array<i64: 8, 128>}]} {
    %c0 = arith.constant 0 : index
    %0 = memref.load %arg2[%c0] : memref<81xf32, #tpu.memory_space<smem>>
    %c1 = arith.constant 1 : index
    %1 = memref.load %arg2[%c1] : memref<81xf32, #tpu.memory_space<smem>>
    %c2 = arith.constant 2 : index
    %2 = memref.load %arg2[%c2] : memref<81xf32, #tpu.memory_space<smem>>
    %c3 = arith.constant 3 : index
    %3 = memref.load %arg2[%c3] : memref<81xf32, #tpu.memory_space<smem>>
    %c4 = arith.constant 4 : index
    %4 = memref.load %arg2[%c4] : memref<81xf32, #tpu.memory_space<smem>>
    %c5 = arith.constant 5 : index
    %5 = memref.load %arg2[%c5] : memref<81xf32, #tpu.memory_space<smem>>
    %c6 = arith.constant 6 : index
    %6 = memref.load %arg2[%c6] : memref<81xf32, #tpu.memory_space<smem>>
    %c7 = arith.constant 7 : index
    %7 = memref.load %arg2[%c7] : memref<81xf32, #tpu.memory_space<smem>>
    %c8 = arith.constant 8 : index
    %8 = memref.load %arg2[%c8] : memref<81xf32, #tpu.memory_space<smem>>
    %c9 = arith.constant 9 : index
    %9 = memref.load %arg2[%c9] : memref<81xf32, #tpu.memory_space<smem>>
    %c10 = arith.constant 10 : index
    %10 = memref.load %arg2[%c10] : memref<81xf32, #tpu.memory_space<smem>>
    %c11 = arith.constant 11 : index
    %11 = memref.load %arg2[%c11] : memref<81xf32, #tpu.memory_space<smem>>
    %c12 = arith.constant 12 : index
    %12 = memref.load %arg2[%c12] : memref<81xf32, #tpu.memory_space<smem>>
    %c13 = arith.constant 13 : index
    %13 = memref.load %arg2[%c13] : memref<81xf32, #tpu.memory_space<smem>>
    %c14 = arith.constant 14 : index
    %14 = memref.load %arg2[%c14] : memref<81xf32, #tpu.memory_space<smem>>
    %c15 = arith.constant 15 : index
    %15 = memref.load %arg2[%c15] : memref<81xf32, #tpu.memory_space<smem>>
    %c16 = arith.constant 16 : index
    %16 = memref.load %arg2[%c16] : memref<81xf32, #tpu.memory_space<smem>>
    %c17 = arith.constant 17 : index
    %17 = memref.load %arg2[%c17] : memref<81xf32, #tpu.memory_space<smem>>
    %c18 = arith.constant 18 : index
    %18 = memref.load %arg2[%c18] : memref<81xf32, #tpu.memory_space<smem>>
    %c19 = arith.constant 19 : index
    %19 = memref.load %arg2[%c19] : memref<81xf32, #tpu.memory_space<smem>>
    %c20 = arith.constant 20 : index
    %20 = memref.load %arg2[%c20] : memref<81xf32, #tpu.memory_space<smem>>
    %c21 = arith.constant 21 : index
    %21 = memref.load %arg2[%c21] : memref<81xf32, #tpu.memory_space<smem>>
    %c22 = arith.constant 22 : index
    %22 = memref.load %arg2[%c22] : memref<81xf32, #tpu.memory_space<smem>>
    %c23 = arith.constant 23 : index
    %23 = memref.load %arg2[%c23] : memref<81xf32, #tpu.memory_space<smem>>
    %c24 = arith.constant 24 : index
    %24 = memref.load %arg2[%c24] : memref<81xf32, #tpu.memory_space<smem>>
    %c25 = arith.constant 25 : index
    %25 = memref.load %arg2[%c25] : memref<81xf32, #tpu.memory_space<smem>>
    %c26 = arith.constant 26 : index
    %26 = memref.load %arg2[%c26] : memref<81xf32, #tpu.memory_space<smem>>
    %c27 = arith.constant 27 : index
    %27 = memref.load %arg2[%c27] : memref<81xf32, #tpu.memory_space<smem>>
    %c28 = arith.constant 28 : index
    %28 = memref.load %arg2[%c28] : memref<81xf32, #tpu.memory_space<smem>>
    %c29 = arith.constant 29 : index
    %29 = memref.load %arg2[%c29] : memref<81xf32, #tpu.memory_space<smem>>
    %c30 = arith.constant 30 : index
    %30 = memref.load %arg2[%c30] : memref<81xf32, #tpu.memory_space<smem>>
    %c31 = arith.constant 31 : index
    %31 = memref.load %arg2[%c31] : memref<81xf32, #tpu.memory_space<smem>>
    %c32 = arith.constant 32 : index
    %32 = memref.load %arg2[%c32] : memref<81xf32, #tpu.memory_space<smem>>
    %c33 = arith.constant 33 : index
    %33 = memref.load %arg2[%c33] : memref<81xf32, #tpu.memory_space<smem>>
    %c34 = arith.constant 34 : index
    %34 = memref.load %arg2[%c34] : memref<81xf32, #tpu.memory_space<smem>>
    %c35 = arith.constant 35 : index
    %35 = memref.load %arg2[%c35] : memref<81xf32, #tpu.memory_space<smem>>
    %c36 = arith.constant 36 : index
    %36 = memref.load %arg2[%c36] : memref<81xf32, #tpu.memory_space<smem>>
    %c37 = arith.constant 37 : index
    %37 = memref.load %arg2[%c37] : memref<81xf32, #tpu.memory_space<smem>>
    %c38 = arith.constant 38 : index
    %38 = memref.load %arg2[%c38] : memref<81xf32, #tpu.memory_space<smem>>
    %c39 = arith.constant 39 : index
    %39 = memref.load %arg2[%c39] : memref<81xf32, #tpu.memory_space<smem>>
    %c40 = arith.constant 40 : index
    %40 = memref.load %arg2[%c40] : memref<81xf32, #tpu.memory_space<smem>>
    %c41 = arith.constant 41 : index
    %41 = memref.load %arg2[%c41] : memref<81xf32, #tpu.memory_space<smem>>
    %c42 = arith.constant 42 : index
    %42 = memref.load %arg2[%c42] : memref<81xf32, #tpu.memory_space<smem>>
    %c43 = arith.constant 43 : index
    %43 = memref.load %arg2[%c43] : memref<81xf32, #tpu.memory_space<smem>>
    %c44 = arith.constant 44 : index
    %44 = memref.load %arg2[%c44] : memref<81xf32, #tpu.memory_space<smem>>
    %c45 = arith.constant 45 : index
    %45 = memref.load %arg2[%c45] : memref<81xf32, #tpu.memory_space<smem>>
    %c46 = arith.constant 46 : index
    %46 = memref.load %arg2[%c46] : memref<81xf32, #tpu.memory_space<smem>>
    %c47 = arith.constant 47 : index
    %47 = memref.load %arg2[%c47] : memref<81xf32, #tpu.memory_space<smem>>
    %c48 = arith.constant 48 : index
    %48 = memref.load %arg2[%c48] : memref<81xf32, #tpu.memory_space<smem>>
    %c49 = arith.constant 49 : index
    %49 = memref.load %arg2[%c49] : memref<81xf32, #tpu.memory_space<smem>>
    %c50 = arith.constant 50 : index
    %50 = memref.load %arg2[%c50] : memref<81xf32, #tpu.memory_space<smem>>
    %c51 = arith.constant 51 : index
    %51 = memref.load %arg2[%c51] : memref<81xf32, #tpu.memory_space<smem>>
    %c52 = arith.constant 52 : index
    %52 = memref.load %arg2[%c52] : memref<81xf32, #tpu.memory_space<smem>>
    %c53 = arith.constant 53 : index
    %53 = memref.load %arg2[%c53] : memref<81xf32, #tpu.memory_space<smem>>
    %c54 = arith.constant 54 : index
    %54 = memref.load %arg2[%c54] : memref<81xf32, #tpu.memory_space<smem>>
    %c55 = arith.constant 55 : index
    %55 = memref.load %arg2[%c55] : memref<81xf32, #tpu.memory_space<smem>>
    %c56 = arith.constant 56 : index
    %56 = memref.load %arg2[%c56] : memref<81xf32, #tpu.memory_space<smem>>
    %c57 = arith.constant 57 : index
    %57 = memref.load %arg2[%c57] : memref<81xf32, #tpu.memory_space<smem>>
    %c58 = arith.constant 58 : index
    %58 = memref.load %arg2[%c58] : memref<81xf32, #tpu.memory_space<smem>>
    %c59 = arith.constant 59 : index
    %59 = memref.load %arg2[%c59] : memref<81xf32, #tpu.memory_space<smem>>
    %c60 = arith.constant 60 : index
    %60 = memref.load %arg2[%c60] : memref<81xf32, #tpu.memory_space<smem>>
    %c61 = arith.constant 61 : index
    %61 = memref.load %arg2[%c61] : memref<81xf32, #tpu.memory_space<smem>>
    %c62 = arith.constant 62 : index
    %62 = memref.load %arg2[%c62] : memref<81xf32, #tpu.memory_space<smem>>
    %c63 = arith.constant 63 : index
    %63 = memref.load %arg2[%c63] : memref<81xf32, #tpu.memory_space<smem>>
    %c64 = arith.constant 64 : index
    %64 = memref.load %arg2[%c64] : memref<81xf32, #tpu.memory_space<smem>>
    %c65 = arith.constant 65 : index
    %65 = memref.load %arg2[%c65] : memref<81xf32, #tpu.memory_space<smem>>
    %c66 = arith.constant 66 : index
    %66 = memref.load %arg2[%c66] : memref<81xf32, #tpu.memory_space<smem>>
    %c67 = arith.constant 67 : index
    %67 = memref.load %arg2[%c67] : memref<81xf32, #tpu.memory_space<smem>>
    %c68 = arith.constant 68 : index
    %68 = memref.load %arg2[%c68] : memref<81xf32, #tpu.memory_space<smem>>
    %c69 = arith.constant 69 : index
    %69 = memref.load %arg2[%c69] : memref<81xf32, #tpu.memory_space<smem>>
    %c70 = arith.constant 70 : index
    %70 = memref.load %arg2[%c70] : memref<81xf32, #tpu.memory_space<smem>>
    %c71 = arith.constant 71 : index
    %71 = memref.load %arg2[%c71] : memref<81xf32, #tpu.memory_space<smem>>
    %c72 = arith.constant 72 : index
    %72 = memref.load %arg2[%c72] : memref<81xf32, #tpu.memory_space<smem>>
    %c73 = arith.constant 73 : index
    %73 = memref.load %arg2[%c73] : memref<81xf32, #tpu.memory_space<smem>>
    %c74 = arith.constant 74 : index
    %74 = memref.load %arg2[%c74] : memref<81xf32, #tpu.memory_space<smem>>
    %c75 = arith.constant 75 : index
    %75 = memref.load %arg2[%c75] : memref<81xf32, #tpu.memory_space<smem>>
    %c76 = arith.constant 76 : index
    %76 = memref.load %arg2[%c76] : memref<81xf32, #tpu.memory_space<smem>>
    %c77 = arith.constant 77 : index
    %77 = memref.load %arg2[%c77] : memref<81xf32, #tpu.memory_space<smem>>
    %c78 = arith.constant 78 : index
    %78 = memref.load %arg2[%c78] : memref<81xf32, #tpu.memory_space<smem>>
    %c79 = arith.constant 79 : index
    %79 = memref.load %arg2[%c79] : memref<81xf32, #tpu.memory_space<smem>>
    %c80 = arith.constant 80 : index
    %80 = memref.load %arg2[%c80] : memref<81xf32, #tpu.memory_space<smem>>
    %cst = arith.constant 0.000000e+00 : f32
    %81 = vector.broadcast %cst : f32 to vector<8x128xf32>
    %c0_0 = arith.constant 0 : index
    %c0_1 = arith.constant 0 : index
    %c0_2 = arith.constant 0 : index
    %c0_3 = arith.constant 0 : index
    %82 = vector.load %arg1[%c0_0, %c0_1, %c0_2, %c0_3] : memref<1x16x8x128xf32, #tpu.memory_space<vmem>>, vector<1x1x8x128xf32>
    %83 = vector.shape_cast %82 : vector<1x1x8x128xf32> to vector<8x128xf32>
    %c0_4 = arith.constant 0 : index
    %c1_5 = arith.constant 1 : index
    %c0_6 = arith.constant 0 : index
    %c0_7 = arith.constant 0 : index
    %84 = vector.load %arg1[%c0_4, %c1_5, %c0_6, %c0_7] : memref<1x16x8x128xf32, #tpu.memory_space<vmem>>, vector<1x1x8x128xf32>
    %85 = vector.shape_cast %84 : vector<1x1x8x128xf32> to vector<8x128xf32>
    %c0_8 = arith.constant 0 : index
    %c2_9 = arith.constant 2 : index
    %c0_10 = arith.constant 0 : index
    %c0_11 = arith.constant 0 : index
    %86 = vector.load %arg1[%c0_8, %c2_9, %c0_10, %c0_11] : memref<1x16x8x128xf32, #tpu.memory_space<vmem>>, vector<1x1x8x128xf32>
    %87 = vector.shape_cast %86 : vector<1x1x8x128xf32> to vector<8x128xf32>
    %88 = vector.broadcast %0 : f32 to vector<8x128xf32>
    %89 = arith.mulf %83, %88 : vector<8x128xf32>
    %90 = vector.broadcast %1 : f32 to vector<8x128xf32>
    %91 = arith.mulf %85, %90 : vector<8x128xf32>
    %92 = arith.addf %89, %91 : vector<8x128xf32>
    %93 = vector.broadcast %2 : f32 to vector<8x128xf32>
    %94 = arith.mulf %87, %93 : vector<8x128xf32>
    %95 = arith.addf %92, %94 : vector<8x128xf32>
    %96 = vector.broadcast %48 : f32 to vector<8x128xf32>
    %97 = arith.addf %95, %96 : vector<8x128xf32>
    %cst_12 = arith.constant 0.000000e+00 : f32
    %98 = vector.broadcast %cst_12 : f32 to vector<8x128xf32>
    %99 = arith.maximumf %97, %98 : vector<8x128xf32>
    %100 = vector.broadcast %64 : f32 to vector<8x128xf32>
    %101 = arith.mulf %99, %100 : vector<8x128xf32>
    %102 = arith.addf %81, %101 : vector<8x128xf32>
    %103 = vector.broadcast %3 : f32 to vector<8x128xf32>
    %104 = arith.mulf %83, %103 : vector<8x128xf32>
    %105 = vector.broadcast %4 : f32 to vector<8x128xf32>
    %106 = arith.mulf %85, %105 : vector<8x128xf32>
    %107 = arith.addf %104, %106 : vector<8x128xf32>
    %108 = vector.broadcast %5 : f32 to vector<8x128xf32>
    %109 = arith.mulf %87, %108 : vector<8x128xf32>
    %110 = arith.addf %107, %109 : vector<8x128xf32>
    %111 = vector.broadcast %49 : f32 to vector<8x128xf32>
    %112 = arith.addf %110, %111 : vector<8x128xf32>
    %cst_13 = arith.constant 0.000000e+00 : f32
    %113 = vector.broadcast %cst_13 : f32 to vector<8x128xf32>
    %114 = arith.maximumf %112, %113 : vector<8x128xf32>
    %115 = vector.broadcast %65 : f32 to vector<8x128xf32>
    %116 = arith.mulf %114, %115 : vector<8x128xf32>
    %117 = arith.addf %102, %116 : vector<8x128xf32>
    %118 = vector.broadcast %6 : f32 to vector<8x128xf32>
    %119 = arith.mulf %83, %118 : vector<8x128xf32>
    %120 = vector.broadcast %7 : f32 to vector<8x128xf32>
    %121 = arith.mulf %85, %120 : vector<8x128xf32>
    %122 = arith.addf %119, %121 : vector<8x128xf32>
    %123 = vector.broadcast %8 : f32 to vector<8x128xf32>
    %124 = arith.mulf %87, %123 : vector<8x128xf32>
    %125 = arith.addf %122, %124 : vector<8x128xf32>
    %126 = vector.broadcast %50 : f32 to vector<8x128xf32>
    %127 = arith.addf %125, %126 : vector<8x128xf32>
    %cst_14 = arith.constant 0.000000e+00 : f32
    %128 = vector.broadcast %cst_14 : f32 to vector<8x128xf32>
    %129 = arith.maximumf %127, %128 : vector<8x128xf32>
    %130 = vector.broadcast %66 : f32 to vector<8x128xf32>
    %131 = arith.mulf %129, %130 : vector<8x128xf32>
    %132 = arith.addf %117, %131 : vector<8x128xf32>
    %133 = vector.broadcast %9 : f32 to vector<8x128xf32>
    %134 = arith.mulf %83, %133 : vector<8x128xf32>
    %135 = vector.broadcast %10 : f32 to vector<8x128xf32>
    %136 = arith.mulf %85, %135 : vector<8x128xf32>
    %137 = arith.addf %134, %136 : vector<8x128xf32>
    %138 = vector.broadcast %11 : f32 to vector<8x128xf32>
    %139 = arith.mulf %87, %138 : vector<8x128xf32>
    %140 = arith.addf %137, %139 : vector<8x128xf32>
    %141 = vector.broadcast %51 : f32 to vector<8x128xf32>
    %142 = arith.addf %140, %141 : vector<8x128xf32>
    %cst_15 = arith.constant 0.000000e+00 : f32
    %143 = vector.broadcast %cst_15 : f32 to vector<8x128xf32>
    %144 = arith.maximumf %142, %143 : vector<8x128xf32>
    %145 = vector.broadcast %67 : f32 to vector<8x128xf32>
    %146 = arith.mulf %144, %145 : vector<8x128xf32>
    %147 = arith.addf %132, %146 : vector<8x128xf32>
    %148 = vector.broadcast %12 : f32 to vector<8x128xf32>
    %149 = arith.mulf %83, %148 : vector<8x128xf32>
    %150 = vector.broadcast %13 : f32 to vector<8x128xf32>
    %151 = arith.mulf %85, %150 : vector<8x128xf32>
    %152 = arith.addf %149, %151 : vector<8x128xf32>
    %153 = vector.broadcast %14 : f32 to vector<8x128xf32>
    %154 = arith.mulf %87, %153 : vector<8x128xf32>
    %155 = arith.addf %152, %154 : vector<8x128xf32>
    %156 = vector.broadcast %52 : f32 to vector<8x128xf32>
    %157 = arith.addf %155, %156 : vector<8x128xf32>
    %cst_16 = arith.constant 0.000000e+00 : f32
    %158 = vector.broadcast %cst_16 : f32 to vector<8x128xf32>
    %159 = arith.maximumf %157, %158 : vector<8x128xf32>
    %160 = vector.broadcast %68 : f32 to vector<8x128xf32>
    %161 = arith.mulf %159, %160 : vector<8x128xf32>
    %162 = arith.addf %147, %161 : vector<8x128xf32>
    %163 = vector.broadcast %15 : f32 to vector<8x128xf32>
    %164 = arith.mulf %83, %163 : vector<8x128xf32>
    %165 = vector.broadcast %16 : f32 to vector<8x128xf32>
    %166 = arith.mulf %85, %165 : vector<8x128xf32>
    %167 = arith.addf %164, %166 : vector<8x128xf32>
    %168 = vector.broadcast %17 : f32 to vector<8x128xf32>
    %169 = arith.mulf %87, %168 : vector<8x128xf32>
    %170 = arith.addf %167, %169 : vector<8x128xf32>
    %171 = vector.broadcast %53 : f32 to vector<8x128xf32>
    %172 = arith.addf %170, %171 : vector<8x128xf32>
    %cst_17 = arith.constant 0.000000e+00 : f32
    %173 = vector.broadcast %cst_17 : f32 to vector<8x128xf32>
    %174 = arith.maximumf %172, %173 : vector<8x128xf32>
    %175 = vector.broadcast %69 : f32 to vector<8x128xf32>
    %176 = arith.mulf %174, %175 : vector<8x128xf32>
    %177 = arith.addf %162, %176 : vector<8x128xf32>
    %178 = vector.broadcast %18 : f32 to vector<8x128xf32>
    %179 = arith.mulf %83, %178 : vector<8x128xf32>
    %180 = vector.broadcast %19 : f32 to vector<8x128xf32>
    %181 = arith.mulf %85, %180 : vector<8x128xf32>
    %182 = arith.addf %179, %181 : vector<8x128xf32>
    %183 = vector.broadcast %20 : f32 to vector<8x128xf32>
    %184 = arith.mulf %87, %183 : vector<8x128xf32>
    %185 = arith.addf %182, %184 : vector<8x128xf32>
    %186 = vector.broadcast %54 : f32 to vector<8x128xf32>
    %187 = arith.addf %185, %186 : vector<8x128xf32>
    %cst_18 = arith.constant 0.000000e+00 : f32
    %188 = vector.broadcast %cst_18 : f32 to vector<8x128xf32>
    %189 = arith.maximumf %187, %188 : vector<8x128xf32>
    %190 = vector.broadcast %70 : f32 to vector<8x128xf32>
    %191 = arith.mulf %189, %190 : vector<8x128xf32>
    %192 = arith.addf %177, %191 : vector<8x128xf32>
    %193 = vector.broadcast %21 : f32 to vector<8x128xf32>
    %194 = arith.mulf %83, %193 : vector<8x128xf32>
    %195 = vector.broadcast %22 : f32 to vector<8x128xf32>
    %196 = arith.mulf %85, %195 : vector<8x128xf32>
    %197 = arith.addf %194, %196 : vector<8x128xf32>
    %198 = vector.broadcast %23 : f32 to vector<8x128xf32>
    %199 = arith.mulf %87, %198 : vector<8x128xf32>
    %200 = arith.addf %197, %199 : vector<8x128xf32>
    %201 = vector.broadcast %55 : f32 to vector<8x128xf32>
    %202 = arith.addf %200, %201 : vector<8x128xf32>
    %cst_19 = arith.constant 0.000000e+00 : f32
    %203 = vector.broadcast %cst_19 : f32 to vector<8x128xf32>
    %204 = arith.maximumf %202, %203 : vector<8x128xf32>
    %205 = vector.broadcast %71 : f32 to vector<8x128xf32>
    %206 = arith.mulf %204, %205 : vector<8x128xf32>
    %207 = arith.addf %192, %206 : vector<8x128xf32>
    %208 = vector.broadcast %24 : f32 to vector<8x128xf32>
    %209 = arith.mulf %83, %208 : vector<8x128xf32>
    %210 = vector.broadcast %25 : f32 to vector<8x128xf32>
    %211 = arith.mulf %85, %210 : vector<8x128xf32>
    %212 = arith.addf %209, %211 : vector<8x128xf32>
    %213 = vector.broadcast %26 : f32 to vector<8x128xf32>
    %214 = arith.mulf %87, %213 : vector<8x128xf32>
    %215 = arith.addf %212, %214 : vector<8x128xf32>
    %216 = vector.broadcast %56 : f32 to vector<8x128xf32>
    %217 = arith.addf %215, %216 : vector<8x128xf32>
    %cst_20 = arith.constant 0.000000e+00 : f32
    %218 = vector.broadcast %cst_20 : f32 to vector<8x128xf32>
    %219 = arith.maximumf %217, %218 : vector<8x128xf32>
    %220 = vector.broadcast %72 : f32 to vector<8x128xf32>
    %221 = arith.mulf %219, %220 : vector<8x128xf32>
    %222 = arith.addf %207, %221 : vector<8x128xf32>
    %223 = vector.broadcast %27 : f32 to vector<8x128xf32>
    %224 = arith.mulf %83, %223 : vector<8x128xf32>
    %225 = vector.broadcast %28 : f32 to vector<8x128xf32>
    %226 = arith.mulf %85, %225 : vector<8x128xf32>
    %227 = arith.addf %224, %226 : vector<8x128xf32>
    %228 = vector.broadcast %29 : f32 to vector<8x128xf32>
    %229 = arith.mulf %87, %228 : vector<8x128xf32>
    %230 = arith.addf %227, %229 : vector<8x128xf32>
    %231 = vector.broadcast %57 : f32 to vector<8x128xf32>
    %232 = arith.addf %230, %231 : vector<8x128xf32>
    %cst_21 = arith.constant 0.000000e+00 : f32
    %233 = vector.broadcast %cst_21 : f32 to vector<8x128xf32>
    %234 = arith.maximumf %232, %233 : vector<8x128xf32>
    %235 = vector.broadcast %73 : f32 to vector<8x128xf32>
    %236 = arith.mulf %234, %235 : vector<8x128xf32>
    %237 = arith.addf %222, %236 : vector<8x128xf32>
    %238 = vector.broadcast %30 : f32 to vector<8x128xf32>
    %239 = arith.mulf %83, %238 : vector<8x128xf32>
    %240 = vector.broadcast %31 : f32 to vector<8x128xf32>
    %241 = arith.mulf %85, %240 : vector<8x128xf32>
    %242 = arith.addf %239, %241 : vector<8x128xf32>
    %243 = vector.broadcast %32 : f32 to vector<8x128xf32>
    %244 = arith.mulf %87, %243 : vector<8x128xf32>
    %245 = arith.addf %242, %244 : vector<8x128xf32>
    %246 = vector.broadcast %58 : f32 to vector<8x128xf32>
    %247 = arith.addf %245, %246 : vector<8x128xf32>
    %cst_22 = arith.constant 0.000000e+00 : f32
    %248 = vector.broadcast %cst_22 : f32 to vector<8x128xf32>
    %249 = arith.maximumf %247, %248 : vector<8x128xf32>
    %250 = vector.broadcast %74 : f32 to vector<8x128xf32>
    %251 = arith.mulf %249, %250 : vector<8x128xf32>
    %252 = arith.addf %237, %251 : vector<8x128xf32>
    %253 = vector.broadcast %33 : f32 to vector<8x128xf32>
    %254 = arith.mulf %83, %253 : vector<8x128xf32>
    %255 = vector.broadcast %34 : f32 to vector<8x128xf32>
    %256 = arith.mulf %85, %255 : vector<8x128xf32>
    %257 = arith.addf %254, %256 : vector<8x128xf32>
    %258 = vector.broadcast %35 : f32 to vector<8x128xf32>
    %259 = arith.mulf %87, %258 : vector<8x128xf32>
    %260 = arith.addf %257, %259 : vector<8x128xf32>
    %261 = vector.broadcast %59 : f32 to vector<8x128xf32>
    %262 = arith.addf %260, %261 : vector<8x128xf32>
    %cst_23 = arith.constant 0.000000e+00 : f32
    %263 = vector.broadcast %cst_23 : f32 to vector<8x128xf32>
    %264 = arith.maximumf %262, %263 : vector<8x128xf32>
    %265 = vector.broadcast %75 : f32 to vector<8x128xf32>
    %266 = arith.mulf %264, %265 : vector<8x128xf32>
    %267 = arith.addf %252, %266 : vector<8x128xf32>
    %268 = vector.broadcast %36 : f32 to vector<8x128xf32>
    %269 = arith.mulf %83, %268 : vector<8x128xf32>
    %270 = vector.broadcast %37 : f32 to vector<8x128xf32>
    %271 = arith.mulf %85, %270 : vector<8x128xf32>
    %272 = arith.addf %269, %271 : vector<8x128xf32>
    %273 = vector.broadcast %38 : f32 to vector<8x128xf32>
    %274 = arith.mulf %87, %273 : vector<8x128xf32>
    %275 = arith.addf %272, %274 : vector<8x128xf32>
    %276 = vector.broadcast %60 : f32 to vector<8x128xf32>
    %277 = arith.addf %275, %276 : vector<8x128xf32>
    %cst_24 = arith.constant 0.000000e+00 : f32
    %278 = vector.broadcast %cst_24 : f32 to vector<8x128xf32>
    %279 = arith.maximumf %277, %278 : vector<8x128xf32>
    %280 = vector.broadcast %76 : f32 to vector<8x128xf32>
    %281 = arith.mulf %279, %280 : vector<8x128xf32>
    %282 = arith.addf %267, %281 : vector<8x128xf32>
    %283 = vector.broadcast %39 : f32 to vector<8x128xf32>
    %284 = arith.mulf %83, %283 : vector<8x128xf32>
    %285 = vector.broadcast %40 : f32 to vector<8x128xf32>
    %286 = arith.mulf %85, %285 : vector<8x128xf32>
    %287 = arith.addf %284, %286 : vector<8x128xf32>
    %288 = vector.broadcast %41 : f32 to vector<8x128xf32>
    %289 = arith.mulf %87, %288 : vector<8x128xf32>
    %290 = arith.addf %287, %289 : vector<8x128xf32>
    %291 = vector.broadcast %61 : f32 to vector<8x128xf32>
    %292 = arith.addf %290, %291 : vector<8x128xf32>
    %cst_25 = arith.constant 0.000000e+00 : f32
    %293 = vector.broadcast %cst_25 : f32 to vector<8x128xf32>
    %294 = arith.maximumf %292, %293 : vector<8x128xf32>
    %295 = vector.broadcast %77 : f32 to vector<8x128xf32>
    %296 = arith.mulf %294, %295 : vector<8x128xf32>
    %297 = arith.addf %282, %296 : vector<8x128xf32>
    %298 = vector.broadcast %42 : f32 to vector<8x128xf32>
    %299 = arith.mulf %83, %298 : vector<8x128xf32>
    %300 = vector.broadcast %43 : f32 to vector<8x128xf32>
    %301 = arith.mulf %85, %300 : vector<8x128xf32>
    %302 = arith.addf %299, %301 : vector<8x128xf32>
    %303 = vector.broadcast %44 : f32 to vector<8x128xf32>
    %304 = arith.mulf %87, %303 : vector<8x128xf32>
    %305 = arith.addf %302, %304 : vector<8x128xf32>
    %306 = vector.broadcast %62 : f32 to vector<8x128xf32>
    %307 = arith.addf %305, %306 : vector<8x128xf32>
    %cst_26 = arith.constant 0.000000e+00 : f32
    %308 = vector.broadcast %cst_26 : f32 to vector<8x128xf32>
    %309 = arith.maximumf %307, %308 : vector<8x128xf32>
    %310 = vector.broadcast %78 : f32 to vector<8x128xf32>
    %311 = arith.mulf %309, %310 : vector<8x128xf32>
    %312 = arith.addf %297, %311 : vector<8x128xf32>
    %313 = vector.broadcast %45 : f32 to vector<8x128xf32>
    %314 = arith.mulf %83, %313 : vector<8x128xf32>
    %315 = vector.broadcast %46 : f32 to vector<8x128xf32>
    %316 = arith.mulf %85, %315 : vector<8x128xf32>
    %317 = arith.addf %314, %316 : vector<8x128xf32>
    %318 = vector.broadcast %47 : f32 to vector<8x128xf32>
    %319 = arith.mulf %87, %318 : vector<8x128xf32>
    %320 = arith.addf %317, %319 : vector<8x128xf32>
    %321 = vector.broadcast %63 : f32 to vector<8x128xf32>
    %322 = arith.addf %320, %321 : vector<8x128xf32>
    %cst_27 = arith.constant 0.000000e+00 : f32
    %323 = vector.broadcast %cst_27 : f32 to vector<8x128xf32>
    %324 = arith.maximumf %322, %323 : vector<8x128xf32>
    %325 = vector.broadcast %79 : f32 to vector<8x128xf32>
    %326 = arith.mulf %324, %325 : vector<8x128xf32>
    %327 = arith.addf %312, %326 : vector<8x128xf32>
    %c0_28 = arith.constant 0 : index
    %c1_29 = arith.constant 1 : index
    %c0_30 = arith.constant 0 : index
    %c0_31 = arith.constant 0 : index
    %328 = vector.load %arg1[%c0_28, %c1_29, %c0_30, %c0_31] : memref<1x16x8x128xf32, #tpu.memory_space<vmem>>, vector<1x1x8x128xf32>
    %329 = vector.shape_cast %328 : vector<1x1x8x128xf32> to vector<8x128xf32>
    %c0_32 = arith.constant 0 : index
    %c2_33 = arith.constant 2 : index
    %c0_34 = arith.constant 0 : index
    %c0_35 = arith.constant 0 : index
    %330 = vector.load %arg1[%c0_32, %c2_33, %c0_34, %c0_35] : memref<1x16x8x128xf32, #tpu.memory_space<vmem>>, vector<1x1x8x128xf32>
    %331 = vector.shape_cast %330 : vector<1x1x8x128xf32> to vector<8x128xf32>
    %c0_36 = arith.constant 0 : index
    %c3_37 = arith.constant 3 : index
    %c0_38 = arith.constant 0 : index
    %c0_39 = arith.constant 0 : index
    %332 = vector.load %arg1[%c0_36, %c3_37, %c0_38, %c0_39] : memref<1x16x8x128xf32, #tpu.memory_space<vmem>>, vector<1x1x8x128xf32>
    %333 = vector.shape_cast %332 : vector<1x1x8x128xf32> to vector<8x128xf32>
    %334 = vector.broadcast %0 : f32 to vector<8x128xf32>
    %335 = arith.mulf %329, %334 : vector<8x128xf32>
    %336 = vector.broadcast %1 : f32 to vector<8x128xf32>
    %337 = arith.mulf %331, %336 : vector<8x128xf32>
    %338 = arith.addf %335, %337 : vector<8x128xf32>
    %339 = vector.broadcast %2 : f32 to vector<8x128xf32>
    %340 = arith.mulf %333, %339 : vector<8x128xf32>
    %341 = arith.addf %338, %340 : vector<8x128xf32>
    %342 = vector.broadcast %48 : f32 to vector<8x128xf32>
    %343 = arith.addf %341, %342 : vector<8x128xf32>
    %cst_40 = arith.constant 0.000000e+00 : f32
    %344 = vector.broadcast %cst_40 : f32 to vector<8x128xf32>
    %345 = arith.maximumf %343, %344 : vector<8x128xf32>
    %346 = vector.broadcast %64 : f32 to vector<8x128xf32>
    %347 = arith.mulf %345, %346 : vector<8x128xf32>
    %348 = arith.addf %327, %347 : vector<8x128xf32>
    %349 = vector.broadcast %3 : f32 to vector<8x128xf32>
    %350 = arith.mulf %329, %349 : vector<8x128xf32>
    %351 = vector.broadcast %4 : f32 to vector<8x128xf32>
    %352 = arith.mulf %331, %351 : vector<8x128xf32>
    %353 = arith.addf %350, %352 : vector<8x128xf32>
    %354 = vector.broadcast %5 : f32 to vector<8x128xf32>
    %355 = arith.mulf %333, %354 : vector<8x128xf32>
    %356 = arith.addf %353, %355 : vector<8x128xf32>
    %357 = vector.broadcast %49 : f32 to vector<8x128xf32>
    %358 = arith.addf %356, %357 : vector<8x128xf32>
    %cst_41 = arith.constant 0.000000e+00 : f32
    %359 = vector.broadcast %cst_41 : f32 to vector<8x128xf32>
    %360 = arith.maximumf %358, %359 : vector<8x128xf32>
    %361 = vector.broadcast %65 : f32 to vector<8x128xf32>
    %362 = arith.mulf %360, %361 : vector<8x128xf32>
    %363 = arith.addf %348, %362 : vector<8x128xf32>
    %364 = vector.broadcast %6 : f32 to vector<8x128xf32>
    %365 = arith.mulf %329, %364 : vector<8x128xf32>
    %366 = vector.broadcast %7 : f32 to vector<8x128xf32>
    %367 = arith.mulf %331, %366 : vector<8x128xf32>
    %368 = arith.addf %365, %367 : vector<8x128xf32>
    %369 = vector.broadcast %8 : f32 to vector<8x128xf32>
    %370 = arith.mulf %333, %369 : vector<8x128xf32>
    %371 = arith.addf %368, %370 : vector<8x128xf32>
    %372 = vector.broadcast %50 : f32 to vector<8x128xf32>
    %373 = arith.addf %371, %372 : vector<8x128xf32>
    %cst_42 = arith.constant 0.000000e+00 : f32
    %374 = vector.broadcast %cst_42 : f32 to vector<8x128xf32>
    %375 = arith.maximumf %373, %374 : vector<8x128xf32>
    %376 = vector.broadcast %66 : f32 to vector<8x128xf32>
    %377 = arith.mulf %375, %376 : vector<8x128xf32>
    %378 = arith.addf %363, %377 : vector<8x128xf32>
    %379 = vector.broadcast %9 : f32 to vector<8x128xf32>
    %380 = arith.mulf %329, %379 : vector<8x128xf32>
    %381 = vector.broadcast %10 : f32 to vector<8x128xf32>
    %382 = arith.mulf %331, %381 : vector<8x128xf32>
    %383 = arith.addf %380, %382 : vector<8x128xf32>
    %384 = vector.broadcast %11 : f32 to vector<8x128xf32>
    %385 = arith.mulf %333, %384 : vector<8x128xf32>
    %386 = arith.addf %383, %385 : vector<8x128xf32>
    %387 = vector.broadcast %51 : f32 to vector<8x128xf32>
    %388 = arith.addf %386, %387 : vector<8x128xf32>
    %cst_43 = arith.constant 0.000000e+00 : f32
    %389 = vector.broadcast %cst_43 : f32 to vector<8x128xf32>
    %390 = arith.maximumf %388, %389 : vector<8x128xf32>
    %391 = vector.broadcast %67 : f32 to vector<8x128xf32>
    %392 = arith.mulf %390, %391 : vector<8x128xf32>
    %393 = arith.addf %378, %392 : vector<8x128xf32>
    %394 = vector.broadcast %12 : f32 to vector<8x128xf32>
    %395 = arith.mulf %329, %394 : vector<8x128xf32>
    %396 = vector.broadcast %13 : f32 to vector<8x128xf32>
    %397 = arith.mulf %331, %396 : vector<8x128xf32>
    %398 = arith.addf %395, %397 : vector<8x128xf32>
    %399 = vector.broadcast %14 : f32 to vector<8x128xf32>
    %400 = arith.mulf %333, %399 : vector<8x128xf32>
    %401 = arith.addf %398, %400 : vector<8x128xf32>
    %402 = vector.broadcast %52 : f32 to vector<8x128xf32>
    %403 = arith.addf %401, %402 : vector<8x128xf32>
    %cst_44 = arith.constant 0.000000e+00 : f32
    %404 = vector.broadcast %cst_44 : f32 to vector<8x128xf32>
    %405 = arith.maximumf %403, %404 : vector<8x128xf32>
    %406 = vector.broadcast %68 : f32 to vector<8x128xf32>
    %407 = arith.mulf %405, %406 : vector<8x128xf32>
    %408 = arith.addf %393, %407 : vector<8x128xf32>
    %409 = vector.broadcast %15 : f32 to vector<8x128xf32>
    %410 = arith.mulf %329, %409 : vector<8x128xf32>
    %411 = vector.broadcast %16 : f32 to vector<8x128xf32>
    %412 = arith.mulf %331, %411 : vector<8x128xf32>
    %413 = arith.addf %410, %412 : vector<8x128xf32>
    %414 = vector.broadcast %17 : f32 to vector<8x128xf32>
    %415 = arith.mulf %333, %414 : vector<8x128xf32>
    %416 = arith.addf %413, %415 : vector<8x128xf32>
    %417 = vector.broadcast %53 : f32 to vector<8x128xf32>
    %418 = arith.addf %416, %417 : vector<8x128xf32>
    %cst_45 = arith.constant 0.000000e+00 : f32
    %419 = vector.broadcast %cst_45 : f32 to vector<8x128xf32>
    %420 = arith.maximumf %418, %419 : vector<8x128xf32>
    %421 = vector.broadcast %69 : f32 to vector<8x128xf32>
    %422 = arith.mulf %420, %421 : vector<8x128xf32>
    %423 = arith.addf %408, %422 : vector<8x128xf32>
    %424 = vector.broadcast %18 : f32 to vector<8x128xf32>
    %425 = arith.mulf %329, %424 : vector<8x128xf32>
    %426 = vector.broadcast %19 : f32 to vector<8x128xf32>
    %427 = arith.mulf %331, %426 : vector<8x128xf32>
    %428 = arith.addf %425, %427 : vector<8x128xf32>
    %429 = vector.broadcast %20 : f32 to vector<8x128xf32>
    %430 = arith.mulf %333, %429 : vector<8x128xf32>
    %431 = arith.addf %428, %430 : vector<8x128xf32>
    %432 = vector.broadcast %54 : f32 to vector<8x128xf32>
    %433 = arith.addf %431, %432 : vector<8x128xf32>
    %cst_46 = arith.constant 0.000000e+00 : f32
    %434 = vector.broadcast %cst_46 : f32 to vector<8x128xf32>
    %435 = arith.maximumf %433, %434 : vector<8x128xf32>
    %436 = vector.broadcast %70 : f32 to vector<8x128xf32>
    %437 = arith.mulf %435, %436 : vector<8x128xf32>
    %438 = arith.addf %423, %437 : vector<8x128xf32>
    %439 = vector.broadcast %21 : f32 to vector<8x128xf32>
    %440 = arith.mulf %329, %439 : vector<8x128xf32>
    %441 = vector.broadcast %22 : f32 to vector<8x128xf32>
    %442 = arith.mulf %331, %441 : vector<8x128xf32>
    %443 = arith.addf %440, %442 : vector<8x128xf32>
    %444 = vector.broadcast %23 : f32 to vector<8x128xf32>
    %445 = arith.mulf %333, %444 : vector<8x128xf32>
    %446 = arith.addf %443, %445 : vector<8x128xf32>
    %447 = vector.broadcast %55 : f32 to vector<8x128xf32>
    %448 = arith.addf %446, %447 : vector<8x128xf32>
    %cst_47 = arith.constant 0.000000e+00 : f32
    %449 = vector.broadcast %cst_47 : f32 to vector<8x128xf32>
    %450 = arith.maximumf %448, %449 : vector<8x128xf32>
    %451 = vector.broadcast %71 : f32 to vector<8x128xf32>
    %452 = arith.mulf %450, %451 : vector<8x128xf32>
    %453 = arith.addf %438, %452 : vector<8x128xf32>
    %454 = vector.broadcast %24 : f32 to vector<8x128xf32>
    %455 = arith.mulf %329, %454 : vector<8x128xf32>
    %456 = vector.broadcast %25 : f32 to vector<8x128xf32>
    %457 = arith.mulf %331, %456 : vector<8x128xf32>
    %458 = arith.addf %455, %457 : vector<8x128xf32>
    %459 = vector.broadcast %26 : f32 to vector<8x128xf32>
    %460 = arith.mulf %333, %459 : vector<8x128xf32>
    %461 = arith.addf %458, %460 : vector<8x128xf32>
    %462 = vector.broadcast %56 : f32 to vector<8x128xf32>
    %463 = arith.addf %461, %462 : vector<8x128xf32>
    %cst_48 = arith.constant 0.000000e+00 : f32
    %464 = vector.broadcast %cst_48 : f32 to vector<8x128xf32>
    %465 = arith.maximumf %463, %464 : vector<8x128xf32>
    %466 = vector.broadcast %72 : f32 to vector<8x128xf32>
    %467 = arith.mulf %465, %466 : vector<8x128xf32>
    %468 = arith.addf %453, %467 : vector<8x128xf32>
    %469 = vector.broadcast %27 : f32 to vector<8x128xf32>
    %470 = arith.mulf %329, %469 : vector<8x128xf32>
    %471 = vector.broadcast %28 : f32 to vector<8x128xf32>
    %472 = arith.mulf %331, %471 : vector<8x128xf32>
    %473 = arith.addf %470, %472 : vector<8x128xf32>
    %474 = vector.broadcast %29 : f32 to vector<8x128xf32>
    %475 = arith.mulf %333, %474 : vector<8x128xf32>
    %476 = arith.addf %473, %475 : vector<8x128xf32>
    %477 = vector.broadcast %57 : f32 to vector<8x128xf32>
    %478 = arith.addf %476, %477 : vector<8x128xf32>
    %cst_49 = arith.constant 0.000000e+00 : f32
    %479 = vector.broadcast %cst_49 : f32 to vector<8x128xf32>
    %480 = arith.maximumf %478, %479 : vector<8x128xf32>
    %481 = vector.broadcast %73 : f32 to vector<8x128xf32>
    %482 = arith.mulf %480, %481 : vector<8x128xf32>
    %483 = arith.addf %468, %482 : vector<8x128xf32>
    %484 = vector.broadcast %30 : f32 to vector<8x128xf32>
    %485 = arith.mulf %329, %484 : vector<8x128xf32>
    %486 = vector.broadcast %31 : f32 to vector<8x128xf32>
    %487 = arith.mulf %331, %486 : vector<8x128xf32>
    %488 = arith.addf %485, %487 : vector<8x128xf32>
    %489 = vector.broadcast %32 : f32 to vector<8x128xf32>
    %490 = arith.mulf %333, %489 : vector<8x128xf32>
    %491 = arith.addf %488, %490 : vector<8x128xf32>
    %492 = vector.broadcast %58 : f32 to vector<8x128xf32>
    %493 = arith.addf %491, %492 : vector<8x128xf32>
    %cst_50 = arith.constant 0.000000e+00 : f32
    %494 = vector.broadcast %cst_50 : f32 to vector<8x128xf32>
    %495 = arith.maximumf %493, %494 : vector<8x128xf32>
    %496 = vector.broadcast %74 : f32 to vector<8x128xf32>
    %497 = arith.mulf %495, %496 : vector<8x128xf32>
    %498 = arith.addf %483, %497 : vector<8x128xf32>
    %499 = vector.broadcast %33 : f32 to vector<8x128xf32>
    %500 = arith.mulf %329, %499 : vector<8x128xf32>
    %501 = vector.broadcast %34 : f32 to vector<8x128xf32>
    %502 = arith.mulf %331, %501 : vector<8x128xf32>
    %503 = arith.addf %500, %502 : vector<8x128xf32>
    %504 = vector.broadcast %35 : f32 to vector<8x128xf32>
    %505 = arith.mulf %333, %504 : vector<8x128xf32>
    %506 = arith.addf %503, %505 : vector<8x128xf32>
    %507 = vector.broadcast %59 : f32 to vector<8x128xf32>
    %508 = arith.addf %506, %507 : vector<8x128xf32>
    %cst_51 = arith.constant 0.000000e+00 : f32
    %509 = vector.broadcast %cst_51 : f32 to vector<8x128xf32>
    %510 = arith.maximumf %508, %509 : vector<8x128xf32>
    %511 = vector.broadcast %75 : f32 to vector<8x128xf32>
    %512 = arith.mulf %510, %511 : vector<8x128xf32>
    %513 = arith.addf %498, %512 : vector<8x128xf32>
    %514 = vector.broadcast %36 : f32 to vector<8x128xf32>
    %515 = arith.mulf %329, %514 : vector<8x128xf32>
    %516 = vector.broadcast %37 : f32 to vector<8x128xf32>
    %517 = arith.mulf %331, %516 : vector<8x128xf32>
    %518 = arith.addf %515, %517 : vector<8x128xf32>
    %519 = vector.broadcast %38 : f32 to vector<8x128xf32>
    %520 = arith.mulf %333, %519 : vector<8x128xf32>
    %521 = arith.addf %518, %520 : vector<8x128xf32>
    %522 = vector.broadcast %60 : f32 to vector<8x128xf32>
    %523 = arith.addf %521, %522 : vector<8x128xf32>
    %cst_52 = arith.constant 0.000000e+00 : f32
    %524 = vector.broadcast %cst_52 : f32 to vector<8x128xf32>
    %525 = arith.maximumf %523, %524 : vector<8x128xf32>
    %526 = vector.broadcast %76 : f32 to vector<8x128xf32>
    %527 = arith.mulf %525, %526 : vector<8x128xf32>
    %528 = arith.addf %513, %527 : vector<8x128xf32>
    %529 = vector.broadcast %39 : f32 to vector<8x128xf32>
    %530 = arith.mulf %329, %529 : vector<8x128xf32>
    %531 = vector.broadcast %40 : f32 to vector<8x128xf32>
    %532 = arith.mulf %331, %531 : vector<8x128xf32>
    %533 = arith.addf %530, %532 : vector<8x128xf32>
    %534 = vector.broadcast %41 : f32 to vector<8x128xf32>
    %535 = arith.mulf %333, %534 : vector<8x128xf32>
    %536 = arith.addf %533, %535 : vector<8x128xf32>
    %537 = vector.broadcast %61 : f32 to vector<8x128xf32>
    %538 = arith.addf %536, %537 : vector<8x128xf32>
    %cst_53 = arith.constant 0.000000e+00 : f32
    %539 = vector.broadcast %cst_53 : f32 to vector<8x128xf32>
    %540 = arith.maximumf %538, %539 : vector<8x128xf32>
    %541 = vector.broadcast %77 : f32 to vector<8x128xf32>
    %542 = arith.mulf %540, %541 : vector<8x128xf32>
    %543 = arith.addf %528, %542 : vector<8x128xf32>
    %544 = vector.broadcast %42 : f32 to vector<8x128xf32>
    %545 = arith.mulf %329, %544 : vector<8x128xf32>
    %546 = vector.broadcast %43 : f32 to vector<8x128xf32>
    %547 = arith.mulf %331, %546 : vector<8x128xf32>
    %548 = arith.addf %545, %547 : vector<8x128xf32>
    %549 = vector.broadcast %44 : f32 to vector<8x128xf32>
    %550 = arith.mulf %333, %549 : vector<8x128xf32>
    %551 = arith.addf %548, %550 : vector<8x128xf32>
    %552 = vector.broadcast %62 : f32 to vector<8x128xf32>
    %553 = arith.addf %551, %552 : vector<8x128xf32>
    %cst_54 = arith.constant 0.000000e+00 : f32
    %554 = vector.broadcast %cst_54 : f32 to vector<8x128xf32>
    %555 = arith.maximumf %553, %554 : vector<8x128xf32>
    %556 = vector.broadcast %78 : f32 to vector<8x128xf32>
    %557 = arith.mulf %555, %556 : vector<8x128xf32>
    %558 = arith.addf %543, %557 : vector<8x128xf32>
    %559 = vector.broadcast %45 : f32 to vector<8x128xf32>
    %560 = arith.mulf %329, %559 : vector<8x128xf32>
    %561 = vector.broadcast %46 : f32 to vector<8x128xf32>
    %562 = arith.mulf %331, %561 : vector<8x128xf32>
    %563 = arith.addf %560, %562 : vector<8x128xf32>
    %564 = vector.broadcast %47 : f32 to vector<8x128xf32>
    %565 = arith.mulf %333, %564 : vector<8x128xf32>
    %566 = arith.addf %563, %565 : vector<8x128xf32>
    %567 = vector.broadcast %63 : f32 to vector<8x128xf32>
    %568 = arith.addf %566, %567 : vector<8x128xf32>
    %cst_55 = arith.constant 0.000000e+00 : f32
    %569 = vector.broadcast %cst_55 : f32 to vector<8x128xf32>
    %570 = arith.maximumf %568, %569 : vector<8x128xf32>
    %571 = vector.broadcast %79 : f32 to vector<8x128xf32>
    %572 = arith.mulf %570, %571 : vector<8x128xf32>
    %573 = arith.addf %558, %572 : vector<8x128xf32>
    %c0_56 = arith.constant 0 : index
    %c2_57 = arith.constant 2 : index
    %c0_58 = arith.constant 0 : index
    %c0_59 = arith.constant 0 : index
    %574 = vector.load %arg1[%c0_56, %c2_57, %c0_58, %c0_59] : memref<1x16x8x128xf32, #tpu.memory_space<vmem>>, vector<1x1x8x128xf32>
    %575 = vector.shape_cast %574 : vector<1x1x8x128xf32> to vector<8x128xf32>
    %c0_60 = arith.constant 0 : index
    %c3_61 = arith.constant 3 : index
    %c0_62 = arith.constant 0 : index
    %c0_63 = arith.constant 0 : index
    %576 = vector.load %arg1[%c0_60, %c3_61, %c0_62, %c0_63] : memref<1x16x8x128xf32, #tpu.memory_space<vmem>>, vector<1x1x8x128xf32>
    %577 = vector.shape_cast %576 : vector<1x1x8x128xf32> to vector<8x128xf32>
    %c0_64 = arith.constant 0 : index
    %c4_65 = arith.constant 4 : index
    %c0_66 = arith.constant 0 : index
    %c0_67 = arith.constant 0 : index
    %578 = vector.load %arg1[%c0_64, %c4_65, %c0_66, %c0_67] : memref<1x16x8x128xf32, #tpu.memory_space<vmem>>, vector<1x1x8x128xf32>
    %579 = vector.shape_cast %578 : vector<1x1x8x128xf32> to vector<8x128xf32>
    %580 = vector.broadcast %0 : f32 to vector<8x128xf32>
    %581 = arith.mulf %575, %580 : vector<8x128xf32>
    %582 = vector.broadcast %1 : f32 to vector<8x128xf32>
    %583 = arith.mulf %577, %582 : vector<8x128xf32>
    %584 = arith.addf %581, %583 : vector<8x128xf32>
    %585 = vector.broadcast %2 : f32 to vector<8x128xf32>
    %586 = arith.mulf %579, %585 : vector<8x128xf32>
    %587 = arith.addf %584, %586 : vector<8x128xf32>
    %588 = vector.broadcast %48 : f32 to vector<8x128xf32>
    %589 = arith.addf %587, %588 : vector<8x128xf32>
    %cst_68 = arith.constant 0.000000e+00 : f32
    %590 = vector.broadcast %cst_68 : f32 to vector<8x128xf32>
    %591 = arith.maximumf %589, %590 : vector<8x128xf32>
    %592 = vector.broadcast %64 : f32 to vector<8x128xf32>
    %593 = arith.mulf %591, %592 : vector<8x128xf32>
    %594 = arith.addf %573, %593 : vector<8x128xf32>
    %595 = vector.broadcast %3 : f32 to vector<8x128xf32>
    %596 = arith.mulf %575, %595 : vector<8x128xf32>
    %597 = vector.broadcast %4 : f32 to vector<8x128xf32>
    %598 = arith.mulf %577, %597 : vector<8x128xf32>
    %599 = arith.addf %596, %598 : vector<8x128xf32>
    %600 = vector.broadcast %5 : f32 to vector<8x128xf32>
    %601 = arith.mulf %579, %600 : vector<8x128xf32>
    %602 = arith.addf %599, %601 : vector<8x128xf32>
    %603 = vector.broadcast %49 : f32 to vector<8x128xf32>
    %604 = arith.addf %602, %603 : vector<8x128xf32>
    %cst_69 = arith.constant 0.000000e+00 : f32
    %605 = vector.broadcast %cst_69 : f32 to vector<8x128xf32>
    %606 = arith.maximumf %604, %605 : vector<8x128xf32>
    %607 = vector.broadcast %65 : f32 to vector<8x128xf32>
    %608 = arith.mulf %606, %607 : vector<8x128xf32>
    %609 = arith.addf %594, %608 : vector<8x128xf32>
    %610 = vector.broadcast %6 : f32 to vector<8x128xf32>
    %611 = arith.mulf %575, %610 : vector<8x128xf32>
    %612 = vector.broadcast %7 : f32 to vector<8x128xf32>
    %613 = arith.mulf %577, %612 : vector<8x128xf32>
    %614 = arith.addf %611, %613 : vector<8x128xf32>
    %615 = vector.broadcast %8 : f32 to vector<8x128xf32>
    %616 = arith.mulf %579, %615 : vector<8x128xf32>
    %617 = arith.addf %614, %616 : vector<8x128xf32>
    %618 = vector.broadcast %50 : f32 to vector<8x128xf32>
    %619 = arith.addf %617, %618 : vector<8x128xf32>
    %cst_70 = arith.constant 0.000000e+00 : f32
    %620 = vector.broadcast %cst_70 : f32 to vector<8x128xf32>
    %621 = arith.maximumf %619, %620 : vector<8x128xf32>
    %622 = vector.broadcast %66 : f32 to vector<8x128xf32>
    %623 = arith.mulf %621, %622 : vector<8x128xf32>
    %624 = arith.addf %609, %623 : vector<8x128xf32>
    %625 = vector.broadcast %9 : f32 to vector<8x128xf32>
    %626 = arith.mulf %575, %625 : vector<8x128xf32>
    %627 = vector.broadcast %10 : f32 to vector<8x128xf32>
    %628 = arith.mulf %577, %627 : vector<8x128xf32>
    %629 = arith.addf %626, %628 : vector<8x128xf32>
    %630 = vector.broadcast %11 : f32 to vector<8x128xf32>
    %631 = arith.mulf %579, %630 : vector<8x128xf32>
    %632 = arith.addf %629, %631 : vector<8x128xf32>
    %633 = vector.broadcast %51 : f32 to vector<8x128xf32>
    %634 = arith.addf %632, %633 : vector<8x128xf32>
    %cst_71 = arith.constant 0.000000e+00 : f32
    %635 = vector.broadcast %cst_71 : f32 to vector<8x128xf32>
    %636 = arith.maximumf %634, %635 : vector<8x128xf32>
    %637 = vector.broadcast %67 : f32 to vector<8x128xf32>
    %638 = arith.mulf %636, %637 : vector<8x128xf32>
    %639 = arith.addf %624, %638 : vector<8x128xf32>
    %640 = vector.broadcast %12 : f32 to vector<8x128xf32>
    %641 = arith.mulf %575, %640 : vector<8x128xf32>
    %642 = vector.broadcast %13 : f32 to vector<8x128xf32>
    %643 = arith.mulf %577, %642 : vector<8x128xf32>
    %644 = arith.addf %641, %643 : vector<8x128xf32>
    %645 = vector.broadcast %14 : f32 to vector<8x128xf32>
    %646 = arith.mulf %579, %645 : vector<8x128xf32>
    %647 = arith.addf %644, %646 : vector<8x128xf32>
    %648 = vector.broadcast %52 : f32 to vector<8x128xf32>
    %649 = arith.addf %647, %648 : vector<8x128xf32>
    %cst_72 = arith.constant 0.000000e+00 : f32
    %650 = vector.broadcast %cst_72 : f32 to vector<8x128xf32>
    %651 = arith.maximumf %649, %650 : vector<8x128xf32>
    %652 = vector.broadcast %68 : f32 to vector<8x128xf32>
    %653 = arith.mulf %651, %652 : vector<8x128xf32>
    %654 = arith.addf %639, %653 : vector<8x128xf32>
    %655 = vector.broadcast %15 : f32 to vector<8x128xf32>
    %656 = arith.mulf %575, %655 : vector<8x128xf32>
    %657 = vector.broadcast %16 : f32 to vector<8x128xf32>
    %658 = arith.mulf %577, %657 : vector<8x128xf32>
    %659 = arith.addf %656, %658 : vector<8x128xf32>
    %660 = vector.broadcast %17 : f32 to vector<8x128xf32>
    %661 = arith.mulf %579, %660 : vector<8x128xf32>
    %662 = arith.addf %659, %661 : vector<8x128xf32>
    %663 = vector.broadcast %53 : f32 to vector<8x128xf32>
    %664 = arith.addf %662, %663 : vector<8x128xf32>
    %cst_73 = arith.constant 0.000000e+00 : f32
    %665 = vector.broadcast %cst_73 : f32 to vector<8x128xf32>
    %666 = arith.maximumf %664, %665 : vector<8x128xf32>
    %667 = vector.broadcast %69 : f32 to vector<8x128xf32>
    %668 = arith.mulf %666, %667 : vector<8x128xf32>
    %669 = arith.addf %654, %668 : vector<8x128xf32>
    %670 = vector.broadcast %18 : f32 to vector<8x128xf32>
    %671 = arith.mulf %575, %670 : vector<8x128xf32>
    %672 = vector.broadcast %19 : f32 to vector<8x128xf32>
    %673 = arith.mulf %577, %672 : vector<8x128xf32>
    %674 = arith.addf %671, %673 : vector<8x128xf32>
    %675 = vector.broadcast %20 : f32 to vector<8x128xf32>
    %676 = arith.mulf %579, %675 : vector<8x128xf32>
    %677 = arith.addf %674, %676 : vector<8x128xf32>
    %678 = vector.broadcast %54 : f32 to vector<8x128xf32>
    %679 = arith.addf %677, %678 : vector<8x128xf32>
    %cst_74 = arith.constant 0.000000e+00 : f32
    %680 = vector.broadcast %cst_74 : f32 to vector<8x128xf32>
    %681 = arith.maximumf %679, %680 : vector<8x128xf32>
    %682 = vector.broadcast %70 : f32 to vector<8x128xf32>
    %683 = arith.mulf %681, %682 : vector<8x128xf32>
    %684 = arith.addf %669, %683 : vector<8x128xf32>
    %685 = vector.broadcast %21 : f32 to vector<8x128xf32>
    %686 = arith.mulf %575, %685 : vector<8x128xf32>
    %687 = vector.broadcast %22 : f32 to vector<8x128xf32>
    %688 = arith.mulf %577, %687 : vector<8x128xf32>
    %689 = arith.addf %686, %688 : vector<8x128xf32>
    %690 = vector.broadcast %23 : f32 to vector<8x128xf32>
    %691 = arith.mulf %579, %690 : vector<8x128xf32>
    %692 = arith.addf %689, %691 : vector<8x128xf32>
    %693 = vector.broadcast %55 : f32 to vector<8x128xf32>
    %694 = arith.addf %692, %693 : vector<8x128xf32>
    %cst_75 = arith.constant 0.000000e+00 : f32
    %695 = vector.broadcast %cst_75 : f32 to vector<8x128xf32>
    %696 = arith.maximumf %694, %695 : vector<8x128xf32>
    %697 = vector.broadcast %71 : f32 to vector<8x128xf32>
    %698 = arith.mulf %696, %697 : vector<8x128xf32>
    %699 = arith.addf %684, %698 : vector<8x128xf32>
    %700 = vector.broadcast %24 : f32 to vector<8x128xf32>
    %701 = arith.mulf %575, %700 : vector<8x128xf32>
    %702 = vector.broadcast %25 : f32 to vector<8x128xf32>
    %703 = arith.mulf %577, %702 : vector<8x128xf32>
    %704 = arith.addf %701, %703 : vector<8x128xf32>
    %705 = vector.broadcast %26 : f32 to vector<8x128xf32>
    %706 = arith.mulf %579, %705 : vector<8x128xf32>
    %707 = arith.addf %704, %706 : vector<8x128xf32>
    %708 = vector.broadcast %56 : f32 to vector<8x128xf32>
    %709 = arith.addf %707, %708 : vector<8x128xf32>
    %cst_76 = arith.constant 0.000000e+00 : f32
    %710 = vector.broadcast %cst_76 : f32 to vector<8x128xf32>
    %711 = arith.maximumf %709, %710 : vector<8x128xf32>
    %712 = vector.broadcast %72 : f32 to vector<8x128xf32>
    %713 = arith.mulf %711, %712 : vector<8x128xf32>
    %714 = arith.addf %699, %713 : vector<8x128xf32>
    %715 = vector.broadcast %27 : f32 to vector<8x128xf32>
    %716 = arith.mulf %575, %715 : vector<8x128xf32>
    %717 = vector.broadcast %28 : f32 to vector<8x128xf32>
    %718 = arith.mulf %577, %717 : vector<8x128xf32>
    %719 = arith.addf %716, %718 : vector<8x128xf32>
    %720 = vector.broadcast %29 : f32 to vector<8x128xf32>
    %721 = arith.mulf %579, %720 : vector<8x128xf32>
    %722 = arith.addf %719, %721 : vector<8x128xf32>
    %723 = vector.broadcast %57 : f32 to vector<8x128xf32>
    %724 = arith.addf %722, %723 : vector<8x128xf32>
    %cst_77 = arith.constant 0.000000e+00 : f32
    %725 = vector.broadcast %cst_77 : f32 to vector<8x128xf32>
    %726 = arith.maximumf %724, %725 : vector<8x128xf32>
    %727 = vector.broadcast %73 : f32 to vector<8x128xf32>
    %728 = arith.mulf %726, %727 : vector<8x128xf32>
    %729 = arith.addf %714, %728 : vector<8x128xf32>
    %730 = vector.broadcast %30 : f32 to vector<8x128xf32>
    %731 = arith.mulf %575, %730 : vector<8x128xf32>
    %732 = vector.broadcast %31 : f32 to vector<8x128xf32>
    %733 = arith.mulf %577, %732 : vector<8x128xf32>
    %734 = arith.addf %731, %733 : vector<8x128xf32>
    %735 = vector.broadcast %32 : f32 to vector<8x128xf32>
    %736 = arith.mulf %579, %735 : vector<8x128xf32>
    %737 = arith.addf %734, %736 : vector<8x128xf32>
    %738 = vector.broadcast %58 : f32 to vector<8x128xf32>
    %739 = arith.addf %737, %738 : vector<8x128xf32>
    %cst_78 = arith.constant 0.000000e+00 : f32
    %740 = vector.broadcast %cst_78 : f32 to vector<8x128xf32>
    %741 = arith.maximumf %739, %740 : vector<8x128xf32>
    %742 = vector.broadcast %74 : f32 to vector<8x128xf32>
    %743 = arith.mulf %741, %742 : vector<8x128xf32>
    %744 = arith.addf %729, %743 : vector<8x128xf32>
    %745 = vector.broadcast %33 : f32 to vector<8x128xf32>
    %746 = arith.mulf %575, %745 : vector<8x128xf32>
    %747 = vector.broadcast %34 : f32 to vector<8x128xf32>
    %748 = arith.mulf %577, %747 : vector<8x128xf32>
    %749 = arith.addf %746, %748 : vector<8x128xf32>
    %750 = vector.broadcast %35 : f32 to vector<8x128xf32>
    %751 = arith.mulf %579, %750 : vector<8x128xf32>
    %752 = arith.addf %749, %751 : vector<8x128xf32>
    %753 = vector.broadcast %59 : f32 to vector<8x128xf32>
    %754 = arith.addf %752, %753 : vector<8x128xf32>
    %cst_79 = arith.constant 0.000000e+00 : f32
    %755 = vector.broadcast %cst_79 : f32 to vector<8x128xf32>
    %756 = arith.maximumf %754, %755 : vector<8x128xf32>
    %757 = vector.broadcast %75 : f32 to vector<8x128xf32>
    %758 = arith.mulf %756, %757 : vector<8x128xf32>
    %759 = arith.addf %744, %758 : vector<8x128xf32>
    %760 = vector.broadcast %36 : f32 to vector<8x128xf32>
    %761 = arith.mulf %575, %760 : vector<8x128xf32>
    %762 = vector.broadcast %37 : f32 to vector<8x128xf32>
    %763 = arith.mulf %577, %762 : vector<8x128xf32>
    %764 = arith.addf %761, %763 : vector<8x128xf32>
    %765 = vector.broadcast %38 : f32 to vector<8x128xf32>
    %766 = arith.mulf %579, %765 : vector<8x128xf32>
    %767 = arith.addf %764, %766 : vector<8x128xf32>
    %768 = vector.broadcast %60 : f32 to vector<8x128xf32>
    %769 = arith.addf %767, %768 : vector<8x128xf32>
    %cst_80 = arith.constant 0.000000e+00 : f32
    %770 = vector.broadcast %cst_80 : f32 to vector<8x128xf32>
    %771 = arith.maximumf %769, %770 : vector<8x128xf32>
    %772 = vector.broadcast %76 : f32 to vector<8x128xf32>
    %773 = arith.mulf %771, %772 : vector<8x128xf32>
    %774 = arith.addf %759, %773 : vector<8x128xf32>
    %775 = vector.broadcast %39 : f32 to vector<8x128xf32>
    %776 = arith.mulf %575, %775 : vector<8x128xf32>
    %777 = vector.broadcast %40 : f32 to vector<8x128xf32>
    %778 = arith.mulf %577, %777 : vector<8x128xf32>
    %779 = arith.addf %776, %778 : vector<8x128xf32>
    %780 = vector.broadcast %41 : f32 to vector<8x128xf32>
    %781 = arith.mulf %579, %780 : vector<8x128xf32>
    %782 = arith.addf %779, %781 : vector<8x128xf32>
    %783 = vector.broadcast %61 : f32 to vector<8x128xf32>
    %784 = arith.addf %782, %783 : vector<8x128xf32>
    %cst_81 = arith.constant 0.000000e+00 : f32
    %785 = vector.broadcast %cst_81 : f32 to vector<8x128xf32>
    %786 = arith.maximumf %784, %785 : vector<8x128xf32>
    %787 = vector.broadcast %77 : f32 to vector<8x128xf32>
    %788 = arith.mulf %786, %787 : vector<8x128xf32>
    %789 = arith.addf %774, %788 : vector<8x128xf32>
    %790 = vector.broadcast %42 : f32 to vector<8x128xf32>
    %791 = arith.mulf %575, %790 : vector<8x128xf32>
    %792 = vector.broadcast %43 : f32 to vector<8x128xf32>
    %793 = arith.mulf %577, %792 : vector<8x128xf32>
    %794 = arith.addf %791, %793 : vector<8x128xf32>
    %795 = vector.broadcast %44 : f32 to vector<8x128xf32>
    %796 = arith.mulf %579, %795 : vector<8x128xf32>
    %797 = arith.addf %794, %796 : vector<8x128xf32>
    %798 = vector.broadcast %62 : f32 to vector<8x128xf32>
    %799 = arith.addf %797, %798 : vector<8x128xf32>
    %cst_82 = arith.constant 0.000000e+00 : f32
    %800 = vector.broadcast %cst_82 : f32 to vector<8x128xf32>
    %801 = arith.maximumf %799, %800 : vector<8x128xf32>
    %802 = vector.broadcast %78 : f32 to vector<8x128xf32>
    %803 = arith.mulf %801, %802 : vector<8x128xf32>
    %804 = arith.addf %789, %803 : vector<8x128xf32>
    %805 = vector.broadcast %45 : f32 to vector<8x128xf32>
    %806 = arith.mulf %575, %805 : vector<8x128xf32>
    %807 = vector.broadcast %46 : f32 to vector<8x128xf32>
    %808 = arith.mulf %577, %807 : vector<8x128xf32>
    %809 = arith.addf %806, %808 : vector<8x128xf32>
    %810 = vector.broadcast %47 : f32 to vector<8x128xf32>
    %811 = arith.mulf %579, %810 : vector<8x128xf32>
    %812 = arith.addf %809, %811 : vector<8x128xf32>
    %813 = vector.broadcast %63 : f32 to vector<8x128xf32>
    %814 = arith.addf %812, %813 : vector<8x128xf32>
    %cst_83 = arith.constant 0.000000e+00 : f32
    %815 = vector.broadcast %cst_83 : f32 to vector<8x128xf32>
    %816 = arith.maximumf %814, %815 : vector<8x128xf32>
    %817 = vector.broadcast %79 : f32 to vector<8x128xf32>
    %818 = arith.mulf %816, %817 : vector<8x128xf32>
    %819 = arith.addf %804, %818 : vector<8x128xf32>
    %c0_84 = arith.constant 0 : index
    %c3_85 = arith.constant 3 : index
    %c0_86 = arith.constant 0 : index
    %c0_87 = arith.constant 0 : index
    %820 = vector.load %arg1[%c0_84, %c3_85, %c0_86, %c0_87] : memref<1x16x8x128xf32, #tpu.memory_space<vmem>>, vector<1x1x8x128xf32>
    %821 = vector.shape_cast %820 : vector<1x1x8x128xf32> to vector<8x128xf32>
    %c0_88 = arith.constant 0 : index
    %c4_89 = arith.constant 4 : index
    %c0_90 = arith.constant 0 : index
    %c0_91 = arith.constant 0 : index
    %822 = vector.load %arg1[%c0_88, %c4_89, %c0_90, %c0_91] : memref<1x16x8x128xf32, #tpu.memory_space<vmem>>, vector<1x1x8x128xf32>
    %823 = vector.shape_cast %822 : vector<1x1x8x128xf32> to vector<8x128xf32>
    %c0_92 = arith.constant 0 : index
    %c5_93 = arith.constant 5 : index
    %c0_94 = arith.constant 0 : index
    %c0_95 = arith.constant 0 : index
    %824 = vector.load %arg1[%c0_92, %c5_93, %c0_94, %c0_95] : memref<1x16x8x128xf32, #tpu.memory_space<vmem>>, vector<1x1x8x128xf32>
    %825 = vector.shape_cast %824 : vector<1x1x8x128xf32> to vector<8x128xf32>
    %826 = vector.broadcast %0 : f32 to vector<8x128xf32>
    %827 = arith.mulf %821, %826 : vector<8x128xf32>
    %828 = vector.broadcast %1 : f32 to vector<8x128xf32>
    %829 = arith.mulf %823, %828 : vector<8x128xf32>
    %830 = arith.addf %827, %829 : vector<8x128xf32>
    %831 = vector.broadcast %2 : f32 to vector<8x128xf32>
    %832 = arith.mulf %825, %831 : vector<8x128xf32>
    %833 = arith.addf %830, %832 : vector<8x128xf32>
    %834 = vector.broadcast %48 : f32 to vector<8x128xf32>
    %835 = arith.addf %833, %834 : vector<8x128xf32>
    %cst_96 = arith.constant 0.000000e+00 : f32
    %836 = vector.broadcast %cst_96 : f32 to vector<8x128xf32>
    %837 = arith.maximumf %835, %836 : vector<8x128xf32>
    %838 = vector.broadcast %64 : f32 to vector<8x128xf32>
    %839 = arith.mulf %837, %838 : vector<8x128xf32>
    %840 = arith.addf %819, %839 : vector<8x128xf32>
    %841 = vector.broadcast %3 : f32 to vector<8x128xf32>
    %842 = arith.mulf %821, %841 : vector<8x128xf32>
    %843 = vector.broadcast %4 : f32 to vector<8x128xf32>
    %844 = arith.mulf %823, %843 : vector<8x128xf32>
    %845 = arith.addf %842, %844 : vector<8x128xf32>
    %846 = vector.broadcast %5 : f32 to vector<8x128xf32>
    %847 = arith.mulf %825, %846 : vector<8x128xf32>
    %848 = arith.addf %845, %847 : vector<8x128xf32>
    %849 = vector.broadcast %49 : f32 to vector<8x128xf32>
    %850 = arith.addf %848, %849 : vector<8x128xf32>
    %cst_97 = arith.constant 0.000000e+00 : f32
    %851 = vector.broadcast %cst_97 : f32 to vector<8x128xf32>
    %852 = arith.maximumf %850, %851 : vector<8x128xf32>
    %853 = vector.broadcast %65 : f32 to vector<8x128xf32>
    %854 = arith.mulf %852, %853 : vector<8x128xf32>
    %855 = arith.addf %840, %854 : vector<8x128xf32>
    %856 = vector.broadcast %6 : f32 to vector<8x128xf32>
    %857 = arith.mulf %821, %856 : vector<8x128xf32>
    %858 = vector.broadcast %7 : f32 to vector<8x128xf32>
    %859 = arith.mulf %823, %858 : vector<8x128xf32>
    %860 = arith.addf %857, %859 : vector<8x128xf32>
    %861 = vector.broadcast %8 : f32 to vector<8x128xf32>
    %862 = arith.mulf %825, %861 : vector<8x128xf32>
    %863 = arith.addf %860, %862 : vector<8x128xf32>
    %864 = vector.broadcast %50 : f32 to vector<8x128xf32>
    %865 = arith.addf %863, %864 : vector<8x128xf32>
    %cst_98 = arith.constant 0.000000e+00 : f32
    %866 = vector.broadcast %cst_98 : f32 to vector<8x128xf32>
    %867 = arith.maximumf %865, %866 : vector<8x128xf32>
    %868 = vector.broadcast %66 : f32 to vector<8x128xf32>
    %869 = arith.mulf %867, %868 : vector<8x128xf32>
    %870 = arith.addf %855, %869 : vector<8x128xf32>
    %871 = vector.broadcast %9 : f32 to vector<8x128xf32>
    %872 = arith.mulf %821, %871 : vector<8x128xf32>
    %873 = vector.broadcast %10 : f32 to vector<8x128xf32>
    %874 = arith.mulf %823, %873 : vector<8x128xf32>
    %875 = arith.addf %872, %874 : vector<8x128xf32>
    %876 = vector.broadcast %11 : f32 to vector<8x128xf32>
    %877 = arith.mulf %825, %876 : vector<8x128xf32>
    %878 = arith.addf %875, %877 : vector<8x128xf32>
    %879 = vector.broadcast %51 : f32 to vector<8x128xf32>
    %880 = arith.addf %878, %879 : vector<8x128xf32>
    %cst_99 = arith.constant 0.000000e+00 : f32
    %881 = vector.broadcast %cst_99 : f32 to vector<8x128xf32>
    %882 = arith.maximumf %880, %881 : vector<8x128xf32>
    %883 = vector.broadcast %67 : f32 to vector<8x128xf32>
    %884 = arith.mulf %882, %883 : vector<8x128xf32>
    %885 = arith.addf %870, %884 : vector<8x128xf32>
    %886 = vector.broadcast %12 : f32 to vector<8x128xf32>
    %887 = arith.mulf %821, %886 : vector<8x128xf32>
    %888 = vector.broadcast %13 : f32 to vector<8x128xf32>
    %889 = arith.mulf %823, %888 : vector<8x128xf32>
    %890 = arith.addf %887, %889 : vector<8x128xf32>
    %891 = vector.broadcast %14 : f32 to vector<8x128xf32>
    %892 = arith.mulf %825, %891 : vector<8x128xf32>
    %893 = arith.addf %890, %892 : vector<8x128xf32>
    %894 = vector.broadcast %52 : f32 to vector<8x128xf32>
    %895 = arith.addf %893, %894 : vector<8x128xf32>
    %cst_100 = arith.constant 0.000000e+00 : f32
    %896 = vector.broadcast %cst_100 : f32 to vector<8x128xf32>
    %897 = arith.maximumf %895, %896 : vector<8x128xf32>
    %898 = vector.broadcast %68 : f32 to vector<8x128xf32>
    %899 = arith.mulf %897, %898 : vector<8x128xf32>
    %900 = arith.addf %885, %899 : vector<8x128xf32>
    %901 = vector.broadcast %15 : f32 to vector<8x128xf32>
    %902 = arith.mulf %821, %901 : vector<8x128xf32>
    %903 = vector.broadcast %16 : f32 to vector<8x128xf32>
    %904 = arith.mulf %823, %903 : vector<8x128xf32>
    %905 = arith.addf %902, %904 : vector<8x128xf32>
    %906 = vector.broadcast %17 : f32 to vector<8x128xf32>
    %907 = arith.mulf %825, %906 : vector<8x128xf32>
    %908 = arith.addf %905, %907 : vector<8x128xf32>
    %909 = vector.broadcast %53 : f32 to vector<8x128xf32>
    %910 = arith.addf %908, %909 : vector<8x128xf32>
    %cst_101 = arith.constant 0.000000e+00 : f32
    %911 = vector.broadcast %cst_101 : f32 to vector<8x128xf32>
    %912 = arith.maximumf %910, %911 : vector<8x128xf32>
    %913 = vector.broadcast %69 : f32 to vector<8x128xf32>
    %914 = arith.mulf %912, %913 : vector<8x128xf32>
    %915 = arith.addf %900, %914 : vector<8x128xf32>
    %916 = vector.broadcast %18 : f32 to vector<8x128xf32>
    %917 = arith.mulf %821, %916 : vector<8x128xf32>
    %918 = vector.broadcast %19 : f32 to vector<8x128xf32>
    %919 = arith.mulf %823, %918 : vector<8x128xf32>
    %920 = arith.addf %917, %919 : vector<8x128xf32>
    %921 = vector.broadcast %20 : f32 to vector<8x128xf32>
    %922 = arith.mulf %825, %921 : vector<8x128xf32>
    %923 = arith.addf %920, %922 : vector<8x128xf32>
    %924 = vector.broadcast %54 : f32 to vector<8x128xf32>
    %925 = arith.addf %923, %924 : vector<8x128xf32>
    %cst_102 = arith.constant 0.000000e+00 : f32
    %926 = vector.broadcast %cst_102 : f32 to vector<8x128xf32>
    %927 = arith.maximumf %925, %926 : vector<8x128xf32>
    %928 = vector.broadcast %70 : f32 to vector<8x128xf32>
    %929 = arith.mulf %927, %928 : vector<8x128xf32>
    %930 = arith.addf %915, %929 : vector<8x128xf32>
    %931 = vector.broadcast %21 : f32 to vector<8x128xf32>
    %932 = arith.mulf %821, %931 : vector<8x128xf32>
    %933 = vector.broadcast %22 : f32 to vector<8x128xf32>
    %934 = arith.mulf %823, %933 : vector<8x128xf32>
    %935 = arith.addf %932, %934 : vector<8x128xf32>
    %936 = vector.broadcast %23 : f32 to vector<8x128xf32>
    %937 = arith.mulf %825, %936 : vector<8x128xf32>
    %938 = arith.addf %935, %937 : vector<8x128xf32>
    %939 = vector.broadcast %55 : f32 to vector<8x128xf32>
    %940 = arith.addf %938, %939 : vector<8x128xf32>
    %cst_103 = arith.constant 0.000000e+00 : f32
    %941 = vector.broadcast %cst_103 : f32 to vector<8x128xf32>
    %942 = arith.maximumf %940, %941 : vector<8x128xf32>
    %943 = vector.broadcast %71 : f32 to vector<8x128xf32>
    %944 = arith.mulf %942, %943 : vector<8x128xf32>
    %945 = arith.addf %930, %944 : vector<8x128xf32>
    %946 = vector.broadcast %24 : f32 to vector<8x128xf32>
    %947 = arith.mulf %821, %946 : vector<8x128xf32>
    %948 = vector.broadcast %25 : f32 to vector<8x128xf32>
    %949 = arith.mulf %823, %948 : vector<8x128xf32>
    %950 = arith.addf %947, %949 : vector<8x128xf32>
    %951 = vector.broadcast %26 : f32 to vector<8x128xf32>
    %952 = arith.mulf %825, %951 : vector<8x128xf32>
    %953 = arith.addf %950, %952 : vector<8x128xf32>
    %954 = vector.broadcast %56 : f32 to vector<8x128xf32>
    %955 = arith.addf %953, %954 : vector<8x128xf32>
    %cst_104 = arith.constant 0.000000e+00 : f32
    %956 = vector.broadcast %cst_104 : f32 to vector<8x128xf32>
    %957 = arith.maximumf %955, %956 : vector<8x128xf32>
    %958 = vector.broadcast %72 : f32 to vector<8x128xf32>
    %959 = arith.mulf %957, %958 : vector<8x128xf32>
    %960 = arith.addf %945, %959 : vector<8x128xf32>
    %961 = vector.broadcast %27 : f32 to vector<8x128xf32>
    %962 = arith.mulf %821, %961 : vector<8x128xf32>
    %963 = vector.broadcast %28 : f32 to vector<8x128xf32>
    %964 = arith.mulf %823, %963 : vector<8x128xf32>
    %965 = arith.addf %962, %964 : vector<8x128xf32>
    %966 = vector.broadcast %29 : f32 to vector<8x128xf32>
    %967 = arith.mulf %825, %966 : vector<8x128xf32>
    %968 = arith.addf %965, %967 : vector<8x128xf32>
    %969 = vector.broadcast %57 : f32 to vector<8x128xf32>
    %970 = arith.addf %968, %969 : vector<8x128xf32>
    %cst_105 = arith.constant 0.000000e+00 : f32
    %971 = vector.broadcast %cst_105 : f32 to vector<8x128xf32>
    %972 = arith.maximumf %970, %971 : vector<8x128xf32>
    %973 = vector.broadcast %73 : f32 to vector<8x128xf32>
    %974 = arith.mulf %972, %973 : vector<8x128xf32>
    %975 = arith.addf %960, %974 : vector<8x128xf32>
    %976 = vector.broadcast %30 : f32 to vector<8x128xf32>
    %977 = arith.mulf %821, %976 : vector<8x128xf32>
    %978 = vector.broadcast %31 : f32 to vector<8x128xf32>
    %979 = arith.mulf %823, %978 : vector<8x128xf32>
    %980 = arith.addf %977, %979 : vector<8x128xf32>
    %981 = vector.broadcast %32 : f32 to vector<8x128xf32>
    %982 = arith.mulf %825, %981 : vector<8x128xf32>
    %983 = arith.addf %980, %982 : vector<8x128xf32>
    %984 = vector.broadcast %58 : f32 to vector<8x128xf32>
    %985 = arith.addf %983, %984 : vector<8x128xf32>
    %cst_106 = arith.constant 0.000000e+00 : f32
    %986 = vector.broadcast %cst_106 : f32 to vector<8x128xf32>
    %987 = arith.maximumf %985, %986 : vector<8x128xf32>
    %988 = vector.broadcast %74 : f32 to vector<8x128xf32>
    %989 = arith.mulf %987, %988 : vector<8x128xf32>
    %990 = arith.addf %975, %989 : vector<8x128xf32>
    %991 = vector.broadcast %33 : f32 to vector<8x128xf32>
    %992 = arith.mulf %821, %991 : vector<8x128xf32>
    %993 = vector.broadcast %34 : f32 to vector<8x128xf32>
    %994 = arith.mulf %823, %993 : vector<8x128xf32>
    %995 = arith.addf %992, %994 : vector<8x128xf32>
    %996 = vector.broadcast %35 : f32 to vector<8x128xf32>
    %997 = arith.mulf %825, %996 : vector<8x128xf32>
    %998 = arith.addf %995, %997 : vector<8x128xf32>
    %999 = vector.broadcast %59 : f32 to vector<8x128xf32>
    %1000 = arith.addf %998, %999 : vector<8x128xf32>
    %cst_107 = arith.constant 0.000000e+00 : f32
    %1001 = vector.broadcast %cst_107 : f32 to vector<8x128xf32>
    %1002 = arith.maximumf %1000, %1001 : vector<8x128xf32>
    %1003 = vector.broadcast %75 : f32 to vector<8x128xf32>
    %1004 = arith.mulf %1002, %1003 : vector<8x128xf32>
    %1005 = arith.addf %990, %1004 : vector<8x128xf32>
    %1006 = vector.broadcast %36 : f32 to vector<8x128xf32>
    %1007 = arith.mulf %821, %1006 : vector<8x128xf32>
    %1008 = vector.broadcast %37 : f32 to vector<8x128xf32>
    %1009 = arith.mulf %823, %1008 : vector<8x128xf32>
    %1010 = arith.addf %1007, %1009 : vector<8x128xf32>
    %1011 = vector.broadcast %38 : f32 to vector<8x128xf32>
    %1012 = arith.mulf %825, %1011 : vector<8x128xf32>
    %1013 = arith.addf %1010, %1012 : vector<8x128xf32>
    %1014 = vector.broadcast %60 : f32 to vector<8x128xf32>
    %1015 = arith.addf %1013, %1014 : vector<8x128xf32>
    %cst_108 = arith.constant 0.000000e+00 : f32
    %1016 = vector.broadcast %cst_108 : f32 to vector<8x128xf32>
    %1017 = arith.maximumf %1015, %1016 : vector<8x128xf32>
    %1018 = vector.broadcast %76 : f32 to vector<8x128xf32>
    %1019 = arith.mulf %1017, %1018 : vector<8x128xf32>
    %1020 = arith.addf %1005, %1019 : vector<8x128xf32>
    %1021 = vector.broadcast %39 : f32 to vector<8x128xf32>
    %1022 = arith.mulf %821, %1021 : vector<8x128xf32>
    %1023 = vector.broadcast %40 : f32 to vector<8x128xf32>
    %1024 = arith.mulf %823, %1023 : vector<8x128xf32>
    %1025 = arith.addf %1022, %1024 : vector<8x128xf32>
    %1026 = vector.broadcast %41 : f32 to vector<8x128xf32>
    %1027 = arith.mulf %825, %1026 : vector<8x128xf32>
    %1028 = arith.addf %1025, %1027 : vector<8x128xf32>
    %1029 = vector.broadcast %61 : f32 to vector<8x128xf32>
    %1030 = arith.addf %1028, %1029 : vector<8x128xf32>
    %cst_109 = arith.constant 0.000000e+00 : f32
    %1031 = vector.broadcast %cst_109 : f32 to vector<8x128xf32>
    %1032 = arith.maximumf %1030, %1031 : vector<8x128xf32>
    %1033 = vector.broadcast %77 : f32 to vector<8x128xf32>
    %1034 = arith.mulf %1032, %1033 : vector<8x128xf32>
    %1035 = arith.addf %1020, %1034 : vector<8x128xf32>
    %1036 = vector.broadcast %42 : f32 to vector<8x128xf32>
    %1037 = arith.mulf %821, %1036 : vector<8x128xf32>
    %1038 = vector.broadcast %43 : f32 to vector<8x128xf32>
    %1039 = arith.mulf %823, %1038 : vector<8x128xf32>
    %1040 = arith.addf %1037, %1039 : vector<8x128xf32>
    %1041 = vector.broadcast %44 : f32 to vector<8x128xf32>
    %1042 = arith.mulf %825, %1041 : vector<8x128xf32>
    %1043 = arith.addf %1040, %1042 : vector<8x128xf32>
    %1044 = vector.broadcast %62 : f32 to vector<8x128xf32>
    %1045 = arith.addf %1043, %1044 : vector<8x128xf32>
    %cst_110 = arith.constant 0.000000e+00 : f32
    %1046 = vector.broadcast %cst_110 : f32 to vector<8x128xf32>
    %1047 = arith.maximumf %1045, %1046 : vector<8x128xf32>
    %1048 = vector.broadcast %78 : f32 to vector<8x128xf32>
    %1049 = arith.mulf %1047, %1048 : vector<8x128xf32>
    %1050 = arith.addf %1035, %1049 : vector<8x128xf32>
    %1051 = vector.broadcast %45 : f32 to vector<8x128xf32>
    %1052 = arith.mulf %821, %1051 : vector<8x128xf32>
    %1053 = vector.broadcast %46 : f32 to vector<8x128xf32>
    %1054 = arith.mulf %823, %1053 : vector<8x128xf32>
    %1055 = arith.addf %1052, %1054 : vector<8x128xf32>
    %1056 = vector.broadcast %47 : f32 to vector<8x128xf32>
    %1057 = arith.mulf %825, %1056 : vector<8x128xf32>
    %1058 = arith.addf %1055, %1057 : vector<8x128xf32>
    %1059 = vector.broadcast %63 : f32 to vector<8x128xf32>
    %1060 = arith.addf %1058, %1059 : vector<8x128xf32>
    %cst_111 = arith.constant 0.000000e+00 : f32
    %1061 = vector.broadcast %cst_111 : f32 to vector<8x128xf32>
    %1062 = arith.maximumf %1060, %1061 : vector<8x128xf32>
    %1063 = vector.broadcast %79 : f32 to vector<8x128xf32>
    %1064 = arith.mulf %1062, %1063 : vector<8x128xf32>
    %1065 = arith.addf %1050, %1064 : vector<8x128xf32>
    %c0_112 = arith.constant 0 : index
    %c4_113 = arith.constant 4 : index
    %c0_114 = arith.constant 0 : index
    %c0_115 = arith.constant 0 : index
    %1066 = vector.load %arg1[%c0_112, %c4_113, %c0_114, %c0_115] : memref<1x16x8x128xf32, #tpu.memory_space<vmem>>, vector<1x1x8x128xf32>
    %1067 = vector.shape_cast %1066 : vector<1x1x8x128xf32> to vector<8x128xf32>
    %c0_116 = arith.constant 0 : index
    %c5_117 = arith.constant 5 : index
    %c0_118 = arith.constant 0 : index
    %c0_119 = arith.constant 0 : index
    %1068 = vector.load %arg1[%c0_116, %c5_117, %c0_118, %c0_119] : memref<1x16x8x128xf32, #tpu.memory_space<vmem>>, vector<1x1x8x128xf32>
    %1069 = vector.shape_cast %1068 : vector<1x1x8x128xf32> to vector<8x128xf32>
    %c0_120 = arith.constant 0 : index
    %c6_121 = arith.constant 6 : index
    %c0_122 = arith.constant 0 : index
    %c0_123 = arith.constant 0 : index
    %1070 = vector.load %arg1[%c0_120, %c6_121, %c0_122, %c0_123] : memref<1x16x8x128xf32, #tpu.memory_space<vmem>>, vector<1x1x8x128xf32>
    %1071 = vector.shape_cast %1070 : vector<1x1x8x128xf32> to vector<8x128xf32>
    %1072 = vector.broadcast %0 : f32 to vector<8x128xf32>
    %1073 = arith.mulf %1067, %1072 : vector<8x128xf32>
    %1074 = vector.broadcast %1 : f32 to vector<8x128xf32>
    %1075 = arith.mulf %1069, %1074 : vector<8x128xf32>
    %1076 = arith.addf %1073, %1075 : vector<8x128xf32>
    %1077 = vector.broadcast %2 : f32 to vector<8x128xf32>
    %1078 = arith.mulf %1071, %1077 : vector<8x128xf32>
    %1079 = arith.addf %1076, %1078 : vector<8x128xf32>
    %1080 = vector.broadcast %48 : f32 to vector<8x128xf32>
    %1081 = arith.addf %1079, %1080 : vector<8x128xf32>
    %cst_124 = arith.constant 0.000000e+00 : f32
    %1082 = vector.broadcast %cst_124 : f32 to vector<8x128xf32>
    %1083 = arith.maximumf %1081, %1082 : vector<8x128xf32>
    %1084 = vector.broadcast %64 : f32 to vector<8x128xf32>
    %1085 = arith.mulf %1083, %1084 : vector<8x128xf32>
    %1086 = arith.addf %1065, %1085 : vector<8x128xf32>
    %1087 = vector.broadcast %3 : f32 to vector<8x128xf32>
    %1088 = arith.mulf %1067, %1087 : vector<8x128xf32>
    %1089 = vector.broadcast %4 : f32 to vector<8x128xf32>
    %1090 = arith.mulf %1069, %1089 : vector<8x128xf32>
    %1091 = arith.addf %1088, %1090 : vector<8x128xf32>
    %1092 = vector.broadcast %5 : f32 to vector<8x128xf32>
    %1093 = arith.mulf %1071, %1092 : vector<8x128xf32>
    %1094 = arith.addf %1091, %1093 : vector<8x128xf32>
    %1095 = vector.broadcast %49 : f32 to vector<8x128xf32>
    %1096 = arith.addf %1094, %1095 : vector<8x128xf32>
    %cst_125 = arith.constant 0.000000e+00 : f32
    %1097 = vector.broadcast %cst_125 : f32 to vector<8x128xf32>
    %1098 = arith.maximumf %1096, %1097 : vector<8x128xf32>
    %1099 = vector.broadcast %65 : f32 to vector<8x128xf32>
    %1100 = arith.mulf %1098, %1099 : vector<8x128xf32>
    %1101 = arith.addf %1086, %1100 : vector<8x128xf32>
    %1102 = vector.broadcast %6 : f32 to vector<8x128xf32>
    %1103 = arith.mulf %1067, %1102 : vector<8x128xf32>
    %1104 = vector.broadcast %7 : f32 to vector<8x128xf32>
    %1105 = arith.mulf %1069, %1104 : vector<8x128xf32>
    %1106 = arith.addf %1103, %1105 : vector<8x128xf32>
    %1107 = vector.broadcast %8 : f32 to vector<8x128xf32>
    %1108 = arith.mulf %1071, %1107 : vector<8x128xf32>
    %1109 = arith.addf %1106, %1108 : vector<8x128xf32>
    %1110 = vector.broadcast %50 : f32 to vector<8x128xf32>
    %1111 = arith.addf %1109, %1110 : vector<8x128xf32>
    %cst_126 = arith.constant 0.000000e+00 : f32
    %1112 = vector.broadcast %cst_126 : f32 to vector<8x128xf32>
    %1113 = arith.maximumf %1111, %1112 : vector<8x128xf32>
    %1114 = vector.broadcast %66 : f32 to vector<8x128xf32>
    %1115 = arith.mulf %1113, %1114 : vector<8x128xf32>
    %1116 = arith.addf %1101, %1115 : vector<8x128xf32>
    %1117 = vector.broadcast %9 : f32 to vector<8x128xf32>
    %1118 = arith.mulf %1067, %1117 : vector<8x128xf32>
    %1119 = vector.broadcast %10 : f32 to vector<8x128xf32>
    %1120 = arith.mulf %1069, %1119 : vector<8x128xf32>
    %1121 = arith.addf %1118, %1120 : vector<8x128xf32>
    %1122 = vector.broadcast %11 : f32 to vector<8x128xf32>
    %1123 = arith.mulf %1071, %1122 : vector<8x128xf32>
    %1124 = arith.addf %1121, %1123 : vector<8x128xf32>
    %1125 = vector.broadcast %51 : f32 to vector<8x128xf32>
    %1126 = arith.addf %1124, %1125 : vector<8x128xf32>
    %cst_127 = arith.constant 0.000000e+00 : f32
    %1127 = vector.broadcast %cst_127 : f32 to vector<8x128xf32>
    %1128 = arith.maximumf %1126, %1127 : vector<8x128xf32>
    %1129 = vector.broadcast %67 : f32 to vector<8x128xf32>
    %1130 = arith.mulf %1128, %1129 : vector<8x128xf32>
    %1131 = arith.addf %1116, %1130 : vector<8x128xf32>
    %1132 = vector.broadcast %12 : f32 to vector<8x128xf32>
    %1133 = arith.mulf %1067, %1132 : vector<8x128xf32>
    %1134 = vector.broadcast %13 : f32 to vector<8x128xf32>
    %1135 = arith.mulf %1069, %1134 : vector<8x128xf32>
    %1136 = arith.addf %1133, %1135 : vector<8x128xf32>
    %1137 = vector.broadcast %14 : f32 to vector<8x128xf32>
    %1138 = arith.mulf %1071, %1137 : vector<8x128xf32>
    %1139 = arith.addf %1136, %1138 : vector<8x128xf32>
    %1140 = vector.broadcast %52 : f32 to vector<8x128xf32>
    %1141 = arith.addf %1139, %1140 : vector<8x128xf32>
    %cst_128 = arith.constant 0.000000e+00 : f32
    %1142 = vector.broadcast %cst_128 : f32 to vector<8x128xf32>
    %1143 = arith.maximumf %1141, %1142 : vector<8x128xf32>
    %1144 = vector.broadcast %68 : f32 to vector<8x128xf32>
    %1145 = arith.mulf %1143, %1144 : vector<8x128xf32>
    %1146 = arith.addf %1131, %1145 : vector<8x128xf32>
    %1147 = vector.broadcast %15 : f32 to vector<8x128xf32>
    %1148 = arith.mulf %1067, %1147 : vector<8x128xf32>
    %1149 = vector.broadcast %16 : f32 to vector<8x128xf32>
    %1150 = arith.mulf %1069, %1149 : vector<8x128xf32>
    %1151 = arith.addf %1148, %1150 : vector<8x128xf32>
    %1152 = vector.broadcast %17 : f32 to vector<8x128xf32>
    %1153 = arith.mulf %1071, %1152 : vector<8x128xf32>
    %1154 = arith.addf %1151, %1153 : vector<8x128xf32>
    %1155 = vector.broadcast %53 : f32 to vector<8x128xf32>
    %1156 = arith.addf %1154, %1155 : vector<8x128xf32>
    %cst_129 = arith.constant 0.000000e+00 : f32
    %1157 = vector.broadcast %cst_129 : f32 to vector<8x128xf32>
    %1158 = arith.maximumf %1156, %1157 : vector<8x128xf32>
    %1159 = vector.broadcast %69 : f32 to vector<8x128xf32>
    %1160 = arith.mulf %1158, %1159 : vector<8x128xf32>
    %1161 = arith.addf %1146, %1160 : vector<8x128xf32>
    %1162 = vector.broadcast %18 : f32 to vector<8x128xf32>
    %1163 = arith.mulf %1067, %1162 : vector<8x128xf32>
    %1164 = vector.broadcast %19 : f32 to vector<8x128xf32>
    %1165 = arith.mulf %1069, %1164 : vector<8x128xf32>
    %1166 = arith.addf %1163, %1165 : vector<8x128xf32>
    %1167 = vector.broadcast %20 : f32 to vector<8x128xf32>
    %1168 = arith.mulf %1071, %1167 : vector<8x128xf32>
    %1169 = arith.addf %1166, %1168 : vector<8x128xf32>
    %1170 = vector.broadcast %54 : f32 to vector<8x128xf32>
    %1171 = arith.addf %1169, %1170 : vector<8x128xf32>
    %cst_130 = arith.constant 0.000000e+00 : f32
    %1172 = vector.broadcast %cst_130 : f32 to vector<8x128xf32>
    %1173 = arith.maximumf %1171, %1172 : vector<8x128xf32>
    %1174 = vector.broadcast %70 : f32 to vector<8x128xf32>
    %1175 = arith.mulf %1173, %1174 : vector<8x128xf32>
    %1176 = arith.addf %1161, %1175 : vector<8x128xf32>
    %1177 = vector.broadcast %21 : f32 to vector<8x128xf32>
    %1178 = arith.mulf %1067, %1177 : vector<8x128xf32>
    %1179 = vector.broadcast %22 : f32 to vector<8x128xf32>
    %1180 = arith.mulf %1069, %1179 : vector<8x128xf32>
    %1181 = arith.addf %1178, %1180 : vector<8x128xf32>
    %1182 = vector.broadcast %23 : f32 to vector<8x128xf32>
    %1183 = arith.mulf %1071, %1182 : vector<8x128xf32>
    %1184 = arith.addf %1181, %1183 : vector<8x128xf32>
    %1185 = vector.broadcast %55 : f32 to vector<8x128xf32>
    %1186 = arith.addf %1184, %1185 : vector<8x128xf32>
    %cst_131 = arith.constant 0.000000e+00 : f32
    %1187 = vector.broadcast %cst_131 : f32 to vector<8x128xf32>
    %1188 = arith.maximumf %1186, %1187 : vector<8x128xf32>
    %1189 = vector.broadcast %71 : f32 to vector<8x128xf32>
    %1190 = arith.mulf %1188, %1189 : vector<8x128xf32>
    %1191 = arith.addf %1176, %1190 : vector<8x128xf32>
    %1192 = vector.broadcast %24 : f32 to vector<8x128xf32>
    %1193 = arith.mulf %1067, %1192 : vector<8x128xf32>
    %1194 = vector.broadcast %25 : f32 to vector<8x128xf32>
    %1195 = arith.mulf %1069, %1194 : vector<8x128xf32>
    %1196 = arith.addf %1193, %1195 : vector<8x128xf32>
    %1197 = vector.broadcast %26 : f32 to vector<8x128xf32>
    %1198 = arith.mulf %1071, %1197 : vector<8x128xf32>
    %1199 = arith.addf %1196, %1198 : vector<8x128xf32>
    %1200 = vector.broadcast %56 : f32 to vector<8x128xf32>
    %1201 = arith.addf %1199, %1200 : vector<8x128xf32>
    %cst_132 = arith.constant 0.000000e+00 : f32
    %1202 = vector.broadcast %cst_132 : f32 to vector<8x128xf32>
    %1203 = arith.maximumf %1201, %1202 : vector<8x128xf32>
    %1204 = vector.broadcast %72 : f32 to vector<8x128xf32>
    %1205 = arith.mulf %1203, %1204 : vector<8x128xf32>
    %1206 = arith.addf %1191, %1205 : vector<8x128xf32>
    %1207 = vector.broadcast %27 : f32 to vector<8x128xf32>
    %1208 = arith.mulf %1067, %1207 : vector<8x128xf32>
    %1209 = vector.broadcast %28 : f32 to vector<8x128xf32>
    %1210 = arith.mulf %1069, %1209 : vector<8x128xf32>
    %1211 = arith.addf %1208, %1210 : vector<8x128xf32>
    %1212 = vector.broadcast %29 : f32 to vector<8x128xf32>
    %1213 = arith.mulf %1071, %1212 : vector<8x128xf32>
    %1214 = arith.addf %1211, %1213 : vector<8x128xf32>
    %1215 = vector.broadcast %57 : f32 to vector<8x128xf32>
    %1216 = arith.addf %1214, %1215 : vector<8x128xf32>
    %cst_133 = arith.constant 0.000000e+00 : f32
    %1217 = vector.broadcast %cst_133 : f32 to vector<8x128xf32>
    %1218 = arith.maximumf %1216, %1217 : vector<8x128xf32>
    %1219 = vector.broadcast %73 : f32 to vector<8x128xf32>
    %1220 = arith.mulf %1218, %1219 : vector<8x128xf32>
    %1221 = arith.addf %1206, %1220 : vector<8x128xf32>
    %1222 = vector.broadcast %30 : f32 to vector<8x128xf32>
    %1223 = arith.mulf %1067, %1222 : vector<8x128xf32>
    %1224 = vector.broadcast %31 : f32 to vector<8x128xf32>
    %1225 = arith.mulf %1069, %1224 : vector<8x128xf32>
    %1226 = arith.addf %1223, %1225 : vector<8x128xf32>
    %1227 = vector.broadcast %32 : f32 to vector<8x128xf32>
    %1228 = arith.mulf %1071, %1227 : vector<8x128xf32>
    %1229 = arith.addf %1226, %1228 : vector<8x128xf32>
    %1230 = vector.broadcast %58 : f32 to vector<8x128xf32>
    %1231 = arith.addf %1229, %1230 : vector<8x128xf32>
    %cst_134 = arith.constant 0.000000e+00 : f32
    %1232 = vector.broadcast %cst_134 : f32 to vector<8x128xf32>
    %1233 = arith.maximumf %1231, %1232 : vector<8x128xf32>
    %1234 = vector.broadcast %74 : f32 to vector<8x128xf32>
    %1235 = arith.mulf %1233, %1234 : vector<8x128xf32>
    %1236 = arith.addf %1221, %1235 : vector<8x128xf32>
    %1237 = vector.broadcast %33 : f32 to vector<8x128xf32>
    %1238 = arith.mulf %1067, %1237 : vector<8x128xf32>
    %1239 = vector.broadcast %34 : f32 to vector<8x128xf32>
    %1240 = arith.mulf %1069, %1239 : vector<8x128xf32>
    %1241 = arith.addf %1238, %1240 : vector<8x128xf32>
    %1242 = vector.broadcast %35 : f32 to vector<8x128xf32>
    %1243 = arith.mulf %1071, %1242 : vector<8x128xf32>
    %1244 = arith.addf %1241, %1243 : vector<8x128xf32>
    %1245 = vector.broadcast %59 : f32 to vector<8x128xf32>
    %1246 = arith.addf %1244, %1245 : vector<8x128xf32>
    %cst_135 = arith.constant 0.000000e+00 : f32
    %1247 = vector.broadcast %cst_135 : f32 to vector<8x128xf32>
    %1248 = arith.maximumf %1246, %1247 : vector<8x128xf32>
    %1249 = vector.broadcast %75 : f32 to vector<8x128xf32>
    %1250 = arith.mulf %1248, %1249 : vector<8x128xf32>
    %1251 = arith.addf %1236, %1250 : vector<8x128xf32>
    %1252 = vector.broadcast %36 : f32 to vector<8x128xf32>
    %1253 = arith.mulf %1067, %1252 : vector<8x128xf32>
    %1254 = vector.broadcast %37 : f32 to vector<8x128xf32>
    %1255 = arith.mulf %1069, %1254 : vector<8x128xf32>
    %1256 = arith.addf %1253, %1255 : vector<8x128xf32>
    %1257 = vector.broadcast %38 : f32 to vector<8x128xf32>
    %1258 = arith.mulf %1071, %1257 : vector<8x128xf32>
    %1259 = arith.addf %1256, %1258 : vector<8x128xf32>
    %1260 = vector.broadcast %60 : f32 to vector<8x128xf32>
    %1261 = arith.addf %1259, %1260 : vector<8x128xf32>
    %cst_136 = arith.constant 0.000000e+00 : f32
    %1262 = vector.broadcast %cst_136 : f32 to vector<8x128xf32>
    %1263 = arith.maximumf %1261, %1262 : vector<8x128xf32>
    %1264 = vector.broadcast %76 : f32 to vector<8x128xf32>
    %1265 = arith.mulf %1263, %1264 : vector<8x128xf32>
    %1266 = arith.addf %1251, %1265 : vector<8x128xf32>
    %1267 = vector.broadcast %39 : f32 to vector<8x128xf32>
    %1268 = arith.mulf %1067, %1267 : vector<8x128xf32>
    %1269 = vector.broadcast %40 : f32 to vector<8x128xf32>
    %1270 = arith.mulf %1069, %1269 : vector<8x128xf32>
    %1271 = arith.addf %1268, %1270 : vector<8x128xf32>
    %1272 = vector.broadcast %41 : f32 to vector<8x128xf32>
    %1273 = arith.mulf %1071, %1272 : vector<8x128xf32>
    %1274 = arith.addf %1271, %1273 : vector<8x128xf32>
    %1275 = vector.broadcast %61 : f32 to vector<8x128xf32>
    %1276 = arith.addf %1274, %1275 : vector<8x128xf32>
    %cst_137 = arith.constant 0.000000e+00 : f32
    %1277 = vector.broadcast %cst_137 : f32 to vector<8x128xf32>
    %1278 = arith.maximumf %1276, %1277 : vector<8x128xf32>
    %1279 = vector.broadcast %77 : f32 to vector<8x128xf32>
    %1280 = arith.mulf %1278, %1279 : vector<8x128xf32>
    %1281 = arith.addf %1266, %1280 : vector<8x128xf32>
    %1282 = vector.broadcast %42 : f32 to vector<8x128xf32>
    %1283 = arith.mulf %1067, %1282 : vector<8x128xf32>
    %1284 = vector.broadcast %43 : f32 to vector<8x128xf32>
    %1285 = arith.mulf %1069, %1284 : vector<8x128xf32>
    %1286 = arith.addf %1283, %1285 : vector<8x128xf32>
    %1287 = vector.broadcast %44 : f32 to vector<8x128xf32>
    %1288 = arith.mulf %1071, %1287 : vector<8x128xf32>
    %1289 = arith.addf %1286, %1288 : vector<8x128xf32>
    %1290 = vector.broadcast %62 : f32 to vector<8x128xf32>
    %1291 = arith.addf %1289, %1290 : vector<8x128xf32>
    %cst_138 = arith.constant 0.000000e+00 : f32
    %1292 = vector.broadcast %cst_138 : f32 to vector<8x128xf32>
    %1293 = arith.maximumf %1291, %1292 : vector<8x128xf32>
    %1294 = vector.broadcast %78 : f32 to vector<8x128xf32>
    %1295 = arith.mulf %1293, %1294 : vector<8x128xf32>
    %1296 = arith.addf %1281, %1295 : vector<8x128xf32>
    %1297 = vector.broadcast %45 : f32 to vector<8x128xf32>
    %1298 = arith.mulf %1067, %1297 : vector<8x128xf32>
    %1299 = vector.broadcast %46 : f32 to vector<8x128xf32>
    %1300 = arith.mulf %1069, %1299 : vector<8x128xf32>
    %1301 = arith.addf %1298, %1300 : vector<8x128xf32>
    %1302 = vector.broadcast %47 : f32 to vector<8x128xf32>
    %1303 = arith.mulf %1071, %1302 : vector<8x128xf32>
    %1304 = arith.addf %1301, %1303 : vector<8x128xf32>
    %1305 = vector.broadcast %63 : f32 to vector<8x128xf32>
    %1306 = arith.addf %1304, %1305 : vector<8x128xf32>
    %cst_139 = arith.constant 0.000000e+00 : f32
    %1307 = vector.broadcast %cst_139 : f32 to vector<8x128xf32>
    %1308 = arith.maximumf %1306, %1307 : vector<8x128xf32>
    %1309 = vector.broadcast %79 : f32 to vector<8x128xf32>
    %1310 = arith.mulf %1308, %1309 : vector<8x128xf32>
    %1311 = arith.addf %1296, %1310 : vector<8x128xf32>
    %c0_140 = arith.constant 0 : index
    %c5_141 = arith.constant 5 : index
    %c0_142 = arith.constant 0 : index
    %c0_143 = arith.constant 0 : index
    %1312 = vector.load %arg1[%c0_140, %c5_141, %c0_142, %c0_143] : memref<1x16x8x128xf32, #tpu.memory_space<vmem>>, vector<1x1x8x128xf32>
    %1313 = vector.shape_cast %1312 : vector<1x1x8x128xf32> to vector<8x128xf32>
    %c0_144 = arith.constant 0 : index
    %c6_145 = arith.constant 6 : index
    %c0_146 = arith.constant 0 : index
    %c0_147 = arith.constant 0 : index
    %1314 = vector.load %arg1[%c0_144, %c6_145, %c0_146, %c0_147] : memref<1x16x8x128xf32, #tpu.memory_space<vmem>>, vector<1x1x8x128xf32>
    %1315 = vector.shape_cast %1314 : vector<1x1x8x128xf32> to vector<8x128xf32>
    %c0_148 = arith.constant 0 : index
    %c7_149 = arith.constant 7 : index
    %c0_150 = arith.constant 0 : index
    %c0_151 = arith.constant 0 : index
    %1316 = vector.load %arg1[%c0_148, %c7_149, %c0_150, %c0_151] : memref<1x16x8x128xf32, #tpu.memory_space<vmem>>, vector<1x1x8x128xf32>
    %1317 = vector.shape_cast %1316 : vector<1x1x8x128xf32> to vector<8x128xf32>
    %1318 = vector.broadcast %0 : f32 to vector<8x128xf32>
    %1319 = arith.mulf %1313, %1318 : vector<8x128xf32>
    %1320 = vector.broadcast %1 : f32 to vector<8x128xf32>
    %1321 = arith.mulf %1315, %1320 : vector<8x128xf32>
    %1322 = arith.addf %1319, %1321 : vector<8x128xf32>
    %1323 = vector.broadcast %2 : f32 to vector<8x128xf32>
    %1324 = arith.mulf %1317, %1323 : vector<8x128xf32>
    %1325 = arith.addf %1322, %1324 : vector<8x128xf32>
    %1326 = vector.broadcast %48 : f32 to vector<8x128xf32>
    %1327 = arith.addf %1325, %1326 : vector<8x128xf32>
    %cst_152 = arith.constant 0.000000e+00 : f32
    %1328 = vector.broadcast %cst_152 : f32 to vector<8x128xf32>
    %1329 = arith.maximumf %1327, %1328 : vector<8x128xf32>
    %1330 = vector.broadcast %64 : f32 to vector<8x128xf32>
    %1331 = arith.mulf %1329, %1330 : vector<8x128xf32>
    %1332 = arith.addf %1311, %1331 : vector<8x128xf32>
    %1333 = vector.broadcast %3 : f32 to vector<8x128xf32>
    %1334 = arith.mulf %1313, %1333 : vector<8x128xf32>
    %1335 = vector.broadcast %4 : f32 to vector<8x128xf32>
    %1336 = arith.mulf %1315, %1335 : vector<8x128xf32>
    %1337 = arith.addf %1334, %1336 : vector<8x128xf32>
    %1338 = vector.broadcast %5 : f32 to vector<8x128xf32>
    %1339 = arith.mulf %1317, %1338 : vector<8x128xf32>
    %1340 = arith.addf %1337, %1339 : vector<8x128xf32>
    %1341 = vector.broadcast %49 : f32 to vector<8x128xf32>
    %1342 = arith.addf %1340, %1341 : vector<8x128xf32>
    %cst_153 = arith.constant 0.000000e+00 : f32
    %1343 = vector.broadcast %cst_153 : f32 to vector<8x128xf32>
    %1344 = arith.maximumf %1342, %1343 : vector<8x128xf32>
    %1345 = vector.broadcast %65 : f32 to vector<8x128xf32>
    %1346 = arith.mulf %1344, %1345 : vector<8x128xf32>
    %1347 = arith.addf %1332, %1346 : vector<8x128xf32>
    %1348 = vector.broadcast %6 : f32 to vector<8x128xf32>
    %1349 = arith.mulf %1313, %1348 : vector<8x128xf32>
    %1350 = vector.broadcast %7 : f32 to vector<8x128xf32>
    %1351 = arith.mulf %1315, %1350 : vector<8x128xf32>
    %1352 = arith.addf %1349, %1351 : vector<8x128xf32>
    %1353 = vector.broadcast %8 : f32 to vector<8x128xf32>
    %1354 = arith.mulf %1317, %1353 : vector<8x128xf32>
    %1355 = arith.addf %1352, %1354 : vector<8x128xf32>
    %1356 = vector.broadcast %50 : f32 to vector<8x128xf32>
    %1357 = arith.addf %1355, %1356 : vector<8x128xf32>
    %cst_154 = arith.constant 0.000000e+00 : f32
    %1358 = vector.broadcast %cst_154 : f32 to vector<8x128xf32>
    %1359 = arith.maximumf %1357, %1358 : vector<8x128xf32>
    %1360 = vector.broadcast %66 : f32 to vector<8x128xf32>
    %1361 = arith.mulf %1359, %1360 : vector<8x128xf32>
    %1362 = arith.addf %1347, %1361 : vector<8x128xf32>
    %1363 = vector.broadcast %9 : f32 to vector<8x128xf32>
    %1364 = arith.mulf %1313, %1363 : vector<8x128xf32>
    %1365 = vector.broadcast %10 : f32 to vector<8x128xf32>
    %1366 = arith.mulf %1315, %1365 : vector<8x128xf32>
    %1367 = arith.addf %1364, %1366 : vector<8x128xf32>
    %1368 = vector.broadcast %11 : f32 to vector<8x128xf32>
    %1369 = arith.mulf %1317, %1368 : vector<8x128xf32>
    %1370 = arith.addf %1367, %1369 : vector<8x128xf32>
    %1371 = vector.broadcast %51 : f32 to vector<8x128xf32>
    %1372 = arith.addf %1370, %1371 : vector<8x128xf32>
    %cst_155 = arith.constant 0.000000e+00 : f32
    %1373 = vector.broadcast %cst_155 : f32 to vector<8x128xf32>
    %1374 = arith.maximumf %1372, %1373 : vector<8x128xf32>
    %1375 = vector.broadcast %67 : f32 to vector<8x128xf32>
    %1376 = arith.mulf %1374, %1375 : vector<8x128xf32>
    %1377 = arith.addf %1362, %1376 : vector<8x128xf32>
    %1378 = vector.broadcast %12 : f32 to vector<8x128xf32>
    %1379 = arith.mulf %1313, %1378 : vector<8x128xf32>
    %1380 = vector.broadcast %13 : f32 to vector<8x128xf32>
    %1381 = arith.mulf %1315, %1380 : vector<8x128xf32>
    %1382 = arith.addf %1379, %1381 : vector<8x128xf32>
    %1383 = vector.broadcast %14 : f32 to vector<8x128xf32>
    %1384 = arith.mulf %1317, %1383 : vector<8x128xf32>
    %1385 = arith.addf %1382, %1384 : vector<8x128xf32>
    %1386 = vector.broadcast %52 : f32 to vector<8x128xf32>
    %1387 = arith.addf %1385, %1386 : vector<8x128xf32>
    %cst_156 = arith.constant 0.000000e+00 : f32
    %1388 = vector.broadcast %cst_156 : f32 to vector<8x128xf32>
    %1389 = arith.maximumf %1387, %1388 : vector<8x128xf32>
    %1390 = vector.broadcast %68 : f32 to vector<8x128xf32>
    %1391 = arith.mulf %1389, %1390 : vector<8x128xf32>
    %1392 = arith.addf %1377, %1391 : vector<8x128xf32>
    %1393 = vector.broadcast %15 : f32 to vector<8x128xf32>
    %1394 = arith.mulf %1313, %1393 : vector<8x128xf32>
    %1395 = vector.broadcast %16 : f32 to vector<8x128xf32>
    %1396 = arith.mulf %1315, %1395 : vector<8x128xf32>
    %1397 = arith.addf %1394, %1396 : vector<8x128xf32>
    %1398 = vector.broadcast %17 : f32 to vector<8x128xf32>
    %1399 = arith.mulf %1317, %1398 : vector<8x128xf32>
    %1400 = arith.addf %1397, %1399 : vector<8x128xf32>
    %1401 = vector.broadcast %53 : f32 to vector<8x128xf32>
    %1402 = arith.addf %1400, %1401 : vector<8x128xf32>
    %cst_157 = arith.constant 0.000000e+00 : f32
    %1403 = vector.broadcast %cst_157 : f32 to vector<8x128xf32>
    %1404 = arith.maximumf %1402, %1403 : vector<8x128xf32>
    %1405 = vector.broadcast %69 : f32 to vector<8x128xf32>
    %1406 = arith.mulf %1404, %1405 : vector<8x128xf32>
    %1407 = arith.addf %1392, %1406 : vector<8x128xf32>
    %1408 = vector.broadcast %18 : f32 to vector<8x128xf32>
    %1409 = arith.mulf %1313, %1408 : vector<8x128xf32>
    %1410 = vector.broadcast %19 : f32 to vector<8x128xf32>
    %1411 = arith.mulf %1315, %1410 : vector<8x128xf32>
    %1412 = arith.addf %1409, %1411 : vector<8x128xf32>
    %1413 = vector.broadcast %20 : f32 to vector<8x128xf32>
    %1414 = arith.mulf %1317, %1413 : vector<8x128xf32>
    %1415 = arith.addf %1412, %1414 : vector<8x128xf32>
    %1416 = vector.broadcast %54 : f32 to vector<8x128xf32>
    %1417 = arith.addf %1415, %1416 : vector<8x128xf32>
    %cst_158 = arith.constant 0.000000e+00 : f32
    %1418 = vector.broadcast %cst_158 : f32 to vector<8x128xf32>
    %1419 = arith.maximumf %1417, %1418 : vector<8x128xf32>
    %1420 = vector.broadcast %70 : f32 to vector<8x128xf32>
    %1421 = arith.mulf %1419, %1420 : vector<8x128xf32>
    %1422 = arith.addf %1407, %1421 : vector<8x128xf32>
    %1423 = vector.broadcast %21 : f32 to vector<8x128xf32>
    %1424 = arith.mulf %1313, %1423 : vector<8x128xf32>
    %1425 = vector.broadcast %22 : f32 to vector<8x128xf32>
    %1426 = arith.mulf %1315, %1425 : vector<8x128xf32>
    %1427 = arith.addf %1424, %1426 : vector<8x128xf32>
    %1428 = vector.broadcast %23 : f32 to vector<8x128xf32>
    %1429 = arith.mulf %1317, %1428 : vector<8x128xf32>
    %1430 = arith.addf %1427, %1429 : vector<8x128xf32>
    %1431 = vector.broadcast %55 : f32 to vector<8x128xf32>
    %1432 = arith.addf %1430, %1431 : vector<8x128xf32>
    %cst_159 = arith.constant 0.000000e+00 : f32
    %1433 = vector.broadcast %cst_159 : f32 to vector<8x128xf32>
    %1434 = arith.maximumf %1432, %1433 : vector<8x128xf32>
    %1435 = vector.broadcast %71 : f32 to vector<8x128xf32>
    %1436 = arith.mulf %1434, %1435 : vector<8x128xf32>
    %1437 = arith.addf %1422, %1436 : vector<8x128xf32>
    %1438 = vector.broadcast %24 : f32 to vector<8x128xf32>
    %1439 = arith.mulf %1313, %1438 : vector<8x128xf32>
    %1440 = vector.broadcast %25 : f32 to vector<8x128xf32>
    %1441 = arith.mulf %1315, %1440 : vector<8x128xf32>
    %1442 = arith.addf %1439, %1441 : vector<8x128xf32>
    %1443 = vector.broadcast %26 : f32 to vector<8x128xf32>
    %1444 = arith.mulf %1317, %1443 : vector<8x128xf32>
    %1445 = arith.addf %1442, %1444 : vector<8x128xf32>
    %1446 = vector.broadcast %56 : f32 to vector<8x128xf32>
    %1447 = arith.addf %1445, %1446 : vector<8x128xf32>
    %cst_160 = arith.constant 0.000000e+00 : f32
    %1448 = vector.broadcast %cst_160 : f32 to vector<8x128xf32>
    %1449 = arith.maximumf %1447, %1448 : vector<8x128xf32>
    %1450 = vector.broadcast %72 : f32 to vector<8x128xf32>
    %1451 = arith.mulf %1449, %1450 : vector<8x128xf32>
    %1452 = arith.addf %1437, %1451 : vector<8x128xf32>
    %1453 = vector.broadcast %27 : f32 to vector<8x128xf32>
    %1454 = arith.mulf %1313, %1453 : vector<8x128xf32>
    %1455 = vector.broadcast %28 : f32 to vector<8x128xf32>
    %1456 = arith.mulf %1315, %1455 : vector<8x128xf32>
    %1457 = arith.addf %1454, %1456 : vector<8x128xf32>
    %1458 = vector.broadcast %29 : f32 to vector<8x128xf32>
    %1459 = arith.mulf %1317, %1458 : vector<8x128xf32>
    %1460 = arith.addf %1457, %1459 : vector<8x128xf32>
    %1461 = vector.broadcast %57 : f32 to vector<8x128xf32>
    %1462 = arith.addf %1460, %1461 : vector<8x128xf32>
    %cst_161 = arith.constant 0.000000e+00 : f32
    %1463 = vector.broadcast %cst_161 : f32 to vector<8x128xf32>
    %1464 = arith.maximumf %1462, %1463 : vector<8x128xf32>
    %1465 = vector.broadcast %73 : f32 to vector<8x128xf32>
    %1466 = arith.mulf %1464, %1465 : vector<8x128xf32>
    %1467 = arith.addf %1452, %1466 : vector<8x128xf32>
    %1468 = vector.broadcast %30 : f32 to vector<8x128xf32>
    %1469 = arith.mulf %1313, %1468 : vector<8x128xf32>
    %1470 = vector.broadcast %31 : f32 to vector<8x128xf32>
    %1471 = arith.mulf %1315, %1470 : vector<8x128xf32>
    %1472 = arith.addf %1469, %1471 : vector<8x128xf32>
    %1473 = vector.broadcast %32 : f32 to vector<8x128xf32>
    %1474 = arith.mulf %1317, %1473 : vector<8x128xf32>
    %1475 = arith.addf %1472, %1474 : vector<8x128xf32>
    %1476 = vector.broadcast %58 : f32 to vector<8x128xf32>
    %1477 = arith.addf %1475, %1476 : vector<8x128xf32>
    %cst_162 = arith.constant 0.000000e+00 : f32
    %1478 = vector.broadcast %cst_162 : f32 to vector<8x128xf32>
    %1479 = arith.maximumf %1477, %1478 : vector<8x128xf32>
    %1480 = vector.broadcast %74 : f32 to vector<8x128xf32>
    %1481 = arith.mulf %1479, %1480 : vector<8x128xf32>
    %1482 = arith.addf %1467, %1481 : vector<8x128xf32>
    %1483 = vector.broadcast %33 : f32 to vector<8x128xf32>
    %1484 = arith.mulf %1313, %1483 : vector<8x128xf32>
    %1485 = vector.broadcast %34 : f32 to vector<8x128xf32>
    %1486 = arith.mulf %1315, %1485 : vector<8x128xf32>
    %1487 = arith.addf %1484, %1486 : vector<8x128xf32>
    %1488 = vector.broadcast %35 : f32 to vector<8x128xf32>
    %1489 = arith.mulf %1317, %1488 : vector<8x128xf32>
    %1490 = arith.addf %1487, %1489 : vector<8x128xf32>
    %1491 = vector.broadcast %59 : f32 to vector<8x128xf32>
    %1492 = arith.addf %1490, %1491 : vector<8x128xf32>
    %cst_163 = arith.constant 0.000000e+00 : f32
    %1493 = vector.broadcast %cst_163 : f32 to vector<8x128xf32>
    %1494 = arith.maximumf %1492, %1493 : vector<8x128xf32>
    %1495 = vector.broadcast %75 : f32 to vector<8x128xf32>
    %1496 = arith.mulf %1494, %1495 : vector<8x128xf32>
    %1497 = arith.addf %1482, %1496 : vector<8x128xf32>
    %1498 = vector.broadcast %36 : f32 to vector<8x128xf32>
    %1499 = arith.mulf %1313, %1498 : vector<8x128xf32>
    %1500 = vector.broadcast %37 : f32 to vector<8x128xf32>
    %1501 = arith.mulf %1315, %1500 : vector<8x128xf32>
    %1502 = arith.addf %1499, %1501 : vector<8x128xf32>
    %1503 = vector.broadcast %38 : f32 to vector<8x128xf32>
    %1504 = arith.mulf %1317, %1503 : vector<8x128xf32>
    %1505 = arith.addf %1502, %1504 : vector<8x128xf32>
    %1506 = vector.broadcast %60 : f32 to vector<8x128xf32>
    %1507 = arith.addf %1505, %1506 : vector<8x128xf32>
    %cst_164 = arith.constant 0.000000e+00 : f32
    %1508 = vector.broadcast %cst_164 : f32 to vector<8x128xf32>
    %1509 = arith.maximumf %1507, %1508 : vector<8x128xf32>
    %1510 = vector.broadcast %76 : f32 to vector<8x128xf32>
    %1511 = arith.mulf %1509, %1510 : vector<8x128xf32>
    %1512 = arith.addf %1497, %1511 : vector<8x128xf32>
    %1513 = vector.broadcast %39 : f32 to vector<8x128xf32>
    %1514 = arith.mulf %1313, %1513 : vector<8x128xf32>
    %1515 = vector.broadcast %40 : f32 to vector<8x128xf32>
    %1516 = arith.mulf %1315, %1515 : vector<8x128xf32>
    %1517 = arith.addf %1514, %1516 : vector<8x128xf32>
    %1518 = vector.broadcast %41 : f32 to vector<8x128xf32>
    %1519 = arith.mulf %1317, %1518 : vector<8x128xf32>
    %1520 = arith.addf %1517, %1519 : vector<8x128xf32>
    %1521 = vector.broadcast %61 : f32 to vector<8x128xf32>
    %1522 = arith.addf %1520, %1521 : vector<8x128xf32>
    %cst_165 = arith.constant 0.000000e+00 : f32
    %1523 = vector.broadcast %cst_165 : f32 to vector<8x128xf32>
    %1524 = arith.maximumf %1522, %1523 : vector<8x128xf32>
    %1525 = vector.broadcast %77 : f32 to vector<8x128xf32>
    %1526 = arith.mulf %1524, %1525 : vector<8x128xf32>
    %1527 = arith.addf %1512, %1526 : vector<8x128xf32>
    %1528 = vector.broadcast %42 : f32 to vector<8x128xf32>
    %1529 = arith.mulf %1313, %1528 : vector<8x128xf32>
    %1530 = vector.broadcast %43 : f32 to vector<8x128xf32>
    %1531 = arith.mulf %1315, %1530 : vector<8x128xf32>
    %1532 = arith.addf %1529, %1531 : vector<8x128xf32>
    %1533 = vector.broadcast %44 : f32 to vector<8x128xf32>
    %1534 = arith.mulf %1317, %1533 : vector<8x128xf32>
    %1535 = arith.addf %1532, %1534 : vector<8x128xf32>
    %1536 = vector.broadcast %62 : f32 to vector<8x128xf32>
    %1537 = arith.addf %1535, %1536 : vector<8x128xf32>
    %cst_166 = arith.constant 0.000000e+00 : f32
    %1538 = vector.broadcast %cst_166 : f32 to vector<8x128xf32>
    %1539 = arith.maximumf %1537, %1538 : vector<8x128xf32>
    %1540 = vector.broadcast %78 : f32 to vector<8x128xf32>
    %1541 = arith.mulf %1539, %1540 : vector<8x128xf32>
    %1542 = arith.addf %1527, %1541 : vector<8x128xf32>
    %1543 = vector.broadcast %45 : f32 to vector<8x128xf32>
    %1544 = arith.mulf %1313, %1543 : vector<8x128xf32>
    %1545 = vector.broadcast %46 : f32 to vector<8x128xf32>
    %1546 = arith.mulf %1315, %1545 : vector<8x128xf32>
    %1547 = arith.addf %1544, %1546 : vector<8x128xf32>
    %1548 = vector.broadcast %47 : f32 to vector<8x128xf32>
    %1549 = arith.mulf %1317, %1548 : vector<8x128xf32>
    %1550 = arith.addf %1547, %1549 : vector<8x128xf32>
    %1551 = vector.broadcast %63 : f32 to vector<8x128xf32>
    %1552 = arith.addf %1550, %1551 : vector<8x128xf32>
    %cst_167 = arith.constant 0.000000e+00 : f32
    %1553 = vector.broadcast %cst_167 : f32 to vector<8x128xf32>
    %1554 = arith.maximumf %1552, %1553 : vector<8x128xf32>
    %1555 = vector.broadcast %79 : f32 to vector<8x128xf32>
    %1556 = arith.mulf %1554, %1555 : vector<8x128xf32>
    %1557 = arith.addf %1542, %1556 : vector<8x128xf32>
    %c0_168 = arith.constant 0 : index
    %c6_169 = arith.constant 6 : index
    %c0_170 = arith.constant 0 : index
    %c0_171 = arith.constant 0 : index
    %1558 = vector.load %arg1[%c0_168, %c6_169, %c0_170, %c0_171] : memref<1x16x8x128xf32, #tpu.memory_space<vmem>>, vector<1x1x8x128xf32>
    %1559 = vector.shape_cast %1558 : vector<1x1x8x128xf32> to vector<8x128xf32>
    %c0_172 = arith.constant 0 : index
    %c7_173 = arith.constant 7 : index
    %c0_174 = arith.constant 0 : index
    %c0_175 = arith.constant 0 : index
    %1560 = vector.load %arg1[%c0_172, %c7_173, %c0_174, %c0_175] : memref<1x16x8x128xf32, #tpu.memory_space<vmem>>, vector<1x1x8x128xf32>
    %1561 = vector.shape_cast %1560 : vector<1x1x8x128xf32> to vector<8x128xf32>
    %c0_176 = arith.constant 0 : index
    %c8_177 = arith.constant 8 : index
    %c0_178 = arith.constant 0 : index
    %c0_179 = arith.constant 0 : index
    %1562 = vector.load %arg1[%c0_176, %c8_177, %c0_178, %c0_179] : memref<1x16x8x128xf32, #tpu.memory_space<vmem>>, vector<1x1x8x128xf32>
    %1563 = vector.shape_cast %1562 : vector<1x1x8x128xf32> to vector<8x128xf32>
    %1564 = vector.broadcast %0 : f32 to vector<8x128xf32>
    %1565 = arith.mulf %1559, %1564 : vector<8x128xf32>
    %1566 = vector.broadcast %1 : f32 to vector<8x128xf32>
    %1567 = arith.mulf %1561, %1566 : vector<8x128xf32>
    %1568 = arith.addf %1565, %1567 : vector<8x128xf32>
    %1569 = vector.broadcast %2 : f32 to vector<8x128xf32>
    %1570 = arith.mulf %1563, %1569 : vector<8x128xf32>
    %1571 = arith.addf %1568, %1570 : vector<8x128xf32>
    %1572 = vector.broadcast %48 : f32 to vector<8x128xf32>
    %1573 = arith.addf %1571, %1572 : vector<8x128xf32>
    %cst_180 = arith.constant 0.000000e+00 : f32
    %1574 = vector.broadcast %cst_180 : f32 to vector<8x128xf32>
    %1575 = arith.maximumf %1573, %1574 : vector<8x128xf32>
    %1576 = vector.broadcast %64 : f32 to vector<8x128xf32>
    %1577 = arith.mulf %1575, %1576 : vector<8x128xf32>
    %1578 = arith.addf %1557, %1577 : vector<8x128xf32>
    %1579 = vector.broadcast %3 : f32 to vector<8x128xf32>
    %1580 = arith.mulf %1559, %1579 : vector<8x128xf32>
    %1581 = vector.broadcast %4 : f32 to vector<8x128xf32>
    %1582 = arith.mulf %1561, %1581 : vector<8x128xf32>
    %1583 = arith.addf %1580, %1582 : vector<8x128xf32>
    %1584 = vector.broadcast %5 : f32 to vector<8x128xf32>
    %1585 = arith.mulf %1563, %1584 : vector<8x128xf32>
    %1586 = arith.addf %1583, %1585 : vector<8x128xf32>
    %1587 = vector.broadcast %49 : f32 to vector<8x128xf32>
    %1588 = arith.addf %1586, %1587 : vector<8x128xf32>
    %cst_181 = arith.constant 0.000000e+00 : f32
    %1589 = vector.broadcast %cst_181 : f32 to vector<8x128xf32>
    %1590 = arith.maximumf %1588, %1589 : vector<8x128xf32>
    %1591 = vector.broadcast %65 : f32 to vector<8x128xf32>
    %1592 = arith.mulf %1590, %1591 : vector<8x128xf32>
    %1593 = arith.addf %1578, %1592 : vector<8x128xf32>
    %1594 = vector.broadcast %6 : f32 to vector<8x128xf32>
    %1595 = arith.mulf %1559, %1594 : vector<8x128xf32>
    %1596 = vector.broadcast %7 : f32 to vector<8x128xf32>
    %1597 = arith.mulf %1561, %1596 : vector<8x128xf32>
    %1598 = arith.addf %1595, %1597 : vector<8x128xf32>
    %1599 = vector.broadcast %8 : f32 to vector<8x128xf32>
    %1600 = arith.mulf %1563, %1599 : vector<8x128xf32>
    %1601 = arith.addf %1598, %1600 : vector<8x128xf32>
    %1602 = vector.broadcast %50 : f32 to vector<8x128xf32>
    %1603 = arith.addf %1601, %1602 : vector<8x128xf32>
    %cst_182 = arith.constant 0.000000e+00 : f32
    %1604 = vector.broadcast %cst_182 : f32 to vector<8x128xf32>
    %1605 = arith.maximumf %1603, %1604 : vector<8x128xf32>
    %1606 = vector.broadcast %66 : f32 to vector<8x128xf32>
    %1607 = arith.mulf %1605, %1606 : vector<8x128xf32>
    %1608 = arith.addf %1593, %1607 : vector<8x128xf32>
    %1609 = vector.broadcast %9 : f32 to vector<8x128xf32>
    %1610 = arith.mulf %1559, %1609 : vector<8x128xf32>
    %1611 = vector.broadcast %10 : f32 to vector<8x128xf32>
    %1612 = arith.mulf %1561, %1611 : vector<8x128xf32>
    %1613 = arith.addf %1610, %1612 : vector<8x128xf32>
    %1614 = vector.broadcast %11 : f32 to vector<8x128xf32>
    %1615 = arith.mulf %1563, %1614 : vector<8x128xf32>
    %1616 = arith.addf %1613, %1615 : vector<8x128xf32>
    %1617 = vector.broadcast %51 : f32 to vector<8x128xf32>
    %1618 = arith.addf %1616, %1617 : vector<8x128xf32>
    %cst_183 = arith.constant 0.000000e+00 : f32
    %1619 = vector.broadcast %cst_183 : f32 to vector<8x128xf32>
    %1620 = arith.maximumf %1618, %1619 : vector<8x128xf32>
    %1621 = vector.broadcast %67 : f32 to vector<8x128xf32>
    %1622 = arith.mulf %1620, %1621 : vector<8x128xf32>
    %1623 = arith.addf %1608, %1622 : vector<8x128xf32>
    %1624 = vector.broadcast %12 : f32 to vector<8x128xf32>
    %1625 = arith.mulf %1559, %1624 : vector<8x128xf32>
    %1626 = vector.broadcast %13 : f32 to vector<8x128xf32>
    %1627 = arith.mulf %1561, %1626 : vector<8x128xf32>
    %1628 = arith.addf %1625, %1627 : vector<8x128xf32>
    %1629 = vector.broadcast %14 : f32 to vector<8x128xf32>
    %1630 = arith.mulf %1563, %1629 : vector<8x128xf32>
    %1631 = arith.addf %1628, %1630 : vector<8x128xf32>
    %1632 = vector.broadcast %52 : f32 to vector<8x128xf32>
    %1633 = arith.addf %1631, %1632 : vector<8x128xf32>
    %cst_184 = arith.constant 0.000000e+00 : f32
    %1634 = vector.broadcast %cst_184 : f32 to vector<8x128xf32>
    %1635 = arith.maximumf %1633, %1634 : vector<8x128xf32>
    %1636 = vector.broadcast %68 : f32 to vector<8x128xf32>
    %1637 = arith.mulf %1635, %1636 : vector<8x128xf32>
    %1638 = arith.addf %1623, %1637 : vector<8x128xf32>
    %1639 = vector.broadcast %15 : f32 to vector<8x128xf32>
    %1640 = arith.mulf %1559, %1639 : vector<8x128xf32>
    %1641 = vector.broadcast %16 : f32 to vector<8x128xf32>
    %1642 = arith.mulf %1561, %1641 : vector<8x128xf32>
    %1643 = arith.addf %1640, %1642 : vector<8x128xf32>
    %1644 = vector.broadcast %17 : f32 to vector<8x128xf32>
    %1645 = arith.mulf %1563, %1644 : vector<8x128xf32>
    %1646 = arith.addf %1643, %1645 : vector<8x128xf32>
    %1647 = vector.broadcast %53 : f32 to vector<8x128xf32>
    %1648 = arith.addf %1646, %1647 : vector<8x128xf32>
    %cst_185 = arith.constant 0.000000e+00 : f32
    %1649 = vector.broadcast %cst_185 : f32 to vector<8x128xf32>
    %1650 = arith.maximumf %1648, %1649 : vector<8x128xf32>
    %1651 = vector.broadcast %69 : f32 to vector<8x128xf32>
    %1652 = arith.mulf %1650, %1651 : vector<8x128xf32>
    %1653 = arith.addf %1638, %1652 : vector<8x128xf32>
    %1654 = vector.broadcast %18 : f32 to vector<8x128xf32>
    %1655 = arith.mulf %1559, %1654 : vector<8x128xf32>
    %1656 = vector.broadcast %19 : f32 to vector<8x128xf32>
    %1657 = arith.mulf %1561, %1656 : vector<8x128xf32>
    %1658 = arith.addf %1655, %1657 : vector<8x128xf32>
    %1659 = vector.broadcast %20 : f32 to vector<8x128xf32>
    %1660 = arith.mulf %1563, %1659 : vector<8x128xf32>
    %1661 = arith.addf %1658, %1660 : vector<8x128xf32>
    %1662 = vector.broadcast %54 : f32 to vector<8x128xf32>
    %1663 = arith.addf %1661, %1662 : vector<8x128xf32>
    %cst_186 = arith.constant 0.000000e+00 : f32
    %1664 = vector.broadcast %cst_186 : f32 to vector<8x128xf32>
    %1665 = arith.maximumf %1663, %1664 : vector<8x128xf32>
    %1666 = vector.broadcast %70 : f32 to vector<8x128xf32>
    %1667 = arith.mulf %1665, %1666 : vector<8x128xf32>
    %1668 = arith.addf %1653, %1667 : vector<8x128xf32>
    %1669 = vector.broadcast %21 : f32 to vector<8x128xf32>
    %1670 = arith.mulf %1559, %1669 : vector<8x128xf32>
    %1671 = vector.broadcast %22 : f32 to vector<8x128xf32>
    %1672 = arith.mulf %1561, %1671 : vector<8x128xf32>
    %1673 = arith.addf %1670, %1672 : vector<8x128xf32>
    %1674 = vector.broadcast %23 : f32 to vector<8x128xf32>
    %1675 = arith.mulf %1563, %1674 : vector<8x128xf32>
    %1676 = arith.addf %1673, %1675 : vector<8x128xf32>
    %1677 = vector.broadcast %55 : f32 to vector<8x128xf32>
    %1678 = arith.addf %1676, %1677 : vector<8x128xf32>
    %cst_187 = arith.constant 0.000000e+00 : f32
    %1679 = vector.broadcast %cst_187 : f32 to vector<8x128xf32>
    %1680 = arith.maximumf %1678, %1679 : vector<8x128xf32>
    %1681 = vector.broadcast %71 : f32 to vector<8x128xf32>
    %1682 = arith.mulf %1680, %1681 : vector<8x128xf32>
    %1683 = arith.addf %1668, %1682 : vector<8x128xf32>
    %1684 = vector.broadcast %24 : f32 to vector<8x128xf32>
    %1685 = arith.mulf %1559, %1684 : vector<8x128xf32>
    %1686 = vector.broadcast %25 : f32 to vector<8x128xf32>
    %1687 = arith.mulf %1561, %1686 : vector<8x128xf32>
    %1688 = arith.addf %1685, %1687 : vector<8x128xf32>
    %1689 = vector.broadcast %26 : f32 to vector<8x128xf32>
    %1690 = arith.mulf %1563, %1689 : vector<8x128xf32>
    %1691 = arith.addf %1688, %1690 : vector<8x128xf32>
    %1692 = vector.broadcast %56 : f32 to vector<8x128xf32>
    %1693 = arith.addf %1691, %1692 : vector<8x128xf32>
    %cst_188 = arith.constant 0.000000e+00 : f32
    %1694 = vector.broadcast %cst_188 : f32 to vector<8x128xf32>
    %1695 = arith.maximumf %1693, %1694 : vector<8x128xf32>
    %1696 = vector.broadcast %72 : f32 to vector<8x128xf32>
    %1697 = arith.mulf %1695, %1696 : vector<8x128xf32>
    %1698 = arith.addf %1683, %1697 : vector<8x128xf32>
    %1699 = vector.broadcast %27 : f32 to vector<8x128xf32>
    %1700 = arith.mulf %1559, %1699 : vector<8x128xf32>
    %1701 = vector.broadcast %28 : f32 to vector<8x128xf32>
    %1702 = arith.mulf %1561, %1701 : vector<8x128xf32>
    %1703 = arith.addf %1700, %1702 : vector<8x128xf32>
    %1704 = vector.broadcast %29 : f32 to vector<8x128xf32>
    %1705 = arith.mulf %1563, %1704 : vector<8x128xf32>
    %1706 = arith.addf %1703, %1705 : vector<8x128xf32>
    %1707 = vector.broadcast %57 : f32 to vector<8x128xf32>
    %1708 = arith.addf %1706, %1707 : vector<8x128xf32>
    %cst_189 = arith.constant 0.000000e+00 : f32
    %1709 = vector.broadcast %cst_189 : f32 to vector<8x128xf32>
    %1710 = arith.maximumf %1708, %1709 : vector<8x128xf32>
    %1711 = vector.broadcast %73 : f32 to vector<8x128xf32>
    %1712 = arith.mulf %1710, %1711 : vector<8x128xf32>
    %1713 = arith.addf %1698, %1712 : vector<8x128xf32>
    %1714 = vector.broadcast %30 : f32 to vector<8x128xf32>
    %1715 = arith.mulf %1559, %1714 : vector<8x128xf32>
    %1716 = vector.broadcast %31 : f32 to vector<8x128xf32>
    %1717 = arith.mulf %1561, %1716 : vector<8x128xf32>
    %1718 = arith.addf %1715, %1717 : vector<8x128xf32>
    %1719 = vector.broadcast %32 : f32 to vector<8x128xf32>
    %1720 = arith.mulf %1563, %1719 : vector<8x128xf32>
    %1721 = arith.addf %1718, %1720 : vector<8x128xf32>
    %1722 = vector.broadcast %58 : f32 to vector<8x128xf32>
    %1723 = arith.addf %1721, %1722 : vector<8x128xf32>
    %cst_190 = arith.constant 0.000000e+00 : f32
    %1724 = vector.broadcast %cst_190 : f32 to vector<8x128xf32>
    %1725 = arith.maximumf %1723, %1724 : vector<8x128xf32>
    %1726 = vector.broadcast %74 : f32 to vector<8x128xf32>
    %1727 = arith.mulf %1725, %1726 : vector<8x128xf32>
    %1728 = arith.addf %1713, %1727 : vector<8x128xf32>
    %1729 = vector.broadcast %33 : f32 to vector<8x128xf32>
    %1730 = arith.mulf %1559, %1729 : vector<8x128xf32>
    %1731 = vector.broadcast %34 : f32 to vector<8x128xf32>
    %1732 = arith.mulf %1561, %1731 : vector<8x128xf32>
    %1733 = arith.addf %1730, %1732 : vector<8x128xf32>
    %1734 = vector.broadcast %35 : f32 to vector<8x128xf32>
    %1735 = arith.mulf %1563, %1734 : vector<8x128xf32>
    %1736 = arith.addf %1733, %1735 : vector<8x128xf32>
    %1737 = vector.broadcast %59 : f32 to vector<8x128xf32>
    %1738 = arith.addf %1736, %1737 : vector<8x128xf32>
    %cst_191 = arith.constant 0.000000e+00 : f32
    %1739 = vector.broadcast %cst_191 : f32 to vector<8x128xf32>
    %1740 = arith.maximumf %1738, %1739 : vector<8x128xf32>
    %1741 = vector.broadcast %75 : f32 to vector<8x128xf32>
    %1742 = arith.mulf %1740, %1741 : vector<8x128xf32>
    %1743 = arith.addf %1728, %1742 : vector<8x128xf32>
    %1744 = vector.broadcast %36 : f32 to vector<8x128xf32>
    %1745 = arith.mulf %1559, %1744 : vector<8x128xf32>
    %1746 = vector.broadcast %37 : f32 to vector<8x128xf32>
    %1747 = arith.mulf %1561, %1746 : vector<8x128xf32>
    %1748 = arith.addf %1745, %1747 : vector<8x128xf32>
    %1749 = vector.broadcast %38 : f32 to vector<8x128xf32>
    %1750 = arith.mulf %1563, %1749 : vector<8x128xf32>
    %1751 = arith.addf %1748, %1750 : vector<8x128xf32>
    %1752 = vector.broadcast %60 : f32 to vector<8x128xf32>
    %1753 = arith.addf %1751, %1752 : vector<8x128xf32>
    %cst_192 = arith.constant 0.000000e+00 : f32
    %1754 = vector.broadcast %cst_192 : f32 to vector<8x128xf32>
    %1755 = arith.maximumf %1753, %1754 : vector<8x128xf32>
    %1756 = vector.broadcast %76 : f32 to vector<8x128xf32>
    %1757 = arith.mulf %1755, %1756 : vector<8x128xf32>
    %1758 = arith.addf %1743, %1757 : vector<8x128xf32>
    %1759 = vector.broadcast %39 : f32 to vector<8x128xf32>
    %1760 = arith.mulf %1559, %1759 : vector<8x128xf32>
    %1761 = vector.broadcast %40 : f32 to vector<8x128xf32>
    %1762 = arith.mulf %1561, %1761 : vector<8x128xf32>
    %1763 = arith.addf %1760, %1762 : vector<8x128xf32>
    %1764 = vector.broadcast %41 : f32 to vector<8x128xf32>
    %1765 = arith.mulf %1563, %1764 : vector<8x128xf32>
    %1766 = arith.addf %1763, %1765 : vector<8x128xf32>
    %1767 = vector.broadcast %61 : f32 to vector<8x128xf32>
    %1768 = arith.addf %1766, %1767 : vector<8x128xf32>
    %cst_193 = arith.constant 0.000000e+00 : f32
    %1769 = vector.broadcast %cst_193 : f32 to vector<8x128xf32>
    %1770 = arith.maximumf %1768, %1769 : vector<8x128xf32>
    %1771 = vector.broadcast %77 : f32 to vector<8x128xf32>
    %1772 = arith.mulf %1770, %1771 : vector<8x128xf32>
    %1773 = arith.addf %1758, %1772 : vector<8x128xf32>
    %1774 = vector.broadcast %42 : f32 to vector<8x128xf32>
    %1775 = arith.mulf %1559, %1774 : vector<8x128xf32>
    %1776 = vector.broadcast %43 : f32 to vector<8x128xf32>
    %1777 = arith.mulf %1561, %1776 : vector<8x128xf32>
    %1778 = arith.addf %1775, %1777 : vector<8x128xf32>
    %1779 = vector.broadcast %44 : f32 to vector<8x128xf32>
    %1780 = arith.mulf %1563, %1779 : vector<8x128xf32>
    %1781 = arith.addf %1778, %1780 : vector<8x128xf32>
    %1782 = vector.broadcast %62 : f32 to vector<8x128xf32>
    %1783 = arith.addf %1781, %1782 : vector<8x128xf32>
    %cst_194 = arith.constant 0.000000e+00 : f32
    %1784 = vector.broadcast %cst_194 : f32 to vector<8x128xf32>
    %1785 = arith.maximumf %1783, %1784 : vector<8x128xf32>
    %1786 = vector.broadcast %78 : f32 to vector<8x128xf32>
    %1787 = arith.mulf %1785, %1786 : vector<8x128xf32>
    %1788 = arith.addf %1773, %1787 : vector<8x128xf32>
    %1789 = vector.broadcast %45 : f32 to vector<8x128xf32>
    %1790 = arith.mulf %1559, %1789 : vector<8x128xf32>
    %1791 = vector.broadcast %46 : f32 to vector<8x128xf32>
    %1792 = arith.mulf %1561, %1791 : vector<8x128xf32>
    %1793 = arith.addf %1790, %1792 : vector<8x128xf32>
    %1794 = vector.broadcast %47 : f32 to vector<8x128xf32>
    %1795 = arith.mulf %1563, %1794 : vector<8x128xf32>
    %1796 = arith.addf %1793, %1795 : vector<8x128xf32>
    %1797 = vector.broadcast %63 : f32 to vector<8x128xf32>
    %1798 = arith.addf %1796, %1797 : vector<8x128xf32>
    %cst_195 = arith.constant 0.000000e+00 : f32
    %1799 = vector.broadcast %cst_195 : f32 to vector<8x128xf32>
    %1800 = arith.maximumf %1798, %1799 : vector<8x128xf32>
    %1801 = vector.broadcast %79 : f32 to vector<8x128xf32>
    %1802 = arith.mulf %1800, %1801 : vector<8x128xf32>
    %1803 = arith.addf %1788, %1802 : vector<8x128xf32>
    %c0_196 = arith.constant 0 : index
    %c7_197 = arith.constant 7 : index
    %c0_198 = arith.constant 0 : index
    %c0_199 = arith.constant 0 : index
    %1804 = vector.load %arg1[%c0_196, %c7_197, %c0_198, %c0_199] : memref<1x16x8x128xf32, #tpu.memory_space<vmem>>, vector<1x1x8x128xf32>
    %1805 = vector.shape_cast %1804 : vector<1x1x8x128xf32> to vector<8x128xf32>
    %c0_200 = arith.constant 0 : index
    %c8_201 = arith.constant 8 : index
    %c0_202 = arith.constant 0 : index
    %c0_203 = arith.constant 0 : index
    %1806 = vector.load %arg1[%c0_200, %c8_201, %c0_202, %c0_203] : memref<1x16x8x128xf32, #tpu.memory_space<vmem>>, vector<1x1x8x128xf32>
    %1807 = vector.shape_cast %1806 : vector<1x1x8x128xf32> to vector<8x128xf32>
    %c0_204 = arith.constant 0 : index
    %c9_205 = arith.constant 9 : index
    %c0_206 = arith.constant 0 : index
    %c0_207 = arith.constant 0 : index
    %1808 = vector.load %arg1[%c0_204, %c9_205, %c0_206, %c0_207] : memref<1x16x8x128xf32, #tpu.memory_space<vmem>>, vector<1x1x8x128xf32>
    %1809 = vector.shape_cast %1808 : vector<1x1x8x128xf32> to vector<8x128xf32>
    %1810 = vector.broadcast %0 : f32 to vector<8x128xf32>
    %1811 = arith.mulf %1805, %1810 : vector<8x128xf32>
    %1812 = vector.broadcast %1 : f32 to vector<8x128xf32>
    %1813 = arith.mulf %1807, %1812 : vector<8x128xf32>
    %1814 = arith.addf %1811, %1813 : vector<8x128xf32>
    %1815 = vector.broadcast %2 : f32 to vector<8x128xf32>
    %1816 = arith.mulf %1809, %1815 : vector<8x128xf32>
    %1817 = arith.addf %1814, %1816 : vector<8x128xf32>
    %1818 = vector.broadcast %48 : f32 to vector<8x128xf32>
    %1819 = arith.addf %1817, %1818 : vector<8x128xf32>
    %cst_208 = arith.constant 0.000000e+00 : f32
    %1820 = vector.broadcast %cst_208 : f32 to vector<8x128xf32>
    %1821 = arith.maximumf %1819, %1820 : vector<8x128xf32>
    %1822 = vector.broadcast %64 : f32 to vector<8x128xf32>
    %1823 = arith.mulf %1821, %1822 : vector<8x128xf32>
    %1824 = arith.addf %1803, %1823 : vector<8x128xf32>
    %1825 = vector.broadcast %3 : f32 to vector<8x128xf32>
    %1826 = arith.mulf %1805, %1825 : vector<8x128xf32>
    %1827 = vector.broadcast %4 : f32 to vector<8x128xf32>
    %1828 = arith.mulf %1807, %1827 : vector<8x128xf32>
    %1829 = arith.addf %1826, %1828 : vector<8x128xf32>
    %1830 = vector.broadcast %5 : f32 to vector<8x128xf32>
    %1831 = arith.mulf %1809, %1830 : vector<8x128xf32>
    %1832 = arith.addf %1829, %1831 : vector<8x128xf32>
    %1833 = vector.broadcast %49 : f32 to vector<8x128xf32>
    %1834 = arith.addf %1832, %1833 : vector<8x128xf32>
    %cst_209 = arith.constant 0.000000e+00 : f32
    %1835 = vector.broadcast %cst_209 : f32 to vector<8x128xf32>
    %1836 = arith.maximumf %1834, %1835 : vector<8x128xf32>
    %1837 = vector.broadcast %65 : f32 to vector<8x128xf32>
    %1838 = arith.mulf %1836, %1837 : vector<8x128xf32>
    %1839 = arith.addf %1824, %1838 : vector<8x128xf32>
    %1840 = vector.broadcast %6 : f32 to vector<8x128xf32>
    %1841 = arith.mulf %1805, %1840 : vector<8x128xf32>
    %1842 = vector.broadcast %7 : f32 to vector<8x128xf32>
    %1843 = arith.mulf %1807, %1842 : vector<8x128xf32>
    %1844 = arith.addf %1841, %1843 : vector<8x128xf32>
    %1845 = vector.broadcast %8 : f32 to vector<8x128xf32>
    %1846 = arith.mulf %1809, %1845 : vector<8x128xf32>
    %1847 = arith.addf %1844, %1846 : vector<8x128xf32>
    %1848 = vector.broadcast %50 : f32 to vector<8x128xf32>
    %1849 = arith.addf %1847, %1848 : vector<8x128xf32>
    %cst_210 = arith.constant 0.000000e+00 : f32
    %1850 = vector.broadcast %cst_210 : f32 to vector<8x128xf32>
    %1851 = arith.maximumf %1849, %1850 : vector<8x128xf32>
    %1852 = vector.broadcast %66 : f32 to vector<8x128xf32>
    %1853 = arith.mulf %1851, %1852 : vector<8x128xf32>
    %1854 = arith.addf %1839, %1853 : vector<8x128xf32>
    %1855 = vector.broadcast %9 : f32 to vector<8x128xf32>
    %1856 = arith.mulf %1805, %1855 : vector<8x128xf32>
    %1857 = vector.broadcast %10 : f32 to vector<8x128xf32>
    %1858 = arith.mulf %1807, %1857 : vector<8x128xf32>
    %1859 = arith.addf %1856, %1858 : vector<8x128xf32>
    %1860 = vector.broadcast %11 : f32 to vector<8x128xf32>
    %1861 = arith.mulf %1809, %1860 : vector<8x128xf32>
    %1862 = arith.addf %1859, %1861 : vector<8x128xf32>
    %1863 = vector.broadcast %51 : f32 to vector<8x128xf32>
    %1864 = arith.addf %1862, %1863 : vector<8x128xf32>
    %cst_211 = arith.constant 0.000000e+00 : f32
    %1865 = vector.broadcast %cst_211 : f32 to vector<8x128xf32>
    %1866 = arith.maximumf %1864, %1865 : vector<8x128xf32>
    %1867 = vector.broadcast %67 : f32 to vector<8x128xf32>
    %1868 = arith.mulf %1866, %1867 : vector<8x128xf32>
    %1869 = arith.addf %1854, %1868 : vector<8x128xf32>
    %1870 = vector.broadcast %12 : f32 to vector<8x128xf32>
    %1871 = arith.mulf %1805, %1870 : vector<8x128xf32>
    %1872 = vector.broadcast %13 : f32 to vector<8x128xf32>
    %1873 = arith.mulf %1807, %1872 : vector<8x128xf32>
    %1874 = arith.addf %1871, %1873 : vector<8x128xf32>
    %1875 = vector.broadcast %14 : f32 to vector<8x128xf32>
    %1876 = arith.mulf %1809, %1875 : vector<8x128xf32>
    %1877 = arith.addf %1874, %1876 : vector<8x128xf32>
    %1878 = vector.broadcast %52 : f32 to vector<8x128xf32>
    %1879 = arith.addf %1877, %1878 : vector<8x128xf32>
    %cst_212 = arith.constant 0.000000e+00 : f32
    %1880 = vector.broadcast %cst_212 : f32 to vector<8x128xf32>
    %1881 = arith.maximumf %1879, %1880 : vector<8x128xf32>
    %1882 = vector.broadcast %68 : f32 to vector<8x128xf32>
    %1883 = arith.mulf %1881, %1882 : vector<8x128xf32>
    %1884 = arith.addf %1869, %1883 : vector<8x128xf32>
    %1885 = vector.broadcast %15 : f32 to vector<8x128xf32>
    %1886 = arith.mulf %1805, %1885 : vector<8x128xf32>
    %1887 = vector.broadcast %16 : f32 to vector<8x128xf32>
    %1888 = arith.mulf %1807, %1887 : vector<8x128xf32>
    %1889 = arith.addf %1886, %1888 : vector<8x128xf32>
    %1890 = vector.broadcast %17 : f32 to vector<8x128xf32>
    %1891 = arith.mulf %1809, %1890 : vector<8x128xf32>
    %1892 = arith.addf %1889, %1891 : vector<8x128xf32>
    %1893 = vector.broadcast %53 : f32 to vector<8x128xf32>
    %1894 = arith.addf %1892, %1893 : vector<8x128xf32>
    %cst_213 = arith.constant 0.000000e+00 : f32
    %1895 = vector.broadcast %cst_213 : f32 to vector<8x128xf32>
    %1896 = arith.maximumf %1894, %1895 : vector<8x128xf32>
    %1897 = vector.broadcast %69 : f32 to vector<8x128xf32>
    %1898 = arith.mulf %1896, %1897 : vector<8x128xf32>
    %1899 = arith.addf %1884, %1898 : vector<8x128xf32>
    %1900 = vector.broadcast %18 : f32 to vector<8x128xf32>
    %1901 = arith.mulf %1805, %1900 : vector<8x128xf32>
    %1902 = vector.broadcast %19 : f32 to vector<8x128xf32>
    %1903 = arith.mulf %1807, %1902 : vector<8x128xf32>
    %1904 = arith.addf %1901, %1903 : vector<8x128xf32>
    %1905 = vector.broadcast %20 : f32 to vector<8x128xf32>
    %1906 = arith.mulf %1809, %1905 : vector<8x128xf32>
    %1907 = arith.addf %1904, %1906 : vector<8x128xf32>
    %1908 = vector.broadcast %54 : f32 to vector<8x128xf32>
    %1909 = arith.addf %1907, %1908 : vector<8x128xf32>
    %cst_214 = arith.constant 0.000000e+00 : f32
    %1910 = vector.broadcast %cst_214 : f32 to vector<8x128xf32>
    %1911 = arith.maximumf %1909, %1910 : vector<8x128xf32>
    %1912 = vector.broadcast %70 : f32 to vector<8x128xf32>
    %1913 = arith.mulf %1911, %1912 : vector<8x128xf32>
    %1914 = arith.addf %1899, %1913 : vector<8x128xf32>
    %1915 = vector.broadcast %21 : f32 to vector<8x128xf32>
    %1916 = arith.mulf %1805, %1915 : vector<8x128xf32>
    %1917 = vector.broadcast %22 : f32 to vector<8x128xf32>
    %1918 = arith.mulf %1807, %1917 : vector<8x128xf32>
    %1919 = arith.addf %1916, %1918 : vector<8x128xf32>
    %1920 = vector.broadcast %23 : f32 to vector<8x128xf32>
    %1921 = arith.mulf %1809, %1920 : vector<8x128xf32>
    %1922 = arith.addf %1919, %1921 : vector<8x128xf32>
    %1923 = vector.broadcast %55 : f32 to vector<8x128xf32>
    %1924 = arith.addf %1922, %1923 : vector<8x128xf32>
    %cst_215 = arith.constant 0.000000e+00 : f32
    %1925 = vector.broadcast %cst_215 : f32 to vector<8x128xf32>
    %1926 = arith.maximumf %1924, %1925 : vector<8x128xf32>
    %1927 = vector.broadcast %71 : f32 to vector<8x128xf32>
    %1928 = arith.mulf %1926, %1927 : vector<8x128xf32>
    %1929 = arith.addf %1914, %1928 : vector<8x128xf32>
    %1930 = vector.broadcast %24 : f32 to vector<8x128xf32>
    %1931 = arith.mulf %1805, %1930 : vector<8x128xf32>
    %1932 = vector.broadcast %25 : f32 to vector<8x128xf32>
    %1933 = arith.mulf %1807, %1932 : vector<8x128xf32>
    %1934 = arith.addf %1931, %1933 : vector<8x128xf32>
    %1935 = vector.broadcast %26 : f32 to vector<8x128xf32>
    %1936 = arith.mulf %1809, %1935 : vector<8x128xf32>
    %1937 = arith.addf %1934, %1936 : vector<8x128xf32>
    %1938 = vector.broadcast %56 : f32 to vector<8x128xf32>
    %1939 = arith.addf %1937, %1938 : vector<8x128xf32>
    %cst_216 = arith.constant 0.000000e+00 : f32
    %1940 = vector.broadcast %cst_216 : f32 to vector<8x128xf32>
    %1941 = arith.maximumf %1939, %1940 : vector<8x128xf32>
    %1942 = vector.broadcast %72 : f32 to vector<8x128xf32>
    %1943 = arith.mulf %1941, %1942 : vector<8x128xf32>
    %1944 = arith.addf %1929, %1943 : vector<8x128xf32>
    %1945 = vector.broadcast %27 : f32 to vector<8x128xf32>
    %1946 = arith.mulf %1805, %1945 : vector<8x128xf32>
    %1947 = vector.broadcast %28 : f32 to vector<8x128xf32>
    %1948 = arith.mulf %1807, %1947 : vector<8x128xf32>
    %1949 = arith.addf %1946, %1948 : vector<8x128xf32>
    %1950 = vector.broadcast %29 : f32 to vector<8x128xf32>
    %1951 = arith.mulf %1809, %1950 : vector<8x128xf32>
    %1952 = arith.addf %1949, %1951 : vector<8x128xf32>
    %1953 = vector.broadcast %57 : f32 to vector<8x128xf32>
    %1954 = arith.addf %1952, %1953 : vector<8x128xf32>
    %cst_217 = arith.constant 0.000000e+00 : f32
    %1955 = vector.broadcast %cst_217 : f32 to vector<8x128xf32>
    %1956 = arith.maximumf %1954, %1955 : vector<8x128xf32>
    %1957 = vector.broadcast %73 : f32 to vector<8x128xf32>
    %1958 = arith.mulf %1956, %1957 : vector<8x128xf32>
    %1959 = arith.addf %1944, %1958 : vector<8x128xf32>
    %1960 = vector.broadcast %30 : f32 to vector<8x128xf32>
    %1961 = arith.mulf %1805, %1960 : vector<8x128xf32>
    %1962 = vector.broadcast %31 : f32 to vector<8x128xf32>
    %1963 = arith.mulf %1807, %1962 : vector<8x128xf32>
    %1964 = arith.addf %1961, %1963 : vector<8x128xf32>
    %1965 = vector.broadcast %32 : f32 to vector<8x128xf32>
    %1966 = arith.mulf %1809, %1965 : vector<8x128xf32>
    %1967 = arith.addf %1964, %1966 : vector<8x128xf32>
    %1968 = vector.broadcast %58 : f32 to vector<8x128xf32>
    %1969 = arith.addf %1967, %1968 : vector<8x128xf32>
    %cst_218 = arith.constant 0.000000e+00 : f32
    %1970 = vector.broadcast %cst_218 : f32 to vector<8x128xf32>
    %1971 = arith.maximumf %1969, %1970 : vector<8x128xf32>
    %1972 = vector.broadcast %74 : f32 to vector<8x128xf32>
    %1973 = arith.mulf %1971, %1972 : vector<8x128xf32>
    %1974 = arith.addf %1959, %1973 : vector<8x128xf32>
    %1975 = vector.broadcast %33 : f32 to vector<8x128xf32>
    %1976 = arith.mulf %1805, %1975 : vector<8x128xf32>
    %1977 = vector.broadcast %34 : f32 to vector<8x128xf32>
    %1978 = arith.mulf %1807, %1977 : vector<8x128xf32>
    %1979 = arith.addf %1976, %1978 : vector<8x128xf32>
    %1980 = vector.broadcast %35 : f32 to vector<8x128xf32>
    %1981 = arith.mulf %1809, %1980 : vector<8x128xf32>
    %1982 = arith.addf %1979, %1981 : vector<8x128xf32>
    %1983 = vector.broadcast %59 : f32 to vector<8x128xf32>
    %1984 = arith.addf %1982, %1983 : vector<8x128xf32>
    %cst_219 = arith.constant 0.000000e+00 : f32
    %1985 = vector.broadcast %cst_219 : f32 to vector<8x128xf32>
    %1986 = arith.maximumf %1984, %1985 : vector<8x128xf32>
    %1987 = vector.broadcast %75 : f32 to vector<8x128xf32>
    %1988 = arith.mulf %1986, %1987 : vector<8x128xf32>
    %1989 = arith.addf %1974, %1988 : vector<8x128xf32>
    %1990 = vector.broadcast %36 : f32 to vector<8x128xf32>
    %1991 = arith.mulf %1805, %1990 : vector<8x128xf32>
    %1992 = vector.broadcast %37 : f32 to vector<8x128xf32>
    %1993 = arith.mulf %1807, %1992 : vector<8x128xf32>
    %1994 = arith.addf %1991, %1993 : vector<8x128xf32>
    %1995 = vector.broadcast %38 : f32 to vector<8x128xf32>
    %1996 = arith.mulf %1809, %1995 : vector<8x128xf32>
    %1997 = arith.addf %1994, %1996 : vector<8x128xf32>
    %1998 = vector.broadcast %60 : f32 to vector<8x128xf32>
    %1999 = arith.addf %1997, %1998 : vector<8x128xf32>
    %cst_220 = arith.constant 0.000000e+00 : f32
    %2000 = vector.broadcast %cst_220 : f32 to vector<8x128xf32>
    %2001 = arith.maximumf %1999, %2000 : vector<8x128xf32>
    %2002 = vector.broadcast %76 : f32 to vector<8x128xf32>
    %2003 = arith.mulf %2001, %2002 : vector<8x128xf32>
    %2004 = arith.addf %1989, %2003 : vector<8x128xf32>
    %2005 = vector.broadcast %39 : f32 to vector<8x128xf32>
    %2006 = arith.mulf %1805, %2005 : vector<8x128xf32>
    %2007 = vector.broadcast %40 : f32 to vector<8x128xf32>
    %2008 = arith.mulf %1807, %2007 : vector<8x128xf32>
    %2009 = arith.addf %2006, %2008 : vector<8x128xf32>
    %2010 = vector.broadcast %41 : f32 to vector<8x128xf32>
    %2011 = arith.mulf %1809, %2010 : vector<8x128xf32>
    %2012 = arith.addf %2009, %2011 : vector<8x128xf32>
    %2013 = vector.broadcast %61 : f32 to vector<8x128xf32>
    %2014 = arith.addf %2012, %2013 : vector<8x128xf32>
    %cst_221 = arith.constant 0.000000e+00 : f32
    %2015 = vector.broadcast %cst_221 : f32 to vector<8x128xf32>
    %2016 = arith.maximumf %2014, %2015 : vector<8x128xf32>
    %2017 = vector.broadcast %77 : f32 to vector<8x128xf32>
    %2018 = arith.mulf %2016, %2017 : vector<8x128xf32>
    %2019 = arith.addf %2004, %2018 : vector<8x128xf32>
    %2020 = vector.broadcast %42 : f32 to vector<8x128xf32>
    %2021 = arith.mulf %1805, %2020 : vector<8x128xf32>
    %2022 = vector.broadcast %43 : f32 to vector<8x128xf32>
    %2023 = arith.mulf %1807, %2022 : vector<8x128xf32>
    %2024 = arith.addf %2021, %2023 : vector<8x128xf32>
    %2025 = vector.broadcast %44 : f32 to vector<8x128xf32>
    %2026 = arith.mulf %1809, %2025 : vector<8x128xf32>
    %2027 = arith.addf %2024, %2026 : vector<8x128xf32>
    %2028 = vector.broadcast %62 : f32 to vector<8x128xf32>
    %2029 = arith.addf %2027, %2028 : vector<8x128xf32>
    %cst_222 = arith.constant 0.000000e+00 : f32
    %2030 = vector.broadcast %cst_222 : f32 to vector<8x128xf32>
    %2031 = arith.maximumf %2029, %2030 : vector<8x128xf32>
    %2032 = vector.broadcast %78 : f32 to vector<8x128xf32>
    %2033 = arith.mulf %2031, %2032 : vector<8x128xf32>
    %2034 = arith.addf %2019, %2033 : vector<8x128xf32>
    %2035 = vector.broadcast %45 : f32 to vector<8x128xf32>
    %2036 = arith.mulf %1805, %2035 : vector<8x128xf32>
    %2037 = vector.broadcast %46 : f32 to vector<8x128xf32>
    %2038 = arith.mulf %1807, %2037 : vector<8x128xf32>
    %2039 = arith.addf %2036, %2038 : vector<8x128xf32>
    %2040 = vector.broadcast %47 : f32 to vector<8x128xf32>
    %2041 = arith.mulf %1809, %2040 : vector<8x128xf32>
    %2042 = arith.addf %2039, %2041 : vector<8x128xf32>
    %2043 = vector.broadcast %63 : f32 to vector<8x128xf32>
    %2044 = arith.addf %2042, %2043 : vector<8x128xf32>
    %cst_223 = arith.constant 0.000000e+00 : f32
    %2045 = vector.broadcast %cst_223 : f32 to vector<8x128xf32>
    %2046 = arith.maximumf %2044, %2045 : vector<8x128xf32>
    %2047 = vector.broadcast %79 : f32 to vector<8x128xf32>
    %2048 = arith.mulf %2046, %2047 : vector<8x128xf32>
    %2049 = arith.addf %2034, %2048 : vector<8x128xf32>
    %c0_224 = arith.constant 0 : index
    %c8_225 = arith.constant 8 : index
    %c0_226 = arith.constant 0 : index
    %c0_227 = arith.constant 0 : index
    %2050 = vector.load %arg1[%c0_224, %c8_225, %c0_226, %c0_227] : memref<1x16x8x128xf32, #tpu.memory_space<vmem>>, vector<1x1x8x128xf32>
    %2051 = vector.shape_cast %2050 : vector<1x1x8x128xf32> to vector<8x128xf32>
    %c0_228 = arith.constant 0 : index
    %c9_229 = arith.constant 9 : index
    %c0_230 = arith.constant 0 : index
    %c0_231 = arith.constant 0 : index
    %2052 = vector.load %arg1[%c0_228, %c9_229, %c0_230, %c0_231] : memref<1x16x8x128xf32, #tpu.memory_space<vmem>>, vector<1x1x8x128xf32>
    %2053 = vector.shape_cast %2052 : vector<1x1x8x128xf32> to vector<8x128xf32>
    %c0_232 = arith.constant 0 : index
    %c10_233 = arith.constant 10 : index
    %c0_234 = arith.constant 0 : index
    %c0_235 = arith.constant 0 : index
    %2054 = vector.load %arg1[%c0_232, %c10_233, %c0_234, %c0_235] : memref<1x16x8x128xf32, #tpu.memory_space<vmem>>, vector<1x1x8x128xf32>
    %2055 = vector.shape_cast %2054 : vector<1x1x8x128xf32> to vector<8x128xf32>
    %2056 = vector.broadcast %0 : f32 to vector<8x128xf32>
    %2057 = arith.mulf %2051, %2056 : vector<8x128xf32>
    %2058 = vector.broadcast %1 : f32 to vector<8x128xf32>
    %2059 = arith.mulf %2053, %2058 : vector<8x128xf32>
    %2060 = arith.addf %2057, %2059 : vector<8x128xf32>
    %2061 = vector.broadcast %2 : f32 to vector<8x128xf32>
    %2062 = arith.mulf %2055, %2061 : vector<8x128xf32>
    %2063 = arith.addf %2060, %2062 : vector<8x128xf32>
    %2064 = vector.broadcast %48 : f32 to vector<8x128xf32>
    %2065 = arith.addf %2063, %2064 : vector<8x128xf32>
    %cst_236 = arith.constant 0.000000e+00 : f32
    %2066 = vector.broadcast %cst_236 : f32 to vector<8x128xf32>
    %2067 = arith.maximumf %2065, %2066 : vector<8x128xf32>
    %2068 = vector.broadcast %64 : f32 to vector<8x128xf32>
    %2069 = arith.mulf %2067, %2068 : vector<8x128xf32>
    %2070 = arith.addf %2049, %2069 : vector<8x128xf32>
    %2071 = vector.broadcast %3 : f32 to vector<8x128xf32>
    %2072 = arith.mulf %2051, %2071 : vector<8x128xf32>
    %2073 = vector.broadcast %4 : f32 to vector<8x128xf32>
    %2074 = arith.mulf %2053, %2073 : vector<8x128xf32>
    %2075 = arith.addf %2072, %2074 : vector<8x128xf32>
    %2076 = vector.broadcast %5 : f32 to vector<8x128xf32>
    %2077 = arith.mulf %2055, %2076 : vector<8x128xf32>
    %2078 = arith.addf %2075, %2077 : vector<8x128xf32>
    %2079 = vector.broadcast %49 : f32 to vector<8x128xf32>
    %2080 = arith.addf %2078, %2079 : vector<8x128xf32>
    %cst_237 = arith.constant 0.000000e+00 : f32
    %2081 = vector.broadcast %cst_237 : f32 to vector<8x128xf32>
    %2082 = arith.maximumf %2080, %2081 : vector<8x128xf32>
    %2083 = vector.broadcast %65 : f32 to vector<8x128xf32>
    %2084 = arith.mulf %2082, %2083 : vector<8x128xf32>
    %2085 = arith.addf %2070, %2084 : vector<8x128xf32>
    %2086 = vector.broadcast %6 : f32 to vector<8x128xf32>
    %2087 = arith.mulf %2051, %2086 : vector<8x128xf32>
    %2088 = vector.broadcast %7 : f32 to vector<8x128xf32>
    %2089 = arith.mulf %2053, %2088 : vector<8x128xf32>
    %2090 = arith.addf %2087, %2089 : vector<8x128xf32>
    %2091 = vector.broadcast %8 : f32 to vector<8x128xf32>
    %2092 = arith.mulf %2055, %2091 : vector<8x128xf32>
    %2093 = arith.addf %2090, %2092 : vector<8x128xf32>
    %2094 = vector.broadcast %50 : f32 to vector<8x128xf32>
    %2095 = arith.addf %2093, %2094 : vector<8x128xf32>
    %cst_238 = arith.constant 0.000000e+00 : f32
    %2096 = vector.broadcast %cst_238 : f32 to vector<8x128xf32>
    %2097 = arith.maximumf %2095, %2096 : vector<8x128xf32>
    %2098 = vector.broadcast %66 : f32 to vector<8x128xf32>
    %2099 = arith.mulf %2097, %2098 : vector<8x128xf32>
    %2100 = arith.addf %2085, %2099 : vector<8x128xf32>
    %2101 = vector.broadcast %9 : f32 to vector<8x128xf32>
    %2102 = arith.mulf %2051, %2101 : vector<8x128xf32>
    %2103 = vector.broadcast %10 : f32 to vector<8x128xf32>
    %2104 = arith.mulf %2053, %2103 : vector<8x128xf32>
    %2105 = arith.addf %2102, %2104 : vector<8x128xf32>
    %2106 = vector.broadcast %11 : f32 to vector<8x128xf32>
    %2107 = arith.mulf %2055, %2106 : vector<8x128xf32>
    %2108 = arith.addf %2105, %2107 : vector<8x128xf32>
    %2109 = vector.broadcast %51 : f32 to vector<8x128xf32>
    %2110 = arith.addf %2108, %2109 : vector<8x128xf32>
    %cst_239 = arith.constant 0.000000e+00 : f32
    %2111 = vector.broadcast %cst_239 : f32 to vector<8x128xf32>
    %2112 = arith.maximumf %2110, %2111 : vector<8x128xf32>
    %2113 = vector.broadcast %67 : f32 to vector<8x128xf32>
    %2114 = arith.mulf %2112, %2113 : vector<8x128xf32>
    %2115 = arith.addf %2100, %2114 : vector<8x128xf32>
    %2116 = vector.broadcast %12 : f32 to vector<8x128xf32>
    %2117 = arith.mulf %2051, %2116 : vector<8x128xf32>
    %2118 = vector.broadcast %13 : f32 to vector<8x128xf32>
    %2119 = arith.mulf %2053, %2118 : vector<8x128xf32>
    %2120 = arith.addf %2117, %2119 : vector<8x128xf32>
    %2121 = vector.broadcast %14 : f32 to vector<8x128xf32>
    %2122 = arith.mulf %2055, %2121 : vector<8x128xf32>
    %2123 = arith.addf %2120, %2122 : vector<8x128xf32>
    %2124 = vector.broadcast %52 : f32 to vector<8x128xf32>
    %2125 = arith.addf %2123, %2124 : vector<8x128xf32>
    %cst_240 = arith.constant 0.000000e+00 : f32
    %2126 = vector.broadcast %cst_240 : f32 to vector<8x128xf32>
    %2127 = arith.maximumf %2125, %2126 : vector<8x128xf32>
    %2128 = vector.broadcast %68 : f32 to vector<8x128xf32>
    %2129 = arith.mulf %2127, %2128 : vector<8x128xf32>
    %2130 = arith.addf %2115, %2129 : vector<8x128xf32>
    %2131 = vector.broadcast %15 : f32 to vector<8x128xf32>
    %2132 = arith.mulf %2051, %2131 : vector<8x128xf32>
    %2133 = vector.broadcast %16 : f32 to vector<8x128xf32>
    %2134 = arith.mulf %2053, %2133 : vector<8x128xf32>
    %2135 = arith.addf %2132, %2134 : vector<8x128xf32>
    %2136 = vector.broadcast %17 : f32 to vector<8x128xf32>
    %2137 = arith.mulf %2055, %2136 : vector<8x128xf32>
    %2138 = arith.addf %2135, %2137 : vector<8x128xf32>
    %2139 = vector.broadcast %53 : f32 to vector<8x128xf32>
    %2140 = arith.addf %2138, %2139 : vector<8x128xf32>
    %cst_241 = arith.constant 0.000000e+00 : f32
    %2141 = vector.broadcast %cst_241 : f32 to vector<8x128xf32>
    %2142 = arith.maximumf %2140, %2141 : vector<8x128xf32>
    %2143 = vector.broadcast %69 : f32 to vector<8x128xf32>
    %2144 = arith.mulf %2142, %2143 : vector<8x128xf32>
    %2145 = arith.addf %2130, %2144 : vector<8x128xf32>
    %2146 = vector.broadcast %18 : f32 to vector<8x128xf32>
    %2147 = arith.mulf %2051, %2146 : vector<8x128xf32>
    %2148 = vector.broadcast %19 : f32 to vector<8x128xf32>
    %2149 = arith.mulf %2053, %2148 : vector<8x128xf32>
    %2150 = arith.addf %2147, %2149 : vector<8x128xf32>
    %2151 = vector.broadcast %20 : f32 to vector<8x128xf32>
    %2152 = arith.mulf %2055, %2151 : vector<8x128xf32>
    %2153 = arith.addf %2150, %2152 : vector<8x128xf32>
    %2154 = vector.broadcast %54 : f32 to vector<8x128xf32>
    %2155 = arith.addf %2153, %2154 : vector<8x128xf32>
    %cst_242 = arith.constant 0.000000e+00 : f32
    %2156 = vector.broadcast %cst_242 : f32 to vector<8x128xf32>
    %2157 = arith.maximumf %2155, %2156 : vector<8x128xf32>
    %2158 = vector.broadcast %70 : f32 to vector<8x128xf32>
    %2159 = arith.mulf %2157, %2158 : vector<8x128xf32>
    %2160 = arith.addf %2145, %2159 : vector<8x128xf32>
    %2161 = vector.broadcast %21 : f32 to vector<8x128xf32>
    %2162 = arith.mulf %2051, %2161 : vector<8x128xf32>
    %2163 = vector.broadcast %22 : f32 to vector<8x128xf32>
    %2164 = arith.mulf %2053, %2163 : vector<8x128xf32>
    %2165 = arith.addf %2162, %2164 : vector<8x128xf32>
    %2166 = vector.broadcast %23 : f32 to vector<8x128xf32>
    %2167 = arith.mulf %2055, %2166 : vector<8x128xf32>
    %2168 = arith.addf %2165, %2167 : vector<8x128xf32>
    %2169 = vector.broadcast %55 : f32 to vector<8x128xf32>
    %2170 = arith.addf %2168, %2169 : vector<8x128xf32>
    %cst_243 = arith.constant 0.000000e+00 : f32
    %2171 = vector.broadcast %cst_243 : f32 to vector<8x128xf32>
    %2172 = arith.maximumf %2170, %2171 : vector<8x128xf32>
    %2173 = vector.broadcast %71 : f32 to vector<8x128xf32>
    %2174 = arith.mulf %2172, %2173 : vector<8x128xf32>
    %2175 = arith.addf %2160, %2174 : vector<8x128xf32>
    %2176 = vector.broadcast %24 : f32 to vector<8x128xf32>
    %2177 = arith.mulf %2051, %2176 : vector<8x128xf32>
    %2178 = vector.broadcast %25 : f32 to vector<8x128xf32>
    %2179 = arith.mulf %2053, %2178 : vector<8x128xf32>
    %2180 = arith.addf %2177, %2179 : vector<8x128xf32>
    %2181 = vector.broadcast %26 : f32 to vector<8x128xf32>
    %2182 = arith.mulf %2055, %2181 : vector<8x128xf32>
    %2183 = arith.addf %2180, %2182 : vector<8x128xf32>
    %2184 = vector.broadcast %56 : f32 to vector<8x128xf32>
    %2185 = arith.addf %2183, %2184 : vector<8x128xf32>
    %cst_244 = arith.constant 0.000000e+00 : f32
    %2186 = vector.broadcast %cst_244 : f32 to vector<8x128xf32>
    %2187 = arith.maximumf %2185, %2186 : vector<8x128xf32>
    %2188 = vector.broadcast %72 : f32 to vector<8x128xf32>
    %2189 = arith.mulf %2187, %2188 : vector<8x128xf32>
    %2190 = arith.addf %2175, %2189 : vector<8x128xf32>
    %2191 = vector.broadcast %27 : f32 to vector<8x128xf32>
    %2192 = arith.mulf %2051, %2191 : vector<8x128xf32>
    %2193 = vector.broadcast %28 : f32 to vector<8x128xf32>
    %2194 = arith.mulf %2053, %2193 : vector<8x128xf32>
    %2195 = arith.addf %2192, %2194 : vector<8x128xf32>
    %2196 = vector.broadcast %29 : f32 to vector<8x128xf32>
    %2197 = arith.mulf %2055, %2196 : vector<8x128xf32>
    %2198 = arith.addf %2195, %2197 : vector<8x128xf32>
    %2199 = vector.broadcast %57 : f32 to vector<8x128xf32>
    %2200 = arith.addf %2198, %2199 : vector<8x128xf32>
    %cst_245 = arith.constant 0.000000e+00 : f32
    %2201 = vector.broadcast %cst_245 : f32 to vector<8x128xf32>
    %2202 = arith.maximumf %2200, %2201 : vector<8x128xf32>
    %2203 = vector.broadcast %73 : f32 to vector<8x128xf32>
    %2204 = arith.mulf %2202, %2203 : vector<8x128xf32>
    %2205 = arith.addf %2190, %2204 : vector<8x128xf32>
    %2206 = vector.broadcast %30 : f32 to vector<8x128xf32>
    %2207 = arith.mulf %2051, %2206 : vector<8x128xf32>
    %2208 = vector.broadcast %31 : f32 to vector<8x128xf32>
    %2209 = arith.mulf %2053, %2208 : vector<8x128xf32>
    %2210 = arith.addf %2207, %2209 : vector<8x128xf32>
    %2211 = vector.broadcast %32 : f32 to vector<8x128xf32>
    %2212 = arith.mulf %2055, %2211 : vector<8x128xf32>
    %2213 = arith.addf %2210, %2212 : vector<8x128xf32>
    %2214 = vector.broadcast %58 : f32 to vector<8x128xf32>
    %2215 = arith.addf %2213, %2214 : vector<8x128xf32>
    %cst_246 = arith.constant 0.000000e+00 : f32
    %2216 = vector.broadcast %cst_246 : f32 to vector<8x128xf32>
    %2217 = arith.maximumf %2215, %2216 : vector<8x128xf32>
    %2218 = vector.broadcast %74 : f32 to vector<8x128xf32>
    %2219 = arith.mulf %2217, %2218 : vector<8x128xf32>
    %2220 = arith.addf %2205, %2219 : vector<8x128xf32>
    %2221 = vector.broadcast %33 : f32 to vector<8x128xf32>
    %2222 = arith.mulf %2051, %2221 : vector<8x128xf32>
    %2223 = vector.broadcast %34 : f32 to vector<8x128xf32>
    %2224 = arith.mulf %2053, %2223 : vector<8x128xf32>
    %2225 = arith.addf %2222, %2224 : vector<8x128xf32>
    %2226 = vector.broadcast %35 : f32 to vector<8x128xf32>
    %2227 = arith.mulf %2055, %2226 : vector<8x128xf32>
    %2228 = arith.addf %2225, %2227 : vector<8x128xf32>
    %2229 = vector.broadcast %59 : f32 to vector<8x128xf32>
    %2230 = arith.addf %2228, %2229 : vector<8x128xf32>
    %cst_247 = arith.constant 0.000000e+00 : f32
    %2231 = vector.broadcast %cst_247 : f32 to vector<8x128xf32>
    %2232 = arith.maximumf %2230, %2231 : vector<8x128xf32>
    %2233 = vector.broadcast %75 : f32 to vector<8x128xf32>
    %2234 = arith.mulf %2232, %2233 : vector<8x128xf32>
    %2235 = arith.addf %2220, %2234 : vector<8x128xf32>
    %2236 = vector.broadcast %36 : f32 to vector<8x128xf32>
    %2237 = arith.mulf %2051, %2236 : vector<8x128xf32>
    %2238 = vector.broadcast %37 : f32 to vector<8x128xf32>
    %2239 = arith.mulf %2053, %2238 : vector<8x128xf32>
    %2240 = arith.addf %2237, %2239 : vector<8x128xf32>
    %2241 = vector.broadcast %38 : f32 to vector<8x128xf32>
    %2242 = arith.mulf %2055, %2241 : vector<8x128xf32>
    %2243 = arith.addf %2240, %2242 : vector<8x128xf32>
    %2244 = vector.broadcast %60 : f32 to vector<8x128xf32>
    %2245 = arith.addf %2243, %2244 : vector<8x128xf32>
    %cst_248 = arith.constant 0.000000e+00 : f32
    %2246 = vector.broadcast %cst_248 : f32 to vector<8x128xf32>
    %2247 = arith.maximumf %2245, %2246 : vector<8x128xf32>
    %2248 = vector.broadcast %76 : f32 to vector<8x128xf32>
    %2249 = arith.mulf %2247, %2248 : vector<8x128xf32>
    %2250 = arith.addf %2235, %2249 : vector<8x128xf32>
    %2251 = vector.broadcast %39 : f32 to vector<8x128xf32>
    %2252 = arith.mulf %2051, %2251 : vector<8x128xf32>
    %2253 = vector.broadcast %40 : f32 to vector<8x128xf32>
    %2254 = arith.mulf %2053, %2253 : vector<8x128xf32>
    %2255 = arith.addf %2252, %2254 : vector<8x128xf32>
    %2256 = vector.broadcast %41 : f32 to vector<8x128xf32>
    %2257 = arith.mulf %2055, %2256 : vector<8x128xf32>
    %2258 = arith.addf %2255, %2257 : vector<8x128xf32>
    %2259 = vector.broadcast %61 : f32 to vector<8x128xf32>
    %2260 = arith.addf %2258, %2259 : vector<8x128xf32>
    %cst_249 = arith.constant 0.000000e+00 : f32
    %2261 = vector.broadcast %cst_249 : f32 to vector<8x128xf32>
    %2262 = arith.maximumf %2260, %2261 : vector<8x128xf32>
    %2263 = vector.broadcast %77 : f32 to vector<8x128xf32>
    %2264 = arith.mulf %2262, %2263 : vector<8x128xf32>
    %2265 = arith.addf %2250, %2264 : vector<8x128xf32>
    %2266 = vector.broadcast %42 : f32 to vector<8x128xf32>
    %2267 = arith.mulf %2051, %2266 : vector<8x128xf32>
    %2268 = vector.broadcast %43 : f32 to vector<8x128xf32>
    %2269 = arith.mulf %2053, %2268 : vector<8x128xf32>
    %2270 = arith.addf %2267, %2269 : vector<8x128xf32>
    %2271 = vector.broadcast %44 : f32 to vector<8x128xf32>
    %2272 = arith.mulf %2055, %2271 : vector<8x128xf32>
    %2273 = arith.addf %2270, %2272 : vector<8x128xf32>
    %2274 = vector.broadcast %62 : f32 to vector<8x128xf32>
    %2275 = arith.addf %2273, %2274 : vector<8x128xf32>
    %cst_250 = arith.constant 0.000000e+00 : f32
    %2276 = vector.broadcast %cst_250 : f32 to vector<8x128xf32>
    %2277 = arith.maximumf %2275, %2276 : vector<8x128xf32>
    %2278 = vector.broadcast %78 : f32 to vector<8x128xf32>
    %2279 = arith.mulf %2277, %2278 : vector<8x128xf32>
    %2280 = arith.addf %2265, %2279 : vector<8x128xf32>
    %2281 = vector.broadcast %45 : f32 to vector<8x128xf32>
    %2282 = arith.mulf %2051, %2281 : vector<8x128xf32>
    %2283 = vector.broadcast %46 : f32 to vector<8x128xf32>
    %2284 = arith.mulf %2053, %2283 : vector<8x128xf32>
    %2285 = arith.addf %2282, %2284 : vector<8x128xf32>
    %2286 = vector.broadcast %47 : f32 to vector<8x128xf32>
    %2287 = arith.mulf %2055, %2286 : vector<8x128xf32>
    %2288 = arith.addf %2285, %2287 : vector<8x128xf32>
    %2289 = vector.broadcast %63 : f32 to vector<8x128xf32>
    %2290 = arith.addf %2288, %2289 : vector<8x128xf32>
    %cst_251 = arith.constant 0.000000e+00 : f32
    %2291 = vector.broadcast %cst_251 : f32 to vector<8x128xf32>
    %2292 = arith.maximumf %2290, %2291 : vector<8x128xf32>
    %2293 = vector.broadcast %79 : f32 to vector<8x128xf32>
    %2294 = arith.mulf %2292, %2293 : vector<8x128xf32>
    %2295 = arith.addf %2280, %2294 : vector<8x128xf32>
    %c0_252 = arith.constant 0 : index
    %c9_253 = arith.constant 9 : index
    %c0_254 = arith.constant 0 : index
    %c0_255 = arith.constant 0 : index
    %2296 = vector.load %arg1[%c0_252, %c9_253, %c0_254, %c0_255] : memref<1x16x8x128xf32, #tpu.memory_space<vmem>>, vector<1x1x8x128xf32>
    %2297 = vector.shape_cast %2296 : vector<1x1x8x128xf32> to vector<8x128xf32>
    %c0_256 = arith.constant 0 : index
    %c10_257 = arith.constant 10 : index
    %c0_258 = arith.constant 0 : index
    %c0_259 = arith.constant 0 : index
    %2298 = vector.load %arg1[%c0_256, %c10_257, %c0_258, %c0_259] : memref<1x16x8x128xf32, #tpu.memory_space<vmem>>, vector<1x1x8x128xf32>
    %2299 = vector.shape_cast %2298 : vector<1x1x8x128xf32> to vector<8x128xf32>
    %c0_260 = arith.constant 0 : index
    %c11_261 = arith.constant 11 : index
    %c0_262 = arith.constant 0 : index
    %c0_263 = arith.constant 0 : index
    %2300 = vector.load %arg1[%c0_260, %c11_261, %c0_262, %c0_263] : memref<1x16x8x128xf32, #tpu.memory_space<vmem>>, vector<1x1x8x128xf32>
    %2301 = vector.shape_cast %2300 : vector<1x1x8x128xf32> to vector<8x128xf32>
    %2302 = vector.broadcast %0 : f32 to vector<8x128xf32>
    %2303 = arith.mulf %2297, %2302 : vector<8x128xf32>
    %2304 = vector.broadcast %1 : f32 to vector<8x128xf32>
    %2305 = arith.mulf %2299, %2304 : vector<8x128xf32>
    %2306 = arith.addf %2303, %2305 : vector<8x128xf32>
    %2307 = vector.broadcast %2 : f32 to vector<8x128xf32>
    %2308 = arith.mulf %2301, %2307 : vector<8x128xf32>
    %2309 = arith.addf %2306, %2308 : vector<8x128xf32>
    %2310 = vector.broadcast %48 : f32 to vector<8x128xf32>
    %2311 = arith.addf %2309, %2310 : vector<8x128xf32>
    %cst_264 = arith.constant 0.000000e+00 : f32
    %2312 = vector.broadcast %cst_264 : f32 to vector<8x128xf32>
    %2313 = arith.maximumf %2311, %2312 : vector<8x128xf32>
    %2314 = vector.broadcast %64 : f32 to vector<8x128xf32>
    %2315 = arith.mulf %2313, %2314 : vector<8x128xf32>
    %2316 = arith.addf %2295, %2315 : vector<8x128xf32>
    %2317 = vector.broadcast %3 : f32 to vector<8x128xf32>
    %2318 = arith.mulf %2297, %2317 : vector<8x128xf32>
    %2319 = vector.broadcast %4 : f32 to vector<8x128xf32>
    %2320 = arith.mulf %2299, %2319 : vector<8x128xf32>
    %2321 = arith.addf %2318, %2320 : vector<8x128xf32>
    %2322 = vector.broadcast %5 : f32 to vector<8x128xf32>
    %2323 = arith.mulf %2301, %2322 : vector<8x128xf32>
    %2324 = arith.addf %2321, %2323 : vector<8x128xf32>
    %2325 = vector.broadcast %49 : f32 to vector<8x128xf32>
    %2326 = arith.addf %2324, %2325 : vector<8x128xf32>
    %cst_265 = arith.constant 0.000000e+00 : f32
    %2327 = vector.broadcast %cst_265 : f32 to vector<8x128xf32>
    %2328 = arith.maximumf %2326, %2327 : vector<8x128xf32>
    %2329 = vector.broadcast %65 : f32 to vector<8x128xf32>
    %2330 = arith.mulf %2328, %2329 : vector<8x128xf32>
    %2331 = arith.addf %2316, %2330 : vector<8x128xf32>
    %2332 = vector.broadcast %6 : f32 to vector<8x128xf32>
    %2333 = arith.mulf %2297, %2332 : vector<8x128xf32>
    %2334 = vector.broadcast %7 : f32 to vector<8x128xf32>
    %2335 = arith.mulf %2299, %2334 : vector<8x128xf32>
    %2336 = arith.addf %2333, %2335 : vector<8x128xf32>
    %2337 = vector.broadcast %8 : f32 to vector<8x128xf32>
    %2338 = arith.mulf %2301, %2337 : vector<8x128xf32>
    %2339 = arith.addf %2336, %2338 : vector<8x128xf32>
    %2340 = vector.broadcast %50 : f32 to vector<8x128xf32>
    %2341 = arith.addf %2339, %2340 : vector<8x128xf32>
    %cst_266 = arith.constant 0.000000e+00 : f32
    %2342 = vector.broadcast %cst_266 : f32 to vector<8x128xf32>
    %2343 = arith.maximumf %2341, %2342 : vector<8x128xf32>
    %2344 = vector.broadcast %66 : f32 to vector<8x128xf32>
    %2345 = arith.mulf %2343, %2344 : vector<8x128xf32>
    %2346 = arith.addf %2331, %2345 : vector<8x128xf32>
    %2347 = vector.broadcast %9 : f32 to vector<8x128xf32>
    %2348 = arith.mulf %2297, %2347 : vector<8x128xf32>
    %2349 = vector.broadcast %10 : f32 to vector<8x128xf32>
    %2350 = arith.mulf %2299, %2349 : vector<8x128xf32>
    %2351 = arith.addf %2348, %2350 : vector<8x128xf32>
    %2352 = vector.broadcast %11 : f32 to vector<8x128xf32>
    %2353 = arith.mulf %2301, %2352 : vector<8x128xf32>
    %2354 = arith.addf %2351, %2353 : vector<8x128xf32>
    %2355 = vector.broadcast %51 : f32 to vector<8x128xf32>
    %2356 = arith.addf %2354, %2355 : vector<8x128xf32>
    %cst_267 = arith.constant 0.000000e+00 : f32
    %2357 = vector.broadcast %cst_267 : f32 to vector<8x128xf32>
    %2358 = arith.maximumf %2356, %2357 : vector<8x128xf32>
    %2359 = vector.broadcast %67 : f32 to vector<8x128xf32>
    %2360 = arith.mulf %2358, %2359 : vector<8x128xf32>
    %2361 = arith.addf %2346, %2360 : vector<8x128xf32>
    %2362 = vector.broadcast %12 : f32 to vector<8x128xf32>
    %2363 = arith.mulf %2297, %2362 : vector<8x128xf32>
    %2364 = vector.broadcast %13 : f32 to vector<8x128xf32>
    %2365 = arith.mulf %2299, %2364 : vector<8x128xf32>
    %2366 = arith.addf %2363, %2365 : vector<8x128xf32>
    %2367 = vector.broadcast %14 : f32 to vector<8x128xf32>
    %2368 = arith.mulf %2301, %2367 : vector<8x128xf32>
    %2369 = arith.addf %2366, %2368 : vector<8x128xf32>
    %2370 = vector.broadcast %52 : f32 to vector<8x128xf32>
    %2371 = arith.addf %2369, %2370 : vector<8x128xf32>
    %cst_268 = arith.constant 0.000000e+00 : f32
    %2372 = vector.broadcast %cst_268 : f32 to vector<8x128xf32>
    %2373 = arith.maximumf %2371, %2372 : vector<8x128xf32>
    %2374 = vector.broadcast %68 : f32 to vector<8x128xf32>
    %2375 = arith.mulf %2373, %2374 : vector<8x128xf32>
    %2376 = arith.addf %2361, %2375 : vector<8x128xf32>
    %2377 = vector.broadcast %15 : f32 to vector<8x128xf32>
    %2378 = arith.mulf %2297, %2377 : vector<8x128xf32>
    %2379 = vector.broadcast %16 : f32 to vector<8x128xf32>
    %2380 = arith.mulf %2299, %2379 : vector<8x128xf32>
    %2381 = arith.addf %2378, %2380 : vector<8x128xf32>
    %2382 = vector.broadcast %17 : f32 to vector<8x128xf32>
    %2383 = arith.mulf %2301, %2382 : vector<8x128xf32>
    %2384 = arith.addf %2381, %2383 : vector<8x128xf32>
    %2385 = vector.broadcast %53 : f32 to vector<8x128xf32>
    %2386 = arith.addf %2384, %2385 : vector<8x128xf32>
    %cst_269 = arith.constant 0.000000e+00 : f32
    %2387 = vector.broadcast %cst_269 : f32 to vector<8x128xf32>
    %2388 = arith.maximumf %2386, %2387 : vector<8x128xf32>
    %2389 = vector.broadcast %69 : f32 to vector<8x128xf32>
    %2390 = arith.mulf %2388, %2389 : vector<8x128xf32>
    %2391 = arith.addf %2376, %2390 : vector<8x128xf32>
    %2392 = vector.broadcast %18 : f32 to vector<8x128xf32>
    %2393 = arith.mulf %2297, %2392 : vector<8x128xf32>
    %2394 = vector.broadcast %19 : f32 to vector<8x128xf32>
    %2395 = arith.mulf %2299, %2394 : vector<8x128xf32>
    %2396 = arith.addf %2393, %2395 : vector<8x128xf32>
    %2397 = vector.broadcast %20 : f32 to vector<8x128xf32>
    %2398 = arith.mulf %2301, %2397 : vector<8x128xf32>
    %2399 = arith.addf %2396, %2398 : vector<8x128xf32>
    %2400 = vector.broadcast %54 : f32 to vector<8x128xf32>
    %2401 = arith.addf %2399, %2400 : vector<8x128xf32>
    %cst_270 = arith.constant 0.000000e+00 : f32
    %2402 = vector.broadcast %cst_270 : f32 to vector<8x128xf32>
    %2403 = arith.maximumf %2401, %2402 : vector<8x128xf32>
    %2404 = vector.broadcast %70 : f32 to vector<8x128xf32>
    %2405 = arith.mulf %2403, %2404 : vector<8x128xf32>
    %2406 = arith.addf %2391, %2405 : vector<8x128xf32>
    %2407 = vector.broadcast %21 : f32 to vector<8x128xf32>
    %2408 = arith.mulf %2297, %2407 : vector<8x128xf32>
    %2409 = vector.broadcast %22 : f32 to vector<8x128xf32>
    %2410 = arith.mulf %2299, %2409 : vector<8x128xf32>
    %2411 = arith.addf %2408, %2410 : vector<8x128xf32>
    %2412 = vector.broadcast %23 : f32 to vector<8x128xf32>
    %2413 = arith.mulf %2301, %2412 : vector<8x128xf32>
    %2414 = arith.addf %2411, %2413 : vector<8x128xf32>
    %2415 = vector.broadcast %55 : f32 to vector<8x128xf32>
    %2416 = arith.addf %2414, %2415 : vector<8x128xf32>
    %cst_271 = arith.constant 0.000000e+00 : f32
    %2417 = vector.broadcast %cst_271 : f32 to vector<8x128xf32>
    %2418 = arith.maximumf %2416, %2417 : vector<8x128xf32>
    %2419 = vector.broadcast %71 : f32 to vector<8x128xf32>
    %2420 = arith.mulf %2418, %2419 : vector<8x128xf32>
    %2421 = arith.addf %2406, %2420 : vector<8x128xf32>
    %2422 = vector.broadcast %24 : f32 to vector<8x128xf32>
    %2423 = arith.mulf %2297, %2422 : vector<8x128xf32>
    %2424 = vector.broadcast %25 : f32 to vector<8x128xf32>
    %2425 = arith.mulf %2299, %2424 : vector<8x128xf32>
    %2426 = arith.addf %2423, %2425 : vector<8x128xf32>
    %2427 = vector.broadcast %26 : f32 to vector<8x128xf32>
    %2428 = arith.mulf %2301, %2427 : vector<8x128xf32>
    %2429 = arith.addf %2426, %2428 : vector<8x128xf32>
    %2430 = vector.broadcast %56 : f32 to vector<8x128xf32>
    %2431 = arith.addf %2429, %2430 : vector<8x128xf32>
    %cst_272 = arith.constant 0.000000e+00 : f32
    %2432 = vector.broadcast %cst_272 : f32 to vector<8x128xf32>
    %2433 = arith.maximumf %2431, %2432 : vector<8x128xf32>
    %2434 = vector.broadcast %72 : f32 to vector<8x128xf32>
    %2435 = arith.mulf %2433, %2434 : vector<8x128xf32>
    %2436 = arith.addf %2421, %2435 : vector<8x128xf32>
    %2437 = vector.broadcast %27 : f32 to vector<8x128xf32>
    %2438 = arith.mulf %2297, %2437 : vector<8x128xf32>
    %2439 = vector.broadcast %28 : f32 to vector<8x128xf32>
    %2440 = arith.mulf %2299, %2439 : vector<8x128xf32>
    %2441 = arith.addf %2438, %2440 : vector<8x128xf32>
    %2442 = vector.broadcast %29 : f32 to vector<8x128xf32>
    %2443 = arith.mulf %2301, %2442 : vector<8x128xf32>
    %2444 = arith.addf %2441, %2443 : vector<8x128xf32>
    %2445 = vector.broadcast %57 : f32 to vector<8x128xf32>
    %2446 = arith.addf %2444, %2445 : vector<8x128xf32>
    %cst_273 = arith.constant 0.000000e+00 : f32
    %2447 = vector.broadcast %cst_273 : f32 to vector<8x128xf32>
    %2448 = arith.maximumf %2446, %2447 : vector<8x128xf32>
    %2449 = vector.broadcast %73 : f32 to vector<8x128xf32>
    %2450 = arith.mulf %2448, %2449 : vector<8x128xf32>
    %2451 = arith.addf %2436, %2450 : vector<8x128xf32>
    %2452 = vector.broadcast %30 : f32 to vector<8x128xf32>
    %2453 = arith.mulf %2297, %2452 : vector<8x128xf32>
    %2454 = vector.broadcast %31 : f32 to vector<8x128xf32>
    %2455 = arith.mulf %2299, %2454 : vector<8x128xf32>
    %2456 = arith.addf %2453, %2455 : vector<8x128xf32>
    %2457 = vector.broadcast %32 : f32 to vector<8x128xf32>
    %2458 = arith.mulf %2301, %2457 : vector<8x128xf32>
    %2459 = arith.addf %2456, %2458 : vector<8x128xf32>
    %2460 = vector.broadcast %58 : f32 to vector<8x128xf32>
    %2461 = arith.addf %2459, %2460 : vector<8x128xf32>
    %cst_274 = arith.constant 0.000000e+00 : f32
    %2462 = vector.broadcast %cst_274 : f32 to vector<8x128xf32>
    %2463 = arith.maximumf %2461, %2462 : vector<8x128xf32>
    %2464 = vector.broadcast %74 : f32 to vector<8x128xf32>
    %2465 = arith.mulf %2463, %2464 : vector<8x128xf32>
    %2466 = arith.addf %2451, %2465 : vector<8x128xf32>
    %2467 = vector.broadcast %33 : f32 to vector<8x128xf32>
    %2468 = arith.mulf %2297, %2467 : vector<8x128xf32>
    %2469 = vector.broadcast %34 : f32 to vector<8x128xf32>
    %2470 = arith.mulf %2299, %2469 : vector<8x128xf32>
    %2471 = arith.addf %2468, %2470 : vector<8x128xf32>
    %2472 = vector.broadcast %35 : f32 to vector<8x128xf32>
    %2473 = arith.mulf %2301, %2472 : vector<8x128xf32>
    %2474 = arith.addf %2471, %2473 : vector<8x128xf32>
    %2475 = vector.broadcast %59 : f32 to vector<8x128xf32>
    %2476 = arith.addf %2474, %2475 : vector<8x128xf32>
    %cst_275 = arith.constant 0.000000e+00 : f32
    %2477 = vector.broadcast %cst_275 : f32 to vector<8x128xf32>
    %2478 = arith.maximumf %2476, %2477 : vector<8x128xf32>
    %2479 = vector.broadcast %75 : f32 to vector<8x128xf32>
    %2480 = arith.mulf %2478, %2479 : vector<8x128xf32>
    %2481 = arith.addf %2466, %2480 : vector<8x128xf32>
    %2482 = vector.broadcast %36 : f32 to vector<8x128xf32>
    %2483 = arith.mulf %2297, %2482 : vector<8x128xf32>
    %2484 = vector.broadcast %37 : f32 to vector<8x128xf32>
    %2485 = arith.mulf %2299, %2484 : vector<8x128xf32>
    %2486 = arith.addf %2483, %2485 : vector<8x128xf32>
    %2487 = vector.broadcast %38 : f32 to vector<8x128xf32>
    %2488 = arith.mulf %2301, %2487 : vector<8x128xf32>
    %2489 = arith.addf %2486, %2488 : vector<8x128xf32>
    %2490 = vector.broadcast %60 : f32 to vector<8x128xf32>
    %2491 = arith.addf %2489, %2490 : vector<8x128xf32>
    %cst_276 = arith.constant 0.000000e+00 : f32
    %2492 = vector.broadcast %cst_276 : f32 to vector<8x128xf32>
    %2493 = arith.maximumf %2491, %2492 : vector<8x128xf32>
    %2494 = vector.broadcast %76 : f32 to vector<8x128xf32>
    %2495 = arith.mulf %2493, %2494 : vector<8x128xf32>
    %2496 = arith.addf %2481, %2495 : vector<8x128xf32>
    %2497 = vector.broadcast %39 : f32 to vector<8x128xf32>
    %2498 = arith.mulf %2297, %2497 : vector<8x128xf32>
    %2499 = vector.broadcast %40 : f32 to vector<8x128xf32>
    %2500 = arith.mulf %2299, %2499 : vector<8x128xf32>
    %2501 = arith.addf %2498, %2500 : vector<8x128xf32>
    %2502 = vector.broadcast %41 : f32 to vector<8x128xf32>
    %2503 = arith.mulf %2301, %2502 : vector<8x128xf32>
    %2504 = arith.addf %2501, %2503 : vector<8x128xf32>
    %2505 = vector.broadcast %61 : f32 to vector<8x128xf32>
    %2506 = arith.addf %2504, %2505 : vector<8x128xf32>
    %cst_277 = arith.constant 0.000000e+00 : f32
    %2507 = vector.broadcast %cst_277 : f32 to vector<8x128xf32>
    %2508 = arith.maximumf %2506, %2507 : vector<8x128xf32>
    %2509 = vector.broadcast %77 : f32 to vector<8x128xf32>
    %2510 = arith.mulf %2508, %2509 : vector<8x128xf32>
    %2511 = arith.addf %2496, %2510 : vector<8x128xf32>
    %2512 = vector.broadcast %42 : f32 to vector<8x128xf32>
    %2513 = arith.mulf %2297, %2512 : vector<8x128xf32>
    %2514 = vector.broadcast %43 : f32 to vector<8x128xf32>
    %2515 = arith.mulf %2299, %2514 : vector<8x128xf32>
    %2516 = arith.addf %2513, %2515 : vector<8x128xf32>
    %2517 = vector.broadcast %44 : f32 to vector<8x128xf32>
    %2518 = arith.mulf %2301, %2517 : vector<8x128xf32>
    %2519 = arith.addf %2516, %2518 : vector<8x128xf32>
    %2520 = vector.broadcast %62 : f32 to vector<8x128xf32>
    %2521 = arith.addf %2519, %2520 : vector<8x128xf32>
    %cst_278 = arith.constant 0.000000e+00 : f32
    %2522 = vector.broadcast %cst_278 : f32 to vector<8x128xf32>
    %2523 = arith.maximumf %2521, %2522 : vector<8x128xf32>
    %2524 = vector.broadcast %78 : f32 to vector<8x128xf32>
    %2525 = arith.mulf %2523, %2524 : vector<8x128xf32>
    %2526 = arith.addf %2511, %2525 : vector<8x128xf32>
    %2527 = vector.broadcast %45 : f32 to vector<8x128xf32>
    %2528 = arith.mulf %2297, %2527 : vector<8x128xf32>
    %2529 = vector.broadcast %46 : f32 to vector<8x128xf32>
    %2530 = arith.mulf %2299, %2529 : vector<8x128xf32>
    %2531 = arith.addf %2528, %2530 : vector<8x128xf32>
    %2532 = vector.broadcast %47 : f32 to vector<8x128xf32>
    %2533 = arith.mulf %2301, %2532 : vector<8x128xf32>
    %2534 = arith.addf %2531, %2533 : vector<8x128xf32>
    %2535 = vector.broadcast %63 : f32 to vector<8x128xf32>
    %2536 = arith.addf %2534, %2535 : vector<8x128xf32>
    %cst_279 = arith.constant 0.000000e+00 : f32
    %2537 = vector.broadcast %cst_279 : f32 to vector<8x128xf32>
    %2538 = arith.maximumf %2536, %2537 : vector<8x128xf32>
    %2539 = vector.broadcast %79 : f32 to vector<8x128xf32>
    %2540 = arith.mulf %2538, %2539 : vector<8x128xf32>
    %2541 = arith.addf %2526, %2540 : vector<8x128xf32>
    %c0_280 = arith.constant 0 : index
    %c10_281 = arith.constant 10 : index
    %c0_282 = arith.constant 0 : index
    %c0_283 = arith.constant 0 : index
    %2542 = vector.load %arg1[%c0_280, %c10_281, %c0_282, %c0_283] : memref<1x16x8x128xf32, #tpu.memory_space<vmem>>, vector<1x1x8x128xf32>
    %2543 = vector.shape_cast %2542 : vector<1x1x8x128xf32> to vector<8x128xf32>
    %c0_284 = arith.constant 0 : index
    %c11_285 = arith.constant 11 : index
    %c0_286 = arith.constant 0 : index
    %c0_287 = arith.constant 0 : index
    %2544 = vector.load %arg1[%c0_284, %c11_285, %c0_286, %c0_287] : memref<1x16x8x128xf32, #tpu.memory_space<vmem>>, vector<1x1x8x128xf32>
    %2545 = vector.shape_cast %2544 : vector<1x1x8x128xf32> to vector<8x128xf32>
    %c0_288 = arith.constant 0 : index
    %c12_289 = arith.constant 12 : index
    %c0_290 = arith.constant 0 : index
    %c0_291 = arith.constant 0 : index
    %2546 = vector.load %arg1[%c0_288, %c12_289, %c0_290, %c0_291] : memref<1x16x8x128xf32, #tpu.memory_space<vmem>>, vector<1x1x8x128xf32>
    %2547 = vector.shape_cast %2546 : vector<1x1x8x128xf32> to vector<8x128xf32>
    %2548 = vector.broadcast %0 : f32 to vector<8x128xf32>
    %2549 = arith.mulf %2543, %2548 : vector<8x128xf32>
    %2550 = vector.broadcast %1 : f32 to vector<8x128xf32>
    %2551 = arith.mulf %2545, %2550 : vector<8x128xf32>
    %2552 = arith.addf %2549, %2551 : vector<8x128xf32>
    %2553 = vector.broadcast %2 : f32 to vector<8x128xf32>
    %2554 = arith.mulf %2547, %2553 : vector<8x128xf32>
    %2555 = arith.addf %2552, %2554 : vector<8x128xf32>
    %2556 = vector.broadcast %48 : f32 to vector<8x128xf32>
    %2557 = arith.addf %2555, %2556 : vector<8x128xf32>
    %cst_292 = arith.constant 0.000000e+00 : f32
    %2558 = vector.broadcast %cst_292 : f32 to vector<8x128xf32>
    %2559 = arith.maximumf %2557, %2558 : vector<8x128xf32>
    %2560 = vector.broadcast %64 : f32 to vector<8x128xf32>
    %2561 = arith.mulf %2559, %2560 : vector<8x128xf32>
    %2562 = arith.addf %2541, %2561 : vector<8x128xf32>
    %2563 = vector.broadcast %3 : f32 to vector<8x128xf32>
    %2564 = arith.mulf %2543, %2563 : vector<8x128xf32>
    %2565 = vector.broadcast %4 : f32 to vector<8x128xf32>
    %2566 = arith.mulf %2545, %2565 : vector<8x128xf32>
    %2567 = arith.addf %2564, %2566 : vector<8x128xf32>
    %2568 = vector.broadcast %5 : f32 to vector<8x128xf32>
    %2569 = arith.mulf %2547, %2568 : vector<8x128xf32>
    %2570 = arith.addf %2567, %2569 : vector<8x128xf32>
    %2571 = vector.broadcast %49 : f32 to vector<8x128xf32>
    %2572 = arith.addf %2570, %2571 : vector<8x128xf32>
    %cst_293 = arith.constant 0.000000e+00 : f32
    %2573 = vector.broadcast %cst_293 : f32 to vector<8x128xf32>
    %2574 = arith.maximumf %2572, %2573 : vector<8x128xf32>
    %2575 = vector.broadcast %65 : f32 to vector<8x128xf32>
    %2576 = arith.mulf %2574, %2575 : vector<8x128xf32>
    %2577 = arith.addf %2562, %2576 : vector<8x128xf32>
    %2578 = vector.broadcast %6 : f32 to vector<8x128xf32>
    %2579 = arith.mulf %2543, %2578 : vector<8x128xf32>
    %2580 = vector.broadcast %7 : f32 to vector<8x128xf32>
    %2581 = arith.mulf %2545, %2580 : vector<8x128xf32>
    %2582 = arith.addf %2579, %2581 : vector<8x128xf32>
    %2583 = vector.broadcast %8 : f32 to vector<8x128xf32>
    %2584 = arith.mulf %2547, %2583 : vector<8x128xf32>
    %2585 = arith.addf %2582, %2584 : vector<8x128xf32>
    %2586 = vector.broadcast %50 : f32 to vector<8x128xf32>
    %2587 = arith.addf %2585, %2586 : vector<8x128xf32>
    %cst_294 = arith.constant 0.000000e+00 : f32
    %2588 = vector.broadcast %cst_294 : f32 to vector<8x128xf32>
    %2589 = arith.maximumf %2587, %2588 : vector<8x128xf32>
    %2590 = vector.broadcast %66 : f32 to vector<8x128xf32>
    %2591 = arith.mulf %2589, %2590 : vector<8x128xf32>
    %2592 = arith.addf %2577, %2591 : vector<8x128xf32>
    %2593 = vector.broadcast %9 : f32 to vector<8x128xf32>
    %2594 = arith.mulf %2543, %2593 : vector<8x128xf32>
    %2595 = vector.broadcast %10 : f32 to vector<8x128xf32>
    %2596 = arith.mulf %2545, %2595 : vector<8x128xf32>
    %2597 = arith.addf %2594, %2596 : vector<8x128xf32>
    %2598 = vector.broadcast %11 : f32 to vector<8x128xf32>
    %2599 = arith.mulf %2547, %2598 : vector<8x128xf32>
    %2600 = arith.addf %2597, %2599 : vector<8x128xf32>
    %2601 = vector.broadcast %51 : f32 to vector<8x128xf32>
    %2602 = arith.addf %2600, %2601 : vector<8x128xf32>
    %cst_295 = arith.constant 0.000000e+00 : f32
    %2603 = vector.broadcast %cst_295 : f32 to vector<8x128xf32>
    %2604 = arith.maximumf %2602, %2603 : vector<8x128xf32>
    %2605 = vector.broadcast %67 : f32 to vector<8x128xf32>
    %2606 = arith.mulf %2604, %2605 : vector<8x128xf32>
    %2607 = arith.addf %2592, %2606 : vector<8x128xf32>
    %2608 = vector.broadcast %12 : f32 to vector<8x128xf32>
    %2609 = arith.mulf %2543, %2608 : vector<8x128xf32>
    %2610 = vector.broadcast %13 : f32 to vector<8x128xf32>
    %2611 = arith.mulf %2545, %2610 : vector<8x128xf32>
    %2612 = arith.addf %2609, %2611 : vector<8x128xf32>
    %2613 = vector.broadcast %14 : f32 to vector<8x128xf32>
    %2614 = arith.mulf %2547, %2613 : vector<8x128xf32>
    %2615 = arith.addf %2612, %2614 : vector<8x128xf32>
    %2616 = vector.broadcast %52 : f32 to vector<8x128xf32>
    %2617 = arith.addf %2615, %2616 : vector<8x128xf32>
    %cst_296 = arith.constant 0.000000e+00 : f32
    %2618 = vector.broadcast %cst_296 : f32 to vector<8x128xf32>
    %2619 = arith.maximumf %2617, %2618 : vector<8x128xf32>
    %2620 = vector.broadcast %68 : f32 to vector<8x128xf32>
    %2621 = arith.mulf %2619, %2620 : vector<8x128xf32>
    %2622 = arith.addf %2607, %2621 : vector<8x128xf32>
    %2623 = vector.broadcast %15 : f32 to vector<8x128xf32>
    %2624 = arith.mulf %2543, %2623 : vector<8x128xf32>
    %2625 = vector.broadcast %16 : f32 to vector<8x128xf32>
    %2626 = arith.mulf %2545, %2625 : vector<8x128xf32>
    %2627 = arith.addf %2624, %2626 : vector<8x128xf32>
    %2628 = vector.broadcast %17 : f32 to vector<8x128xf32>
    %2629 = arith.mulf %2547, %2628 : vector<8x128xf32>
    %2630 = arith.addf %2627, %2629 : vector<8x128xf32>
    %2631 = vector.broadcast %53 : f32 to vector<8x128xf32>
    %2632 = arith.addf %2630, %2631 : vector<8x128xf32>
    %cst_297 = arith.constant 0.000000e+00 : f32
    %2633 = vector.broadcast %cst_297 : f32 to vector<8x128xf32>
    %2634 = arith.maximumf %2632, %2633 : vector<8x128xf32>
    %2635 = vector.broadcast %69 : f32 to vector<8x128xf32>
    %2636 = arith.mulf %2634, %2635 : vector<8x128xf32>
    %2637 = arith.addf %2622, %2636 : vector<8x128xf32>
    %2638 = vector.broadcast %18 : f32 to vector<8x128xf32>
    %2639 = arith.mulf %2543, %2638 : vector<8x128xf32>
    %2640 = vector.broadcast %19 : f32 to vector<8x128xf32>
    %2641 = arith.mulf %2545, %2640 : vector<8x128xf32>
    %2642 = arith.addf %2639, %2641 : vector<8x128xf32>
    %2643 = vector.broadcast %20 : f32 to vector<8x128xf32>
    %2644 = arith.mulf %2547, %2643 : vector<8x128xf32>
    %2645 = arith.addf %2642, %2644 : vector<8x128xf32>
    %2646 = vector.broadcast %54 : f32 to vector<8x128xf32>
    %2647 = arith.addf %2645, %2646 : vector<8x128xf32>
    %cst_298 = arith.constant 0.000000e+00 : f32
    %2648 = vector.broadcast %cst_298 : f32 to vector<8x128xf32>
    %2649 = arith.maximumf %2647, %2648 : vector<8x128xf32>
    %2650 = vector.broadcast %70 : f32 to vector<8x128xf32>
    %2651 = arith.mulf %2649, %2650 : vector<8x128xf32>
    %2652 = arith.addf %2637, %2651 : vector<8x128xf32>
    %2653 = vector.broadcast %21 : f32 to vector<8x128xf32>
    %2654 = arith.mulf %2543, %2653 : vector<8x128xf32>
    %2655 = vector.broadcast %22 : f32 to vector<8x128xf32>
    %2656 = arith.mulf %2545, %2655 : vector<8x128xf32>
    %2657 = arith.addf %2654, %2656 : vector<8x128xf32>
    %2658 = vector.broadcast %23 : f32 to vector<8x128xf32>
    %2659 = arith.mulf %2547, %2658 : vector<8x128xf32>
    %2660 = arith.addf %2657, %2659 : vector<8x128xf32>
    %2661 = vector.broadcast %55 : f32 to vector<8x128xf32>
    %2662 = arith.addf %2660, %2661 : vector<8x128xf32>
    %cst_299 = arith.constant 0.000000e+00 : f32
    %2663 = vector.broadcast %cst_299 : f32 to vector<8x128xf32>
    %2664 = arith.maximumf %2662, %2663 : vector<8x128xf32>
    %2665 = vector.broadcast %71 : f32 to vector<8x128xf32>
    %2666 = arith.mulf %2664, %2665 : vector<8x128xf32>
    %2667 = arith.addf %2652, %2666 : vector<8x128xf32>
    %2668 = vector.broadcast %24 : f32 to vector<8x128xf32>
    %2669 = arith.mulf %2543, %2668 : vector<8x128xf32>
    %2670 = vector.broadcast %25 : f32 to vector<8x128xf32>
    %2671 = arith.mulf %2545, %2670 : vector<8x128xf32>
    %2672 = arith.addf %2669, %2671 : vector<8x128xf32>
    %2673 = vector.broadcast %26 : f32 to vector<8x128xf32>
    %2674 = arith.mulf %2547, %2673 : vector<8x128xf32>
    %2675 = arith.addf %2672, %2674 : vector<8x128xf32>
    %2676 = vector.broadcast %56 : f32 to vector<8x128xf32>
    %2677 = arith.addf %2675, %2676 : vector<8x128xf32>
    %cst_300 = arith.constant 0.000000e+00 : f32
    %2678 = vector.broadcast %cst_300 : f32 to vector<8x128xf32>
    %2679 = arith.maximumf %2677, %2678 : vector<8x128xf32>
    %2680 = vector.broadcast %72 : f32 to vector<8x128xf32>
    %2681 = arith.mulf %2679, %2680 : vector<8x128xf32>
    %2682 = arith.addf %2667, %2681 : vector<8x128xf32>
    %2683 = vector.broadcast %27 : f32 to vector<8x128xf32>
    %2684 = arith.mulf %2543, %2683 : vector<8x128xf32>
    %2685 = vector.broadcast %28 : f32 to vector<8x128xf32>
    %2686 = arith.mulf %2545, %2685 : vector<8x128xf32>
    %2687 = arith.addf %2684, %2686 : vector<8x128xf32>
    %2688 = vector.broadcast %29 : f32 to vector<8x128xf32>
    %2689 = arith.mulf %2547, %2688 : vector<8x128xf32>
    %2690 = arith.addf %2687, %2689 : vector<8x128xf32>
    %2691 = vector.broadcast %57 : f32 to vector<8x128xf32>
    %2692 = arith.addf %2690, %2691 : vector<8x128xf32>
    %cst_301 = arith.constant 0.000000e+00 : f32
    %2693 = vector.broadcast %cst_301 : f32 to vector<8x128xf32>
    %2694 = arith.maximumf %2692, %2693 : vector<8x128xf32>
    %2695 = vector.broadcast %73 : f32 to vector<8x128xf32>
    %2696 = arith.mulf %2694, %2695 : vector<8x128xf32>
    %2697 = arith.addf %2682, %2696 : vector<8x128xf32>
    %2698 = vector.broadcast %30 : f32 to vector<8x128xf32>
    %2699 = arith.mulf %2543, %2698 : vector<8x128xf32>
    %2700 = vector.broadcast %31 : f32 to vector<8x128xf32>
    %2701 = arith.mulf %2545, %2700 : vector<8x128xf32>
    %2702 = arith.addf %2699, %2701 : vector<8x128xf32>
    %2703 = vector.broadcast %32 : f32 to vector<8x128xf32>
    %2704 = arith.mulf %2547, %2703 : vector<8x128xf32>
    %2705 = arith.addf %2702, %2704 : vector<8x128xf32>
    %2706 = vector.broadcast %58 : f32 to vector<8x128xf32>
    %2707 = arith.addf %2705, %2706 : vector<8x128xf32>
    %cst_302 = arith.constant 0.000000e+00 : f32
    %2708 = vector.broadcast %cst_302 : f32 to vector<8x128xf32>
    %2709 = arith.maximumf %2707, %2708 : vector<8x128xf32>
    %2710 = vector.broadcast %74 : f32 to vector<8x128xf32>
    %2711 = arith.mulf %2709, %2710 : vector<8x128xf32>
    %2712 = arith.addf %2697, %2711 : vector<8x128xf32>
    %2713 = vector.broadcast %33 : f32 to vector<8x128xf32>
    %2714 = arith.mulf %2543, %2713 : vector<8x128xf32>
    %2715 = vector.broadcast %34 : f32 to vector<8x128xf32>
    %2716 = arith.mulf %2545, %2715 : vector<8x128xf32>
    %2717 = arith.addf %2714, %2716 : vector<8x128xf32>
    %2718 = vector.broadcast %35 : f32 to vector<8x128xf32>
    %2719 = arith.mulf %2547, %2718 : vector<8x128xf32>
    %2720 = arith.addf %2717, %2719 : vector<8x128xf32>
    %2721 = vector.broadcast %59 : f32 to vector<8x128xf32>
    %2722 = arith.addf %2720, %2721 : vector<8x128xf32>
    %cst_303 = arith.constant 0.000000e+00 : f32
    %2723 = vector.broadcast %cst_303 : f32 to vector<8x128xf32>
    %2724 = arith.maximumf %2722, %2723 : vector<8x128xf32>
    %2725 = vector.broadcast %75 : f32 to vector<8x128xf32>
    %2726 = arith.mulf %2724, %2725 : vector<8x128xf32>
    %2727 = arith.addf %2712, %2726 : vector<8x128xf32>
    %2728 = vector.broadcast %36 : f32 to vector<8x128xf32>
    %2729 = arith.mulf %2543, %2728 : vector<8x128xf32>
    %2730 = vector.broadcast %37 : f32 to vector<8x128xf32>
    %2731 = arith.mulf %2545, %2730 : vector<8x128xf32>
    %2732 = arith.addf %2729, %2731 : vector<8x128xf32>
    %2733 = vector.broadcast %38 : f32 to vector<8x128xf32>
    %2734 = arith.mulf %2547, %2733 : vector<8x128xf32>
    %2735 = arith.addf %2732, %2734 : vector<8x128xf32>
    %2736 = vector.broadcast %60 : f32 to vector<8x128xf32>
    %2737 = arith.addf %2735, %2736 : vector<8x128xf32>
    %cst_304 = arith.constant 0.000000e+00 : f32
    %2738 = vector.broadcast %cst_304 : f32 to vector<8x128xf32>
    %2739 = arith.maximumf %2737, %2738 : vector<8x128xf32>
    %2740 = vector.broadcast %76 : f32 to vector<8x128xf32>
    %2741 = arith.mulf %2739, %2740 : vector<8x128xf32>
    %2742 = arith.addf %2727, %2741 : vector<8x128xf32>
    %2743 = vector.broadcast %39 : f32 to vector<8x128xf32>
    %2744 = arith.mulf %2543, %2743 : vector<8x128xf32>
    %2745 = vector.broadcast %40 : f32 to vector<8x128xf32>
    %2746 = arith.mulf %2545, %2745 : vector<8x128xf32>
    %2747 = arith.addf %2744, %2746 : vector<8x128xf32>
    %2748 = vector.broadcast %41 : f32 to vector<8x128xf32>
    %2749 = arith.mulf %2547, %2748 : vector<8x128xf32>
    %2750 = arith.addf %2747, %2749 : vector<8x128xf32>
    %2751 = vector.broadcast %61 : f32 to vector<8x128xf32>
    %2752 = arith.addf %2750, %2751 : vector<8x128xf32>
    %cst_305 = arith.constant 0.000000e+00 : f32
    %2753 = vector.broadcast %cst_305 : f32 to vector<8x128xf32>
    %2754 = arith.maximumf %2752, %2753 : vector<8x128xf32>
    %2755 = vector.broadcast %77 : f32 to vector<8x128xf32>
    %2756 = arith.mulf %2754, %2755 : vector<8x128xf32>
    %2757 = arith.addf %2742, %2756 : vector<8x128xf32>
    %2758 = vector.broadcast %42 : f32 to vector<8x128xf32>
    %2759 = arith.mulf %2543, %2758 : vector<8x128xf32>
    %2760 = vector.broadcast %43 : f32 to vector<8x128xf32>
    %2761 = arith.mulf %2545, %2760 : vector<8x128xf32>
    %2762 = arith.addf %2759, %2761 : vector<8x128xf32>
    %2763 = vector.broadcast %44 : f32 to vector<8x128xf32>
    %2764 = arith.mulf %2547, %2763 : vector<8x128xf32>
    %2765 = arith.addf %2762, %2764 : vector<8x128xf32>
    %2766 = vector.broadcast %62 : f32 to vector<8x128xf32>
    %2767 = arith.addf %2765, %2766 : vector<8x128xf32>
    %cst_306 = arith.constant 0.000000e+00 : f32
    %2768 = vector.broadcast %cst_306 : f32 to vector<8x128xf32>
    %2769 = arith.maximumf %2767, %2768 : vector<8x128xf32>
    %2770 = vector.broadcast %78 : f32 to vector<8x128xf32>
    %2771 = arith.mulf %2769, %2770 : vector<8x128xf32>
    %2772 = arith.addf %2757, %2771 : vector<8x128xf32>
    %2773 = vector.broadcast %45 : f32 to vector<8x128xf32>
    %2774 = arith.mulf %2543, %2773 : vector<8x128xf32>
    %2775 = vector.broadcast %46 : f32 to vector<8x128xf32>
    %2776 = arith.mulf %2545, %2775 : vector<8x128xf32>
    %2777 = arith.addf %2774, %2776 : vector<8x128xf32>
    %2778 = vector.broadcast %47 : f32 to vector<8x128xf32>
    %2779 = arith.mulf %2547, %2778 : vector<8x128xf32>
    %2780 = arith.addf %2777, %2779 : vector<8x128xf32>
    %2781 = vector.broadcast %63 : f32 to vector<8x128xf32>
    %2782 = arith.addf %2780, %2781 : vector<8x128xf32>
    %cst_307 = arith.constant 0.000000e+00 : f32
    %2783 = vector.broadcast %cst_307 : f32 to vector<8x128xf32>
    %2784 = arith.maximumf %2782, %2783 : vector<8x128xf32>
    %2785 = vector.broadcast %79 : f32 to vector<8x128xf32>
    %2786 = arith.mulf %2784, %2785 : vector<8x128xf32>
    %2787 = arith.addf %2772, %2786 : vector<8x128xf32>
    %c0_308 = arith.constant 0 : index
    %c11_309 = arith.constant 11 : index
    %c0_310 = arith.constant 0 : index
    %c0_311 = arith.constant 0 : index
    %2788 = vector.load %arg1[%c0_308, %c11_309, %c0_310, %c0_311] : memref<1x16x8x128xf32, #tpu.memory_space<vmem>>, vector<1x1x8x128xf32>
    %2789 = vector.shape_cast %2788 : vector<1x1x8x128xf32> to vector<8x128xf32>
    %c0_312 = arith.constant 0 : index
    %c12_313 = arith.constant 12 : index
    %c0_314 = arith.constant 0 : index
    %c0_315 = arith.constant 0 : index
    %2790 = vector.load %arg1[%c0_312, %c12_313, %c0_314, %c0_315] : memref<1x16x8x128xf32, #tpu.memory_space<vmem>>, vector<1x1x8x128xf32>
    %2791 = vector.shape_cast %2790 : vector<1x1x8x128xf32> to vector<8x128xf32>
    %c0_316 = arith.constant 0 : index
    %c13_317 = arith.constant 13 : index
    %c0_318 = arith.constant 0 : index
    %c0_319 = arith.constant 0 : index
    %2792 = vector.load %arg1[%c0_316, %c13_317, %c0_318, %c0_319] : memref<1x16x8x128xf32, #tpu.memory_space<vmem>>, vector<1x1x8x128xf32>
    %2793 = vector.shape_cast %2792 : vector<1x1x8x128xf32> to vector<8x128xf32>
    %2794 = vector.broadcast %0 : f32 to vector<8x128xf32>
    %2795 = arith.mulf %2789, %2794 : vector<8x128xf32>
    %2796 = vector.broadcast %1 : f32 to vector<8x128xf32>
    %2797 = arith.mulf %2791, %2796 : vector<8x128xf32>
    %2798 = arith.addf %2795, %2797 : vector<8x128xf32>
    %2799 = vector.broadcast %2 : f32 to vector<8x128xf32>
    %2800 = arith.mulf %2793, %2799 : vector<8x128xf32>
    %2801 = arith.addf %2798, %2800 : vector<8x128xf32>
    %2802 = vector.broadcast %48 : f32 to vector<8x128xf32>
    %2803 = arith.addf %2801, %2802 : vector<8x128xf32>
    %cst_320 = arith.constant 0.000000e+00 : f32
    %2804 = vector.broadcast %cst_320 : f32 to vector<8x128xf32>
    %2805 = arith.maximumf %2803, %2804 : vector<8x128xf32>
    %2806 = vector.broadcast %64 : f32 to vector<8x128xf32>
    %2807 = arith.mulf %2805, %2806 : vector<8x128xf32>
    %2808 = arith.addf %2787, %2807 : vector<8x128xf32>
    %2809 = vector.broadcast %3 : f32 to vector<8x128xf32>
    %2810 = arith.mulf %2789, %2809 : vector<8x128xf32>
    %2811 = vector.broadcast %4 : f32 to vector<8x128xf32>
    %2812 = arith.mulf %2791, %2811 : vector<8x128xf32>
    %2813 = arith.addf %2810, %2812 : vector<8x128xf32>
    %2814 = vector.broadcast %5 : f32 to vector<8x128xf32>
    %2815 = arith.mulf %2793, %2814 : vector<8x128xf32>
    %2816 = arith.addf %2813, %2815 : vector<8x128xf32>
    %2817 = vector.broadcast %49 : f32 to vector<8x128xf32>
    %2818 = arith.addf %2816, %2817 : vector<8x128xf32>
    %cst_321 = arith.constant 0.000000e+00 : f32
    %2819 = vector.broadcast %cst_321 : f32 to vector<8x128xf32>
    %2820 = arith.maximumf %2818, %2819 : vector<8x128xf32>
    %2821 = vector.broadcast %65 : f32 to vector<8x128xf32>
    %2822 = arith.mulf %2820, %2821 : vector<8x128xf32>
    %2823 = arith.addf %2808, %2822 : vector<8x128xf32>
    %2824 = vector.broadcast %6 : f32 to vector<8x128xf32>
    %2825 = arith.mulf %2789, %2824 : vector<8x128xf32>
    %2826 = vector.broadcast %7 : f32 to vector<8x128xf32>
    %2827 = arith.mulf %2791, %2826 : vector<8x128xf32>
    %2828 = arith.addf %2825, %2827 : vector<8x128xf32>
    %2829 = vector.broadcast %8 : f32 to vector<8x128xf32>
    %2830 = arith.mulf %2793, %2829 : vector<8x128xf32>
    %2831 = arith.addf %2828, %2830 : vector<8x128xf32>
    %2832 = vector.broadcast %50 : f32 to vector<8x128xf32>
    %2833 = arith.addf %2831, %2832 : vector<8x128xf32>
    %cst_322 = arith.constant 0.000000e+00 : f32
    %2834 = vector.broadcast %cst_322 : f32 to vector<8x128xf32>
    %2835 = arith.maximumf %2833, %2834 : vector<8x128xf32>
    %2836 = vector.broadcast %66 : f32 to vector<8x128xf32>
    %2837 = arith.mulf %2835, %2836 : vector<8x128xf32>
    %2838 = arith.addf %2823, %2837 : vector<8x128xf32>
    %2839 = vector.broadcast %9 : f32 to vector<8x128xf32>
    %2840 = arith.mulf %2789, %2839 : vector<8x128xf32>
    %2841 = vector.broadcast %10 : f32 to vector<8x128xf32>
    %2842 = arith.mulf %2791, %2841 : vector<8x128xf32>
    %2843 = arith.addf %2840, %2842 : vector<8x128xf32>
    %2844 = vector.broadcast %11 : f32 to vector<8x128xf32>
    %2845 = arith.mulf %2793, %2844 : vector<8x128xf32>
    %2846 = arith.addf %2843, %2845 : vector<8x128xf32>
    %2847 = vector.broadcast %51 : f32 to vector<8x128xf32>
    %2848 = arith.addf %2846, %2847 : vector<8x128xf32>
    %cst_323 = arith.constant 0.000000e+00 : f32
    %2849 = vector.broadcast %cst_323 : f32 to vector<8x128xf32>
    %2850 = arith.maximumf %2848, %2849 : vector<8x128xf32>
    %2851 = vector.broadcast %67 : f32 to vector<8x128xf32>
    %2852 = arith.mulf %2850, %2851 : vector<8x128xf32>
    %2853 = arith.addf %2838, %2852 : vector<8x128xf32>
    %2854 = vector.broadcast %12 : f32 to vector<8x128xf32>
    %2855 = arith.mulf %2789, %2854 : vector<8x128xf32>
    %2856 = vector.broadcast %13 : f32 to vector<8x128xf32>
    %2857 = arith.mulf %2791, %2856 : vector<8x128xf32>
    %2858 = arith.addf %2855, %2857 : vector<8x128xf32>
    %2859 = vector.broadcast %14 : f32 to vector<8x128xf32>
    %2860 = arith.mulf %2793, %2859 : vector<8x128xf32>
    %2861 = arith.addf %2858, %2860 : vector<8x128xf32>
    %2862 = vector.broadcast %52 : f32 to vector<8x128xf32>
    %2863 = arith.addf %2861, %2862 : vector<8x128xf32>
    %cst_324 = arith.constant 0.000000e+00 : f32
    %2864 = vector.broadcast %cst_324 : f32 to vector<8x128xf32>
    %2865 = arith.maximumf %2863, %2864 : vector<8x128xf32>
    %2866 = vector.broadcast %68 : f32 to vector<8x128xf32>
    %2867 = arith.mulf %2865, %2866 : vector<8x128xf32>
    %2868 = arith.addf %2853, %2867 : vector<8x128xf32>
    %2869 = vector.broadcast %15 : f32 to vector<8x128xf32>
    %2870 = arith.mulf %2789, %2869 : vector<8x128xf32>
    %2871 = vector.broadcast %16 : f32 to vector<8x128xf32>
    %2872 = arith.mulf %2791, %2871 : vector<8x128xf32>
    %2873 = arith.addf %2870, %2872 : vector<8x128xf32>
    %2874 = vector.broadcast %17 : f32 to vector<8x128xf32>
    %2875 = arith.mulf %2793, %2874 : vector<8x128xf32>
    %2876 = arith.addf %2873, %2875 : vector<8x128xf32>
    %2877 = vector.broadcast %53 : f32 to vector<8x128xf32>
    %2878 = arith.addf %2876, %2877 : vector<8x128xf32>
    %cst_325 = arith.constant 0.000000e+00 : f32
    %2879 = vector.broadcast %cst_325 : f32 to vector<8x128xf32>
    %2880 = arith.maximumf %2878, %2879 : vector<8x128xf32>
    %2881 = vector.broadcast %69 : f32 to vector<8x128xf32>
    %2882 = arith.mulf %2880, %2881 : vector<8x128xf32>
    %2883 = arith.addf %2868, %2882 : vector<8x128xf32>
    %2884 = vector.broadcast %18 : f32 to vector<8x128xf32>
    %2885 = arith.mulf %2789, %2884 : vector<8x128xf32>
    %2886 = vector.broadcast %19 : f32 to vector<8x128xf32>
    %2887 = arith.mulf %2791, %2886 : vector<8x128xf32>
    %2888 = arith.addf %2885, %2887 : vector<8x128xf32>
    %2889 = vector.broadcast %20 : f32 to vector<8x128xf32>
    %2890 = arith.mulf %2793, %2889 : vector<8x128xf32>
    %2891 = arith.addf %2888, %2890 : vector<8x128xf32>
    %2892 = vector.broadcast %54 : f32 to vector<8x128xf32>
    %2893 = arith.addf %2891, %2892 : vector<8x128xf32>
    %cst_326 = arith.constant 0.000000e+00 : f32
    %2894 = vector.broadcast %cst_326 : f32 to vector<8x128xf32>
    %2895 = arith.maximumf %2893, %2894 : vector<8x128xf32>
    %2896 = vector.broadcast %70 : f32 to vector<8x128xf32>
    %2897 = arith.mulf %2895, %2896 : vector<8x128xf32>
    %2898 = arith.addf %2883, %2897 : vector<8x128xf32>
    %2899 = vector.broadcast %21 : f32 to vector<8x128xf32>
    %2900 = arith.mulf %2789, %2899 : vector<8x128xf32>
    %2901 = vector.broadcast %22 : f32 to vector<8x128xf32>
    %2902 = arith.mulf %2791, %2901 : vector<8x128xf32>
    %2903 = arith.addf %2900, %2902 : vector<8x128xf32>
    %2904 = vector.broadcast %23 : f32 to vector<8x128xf32>
    %2905 = arith.mulf %2793, %2904 : vector<8x128xf32>
    %2906 = arith.addf %2903, %2905 : vector<8x128xf32>
    %2907 = vector.broadcast %55 : f32 to vector<8x128xf32>
    %2908 = arith.addf %2906, %2907 : vector<8x128xf32>
    %cst_327 = arith.constant 0.000000e+00 : f32
    %2909 = vector.broadcast %cst_327 : f32 to vector<8x128xf32>
    %2910 = arith.maximumf %2908, %2909 : vector<8x128xf32>
    %2911 = vector.broadcast %71 : f32 to vector<8x128xf32>
    %2912 = arith.mulf %2910, %2911 : vector<8x128xf32>
    %2913 = arith.addf %2898, %2912 : vector<8x128xf32>
    %2914 = vector.broadcast %24 : f32 to vector<8x128xf32>
    %2915 = arith.mulf %2789, %2914 : vector<8x128xf32>
    %2916 = vector.broadcast %25 : f32 to vector<8x128xf32>
    %2917 = arith.mulf %2791, %2916 : vector<8x128xf32>
    %2918 = arith.addf %2915, %2917 : vector<8x128xf32>
    %2919 = vector.broadcast %26 : f32 to vector<8x128xf32>
    %2920 = arith.mulf %2793, %2919 : vector<8x128xf32>
    %2921 = arith.addf %2918, %2920 : vector<8x128xf32>
    %2922 = vector.broadcast %56 : f32 to vector<8x128xf32>
    %2923 = arith.addf %2921, %2922 : vector<8x128xf32>
    %cst_328 = arith.constant 0.000000e+00 : f32
    %2924 = vector.broadcast %cst_328 : f32 to vector<8x128xf32>
    %2925 = arith.maximumf %2923, %2924 : vector<8x128xf32>
    %2926 = vector.broadcast %72 : f32 to vector<8x128xf32>
    %2927 = arith.mulf %2925, %2926 : vector<8x128xf32>
    %2928 = arith.addf %2913, %2927 : vector<8x128xf32>
    %2929 = vector.broadcast %27 : f32 to vector<8x128xf32>
    %2930 = arith.mulf %2789, %2929 : vector<8x128xf32>
    %2931 = vector.broadcast %28 : f32 to vector<8x128xf32>
    %2932 = arith.mulf %2791, %2931 : vector<8x128xf32>
    %2933 = arith.addf %2930, %2932 : vector<8x128xf32>
    %2934 = vector.broadcast %29 : f32 to vector<8x128xf32>
    %2935 = arith.mulf %2793, %2934 : vector<8x128xf32>
    %2936 = arith.addf %2933, %2935 : vector<8x128xf32>
    %2937 = vector.broadcast %57 : f32 to vector<8x128xf32>
    %2938 = arith.addf %2936, %2937 : vector<8x128xf32>
    %cst_329 = arith.constant 0.000000e+00 : f32
    %2939 = vector.broadcast %cst_329 : f32 to vector<8x128xf32>
    %2940 = arith.maximumf %2938, %2939 : vector<8x128xf32>
    %2941 = vector.broadcast %73 : f32 to vector<8x128xf32>
    %2942 = arith.mulf %2940, %2941 : vector<8x128xf32>
    %2943 = arith.addf %2928, %2942 : vector<8x128xf32>
    %2944 = vector.broadcast %30 : f32 to vector<8x128xf32>
    %2945 = arith.mulf %2789, %2944 : vector<8x128xf32>
    %2946 = vector.broadcast %31 : f32 to vector<8x128xf32>
    %2947 = arith.mulf %2791, %2946 : vector<8x128xf32>
    %2948 = arith.addf %2945, %2947 : vector<8x128xf32>
    %2949 = vector.broadcast %32 : f32 to vector<8x128xf32>
    %2950 = arith.mulf %2793, %2949 : vector<8x128xf32>
    %2951 = arith.addf %2948, %2950 : vector<8x128xf32>
    %2952 = vector.broadcast %58 : f32 to vector<8x128xf32>
    %2953 = arith.addf %2951, %2952 : vector<8x128xf32>
    %cst_330 = arith.constant 0.000000e+00 : f32
    %2954 = vector.broadcast %cst_330 : f32 to vector<8x128xf32>
    %2955 = arith.maximumf %2953, %2954 : vector<8x128xf32>
    %2956 = vector.broadcast %74 : f32 to vector<8x128xf32>
    %2957 = arith.mulf %2955, %2956 : vector<8x128xf32>
    %2958 = arith.addf %2943, %2957 : vector<8x128xf32>
    %2959 = vector.broadcast %33 : f32 to vector<8x128xf32>
    %2960 = arith.mulf %2789, %2959 : vector<8x128xf32>
    %2961 = vector.broadcast %34 : f32 to vector<8x128xf32>
    %2962 = arith.mulf %2791, %2961 : vector<8x128xf32>
    %2963 = arith.addf %2960, %2962 : vector<8x128xf32>
    %2964 = vector.broadcast %35 : f32 to vector<8x128xf32>
    %2965 = arith.mulf %2793, %2964 : vector<8x128xf32>
    %2966 = arith.addf %2963, %2965 : vector<8x128xf32>
    %2967 = vector.broadcast %59 : f32 to vector<8x128xf32>
    %2968 = arith.addf %2966, %2967 : vector<8x128xf32>
    %cst_331 = arith.constant 0.000000e+00 : f32
    %2969 = vector.broadcast %cst_331 : f32 to vector<8x128xf32>
    %2970 = arith.maximumf %2968, %2969 : vector<8x128xf32>
    %2971 = vector.broadcast %75 : f32 to vector<8x128xf32>
    %2972 = arith.mulf %2970, %2971 : vector<8x128xf32>
    %2973 = arith.addf %2958, %2972 : vector<8x128xf32>
    %2974 = vector.broadcast %36 : f32 to vector<8x128xf32>
    %2975 = arith.mulf %2789, %2974 : vector<8x128xf32>
    %2976 = vector.broadcast %37 : f32 to vector<8x128xf32>
    %2977 = arith.mulf %2791, %2976 : vector<8x128xf32>
    %2978 = arith.addf %2975, %2977 : vector<8x128xf32>
    %2979 = vector.broadcast %38 : f32 to vector<8x128xf32>
    %2980 = arith.mulf %2793, %2979 : vector<8x128xf32>
    %2981 = arith.addf %2978, %2980 : vector<8x128xf32>
    %2982 = vector.broadcast %60 : f32 to vector<8x128xf32>
    %2983 = arith.addf %2981, %2982 : vector<8x128xf32>
    %cst_332 = arith.constant 0.000000e+00 : f32
    %2984 = vector.broadcast %cst_332 : f32 to vector<8x128xf32>
    %2985 = arith.maximumf %2983, %2984 : vector<8x128xf32>
    %2986 = vector.broadcast %76 : f32 to vector<8x128xf32>
    %2987 = arith.mulf %2985, %2986 : vector<8x128xf32>
    %2988 = arith.addf %2973, %2987 : vector<8x128xf32>
    %2989 = vector.broadcast %39 : f32 to vector<8x128xf32>
    %2990 = arith.mulf %2789, %2989 : vector<8x128xf32>
    %2991 = vector.broadcast %40 : f32 to vector<8x128xf32>
    %2992 = arith.mulf %2791, %2991 : vector<8x128xf32>
    %2993 = arith.addf %2990, %2992 : vector<8x128xf32>
    %2994 = vector.broadcast %41 : f32 to vector<8x128xf32>
    %2995 = arith.mulf %2793, %2994 : vector<8x128xf32>
    %2996 = arith.addf %2993, %2995 : vector<8x128xf32>
    %2997 = vector.broadcast %61 : f32 to vector<8x128xf32>
    %2998 = arith.addf %2996, %2997 : vector<8x128xf32>
    %cst_333 = arith.constant 0.000000e+00 : f32
    %2999 = vector.broadcast %cst_333 : f32 to vector<8x128xf32>
    %3000 = arith.maximumf %2998, %2999 : vector<8x128xf32>
    %3001 = vector.broadcast %77 : f32 to vector<8x128xf32>
    %3002 = arith.mulf %3000, %3001 : vector<8x128xf32>
    %3003 = arith.addf %2988, %3002 : vector<8x128xf32>
    %3004 = vector.broadcast %42 : f32 to vector<8x128xf32>
    %3005 = arith.mulf %2789, %3004 : vector<8x128xf32>
    %3006 = vector.broadcast %43 : f32 to vector<8x128xf32>
    %3007 = arith.mulf %2791, %3006 : vector<8x128xf32>
    %3008 = arith.addf %3005, %3007 : vector<8x128xf32>
    %3009 = vector.broadcast %44 : f32 to vector<8x128xf32>
    %3010 = arith.mulf %2793, %3009 : vector<8x128xf32>
    %3011 = arith.addf %3008, %3010 : vector<8x128xf32>
    %3012 = vector.broadcast %62 : f32 to vector<8x128xf32>
    %3013 = arith.addf %3011, %3012 : vector<8x128xf32>
    %cst_334 = arith.constant 0.000000e+00 : f32
    %3014 = vector.broadcast %cst_334 : f32 to vector<8x128xf32>
    %3015 = arith.maximumf %3013, %3014 : vector<8x128xf32>
    %3016 = vector.broadcast %78 : f32 to vector<8x128xf32>
    %3017 = arith.mulf %3015, %3016 : vector<8x128xf32>
    %3018 = arith.addf %3003, %3017 : vector<8x128xf32>
    %3019 = vector.broadcast %45 : f32 to vector<8x128xf32>
    %3020 = arith.mulf %2789, %3019 : vector<8x128xf32>
    %3021 = vector.broadcast %46 : f32 to vector<8x128xf32>
    %3022 = arith.mulf %2791, %3021 : vector<8x128xf32>
    %3023 = arith.addf %3020, %3022 : vector<8x128xf32>
    %3024 = vector.broadcast %47 : f32 to vector<8x128xf32>
    %3025 = arith.mulf %2793, %3024 : vector<8x128xf32>
    %3026 = arith.addf %3023, %3025 : vector<8x128xf32>
    %3027 = vector.broadcast %63 : f32 to vector<8x128xf32>
    %3028 = arith.addf %3026, %3027 : vector<8x128xf32>
    %cst_335 = arith.constant 0.000000e+00 : f32
    %3029 = vector.broadcast %cst_335 : f32 to vector<8x128xf32>
    %3030 = arith.maximumf %3028, %3029 : vector<8x128xf32>
    %3031 = vector.broadcast %79 : f32 to vector<8x128xf32>
    %3032 = arith.mulf %3030, %3031 : vector<8x128xf32>
    %3033 = arith.addf %3018, %3032 : vector<8x128xf32>
    %c0_336 = arith.constant 0 : index
    %c12_337 = arith.constant 12 : index
    %c0_338 = arith.constant 0 : index
    %c0_339 = arith.constant 0 : index
    %3034 = vector.load %arg1[%c0_336, %c12_337, %c0_338, %c0_339] : memref<1x16x8x128xf32, #tpu.memory_space<vmem>>, vector<1x1x8x128xf32>
    %3035 = vector.shape_cast %3034 : vector<1x1x8x128xf32> to vector<8x128xf32>
    %c0_340 = arith.constant 0 : index
    %c13_341 = arith.constant 13 : index
    %c0_342 = arith.constant 0 : index
    %c0_343 = arith.constant 0 : index
    %3036 = vector.load %arg1[%c0_340, %c13_341, %c0_342, %c0_343] : memref<1x16x8x128xf32, #tpu.memory_space<vmem>>, vector<1x1x8x128xf32>
    %3037 = vector.shape_cast %3036 : vector<1x1x8x128xf32> to vector<8x128xf32>
    %c0_344 = arith.constant 0 : index
    %c14_345 = arith.constant 14 : index
    %c0_346 = arith.constant 0 : index
    %c0_347 = arith.constant 0 : index
    %3038 = vector.load %arg1[%c0_344, %c14_345, %c0_346, %c0_347] : memref<1x16x8x128xf32, #tpu.memory_space<vmem>>, vector<1x1x8x128xf32>
    %3039 = vector.shape_cast %3038 : vector<1x1x8x128xf32> to vector<8x128xf32>
    %3040 = vector.broadcast %0 : f32 to vector<8x128xf32>
    %3041 = arith.mulf %3035, %3040 : vector<8x128xf32>
    %3042 = vector.broadcast %1 : f32 to vector<8x128xf32>
    %3043 = arith.mulf %3037, %3042 : vector<8x128xf32>
    %3044 = arith.addf %3041, %3043 : vector<8x128xf32>
    %3045 = vector.broadcast %2 : f32 to vector<8x128xf32>
    %3046 = arith.mulf %3039, %3045 : vector<8x128xf32>
    %3047 = arith.addf %3044, %3046 : vector<8x128xf32>
    %3048 = vector.broadcast %48 : f32 to vector<8x128xf32>
    %3049 = arith.addf %3047, %3048 : vector<8x128xf32>
    %cst_348 = arith.constant 0.000000e+00 : f32
    %3050 = vector.broadcast %cst_348 : f32 to vector<8x128xf32>
    %3051 = arith.maximumf %3049, %3050 : vector<8x128xf32>
    %3052 = vector.broadcast %64 : f32 to vector<8x128xf32>
    %3053 = arith.mulf %3051, %3052 : vector<8x128xf32>
    %3054 = arith.addf %3033, %3053 : vector<8x128xf32>
    %3055 = vector.broadcast %3 : f32 to vector<8x128xf32>
    %3056 = arith.mulf %3035, %3055 : vector<8x128xf32>
    %3057 = vector.broadcast %4 : f32 to vector<8x128xf32>
    %3058 = arith.mulf %3037, %3057 : vector<8x128xf32>
    %3059 = arith.addf %3056, %3058 : vector<8x128xf32>
    %3060 = vector.broadcast %5 : f32 to vector<8x128xf32>
    %3061 = arith.mulf %3039, %3060 : vector<8x128xf32>
    %3062 = arith.addf %3059, %3061 : vector<8x128xf32>
    %3063 = vector.broadcast %49 : f32 to vector<8x128xf32>
    %3064 = arith.addf %3062, %3063 : vector<8x128xf32>
    %cst_349 = arith.constant 0.000000e+00 : f32
    %3065 = vector.broadcast %cst_349 : f32 to vector<8x128xf32>
    %3066 = arith.maximumf %3064, %3065 : vector<8x128xf32>
    %3067 = vector.broadcast %65 : f32 to vector<8x128xf32>
    %3068 = arith.mulf %3066, %3067 : vector<8x128xf32>
    %3069 = arith.addf %3054, %3068 : vector<8x128xf32>
    %3070 = vector.broadcast %6 : f32 to vector<8x128xf32>
    %3071 = arith.mulf %3035, %3070 : vector<8x128xf32>
    %3072 = vector.broadcast %7 : f32 to vector<8x128xf32>
    %3073 = arith.mulf %3037, %3072 : vector<8x128xf32>
    %3074 = arith.addf %3071, %3073 : vector<8x128xf32>
    %3075 = vector.broadcast %8 : f32 to vector<8x128xf32>
    %3076 = arith.mulf %3039, %3075 : vector<8x128xf32>
    %3077 = arith.addf %3074, %3076 : vector<8x128xf32>
    %3078 = vector.broadcast %50 : f32 to vector<8x128xf32>
    %3079 = arith.addf %3077, %3078 : vector<8x128xf32>
    %cst_350 = arith.constant 0.000000e+00 : f32
    %3080 = vector.broadcast %cst_350 : f32 to vector<8x128xf32>
    %3081 = arith.maximumf %3079, %3080 : vector<8x128xf32>
    %3082 = vector.broadcast %66 : f32 to vector<8x128xf32>
    %3083 = arith.mulf %3081, %3082 : vector<8x128xf32>
    %3084 = arith.addf %3069, %3083 : vector<8x128xf32>
    %3085 = vector.broadcast %9 : f32 to vector<8x128xf32>
    %3086 = arith.mulf %3035, %3085 : vector<8x128xf32>
    %3087 = vector.broadcast %10 : f32 to vector<8x128xf32>
    %3088 = arith.mulf %3037, %3087 : vector<8x128xf32>
    %3089 = arith.addf %3086, %3088 : vector<8x128xf32>
    %3090 = vector.broadcast %11 : f32 to vector<8x128xf32>
    %3091 = arith.mulf %3039, %3090 : vector<8x128xf32>
    %3092 = arith.addf %3089, %3091 : vector<8x128xf32>
    %3093 = vector.broadcast %51 : f32 to vector<8x128xf32>
    %3094 = arith.addf %3092, %3093 : vector<8x128xf32>
    %cst_351 = arith.constant 0.000000e+00 : f32
    %3095 = vector.broadcast %cst_351 : f32 to vector<8x128xf32>
    %3096 = arith.maximumf %3094, %3095 : vector<8x128xf32>
    %3097 = vector.broadcast %67 : f32 to vector<8x128xf32>
    %3098 = arith.mulf %3096, %3097 : vector<8x128xf32>
    %3099 = arith.addf %3084, %3098 : vector<8x128xf32>
    %3100 = vector.broadcast %12 : f32 to vector<8x128xf32>
    %3101 = arith.mulf %3035, %3100 : vector<8x128xf32>
    %3102 = vector.broadcast %13 : f32 to vector<8x128xf32>
    %3103 = arith.mulf %3037, %3102 : vector<8x128xf32>
    %3104 = arith.addf %3101, %3103 : vector<8x128xf32>
    %3105 = vector.broadcast %14 : f32 to vector<8x128xf32>
    %3106 = arith.mulf %3039, %3105 : vector<8x128xf32>
    %3107 = arith.addf %3104, %3106 : vector<8x128xf32>
    %3108 = vector.broadcast %52 : f32 to vector<8x128xf32>
    %3109 = arith.addf %3107, %3108 : vector<8x128xf32>
    %cst_352 = arith.constant 0.000000e+00 : f32
    %3110 = vector.broadcast %cst_352 : f32 to vector<8x128xf32>
    %3111 = arith.maximumf %3109, %3110 : vector<8x128xf32>
    %3112 = vector.broadcast %68 : f32 to vector<8x128xf32>
    %3113 = arith.mulf %3111, %3112 : vector<8x128xf32>
    %3114 = arith.addf %3099, %3113 : vector<8x128xf32>
    %3115 = vector.broadcast %15 : f32 to vector<8x128xf32>
    %3116 = arith.mulf %3035, %3115 : vector<8x128xf32>
    %3117 = vector.broadcast %16 : f32 to vector<8x128xf32>
    %3118 = arith.mulf %3037, %3117 : vector<8x128xf32>
    %3119 = arith.addf %3116, %3118 : vector<8x128xf32>
    %3120 = vector.broadcast %17 : f32 to vector<8x128xf32>
    %3121 = arith.mulf %3039, %3120 : vector<8x128xf32>
    %3122 = arith.addf %3119, %3121 : vector<8x128xf32>
    %3123 = vector.broadcast %53 : f32 to vector<8x128xf32>
    %3124 = arith.addf %3122, %3123 : vector<8x128xf32>
    %cst_353 = arith.constant 0.000000e+00 : f32
    %3125 = vector.broadcast %cst_353 : f32 to vector<8x128xf32>
    %3126 = arith.maximumf %3124, %3125 : vector<8x128xf32>
    %3127 = vector.broadcast %69 : f32 to vector<8x128xf32>
    %3128 = arith.mulf %3126, %3127 : vector<8x128xf32>
    %3129 = arith.addf %3114, %3128 : vector<8x128xf32>
    %3130 = vector.broadcast %18 : f32 to vector<8x128xf32>
    %3131 = arith.mulf %3035, %3130 : vector<8x128xf32>
    %3132 = vector.broadcast %19 : f32 to vector<8x128xf32>
    %3133 = arith.mulf %3037, %3132 : vector<8x128xf32>
    %3134 = arith.addf %3131, %3133 : vector<8x128xf32>
    %3135 = vector.broadcast %20 : f32 to vector<8x128xf32>
    %3136 = arith.mulf %3039, %3135 : vector<8x128xf32>
    %3137 = arith.addf %3134, %3136 : vector<8x128xf32>
    %3138 = vector.broadcast %54 : f32 to vector<8x128xf32>
    %3139 = arith.addf %3137, %3138 : vector<8x128xf32>
    %cst_354 = arith.constant 0.000000e+00 : f32
    %3140 = vector.broadcast %cst_354 : f32 to vector<8x128xf32>
    %3141 = arith.maximumf %3139, %3140 : vector<8x128xf32>
    %3142 = vector.broadcast %70 : f32 to vector<8x128xf32>
    %3143 = arith.mulf %3141, %3142 : vector<8x128xf32>
    %3144 = arith.addf %3129, %3143 : vector<8x128xf32>
    %3145 = vector.broadcast %21 : f32 to vector<8x128xf32>
    %3146 = arith.mulf %3035, %3145 : vector<8x128xf32>
    %3147 = vector.broadcast %22 : f32 to vector<8x128xf32>
    %3148 = arith.mulf %3037, %3147 : vector<8x128xf32>
    %3149 = arith.addf %3146, %3148 : vector<8x128xf32>
    %3150 = vector.broadcast %23 : f32 to vector<8x128xf32>
    %3151 = arith.mulf %3039, %3150 : vector<8x128xf32>
    %3152 = arith.addf %3149, %3151 : vector<8x128xf32>
    %3153 = vector.broadcast %55 : f32 to vector<8x128xf32>
    %3154 = arith.addf %3152, %3153 : vector<8x128xf32>
    %cst_355 = arith.constant 0.000000e+00 : f32
    %3155 = vector.broadcast %cst_355 : f32 to vector<8x128xf32>
    %3156 = arith.maximumf %3154, %3155 : vector<8x128xf32>
    %3157 = vector.broadcast %71 : f32 to vector<8x128xf32>
    %3158 = arith.mulf %3156, %3157 : vector<8x128xf32>
    %3159 = arith.addf %3144, %3158 : vector<8x128xf32>
    %3160 = vector.broadcast %24 : f32 to vector<8x128xf32>
    %3161 = arith.mulf %3035, %3160 : vector<8x128xf32>
    %3162 = vector.broadcast %25 : f32 to vector<8x128xf32>
    %3163 = arith.mulf %3037, %3162 : vector<8x128xf32>
    %3164 = arith.addf %3161, %3163 : vector<8x128xf32>
    %3165 = vector.broadcast %26 : f32 to vector<8x128xf32>
    %3166 = arith.mulf %3039, %3165 : vector<8x128xf32>
    %3167 = arith.addf %3164, %3166 : vector<8x128xf32>
    %3168 = vector.broadcast %56 : f32 to vector<8x128xf32>
    %3169 = arith.addf %3167, %3168 : vector<8x128xf32>
    %cst_356 = arith.constant 0.000000e+00 : f32
    %3170 = vector.broadcast %cst_356 : f32 to vector<8x128xf32>
    %3171 = arith.maximumf %3169, %3170 : vector<8x128xf32>
    %3172 = vector.broadcast %72 : f32 to vector<8x128xf32>
    %3173 = arith.mulf %3171, %3172 : vector<8x128xf32>
    %3174 = arith.addf %3159, %3173 : vector<8x128xf32>
    %3175 = vector.broadcast %27 : f32 to vector<8x128xf32>
    %3176 = arith.mulf %3035, %3175 : vector<8x128xf32>
    %3177 = vector.broadcast %28 : f32 to vector<8x128xf32>
    %3178 = arith.mulf %3037, %3177 : vector<8x128xf32>
    %3179 = arith.addf %3176, %3178 : vector<8x128xf32>
    %3180 = vector.broadcast %29 : f32 to vector<8x128xf32>
    %3181 = arith.mulf %3039, %3180 : vector<8x128xf32>
    %3182 = arith.addf %3179, %3181 : vector<8x128xf32>
    %3183 = vector.broadcast %57 : f32 to vector<8x128xf32>
    %3184 = arith.addf %3182, %3183 : vector<8x128xf32>
    %cst_357 = arith.constant 0.000000e+00 : f32
    %3185 = vector.broadcast %cst_357 : f32 to vector<8x128xf32>
    %3186 = arith.maximumf %3184, %3185 : vector<8x128xf32>
    %3187 = vector.broadcast %73 : f32 to vector<8x128xf32>
    %3188 = arith.mulf %3186, %3187 : vector<8x128xf32>
    %3189 = arith.addf %3174, %3188 : vector<8x128xf32>
    %3190 = vector.broadcast %30 : f32 to vector<8x128xf32>
    %3191 = arith.mulf %3035, %3190 : vector<8x128xf32>
    %3192 = vector.broadcast %31 : f32 to vector<8x128xf32>
    %3193 = arith.mulf %3037, %3192 : vector<8x128xf32>
    %3194 = arith.addf %3191, %3193 : vector<8x128xf32>
    %3195 = vector.broadcast %32 : f32 to vector<8x128xf32>
    %3196 = arith.mulf %3039, %3195 : vector<8x128xf32>
    %3197 = arith.addf %3194, %3196 : vector<8x128xf32>
    %3198 = vector.broadcast %58 : f32 to vector<8x128xf32>
    %3199 = arith.addf %3197, %3198 : vector<8x128xf32>
    %cst_358 = arith.constant 0.000000e+00 : f32
    %3200 = vector.broadcast %cst_358 : f32 to vector<8x128xf32>
    %3201 = arith.maximumf %3199, %3200 : vector<8x128xf32>
    %3202 = vector.broadcast %74 : f32 to vector<8x128xf32>
    %3203 = arith.mulf %3201, %3202 : vector<8x128xf32>
    %3204 = arith.addf %3189, %3203 : vector<8x128xf32>
    %3205 = vector.broadcast %33 : f32 to vector<8x128xf32>
    %3206 = arith.mulf %3035, %3205 : vector<8x128xf32>
    %3207 = vector.broadcast %34 : f32 to vector<8x128xf32>
    %3208 = arith.mulf %3037, %3207 : vector<8x128xf32>
    %3209 = arith.addf %3206, %3208 : vector<8x128xf32>
    %3210 = vector.broadcast %35 : f32 to vector<8x128xf32>
    %3211 = arith.mulf %3039, %3210 : vector<8x128xf32>
    %3212 = arith.addf %3209, %3211 : vector<8x128xf32>
    %3213 = vector.broadcast %59 : f32 to vector<8x128xf32>
    %3214 = arith.addf %3212, %3213 : vector<8x128xf32>
    %cst_359 = arith.constant 0.000000e+00 : f32
    %3215 = vector.broadcast %cst_359 : f32 to vector<8x128xf32>
    %3216 = arith.maximumf %3214, %3215 : vector<8x128xf32>
    %3217 = vector.broadcast %75 : f32 to vector<8x128xf32>
    %3218 = arith.mulf %3216, %3217 : vector<8x128xf32>
    %3219 = arith.addf %3204, %3218 : vector<8x128xf32>
    %3220 = vector.broadcast %36 : f32 to vector<8x128xf32>
    %3221 = arith.mulf %3035, %3220 : vector<8x128xf32>
    %3222 = vector.broadcast %37 : f32 to vector<8x128xf32>
    %3223 = arith.mulf %3037, %3222 : vector<8x128xf32>
    %3224 = arith.addf %3221, %3223 : vector<8x128xf32>
    %3225 = vector.broadcast %38 : f32 to vector<8x128xf32>
    %3226 = arith.mulf %3039, %3225 : vector<8x128xf32>
    %3227 = arith.addf %3224, %3226 : vector<8x128xf32>
    %3228 = vector.broadcast %60 : f32 to vector<8x128xf32>
    %3229 = arith.addf %3227, %3228 : vector<8x128xf32>
    %cst_360 = arith.constant 0.000000e+00 : f32
    %3230 = vector.broadcast %cst_360 : f32 to vector<8x128xf32>
    %3231 = arith.maximumf %3229, %3230 : vector<8x128xf32>
    %3232 = vector.broadcast %76 : f32 to vector<8x128xf32>
    %3233 = arith.mulf %3231, %3232 : vector<8x128xf32>
    %3234 = arith.addf %3219, %3233 : vector<8x128xf32>
    %3235 = vector.broadcast %39 : f32 to vector<8x128xf32>
    %3236 = arith.mulf %3035, %3235 : vector<8x128xf32>
    %3237 = vector.broadcast %40 : f32 to vector<8x128xf32>
    %3238 = arith.mulf %3037, %3237 : vector<8x128xf32>
    %3239 = arith.addf %3236, %3238 : vector<8x128xf32>
    %3240 = vector.broadcast %41 : f32 to vector<8x128xf32>
    %3241 = arith.mulf %3039, %3240 : vector<8x128xf32>
    %3242 = arith.addf %3239, %3241 : vector<8x128xf32>
    %3243 = vector.broadcast %61 : f32 to vector<8x128xf32>
    %3244 = arith.addf %3242, %3243 : vector<8x128xf32>
    %cst_361 = arith.constant 0.000000e+00 : f32
    %3245 = vector.broadcast %cst_361 : f32 to vector<8x128xf32>
    %3246 = arith.maximumf %3244, %3245 : vector<8x128xf32>
    %3247 = vector.broadcast %77 : f32 to vector<8x128xf32>
    %3248 = arith.mulf %3246, %3247 : vector<8x128xf32>
    %3249 = arith.addf %3234, %3248 : vector<8x128xf32>
    %3250 = vector.broadcast %42 : f32 to vector<8x128xf32>
    %3251 = arith.mulf %3035, %3250 : vector<8x128xf32>
    %3252 = vector.broadcast %43 : f32 to vector<8x128xf32>
    %3253 = arith.mulf %3037, %3252 : vector<8x128xf32>
    %3254 = arith.addf %3251, %3253 : vector<8x128xf32>
    %3255 = vector.broadcast %44 : f32 to vector<8x128xf32>
    %3256 = arith.mulf %3039, %3255 : vector<8x128xf32>
    %3257 = arith.addf %3254, %3256 : vector<8x128xf32>
    %3258 = vector.broadcast %62 : f32 to vector<8x128xf32>
    %3259 = arith.addf %3257, %3258 : vector<8x128xf32>
    %cst_362 = arith.constant 0.000000e+00 : f32
    %3260 = vector.broadcast %cst_362 : f32 to vector<8x128xf32>
    %3261 = arith.maximumf %3259, %3260 : vector<8x128xf32>
    %3262 = vector.broadcast %78 : f32 to vector<8x128xf32>
    %3263 = arith.mulf %3261, %3262 : vector<8x128xf32>
    %3264 = arith.addf %3249, %3263 : vector<8x128xf32>
    %3265 = vector.broadcast %45 : f32 to vector<8x128xf32>
    %3266 = arith.mulf %3035, %3265 : vector<8x128xf32>
    %3267 = vector.broadcast %46 : f32 to vector<8x128xf32>
    %3268 = arith.mulf %3037, %3267 : vector<8x128xf32>
    %3269 = arith.addf %3266, %3268 : vector<8x128xf32>
    %3270 = vector.broadcast %47 : f32 to vector<8x128xf32>
    %3271 = arith.mulf %3039, %3270 : vector<8x128xf32>
    %3272 = arith.addf %3269, %3271 : vector<8x128xf32>
    %3273 = vector.broadcast %63 : f32 to vector<8x128xf32>
    %3274 = arith.addf %3272, %3273 : vector<8x128xf32>
    %cst_363 = arith.constant 0.000000e+00 : f32
    %3275 = vector.broadcast %cst_363 : f32 to vector<8x128xf32>
    %3276 = arith.maximumf %3274, %3275 : vector<8x128xf32>
    %3277 = vector.broadcast %79 : f32 to vector<8x128xf32>
    %3278 = arith.mulf %3276, %3277 : vector<8x128xf32>
    %3279 = arith.addf %3264, %3278 : vector<8x128xf32>
    %c0_364 = arith.constant 0 : index
    %c13_365 = arith.constant 13 : index
    %c0_366 = arith.constant 0 : index
    %c0_367 = arith.constant 0 : index
    %3280 = vector.load %arg1[%c0_364, %c13_365, %c0_366, %c0_367] : memref<1x16x8x128xf32, #tpu.memory_space<vmem>>, vector<1x1x8x128xf32>
    %3281 = vector.shape_cast %3280 : vector<1x1x8x128xf32> to vector<8x128xf32>
    %c0_368 = arith.constant 0 : index
    %c14_369 = arith.constant 14 : index
    %c0_370 = arith.constant 0 : index
    %c0_371 = arith.constant 0 : index
    %3282 = vector.load %arg1[%c0_368, %c14_369, %c0_370, %c0_371] : memref<1x16x8x128xf32, #tpu.memory_space<vmem>>, vector<1x1x8x128xf32>
    %3283 = vector.shape_cast %3282 : vector<1x1x8x128xf32> to vector<8x128xf32>
    %c0_372 = arith.constant 0 : index
    %c15_373 = arith.constant 15 : index
    %c0_374 = arith.constant 0 : index
    %c0_375 = arith.constant 0 : index
    %3284 = vector.load %arg1[%c0_372, %c15_373, %c0_374, %c0_375] : memref<1x16x8x128xf32, #tpu.memory_space<vmem>>, vector<1x1x8x128xf32>
    %3285 = vector.shape_cast %3284 : vector<1x1x8x128xf32> to vector<8x128xf32>
    %3286 = vector.broadcast %0 : f32 to vector<8x128xf32>
    %3287 = arith.mulf %3281, %3286 : vector<8x128xf32>
    %3288 = vector.broadcast %1 : f32 to vector<8x128xf32>
    %3289 = arith.mulf %3283, %3288 : vector<8x128xf32>
    %3290 = arith.addf %3287, %3289 : vector<8x128xf32>
    %3291 = vector.broadcast %2 : f32 to vector<8x128xf32>
    %3292 = arith.mulf %3285, %3291 : vector<8x128xf32>
    %3293 = arith.addf %3290, %3292 : vector<8x128xf32>
    %3294 = vector.broadcast %48 : f32 to vector<8x128xf32>
    %3295 = arith.addf %3293, %3294 : vector<8x128xf32>
    %cst_376 = arith.constant 0.000000e+00 : f32
    %3296 = vector.broadcast %cst_376 : f32 to vector<8x128xf32>
    %3297 = arith.maximumf %3295, %3296 : vector<8x128xf32>
    %3298 = vector.broadcast %64 : f32 to vector<8x128xf32>
    %3299 = arith.mulf %3297, %3298 : vector<8x128xf32>
    %3300 = arith.addf %3279, %3299 : vector<8x128xf32>
    %3301 = vector.broadcast %3 : f32 to vector<8x128xf32>
    %3302 = arith.mulf %3281, %3301 : vector<8x128xf32>
    %3303 = vector.broadcast %4 : f32 to vector<8x128xf32>
    %3304 = arith.mulf %3283, %3303 : vector<8x128xf32>
    %3305 = arith.addf %3302, %3304 : vector<8x128xf32>
    %3306 = vector.broadcast %5 : f32 to vector<8x128xf32>
    %3307 = arith.mulf %3285, %3306 : vector<8x128xf32>
    %3308 = arith.addf %3305, %3307 : vector<8x128xf32>
    %3309 = vector.broadcast %49 : f32 to vector<8x128xf32>
    %3310 = arith.addf %3308, %3309 : vector<8x128xf32>
    %cst_377 = arith.constant 0.000000e+00 : f32
    %3311 = vector.broadcast %cst_377 : f32 to vector<8x128xf32>
    %3312 = arith.maximumf %3310, %3311 : vector<8x128xf32>
    %3313 = vector.broadcast %65 : f32 to vector<8x128xf32>
    %3314 = arith.mulf %3312, %3313 : vector<8x128xf32>
    %3315 = arith.addf %3300, %3314 : vector<8x128xf32>
    %3316 = vector.broadcast %6 : f32 to vector<8x128xf32>
    %3317 = arith.mulf %3281, %3316 : vector<8x128xf32>
    %3318 = vector.broadcast %7 : f32 to vector<8x128xf32>
    %3319 = arith.mulf %3283, %3318 : vector<8x128xf32>
    %3320 = arith.addf %3317, %3319 : vector<8x128xf32>
    %3321 = vector.broadcast %8 : f32 to vector<8x128xf32>
    %3322 = arith.mulf %3285, %3321 : vector<8x128xf32>
    %3323 = arith.addf %3320, %3322 : vector<8x128xf32>
    %3324 = vector.broadcast %50 : f32 to vector<8x128xf32>
    %3325 = arith.addf %3323, %3324 : vector<8x128xf32>
    %cst_378 = arith.constant 0.000000e+00 : f32
    %3326 = vector.broadcast %cst_378 : f32 to vector<8x128xf32>
    %3327 = arith.maximumf %3325, %3326 : vector<8x128xf32>
    %3328 = vector.broadcast %66 : f32 to vector<8x128xf32>
    %3329 = arith.mulf %3327, %3328 : vector<8x128xf32>
    %3330 = arith.addf %3315, %3329 : vector<8x128xf32>
    %3331 = vector.broadcast %9 : f32 to vector<8x128xf32>
    %3332 = arith.mulf %3281, %3331 : vector<8x128xf32>
    %3333 = vector.broadcast %10 : f32 to vector<8x128xf32>
    %3334 = arith.mulf %3283, %3333 : vector<8x128xf32>
    %3335 = arith.addf %3332, %3334 : vector<8x128xf32>
    %3336 = vector.broadcast %11 : f32 to vector<8x128xf32>
    %3337 = arith.mulf %3285, %3336 : vector<8x128xf32>
    %3338 = arith.addf %3335, %3337 : vector<8x128xf32>
    %3339 = vector.broadcast %51 : f32 to vector<8x128xf32>
    %3340 = arith.addf %3338, %3339 : vector<8x128xf32>
    %cst_379 = arith.constant 0.000000e+00 : f32
    %3341 = vector.broadcast %cst_379 : f32 to vector<8x128xf32>
    %3342 = arith.maximumf %3340, %3341 : vector<8x128xf32>
    %3343 = vector.broadcast %67 : f32 to vector<8x128xf32>
    %3344 = arith.mulf %3342, %3343 : vector<8x128xf32>
    %3345 = arith.addf %3330, %3344 : vector<8x128xf32>
    %3346 = vector.broadcast %12 : f32 to vector<8x128xf32>
    %3347 = arith.mulf %3281, %3346 : vector<8x128xf32>
    %3348 = vector.broadcast %13 : f32 to vector<8x128xf32>
    %3349 = arith.mulf %3283, %3348 : vector<8x128xf32>
    %3350 = arith.addf %3347, %3349 : vector<8x128xf32>
    %3351 = vector.broadcast %14 : f32 to vector<8x128xf32>
    %3352 = arith.mulf %3285, %3351 : vector<8x128xf32>
    %3353 = arith.addf %3350, %3352 : vector<8x128xf32>
    %3354 = vector.broadcast %52 : f32 to vector<8x128xf32>
    %3355 = arith.addf %3353, %3354 : vector<8x128xf32>
    %cst_380 = arith.constant 0.000000e+00 : f32
    %3356 = vector.broadcast %cst_380 : f32 to vector<8x128xf32>
    %3357 = arith.maximumf %3355, %3356 : vector<8x128xf32>
    %3358 = vector.broadcast %68 : f32 to vector<8x128xf32>
    %3359 = arith.mulf %3357, %3358 : vector<8x128xf32>
    %3360 = arith.addf %3345, %3359 : vector<8x128xf32>
    %3361 = vector.broadcast %15 : f32 to vector<8x128xf32>
    %3362 = arith.mulf %3281, %3361 : vector<8x128xf32>
    %3363 = vector.broadcast %16 : f32 to vector<8x128xf32>
    %3364 = arith.mulf %3283, %3363 : vector<8x128xf32>
    %3365 = arith.addf %3362, %3364 : vector<8x128xf32>
    %3366 = vector.broadcast %17 : f32 to vector<8x128xf32>
    %3367 = arith.mulf %3285, %3366 : vector<8x128xf32>
    %3368 = arith.addf %3365, %3367 : vector<8x128xf32>
    %3369 = vector.broadcast %53 : f32 to vector<8x128xf32>
    %3370 = arith.addf %3368, %3369 : vector<8x128xf32>
    %cst_381 = arith.constant 0.000000e+00 : f32
    %3371 = vector.broadcast %cst_381 : f32 to vector<8x128xf32>
    %3372 = arith.maximumf %3370, %3371 : vector<8x128xf32>
    %3373 = vector.broadcast %69 : f32 to vector<8x128xf32>
    %3374 = arith.mulf %3372, %3373 : vector<8x128xf32>
    %3375 = arith.addf %3360, %3374 : vector<8x128xf32>
    %3376 = vector.broadcast %18 : f32 to vector<8x128xf32>
    %3377 = arith.mulf %3281, %3376 : vector<8x128xf32>
    %3378 = vector.broadcast %19 : f32 to vector<8x128xf32>
    %3379 = arith.mulf %3283, %3378 : vector<8x128xf32>
    %3380 = arith.addf %3377, %3379 : vector<8x128xf32>
    %3381 = vector.broadcast %20 : f32 to vector<8x128xf32>
    %3382 = arith.mulf %3285, %3381 : vector<8x128xf32>
    %3383 = arith.addf %3380, %3382 : vector<8x128xf32>
    %3384 = vector.broadcast %54 : f32 to vector<8x128xf32>
    %3385 = arith.addf %3383, %3384 : vector<8x128xf32>
    %cst_382 = arith.constant 0.000000e+00 : f32
    %3386 = vector.broadcast %cst_382 : f32 to vector<8x128xf32>
    %3387 = arith.maximumf %3385, %3386 : vector<8x128xf32>
    %3388 = vector.broadcast %70 : f32 to vector<8x128xf32>
    %3389 = arith.mulf %3387, %3388 : vector<8x128xf32>
    %3390 = arith.addf %3375, %3389 : vector<8x128xf32>
    %3391 = vector.broadcast %21 : f32 to vector<8x128xf32>
    %3392 = arith.mulf %3281, %3391 : vector<8x128xf32>
    %3393 = vector.broadcast %22 : f32 to vector<8x128xf32>
    %3394 = arith.mulf %3283, %3393 : vector<8x128xf32>
    %3395 = arith.addf %3392, %3394 : vector<8x128xf32>
    %3396 = vector.broadcast %23 : f32 to vector<8x128xf32>
    %3397 = arith.mulf %3285, %3396 : vector<8x128xf32>
    %3398 = arith.addf %3395, %3397 : vector<8x128xf32>
    %3399 = vector.broadcast %55 : f32 to vector<8x128xf32>
    %3400 = arith.addf %3398, %3399 : vector<8x128xf32>
    %cst_383 = arith.constant 0.000000e+00 : f32
    %3401 = vector.broadcast %cst_383 : f32 to vector<8x128xf32>
    %3402 = arith.maximumf %3400, %3401 : vector<8x128xf32>
    %3403 = vector.broadcast %71 : f32 to vector<8x128xf32>
    %3404 = arith.mulf %3402, %3403 : vector<8x128xf32>
    %3405 = arith.addf %3390, %3404 : vector<8x128xf32>
    %3406 = vector.broadcast %24 : f32 to vector<8x128xf32>
    %3407 = arith.mulf %3281, %3406 : vector<8x128xf32>
    %3408 = vector.broadcast %25 : f32 to vector<8x128xf32>
    %3409 = arith.mulf %3283, %3408 : vector<8x128xf32>
    %3410 = arith.addf %3407, %3409 : vector<8x128xf32>
    %3411 = vector.broadcast %26 : f32 to vector<8x128xf32>
    %3412 = arith.mulf %3285, %3411 : vector<8x128xf32>
    %3413 = arith.addf %3410, %3412 : vector<8x128xf32>
    %3414 = vector.broadcast %56 : f32 to vector<8x128xf32>
    %3415 = arith.addf %3413, %3414 : vector<8x128xf32>
    %cst_384 = arith.constant 0.000000e+00 : f32
    %3416 = vector.broadcast %cst_384 : f32 to vector<8x128xf32>
    %3417 = arith.maximumf %3415, %3416 : vector<8x128xf32>
    %3418 = vector.broadcast %72 : f32 to vector<8x128xf32>
    %3419 = arith.mulf %3417, %3418 : vector<8x128xf32>
    %3420 = arith.addf %3405, %3419 : vector<8x128xf32>
    %3421 = vector.broadcast %27 : f32 to vector<8x128xf32>
    %3422 = arith.mulf %3281, %3421 : vector<8x128xf32>
    %3423 = vector.broadcast %28 : f32 to vector<8x128xf32>
    %3424 = arith.mulf %3283, %3423 : vector<8x128xf32>
    %3425 = arith.addf %3422, %3424 : vector<8x128xf32>
    %3426 = vector.broadcast %29 : f32 to vector<8x128xf32>
    %3427 = arith.mulf %3285, %3426 : vector<8x128xf32>
    %3428 = arith.addf %3425, %3427 : vector<8x128xf32>
    %3429 = vector.broadcast %57 : f32 to vector<8x128xf32>
    %3430 = arith.addf %3428, %3429 : vector<8x128xf32>
    %cst_385 = arith.constant 0.000000e+00 : f32
    %3431 = vector.broadcast %cst_385 : f32 to vector<8x128xf32>
    %3432 = arith.maximumf %3430, %3431 : vector<8x128xf32>
    %3433 = vector.broadcast %73 : f32 to vector<8x128xf32>
    %3434 = arith.mulf %3432, %3433 : vector<8x128xf32>
    %3435 = arith.addf %3420, %3434 : vector<8x128xf32>
    %3436 = vector.broadcast %30 : f32 to vector<8x128xf32>
    %3437 = arith.mulf %3281, %3436 : vector<8x128xf32>
    %3438 = vector.broadcast %31 : f32 to vector<8x128xf32>
    %3439 = arith.mulf %3283, %3438 : vector<8x128xf32>
    %3440 = arith.addf %3437, %3439 : vector<8x128xf32>
    %3441 = vector.broadcast %32 : f32 to vector<8x128xf32>
    %3442 = arith.mulf %3285, %3441 : vector<8x128xf32>
    %3443 = arith.addf %3440, %3442 : vector<8x128xf32>
    %3444 = vector.broadcast %58 : f32 to vector<8x128xf32>
    %3445 = arith.addf %3443, %3444 : vector<8x128xf32>
    %cst_386 = arith.constant 0.000000e+00 : f32
    %3446 = vector.broadcast %cst_386 : f32 to vector<8x128xf32>
    %3447 = arith.maximumf %3445, %3446 : vector<8x128xf32>
    %3448 = vector.broadcast %74 : f32 to vector<8x128xf32>
    %3449 = arith.mulf %3447, %3448 : vector<8x128xf32>
    %3450 = arith.addf %3435, %3449 : vector<8x128xf32>
    %3451 = vector.broadcast %33 : f32 to vector<8x128xf32>
    %3452 = arith.mulf %3281, %3451 : vector<8x128xf32>
    %3453 = vector.broadcast %34 : f32 to vector<8x128xf32>
    %3454 = arith.mulf %3283, %3453 : vector<8x128xf32>
    %3455 = arith.addf %3452, %3454 : vector<8x128xf32>
    %3456 = vector.broadcast %35 : f32 to vector<8x128xf32>
    %3457 = arith.mulf %3285, %3456 : vector<8x128xf32>
    %3458 = arith.addf %3455, %3457 : vector<8x128xf32>
    %3459 = vector.broadcast %59 : f32 to vector<8x128xf32>
    %3460 = arith.addf %3458, %3459 : vector<8x128xf32>
    %cst_387 = arith.constant 0.000000e+00 : f32
    %3461 = vector.broadcast %cst_387 : f32 to vector<8x128xf32>
    %3462 = arith.maximumf %3460, %3461 : vector<8x128xf32>
    %3463 = vector.broadcast %75 : f32 to vector<8x128xf32>
    %3464 = arith.mulf %3462, %3463 : vector<8x128xf32>
    %3465 = arith.addf %3450, %3464 : vector<8x128xf32>
    %3466 = vector.broadcast %36 : f32 to vector<8x128xf32>
    %3467 = arith.mulf %3281, %3466 : vector<8x128xf32>
    %3468 = vector.broadcast %37 : f32 to vector<8x128xf32>
    %3469 = arith.mulf %3283, %3468 : vector<8x128xf32>
    %3470 = arith.addf %3467, %3469 : vector<8x128xf32>
    %3471 = vector.broadcast %38 : f32 to vector<8x128xf32>
    %3472 = arith.mulf %3285, %3471 : vector<8x128xf32>
    %3473 = arith.addf %3470, %3472 : vector<8x128xf32>
    %3474 = vector.broadcast %60 : f32 to vector<8x128xf32>
    %3475 = arith.addf %3473, %3474 : vector<8x128xf32>
    %cst_388 = arith.constant 0.000000e+00 : f32
    %3476 = vector.broadcast %cst_388 : f32 to vector<8x128xf32>
    %3477 = arith.maximumf %3475, %3476 : vector<8x128xf32>
    %3478 = vector.broadcast %76 : f32 to vector<8x128xf32>
    %3479 = arith.mulf %3477, %3478 : vector<8x128xf32>
    %3480 = arith.addf %3465, %3479 : vector<8x128xf32>
    %3481 = vector.broadcast %39 : f32 to vector<8x128xf32>
    %3482 = arith.mulf %3281, %3481 : vector<8x128xf32>
    %3483 = vector.broadcast %40 : f32 to vector<8x128xf32>
    %3484 = arith.mulf %3283, %3483 : vector<8x128xf32>
    %3485 = arith.addf %3482, %3484 : vector<8x128xf32>
    %3486 = vector.broadcast %41 : f32 to vector<8x128xf32>
    %3487 = arith.mulf %3285, %3486 : vector<8x128xf32>
    %3488 = arith.addf %3485, %3487 : vector<8x128xf32>
    %3489 = vector.broadcast %61 : f32 to vector<8x128xf32>
    %3490 = arith.addf %3488, %3489 : vector<8x128xf32>
    %cst_389 = arith.constant 0.000000e+00 : f32
    %3491 = vector.broadcast %cst_389 : f32 to vector<8x128xf32>
    %3492 = arith.maximumf %3490, %3491 : vector<8x128xf32>
    %3493 = vector.broadcast %77 : f32 to vector<8x128xf32>
    %3494 = arith.mulf %3492, %3493 : vector<8x128xf32>
    %3495 = arith.addf %3480, %3494 : vector<8x128xf32>
    %3496 = vector.broadcast %42 : f32 to vector<8x128xf32>
    %3497 = arith.mulf %3281, %3496 : vector<8x128xf32>
    %3498 = vector.broadcast %43 : f32 to vector<8x128xf32>
    %3499 = arith.mulf %3283, %3498 : vector<8x128xf32>
    %3500 = arith.addf %3497, %3499 : vector<8x128xf32>
    %3501 = vector.broadcast %44 : f32 to vector<8x128xf32>
    %3502 = arith.mulf %3285, %3501 : vector<8x128xf32>
    %3503 = arith.addf %3500, %3502 : vector<8x128xf32>
    %3504 = vector.broadcast %62 : f32 to vector<8x128xf32>
    %3505 = arith.addf %3503, %3504 : vector<8x128xf32>
    %cst_390 = arith.constant 0.000000e+00 : f32
    %3506 = vector.broadcast %cst_390 : f32 to vector<8x128xf32>
    %3507 = arith.maximumf %3505, %3506 : vector<8x128xf32>
    %3508 = vector.broadcast %78 : f32 to vector<8x128xf32>
    %3509 = arith.mulf %3507, %3508 : vector<8x128xf32>
    %3510 = arith.addf %3495, %3509 : vector<8x128xf32>
    %3511 = vector.broadcast %45 : f32 to vector<8x128xf32>
    %3512 = arith.mulf %3281, %3511 : vector<8x128xf32>
    %3513 = vector.broadcast %46 : f32 to vector<8x128xf32>
    %3514 = arith.mulf %3283, %3513 : vector<8x128xf32>
    %3515 = arith.addf %3512, %3514 : vector<8x128xf32>
    %3516 = vector.broadcast %47 : f32 to vector<8x128xf32>
    %3517 = arith.mulf %3285, %3516 : vector<8x128xf32>
    %3518 = arith.addf %3515, %3517 : vector<8x128xf32>
    %3519 = vector.broadcast %63 : f32 to vector<8x128xf32>
    %3520 = arith.addf %3518, %3519 : vector<8x128xf32>
    %cst_391 = arith.constant 0.000000e+00 : f32
    %3521 = vector.broadcast %cst_391 : f32 to vector<8x128xf32>
    %3522 = arith.maximumf %3520, %3521 : vector<8x128xf32>
    %3523 = vector.broadcast %79 : f32 to vector<8x128xf32>
    %3524 = arith.mulf %3522, %3523 : vector<8x128xf32>
    %3525 = arith.addf %3510, %3524 : vector<8x128xf32>
    %3526 = vector.broadcast %80 : f32 to vector<8x128xf32>
    %3527 = arith.addf %3525, %3526 : vector<8x128xf32>
    %c0_392 = arith.constant 0 : index
    %c0_393 = arith.constant 0 : index
    %3528 = vector.load %arg3[%c0_392, %c0_393] : memref<8x128xf32, #tpu.memory_space<vmem>>, vector<8x128xf32>
    tpu.vector_store %arg3[%c0_392, %c0_393], %3527 {strides = array<i32>} : memref<8x128xf32, #tpu.memory_space<vmem>>, vector<8x128xf32>,
    return
  }
  func.func @transform_0(%arg0: i32) -> (i32, i32, i32, i32) {
    %c0_i32 = arith.constant 0 : i32
    %c0_i32_0 = arith.constant 0 : i32
    %c0_i32_1 = arith.constant 0 : i32
    %c0_i32_2 = arith.constant 0 : i32
    return %c0_i32, %c0_i32_0, %arg0, %c0_i32_1 : i32, i32, i32, i32
  }
  func.func @transform_1(%arg0: i32) -> i32 {
    %c0_i32 = arith.constant 0 : i32
    %c0_i32_0 = arith.constant 0 : i32
    return %c0_i32 : i32
  }
  func.func @transform_2(%arg0: i32) -> (i32, i32) {
    %c0_i32 = arith.constant 0 : i32
    %c0_i32_0 = arith.constant 0 : i32
    return %arg0, %c0_i32 : i32, i32
  }
}

</mosaic_0001>

<llo_original>
// kernel: tpu_custom_call.1
$region0: #{tpu_custom_call.1}
  #allocation0 [shape = 'u32[]', space=smem, size = 0x4, offset = 0x4, fixed_abs, tag = 'smem constant byte address 0x4 - core index']
  #allocation1 [shape = 'u32[144,128]{1,0:T(1,128)}', space=vmem, size = 0x12000, scoped, tag = 'internal scratch']
  %s0 = inlined_call_operand.hbm [shape: f32[1,16,8,128], index: 0, kind: input, shape index: {}]
  %s1 = inlined_call_operand.vmem [shape: f32[81], index: 1, kind: input, shape index: {}]
  %s2 = inlined_call_operand.hbm [shape: f32[8,128], index: 2, kind: output, shape index: {}]
  %s3 = sld [smem:[#allocation0]]
  $region26: #{tpu_custom_call.1} parent=0
    _
  %s5 = ssub.s32 1, %s3
  %s6 = scalar_select 0, %s5, %s3
  $region1: #{tpu_custom_call.1} parent=0
    #allocation2 [shape = 'u8[65536]{0}', space=vmem, size = 0x10000, scoped, tag = 'input window, operand 0, single buffered']
    #allocation3 [shape = 's32[1]{0}', space=sflag, size = 0x4, scoped, tag = 'scoped memory for tpu_custom_call.1']
    #allocation4 [shape = 's32[1]{0}', space=sflag, size = 0x4, scoped, tag = 'scoped memory for tpu_custom_call.1']
    #allocation5 [shape = 's32[1]{0}', space=sflag, size = 0x4, scoped, tag = 'scoped memory for tpu_custom_call.1']
    #allocation6 [shape = 'u8[512]{0}', space=smem, size = 0x200, scoped, tag = 'input window, operand 1, single buffered']
    #allocation7 [shape = 'u8[4096]{0}', space=vmem, size = 0x1000, scoped, tag = 'output window, operand 0, single buffered']
    %7 = vsyncpa [#allocation3], 0
    %8 = vsyncpa [#allocation5], 0
    %9 = vsyncpa [#allocation4], 0
    // Predicated region
    $region2: #{tpu_custom_call.1} parent=1 // pred_check
      _
    $region3: #{tpu_custom_call.1} parent=1 // pred_check_branch
      %11 = sbr.rel (0) target = $region5
    $region4: #{tpu_custom_call.1} parent=1 // pred_region
      %s13 = ssub.s32 2048, 2048
      %14 = vsyncadd [#allocation3], %s13
      %s15 = sshll.u32 [#allocation2], 4
      %s16 = int_to_ptr.vmem [resolvable:$true] %s15
      %21 = dma.hbm_to_vmem [thread:$0]  %s0, 2048, %s16, [#allocation3], 128, 128, 8
    $region5: #{tpu_custom_call.1} parent=1 // pred_fallthru
      _
    // Predicated region
    $region6: #{tpu_custom_call.1} parent=1 // pred_check
      _
    $region7: #{tpu_custom_call.1} parent=1 // pred_check_branch
      %23 = sbr.rel (0) target = $region9
    $region8: #{tpu_custom_call.1} parent=1 // pred_region
      %s25 = ssub.s32 16, 16
      %26 = vsyncadd [#allocation5], %s25
      %s28 = sshll.u32 %s1, 4
      %s29 = int_to_ptr.vmem [resolvable:$true] %s28
      %31 = dma.vmem_to_smem %s29, 16, [#allocation6], [#allocation5]
    $region9: #{tpu_custom_call.1} parent=1 // pred_fallthru
      _
    // Predicated region
    $region10: #{tpu_custom_call.1} parent=1 // pred_check
      _
    $region11: #{tpu_custom_call.1} parent=1 // pred_check_branch
      %33 = sbr.rel (0) target = $region13
    $region12: #{tpu_custom_call.1} parent=1 // pred_region
      %34 = dma.done [#allocation3], 2048
    $region13: #{tpu_custom_call.1} parent=1 // pred_fallthru
      _
    // Predicated region
    $region14: #{tpu_custom_call.1} parent=1 // pred_check
      _
    $region15: #{tpu_custom_call.1} parent=1 // pred_check_branch
      %36 = sbr.rel (0) target = $region17
    $region16: #{tpu_custom_call.1} parent=1 // pred_region
      %37 = dma.done [#allocation5], 16
    $region17: #{tpu_custom_call.1} parent=1 // pred_fallthru
      _
    %38 = sfence
    %s39 = sld [smem:[#allocation6]]
    %s40 = sld [smem:[#allocation6 + $0x1]]
    %s41 = sld [smem:[#allocation6 + $0x2]]
    %s42 = sld [smem:[#allocation6 + $0x3]]
    %s43 = sld [smem:[#allocation6 + $0x4]]
    %s44 = sld [smem:[#allocation6 + $0x5]]
    %s45 = sld [smem:[#allocation6 + $0x6]]
    %s46 = sld [smem:[#allocation6 + $0x7]]
    %s47 = sld [smem:[#allocation6 + $0x8]]
    %s48 = sld [smem:[#allocation6 + $0x9]]
    %s49 = sld [smem:[#allocation6 + $0xa]]
    %s50 = sld [smem:[#allocation6 + $0xb]]
    %s51 = sld [smem:[#allocation6 + $0xc]]
    %s52 = sld [smem:[#allocation6 + $0xd]]
    %s53 = sld [smem:[#allocation6 + $0xe]]
    %s54 = sld [smem:[#allocation6 + $0xf]]
    %s55 = sld [smem:[#allocation6 + $0x10]]
    %s56 = sld [smem:[#allocation6 + $0x11]]
    %s57 = sld [smem:[#allocation6 + $0x12]]
    %s58 = sld [smem:[#allocation6 + $0x13]]
    %s59 = sld [smem:[#allocation6 + $0x14]]
    %s60 = sld [smem:[#allocation6 + $0x15]]
    %s61 = sld [smem:[#allocation6 + $0x16]]
    %s62 = sld [smem:[#allocation6 + $0x17]]
    %s63 = sld [smem:[#allocation6 + $0x18]]
    %s64 = sld [smem:[#allocation6 + $0x19]]
    %s65 = sld [smem:[#allocation6 + $0x1a]]
    %s66 = sld [smem:[#allocation6 + $0x1b]]
    %s67 = sld [smem:[#allocation6 + $0x1c]]
    %s68 = sld [smem:[#allocation6 + $0x1d]]
    %s69 = sld [smem:[#allocation6 + $0x1e]]
    %s70 = sld [smem:[#allocation6 + $0x1f]]
    %s71 = sld [smem:[#allocation6 + $0x20]]
    %s72 = sld [smem:[#allocation6 + $0x21]]
    %s73 = sld [smem:[#allocation6 + $0x22]]
    %s74 = sld [smem:[#allocation6 + $0x23]]
    %s75 = sld [smem:[#allocation6 + $0x24]]
    %s76 = sld [smem:[#allocation6 + $0x25]]
    %s77 = sld [smem:[#allocation6 + $0x26]]
    %s78 = sld [smem:[#allocation6 + $0x27]]
    %s79 = sld [smem:[#allocation6 + $0x28]]
    %s80 = sld [smem:[#allocation6 + $0x29]]
    %s81 = sld [smem:[#allocation6 + $0x2a]]
    %s82 = sld [smem:[#allocation6 + $0x2b]]
    %s83 = sld [smem:[#allocation6 + $0x2c]]
    %s84 = sld [smem:[#allocation6 + $0x2d]]
    %s85 = sld [smem:[#allocation6 + $0x2e]]
    %s86 = sld [smem:[#allocation6 + $0x2f]]
    %s87 = sld [smem:[#allocation6 + $0x30]]
    %s88 = sld [smem:[#allocation6 + $0x31]]
    %s89 = sld [smem:[#allocation6 + $0x32]]
    %s90 = sld [smem:[#allocation6 + $0x33]]
    %s91 = sld [smem:[#allocation6 + $0x34]]
    %s92 = sld [smem:[#allocation6 + $0x35]]
    %s93 = sld [smem:[#allocation6 + $0x36]]
    %s94 = sld [smem:[#allocation6 + $0x37]]
    %s95 = sld [smem:[#allocation6 + $0x38]]
    %s96 = sld [smem:[#allocation6 + $0x39]]
    %s97 = sld [smem:[#allocation6 + $0x3a]]
    %s98 = sld [smem:[#allocation6 + $0x3b]]
    %s99 = sld [smem:[#allocation6 + $0x3c]]
    %s100 = sld [smem:[#allocation6 + $0x3d]]
    %s101 = sld [smem:[#allocation6 + $0x3e]]
    %s102 = sld [smem:[#allocation6 + $0x3f]]
    %s103 = sld [smem:[#allocation6 + $0x40]]
    %s104 = sld [smem:[#allocation6 + $0x41]]
    %s105 = sld [smem:[#allocation6 + $0x42]]
    %s106 = sld [smem:[#allocation6 + $0x43]]
    %s107 = sld [smem:[#allocation6 + $0x44]]
    %s108 = sld [smem:[#allocation6 + $0x45]]
    %s109 = sld [smem:[#allocation6 + $0x46]]
    %s110 = sld [smem:[#allocation6 + $0x47]]
    %s111 = sld [smem:[#allocation6 + $0x48]]
    %s112 = sld [smem:[#allocation6 + $0x49]]
    %s113 = sld [smem:[#allocation6 + $0x4a]]
    %s114 = sld [smem:[#allocation6 + $0x4b]]
    %s115 = sld [smem:[#allocation6 + $0x4c]]
    %s116 = sld [smem:[#allocation6 + $0x4d]]
    %s117 = sld [smem:[#allocation6 + $0x4e]]
    %s118 = sld [smem:[#allocation6 + $0x4f]]
    %s119 = sld [smem:[#allocation6 + $0x50]]
    %v120 = vld [vmem:[#allocation2] sm:$0xff]
    %s121 = scalar_lea.vmem [#allocation2], 8
    %v122 = vld [vmem:[%s121] sm:$0xff]
    %s123 = scalar_lea.vmem [#allocation2], 16
    %v124 = vld [vmem:[%s123] sm:$0xff]
    %v125 = vstv %s39
    %v126 = vmul.f32 %v120, %v125
    %v127 = vstv %s40
    %v128 = vmul.f32 %v122, %v127
    %v129 = vadd.f32 %v126, %v128
    %v130 = vstv %s41
    %v131 = vmul.f32 %v124, %v130
    %v132 = vadd.f32 %v129, %v131
    %v133 = vstv %s87
    %v134 = vadd.f32 %v132, %v133
    %v135 = vmax.f32 %v134, 0.0
    %v136 = vstv %s103
    %v137 = vmul.f32 %v135, %v136
    %v138 = vadd.f32 %v137, 0.0
    %v139 = vstv %s42
    %v140 = vmul.f32 %v120, %v139
    %v141 = vstv %s43
    %v142 = vmul.f32 %v122, %v141
    %v143 = vadd.f32 %v140, %v142
    %v144 = vstv %s44
    %v145 = vmul.f32 %v124, %v144
    %v146 = vadd.f32 %v143, %v145
    %v147 = vstv %s88
    %v148 = vadd.f32 %v146, %v147
    %v149 = vmax.f32 %v148, 0.0
    %v150 = vstv %s104
    %v151 = vmul.f32 %v149, %v150
    %v152 = vadd.f32 %v138, %v151
    %v153 = vstv %s45
    %v154 = vmul.f32 %v120, %v153
    %v155 = vstv %s46
    %v156 = vmul.f32 %v122, %v155
    %v157 = vadd.f32 %v154, %v156
    %v158 = vstv %s47
    %v159 = vmul.f32 %v124, %v158
    %v160 = vadd.f32 %v157, %v159
    %v161 = vstv %s89
    %v162 = vadd.f32 %v160, %v161
    %v163 = vmax.f32 %v162, 0.0
    %v164 = vstv %s105
    %v165 = vmul.f32 %v163, %v164
    %v166 = vadd.f32 %v152, %v165
    %v167 = vstv %s48
    %v168 = vmul.f32 %v120, %v167
    %v169 = vstv %s49
    %v170 = vmul.f32 %v122, %v169
    %v171 = vadd.f32 %v168, %v170
    %v172 = vstv %s50
    %v173 = vmul.f32 %v124, %v172
    %v174 = vadd.f32 %v171, %v173
    %v175 = vstv %s90
    %v176 = vadd.f32 %v174, %v175
    %v177 = vmax.f32 %v176, 0.0
    %v178 = vstv %s106
    %v179 = vmul.f32 %v177, %v178
    %v180 = vadd.f32 %v166, %v179
    %v181 = vstv %s51
    %v182 = vmul.f32 %v120, %v181
    %v183 = vstv %s52
    %v184 = vmul.f32 %v122, %v183
    %v185 = vadd.f32 %v182, %v184
    %v186 = vstv %s53
    %v187 = vmul.f32 %v124, %v186
    %v188 = vadd.f32 %v185, %v187
    %v189 = vstv %s91
    %v190 = vadd.f32 %v188, %v189
    %v191 = vmax.f32 %v190, 0.0
    %v192 = vstv %s107
    %v193 = vmul.f32 %v191, %v192
    %v194 = vadd.f32 %v180, %v193
    %v195 = vstv %s54
    %v196 = vmul.f32 %v120, %v195
    %v197 = vstv %s55
    %v198 = vmul.f32 %v122, %v197
    %v199 = vadd.f32 %v196, %v198
    %v200 = vstv %s56
    %v201 = vmul.f32 %v124, %v200
    %v202 = vadd.f32 %v199, %v201
    %v203 = vstv %s92
    %v204 = vadd.f32 %v202, %v203
    %v205 = vmax.f32 %v204, 0.0
    %v206 = vstv %s108
    %v207 = vmul.f32 %v205, %v206
    %v208 = vadd.f32 %v194, %v207
    %v209 = vstv %s57
    %v210 = vmul.f32 %v120, %v209
    %v211 = vstv %s58
    %v212 = vmul.f32 %v122, %v211
    %v213 = vadd.f32 %v210, %v212
    %v214 = vstv %s59
    %v215 = vmul.f32 %v124, %v214
    %v216 = vadd.f32 %v213, %v215
    %v217 = vstv %s93
    %v218 = vadd.f32 %v216, %v217
    %v219 = vmax.f32 %v218, 0.0
    %v220 = vstv %s109
    %v221 = vmul.f32 %v219, %v220
    %v222 = vadd.f32 %v208, %v221
    %v223 = vstv %s60
    %v224 = vmul.f32 %v120, %v223
    %v225 = vstv %s61
    %v226 = vmul.f32 %v122, %v225
    %v227 = vadd.f32 %v224, %v226
    %v228 = vstv %s62
    %v229 = vmul.f32 %v124, %v228
    %v230 = vadd.f32 %v227, %v229
    %v231 = vstv %s94
    %v232 = vadd.f32 %v230, %v231
    %v233 = vmax.f32 %v232, 0.0
    %v234 = vstv %s110
    %v235 = vmul.f32 %v233, %v234
    %v236 = vadd.f32 %v222, %v235
    %v237 = vstv %s63
    %v238 = vmul.f32 %v120, %v237
    %v239 = vstv %s64
    %v240 = vmul.f32 %v122, %v239
    %v241 = vadd.f32 %v238, %v240
    %v242 = vstv %s65
    %v243 = vmul.f32 %v124, %v242
    %v244 = vadd.f32 %v241, %v243
    %v245 = vstv %s95
    %v246 = vadd.f32 %v244, %v245
    %v247 = vmax.f32 %v246, 0.0
    %v248 = vstv %s111
    %v249 = vmul.f32 %v247, %v248
    %v250 = vadd.f32 %v236, %v249
    %v251 = vstv %s66
    %v252 = vmul.f32 %v120, %v251
    %v253 = vstv %s67
    %v254 = vmul.f32 %v122, %v253
    %v255 = vadd.f32 %v252, %v254
    %v256 = vstv %s68
    %v257 = vmul.f32 %v124, %v256
    %v258 = vadd.f32 %v255, %v257
    %v259 = vstv %s96
    %v260 = vadd.f32 %v258, %v259
    %v261 = vmax.f32 %v260, 0.0
    %v262 = vstv %s112
    %v263 = vmul.f32 %v261, %v262
    %v264 = vadd.f32 %v250, %v263
    %v265 = vstv %s69
    %v266 = vmul.f32 %v120, %v265
    %v267 = vstv %s70
    %v268 = vmul.f32 %v122, %v267
    %v269 = vadd.f32 %v266, %v268
    %v270 = vstv %s71
    %v271 = vmul.f32 %v124, %v270
    %v272 = vadd.f32 %v269, %v271
    %v273 = vstv %s97
    %v274 = vadd.f32 %v272, %v273
    %v275 = vmax.f32 %v274, 0.0
    %v276 = vstv %s113
    %v277 = vmul.f32 %v275, %v276
    %v278 = vadd.f32 %v264, %v277
    %v279 = vstv %s72
    %v280 = vmul.f32 %v120, %v279
    %v281 = vstv %s73
    %v282 = vmul.f32 %v122, %v281
    %v283 = vadd.f32 %v280, %v282
    %v284 = vstv %s74
    %v285 = vmul.f32 %v124, %v284
    %v286 = vadd.f32 %v283, %v285
    %v287 = vstv %s98
    %v288 = vadd.f32 %v286, %v287
    %v289 = vmax.f32 %v288, 0.0
    %v290 = vstv %s114
    %v291 = vmul.f32 %v289, %v290
    %v292 = vadd.f32 %v278, %v291
    %v293 = vstv %s75
    %v294 = vmul.f32 %v120, %v293
    %v295 = vstv %s76
    %v296 = vmul.f32 %v122, %v295
    %v297 = vadd.f32 %v294, %v296
    %v298 = vstv %s77
    %v299 = vmul.f32 %v124, %v298
    %v300 = vadd.f32 %v297, %v299
    %v301 = vstv %s99
    %v302 = vadd.f32 %v300, %v301
    %v303 = vmax.f32 %v302, 0.0
    %v304 = vstv %s115
    %v305 = vmul.f32 %v303, %v304
    %v306 = vadd.f32 %v292, %v305
    %v307 = vstv %s78
    %v308 = vmul.f32 %v120, %v307
    %v309 = vstv %s79
    %v310 = vmul.f32 %v122, %v309
    %v311 = vadd.f32 %v308, %v310
    %v312 = vstv %s80
    %v313 = vmul.f32 %v124, %v312
    %v314 = vadd.f32 %v311, %v313
    %v315 = vstv %s100
    %v316 = vadd.f32 %v314, %v315
    %v317 = vmax.f32 %v316, 0.0
    %v318 = vstv %s116
    %v319 = vmul.f32 %v317, %v318
    %v320 = vadd.f32 %v306, %v319
    %v321 = vstv %s81
    %v322 = vmul.f32 %v120, %v321
    %v323 = vstv %s82
    %v324 = vmul.f32 %v122, %v323
    %v325 = vadd.f32 %v322, %v324
    %v326 = vstv %s83
    %v327 = vmul.f32 %v124, %v326
    %v328 = vadd.f32 %v325, %v327
    %v329 = vstv %s101
    %v330 = vadd.f32 %v328, %v329
    %v331 = vmax.f32 %v330, 0.0
    %v332 = vstv %s117
    %v333 = vmul.f32 %v331, %v332
    %v334 = vadd.f32 %v320, %v333
    %v335 = vstv %s84
    %v336 = vmul.f32 %v120, %v335
    %v337 = vstv %s85
    %v338 = vmul.f32 %v122, %v337
    %v339 = vadd.f32 %v336, %v338
    %v340 = vstv %s86
    %v341 = vmul.f32 %v124, %v340
    %v342 = vadd.f32 %v339, %v341
    %v343 = vstv %s102
    %v344 = vadd.f32 %v342, %v343
    %v345 = vmax.f32 %v344, 0.0
    %v346 = vstv %s118
    %v347 = vmul.f32 %v345, %v346
    %v348 = vadd.f32 %v334, %v347
    %s349 = scalar_lea.vmem [#allocation2], 24
    %v350 = vld [vmem:[%s349] sm:$0xff]
    %v351 = vmul.f32 %v122, %v125
    %v352 = vmul.f32 %v124, %v127
    %v353 = vadd.f32 %v351, %v352
    %v354 = vmul.f32 %v350, %v130
    %v355 = vadd.f32 %v353, %v354
    %v356 = vadd.f32 %v355, %v133
    %v357 = vmax.f32 %v356, 0.0
    %v358 = vmul.f32 %v357, %v136
    %v359 = vadd.f32 %v348, %v358
    %v360 = vmul.f32 %v122, %v139
    %v361 = vmul.f32 %v124, %v141
    %v362 = vadd.f32 %v360, %v361
    %v363 = vmul.f32 %v350, %v144
    %v364 = vadd.f32 %v362, %v363
    %v365 = vadd.f32 %v364, %v147
    %v366 = vmax.f32 %v365, 0.0
    %v367 = vmul.f32 %v366, %v150
    %v368 = vadd.f32 %v359, %v367
    %v369 = vmul.f32 %v122, %v153
    %v370 = vmul.f32 %v124, %v155
    %v371 = vadd.f32 %v369, %v370
    %v372 = vmul.f32 %v350, %v158
    %v373 = vadd.f32 %v371, %v372
    %v374 = vadd.f32 %v373, %v161
    %v375 = vmax.f32 %v374, 0.0
    %v376 = vmul.f32 %v375, %v164
    %v377 = vadd.f32 %v368, %v376
    %v378 = vmul.f32 %v122, %v167
    %v379 = vmul.f32 %v124, %v169
    %v380 = vadd.f32 %v378, %v379
    %v381 = vmul.f32 %v350, %v172
    %v382 = vadd.f32 %v380, %v381
    %v383 = vadd.f32 %v382, %v175
    %v384 = vmax.f32 %v383, 0.0
    %v385 = vmul.f32 %v384, %v178
    %v386 = vadd.f32 %v377, %v385
    %v387 = vmul.f32 %v122, %v181
    %v388 = vmul.f32 %v124, %v183
    %v389 = vadd.f32 %v387, %v388
    %v390 = vmul.f32 %v350, %v186
    %v391 = vadd.f32 %v389, %v390
    %v392 = vadd.f32 %v391, %v189
    %v393 = vmax.f32 %v392, 0.0
    %v394 = vmul.f32 %v393, %v192
    %v395 = vadd.f32 %v386, %v394
    %v396 = vmul.f32 %v122, %v195
    %v397 = vmul.f32 %v124, %v197
    %v398 = vadd.f32 %v396, %v397
    %v399 = vmul.f32 %v350, %v200
    %v400 = vadd.f32 %v398, %v399
    %v401 = vadd.f32 %v400, %v203
    %v402 = vmax.f32 %v401, 0.0
    %v403 = vmul.f32 %v402, %v206
    %v404 = vadd.f32 %v395, %v403
    %v405 = vmul.f32 %v122, %v209
    %v406 = vmul.f32 %v124, %v211
    %v407 = vadd.f32 %v405, %v406
    %v408 = vmul.f32 %v350, %v214
    %v409 = vadd.f32 %v407, %v408
    %v410 = vadd.f32 %v409, %v217
    %v411 = vmax.f32 %v410, 0.0
    %v412 = vmul.f32 %v411, %v220
    %v413 = vadd.f32 %v404, %v412
    %v414 = vmul.f32 %v122, %v223
    %v415 = vmul.f32 %v124, %v225
    %v416 = vadd.f32 %v414, %v415
    %v417 = vmul.f32 %v350, %v228
    %v418 = vadd.f32 %v416, %v417
    %v419 = vadd.f32 %v418, %v231
    %v420 = vmax.f32 %v419, 0.0
    %v421 = vmul.f32 %v420, %v234
    %v422 = vadd.f32 %v413, %v421
    %v423 = vmul.f32 %v122, %v237
    %v424 = vmul.f32 %v124, %v239
    %v425 = vadd.f32 %v423, %v424
    %v426 = vmul.f32 %v350, %v242
    %v427 = vadd.f32 %v425, %v426
    %v428 = vadd.f32 %v427, %v245
    %v429 = vmax.f32 %v428, 0.0
    %v430 = vmul.f32 %v429, %v248
    %v431 = vadd.f32 %v422, %v430
    %v432 = vmul.f32 %v122, %v251
    %v433 = vmul.f32 %v124, %v253
    %v434 = vadd.f32 %v432, %v433
    %v435 = vmul.f32 %v350, %v256
    %v436 = vadd.f32 %v434, %v435
    %v437 = vadd.f32 %v436, %v259
    %v438 = vmax.f32 %v437, 0.0
    %v439 = vmul.f32 %v438, %v262
    %v440 = vadd.f32 %v431, %v439
    %v441 = vmul.f32 %v122, %v265
    %v442 = vmul.f32 %v124, %v267
    %v443 = vadd.f32 %v441, %v442
    %v444 = vmul.f32 %v350, %v270
    %v445 = vadd.f32 %v443, %v444
    %v446 = vadd.f32 %v445, %v273
    %v447 = vmax.f32 %v446, 0.0
    %v448 = vmul.f32 %v447, %v276
    %v449 = vadd.f32 %v440, %v448
    %v450 = vmul.f32 %v122, %v279
    %v451 = vmul.f32 %v124, %v281
    %v452 = vadd.f32 %v450, %v451
    %v453 = vmul.f32 %v350, %v284
    %v454 = vadd.f32 %v452, %v453
    %v455 = vadd.f32 %v454, %v287
    %v456 = vmax.f32 %v455, 0.0
    %v457 = vmul.f32 %v456, %v290
    %v458 = vadd.f32 %v449, %v457
    %v459 = vmul.f32 %v122, %v293
    %v460 = vmul.f32 %v124, %v295
    %v461 = vadd.f32 %v459, %v460
    %v462 = vmul.f32 %v350, %v298
    %v463 = vadd.f32 %v461, %v462
    %v464 = vadd.f32 %v463, %v301
    %v465 = vmax.f32 %v464, 0.0
    %v466 = vmul.f32 %v465, %v304
    %v467 = vadd.f32 %v458, %v466
    %v468 = vmul.f32 %v122, %v307
    %v469 = vmul.f32 %v124, %v309
    %v470 = vadd.f32 %v468, %v469
    %v471 = vmul.f32 %v350, %v312
    %v472 = vadd.f32 %v470, %v471
    %v473 = vadd.f32 %v472, %v315
    %v474 = vmax.f32 %v473, 0.0
    %v475 = vmul.f32 %v474, %v318
    %v476 = vadd.f32 %v467, %v475
    %v477 = vmul.f32 %v122, %v321
    %v478 = vmul.f32 %v124, %v323
    %v479 = vadd.f32 %v477, %v478
    %v480 = vmul.f32 %v350, %v326
    %v481 = vadd.f32 %v479, %v480
    %v482 = vadd.f32 %v481, %v329
    %v483 = vmax.f32 %v482, 0.0
    %v484 = vmul.f32 %v483, %v332
    %v485 = vadd.f32 %v476, %v484
    %v486 = vmul.f32 %v122, %v335
    %v487 = vmul.f32 %v124, %v337
    %v488 = vadd.f32 %v486, %v487
    %v489 = vmul.f32 %v350, %v340
    %v490 = vadd.f32 %v488, %v489
    %v491 = vadd.f32 %v490, %v343
    %v492 = vmax.f32 %v491, 0.0
    %v493 = vmul.f32 %v492, %v346
    %v494 = vadd.f32 %v485, %v493
    %s495 = scalar_lea.vmem [#allocation2], 32
    %v496 = vld [vmem:[%s495] sm:$0xff]
    %v497 = vmul.f32 %v124, %v125
    %v498 = vmul.f32 %v350, %v127
    %v499 = vadd.f32 %v497, %v498
    %v500 = vmul.f32 %v496, %v130
    %v501 = vadd.f32 %v499, %v500
    %v502 = vadd.f32 %v501, %v133
    %v503 = vmax.f32 %v502, 0.0
    %v504 = vmul.f32 %v503, %v136
    %v505 = vadd.f32 %v494, %v504
    %v506 = vmul.f32 %v124, %v139
    %v507 = vmul.f32 %v350, %v141
    %v508 = vadd.f32 %v506, %v507
    %v509 = vmul.f32 %v496, %v144
    %v510 = vadd.f32 %v508, %v509
    %v511 = vadd.f32 %v510, %v147
    %v512 = vmax.f32 %v511, 0.0
    %v513 = vmul.f32 %v512, %v150
    %v514 = vadd.f32 %v505, %v513
    %v515 = vmul.f32 %v124, %v153
    %v516 = vmul.f32 %v350, %v155
    %v517 = vadd.f32 %v515, %v516
    %v518 = vmul.f32 %v496, %v158
    %v519 = vadd.f32 %v517, %v518
    %v520 = vadd.f32 %v519, %v161
    %v521 = vmax.f32 %v520, 0.0
    %v522 = vmul.f32 %v521, %v164
    %v523 = vadd.f32 %v514, %v522
    %v524 = vmul.f32 %v124, %v167
    %v525 = vmul.f32 %v350, %v169
    %v526 = vadd.f32 %v524, %v525
    %v527 = vmul.f32 %v496, %v172
    %v528 = vadd.f32 %v526, %v527
    %v529 = vadd.f32 %v528, %v175
    %v530 = vmax.f32 %v529, 0.0
    %v531 = vmul.f32 %v530, %v178
    %v532 = vadd.f32 %v523, %v531
    %v533 = vmul.f32 %v124, %v181
    %v534 = vmul.f32 %v350, %v183
    %v535 = vadd.f32 %v533, %v534
    %v536 = vmul.f32 %v496, %v186
    %v537 = vadd.f32 %v535, %v536
    %v538 = vadd.f32 %v537, %v189
    %v539 = vmax.f32 %v538, 0.0
    %v540 = vmul.f32 %v539, %v192
    %v541 = vadd.f32 %v532, %v540
    %v542 = vmul.f32 %v124, %v195
    %v543 = vmul.f32 %v350, %v197
    %v544 = vadd.f32 %v542, %v543
    %v545 = vmul.f32 %v496, %v200
    %v546 = vadd.f32 %v544, %v545
    %v547 = vadd.f32 %v546, %v203
    %v548 = vmax.f32 %v547, 0.0
    %v549 = vmul.f32 %v548, %v206
    %v550 = vadd.f32 %v541, %v549
    %v551 = vmul.f32 %v124, %v209
    %v552 = vmul.f32 %v350, %v211
    %v553 = vadd.f32 %v551, %v552
    %v554 = vmul.f32 %v496, %v214
    %v555 = vadd.f32 %v553, %v554
    %v556 = vadd.f32 %v555, %v217
    %v557 = vmax.f32 %v556, 0.0
    %v558 = vmul.f32 %v557, %v220
    %v559 = vadd.f32 %v550, %v558
    %v560 = vmul.f32 %v124, %v223
    %v561 = vmul.f32 %v350, %v225
    %v562 = vadd.f32 %v560, %v561
    %v563 = vmul.f32 %v496, %v228
    %v564 = vadd.f32 %v562, %v563
    %v565 = vadd.f32 %v564, %v231
    %v566 = vmax.f32 %v565, 0.0
    %v567 = vmul.f32 %v566, %v234
    %v568 = vadd.f32 %v559, %v567
    %v569 = vmul.f32 %v124, %v237
    %v570 = vmul.f32 %v350, %v239
    %v571 = vadd.f32 %v569, %v570
    %v572 = vmul.f32 %v496, %v242
    %v573 = vadd.f32 %v571, %v572
    %v574 = vadd.f32 %v573, %v245
    %v575 = vmax.f32 %v574, 0.0
    %v576 = vmul.f32 %v575, %v248
    %v577 = vadd.f32 %v568, %v576
    %v578 = vmul.f32 %v124, %v251
    %v579 = vmul.f32 %v350, %v253
    %v580 = vadd.f32 %v578, %v579
    %v581 = vmul.f32 %v496, %v256
    %v582 = vadd.f32 %v580, %v581
    %v583 = vadd.f32 %v582, %v259
    %v584 = vmax.f32 %v583, 0.0
    %v585 = vmul.f32 %v584, %v262
    %v586 = vadd.f32 %v577, %v585
    %v587 = vmul.f32 %v124, %v265
    %v588 = vmul.f32 %v350, %v267
    %v589 = vadd.f32 %v587, %v588
    %v590 = vmul.f32 %v496, %v270
    %v591 = vadd.f32 %v589, %v590
    %v592 = vadd.f32 %v591, %v273
    %v593 = vmax.f32 %v592, 0.0
    %v594 = vmul.f32 %v593, %v276
    %v595 = vadd.f32 %v586, %v594
    %v596 = vmul.f32 %v124, %v279
    %v597 = vmul.f32 %v350, %v281
    %v598 = vadd.f32 %v596, %v597
    %v599 = vmul.f32 %v496, %v284
    %v600 = vadd.f32 %v598, %v599
    %v601 = vadd.f32 %v600, %v287
    %v602 = vmax.f32 %v601, 0.0
    %v603 = vmul.f32 %v602, %v290
    %v604 = vadd.f32 %v595, %v603
    %v605 = vmul.f32 %v124, %v293
    %v606 = vmul.f32 %v350, %v295
    %v607 = vadd.f32 %v605, %v606
    %v608 = vmul.f32 %v496, %v298
    %v609 = vadd.f32 %v607, %v608
    %v610 = vadd.f32 %v609, %v301
    %v611 = vmax.f32 %v610, 0.0
    %v612 = vmul.f32 %v611, %v304
    %v613 = vadd.f32 %v604, %v612
    %v614 = vmul.f32 %v124, %v307
    %v615 = vmul.f32 %v350, %v309
    %v616 = vadd.f32 %v614, %v615
    %v617 = vmul.f32 %v496, %v312
    %v618 = vadd.f32 %v616, %v617
    %v619 = vadd.f32 %v618, %v315
    %v620 = vmax.f32 %v619, 0.0
    %v621 = vmul.f32 %v620, %v318
    %v622 = vadd.f32 %v613, %v621
    %v623 = vmul.f32 %v124, %v321
    %v624 = vmul.f32 %v350, %v323
    %v625 = vadd.f32 %v623, %v624
    %v626 = vmul.f32 %v496, %v326
    %v627 = vadd.f32 %v625, %v626
    %v628 = vadd.f32 %v627, %v329
    %v629 = vmax.f32 %v628, 0.0
    %v630 = vmul.f32 %v629, %v332
    %v631 = vadd.f32 %v622, %v630
    %v632 = vmul.f32 %v124, %v335
    %v633 = vmul.f32 %v350, %v337
    %v634 = vadd.f32 %v632, %v633
    %v635 = vmul.f32 %v496, %v340
    %v636 = vadd.f32 %v634, %v635
    %v637 = vadd.f32 %v636, %v343
    %v638 = vmax.f32 %v637, 0.0
    %v639 = vmul.f32 %v638, %v346
    %v640 = vadd.f32 %v631, %v639
    %s641 = scalar_lea.vmem [#allocation2], 40
    %v642 = vld [vmem:[%s641] sm:$0xff]
    %v643 = vmul.f32 %v350, %v125
    %v644 = vmul.f32 %v496, %v127
    %v645 = vadd.f32 %v643, %v644
    %v646 = vmul.f32 %v642, %v130
    %v647 = vadd.f32 %v645, %v646
    %v648 = vadd.f32 %v647, %v133
    %v649 = vmax.f32 %v648, 0.0
    %v650 = vmul.f32 %v649, %v136
    %v651 = vadd.f32 %v640, %v650
    %v652 = vmul.f32 %v350, %v139
    %v653 = vmul.f32 %v496, %v141
    %v654 = vadd.f32 %v652, %v653
    %v655 = vmul.f32 %v642, %v144
    %v656 = vadd.f32 %v654, %v655
    %v657 = vadd.f32 %v656, %v147
    %v658 = vmax.f32 %v657, 0.0
    %v659 = vmul.f32 %v658, %v150
    %v660 = vadd.f32 %v651, %v659
    %v661 = vmul.f32 %v350, %v153
    %v662 = vmul.f32 %v496, %v155
    %v663 = vadd.f32 %v661, %v662
    %v664 = vmul.f32 %v642, %v158
    %v665 = vadd.f32 %v663, %v664
    %v666 = vadd.f32 %v665, %v161
    %v667 = vmax.f32 %v666, 0.0
    %v668 = vmul.f32 %v667, %v164
    %v669 = vadd.f32 %v660, %v668
    %v670 = vmul.f32 %v350, %v167
    %v671 = vmul.f32 %v496, %v169
    %v672 = vadd.f32 %v670, %v671
    %v673 = vmul.f32 %v642, %v172
    %v674 = vadd.f32 %v672, %v673
    %v675 = vadd.f32 %v674, %v175
    %v676 = vmax.f32 %v675, 0.0
    %v677 = vmul.f32 %v676, %v178
    %v678 = vadd.f32 %v669, %v677
    %v679 = vmul.f32 %v350, %v181
    %v680 = vmul.f32 %v496, %v183
    %v681 = vadd.f32 %v679, %v680
    %v682 = vmul.f32 %v642, %v186
    %v683 = vadd.f32 %v681, %v682
    %v684 = vadd.f32 %v683, %v189
    %v685 = vmax.f32 %v684, 0.0
    %v686 = vmul.f32 %v685, %v192
    %v687 = vadd.f32 %v678, %v686
    %v688 = vmul.f32 %v350, %v195
    %v689 = vmul.f32 %v496, %v197
    %v690 = vadd.f32 %v688, %v689
    %v691 = vmul.f32 %v642, %v200
    %v692 = vadd.f32 %v690, %v691
    %v693 = vadd.f32 %v692, %v203
    %v694 = vmax.f32 %v693, 0.0
    %v695 = vmul.f32 %v694, %v206
    %v696 = vadd.f32 %v687, %v695
    %v697 = vmul.f32 %v350, %v209
    %v698 = vmul.f32 %v496, %v211
    %v699 = vadd.f32 %v697, %v698
    %v700 = vmul.f32 %v642, %v214
    %v701 = vadd.f32 %v699, %v700
    %v702 = vadd.f32 %v701, %v217
    %v703 = vmax.f32 %v702, 0.0
    %v704 = vmul.f32 %v703, %v220
    %v705 = vadd.f32 %v696, %v704
    %v706 = vmul.f32 %v350, %v223
    %v707 = vmul.f32 %v496, %v225
    %v708 = vadd.f32 %v706, %v707
    %v709 = vmul.f32 %v642, %v228
    %v710 = vadd.f32 %v708, %v709
    %v711 = vadd.f32 %v710, %v231
    %v712 = vmax.f32 %v711, 0.0
    %v713 = vmul.f32 %v712, %v234
    %v714 = vadd.f32 %v705, %v713
    %v715 = vmul.f32 %v350, %v237
    %v716 = vmul.f32 %v496, %v239
    %v717 = vadd.f32 %v715, %v716
    %v718 = vmul.f32 %v642, %v242
    %v719 = vadd.f32 %v717, %v718
    %v720 = vadd.f32 %v719, %v245
    %v721 = vmax.f32 %v720, 0.0
    %v722 = vmul.f32 %v721, %v248
    %v723 = vadd.f32 %v714, %v722
    %v724 = vmul.f32 %v350, %v251
    %v725 = vmul.f32 %v496, %v253
    %v726 = vadd.f32 %v724, %v725
    %v727 = vmul.f32 %v642, %v256
    %v728 = vadd.f32 %v726, %v727
    %v729 = vadd.f32 %v728, %v259
    %v730 = vmax.f32 %v729, 0.0
    %v731 = vmul.f32 %v730, %v262
    %v732 = vadd.f32 %v723, %v731
    %v733 = vmul.f32 %v350, %v265
    %v734 = vmul.f32 %v496, %v267
    %v735 = vadd.f32 %v733, %v734
    %v736 = vmul.f32 %v642, %v270
    %v737 = vadd.f32 %v735, %v736
    %v738 = vadd.f32 %v737, %v273
    %v739 = vmax.f32 %v738, 0.0
    %v740 = vmul.f32 %v739, %v276
    %v741 = vadd.f32 %v732, %v740
    %v742 = vmul.f32 %v350, %v279
    %v743 = vmul.f32 %v496, %v281
    %v744 = vadd.f32 %v742, %v743
    %v745 = vmul.f32 %v642, %v284
    %v746 = vadd.f32 %v744, %v745
    %v747 = vadd.f32 %v746, %v287
    %v748 = vmax.f32 %v747, 0.0
    %v749 = vmul.f32 %v748, %v290
    %v750 = vadd.f32 %v741, %v749
    %v751 = vmul.f32 %v350, %v293
    %v752 = vmul.f32 %v496, %v295
    %v753 = vadd.f32 %v751, %v752
    %v754 = vmul.f32 %v642, %v298
    %v755 = vadd.f32 %v753, %v754
    %v756 = vadd.f32 %v755, %v301
    %v757 = vmax.f32 %v756, 0.0
    %v758 = vmul.f32 %v757, %v304
    %v759 = vadd.f32 %v750, %v758
    %v760 = vmul.f32 %v350, %v307
    %v761 = vmul.f32 %v496, %v309
    %v762 = vadd.f32 %v760, %v761
    %v763 = vmul.f32 %v642, %v312
    %v764 = vadd.f32 %v762, %v763
    %v765 = vadd.f32 %v764, %v315
    %v766 = vmax.f32 %v765, 0.0
    %v767 = vmul.f32 %v766, %v318
    %v768 = vadd.f32 %v759, %v767
    %v769 = vmul.f32 %v350, %v321
    %v770 = vmul.f32 %v496, %v323
    %v771 = vadd.f32 %v769, %v770
    %v772 = vmul.f32 %v642, %v326
    %v773 = vadd.f32 %v771, %v772
    %v774 = vadd.f32 %v773, %v329
    %v775 = vmax.f32 %v774, 0.0
    %v776 = vmul.f32 %v775, %v332
    %v777 = vadd.f32 %v768, %v776
    %v778 = vmul.f32 %v350, %v335
    %v779 = vmul.f32 %v496, %v337
    %v780 = vadd.f32 %v778, %v779
    %v781 = vmul.f32 %v642, %v340
    %v782 = vadd.f32 %v780, %v781
    %v783 = vadd.f32 %v782, %v343
    %v784 = vmax.f32 %v783, 0.0
    %v785 = vmul.f32 %v784, %v346
    %v786 = vadd.f32 %v777, %v785
    %s787 = scalar_lea.vmem [#allocation2], 48
    %v788 = vld [vmem:[%s787] sm:$0xff]
    %v789 = vmul.f32 %v496, %v125
    %v790 = vmul.f32 %v642, %v127
    %v791 = vadd.f32 %v789, %v790
    %v792 = vmul.f32 %v788, %v130
    %v793 = vadd.f32 %v791, %v792
    %v794 = vadd.f32 %v793, %v133
    %v795 = vmax.f32 %v794, 0.0
    %v796 = vmul.f32 %v795, %v136
    %v797 = vadd.f32 %v786, %v796
    %v798 = vmul.f32 %v496, %v139
    %v799 = vmul.f32 %v642, %v141
    %v800 = vadd.f32 %v798, %v799
    %v801 = vmul.f32 %v788, %v144
    %v802 = vadd.f32 %v800, %v801
    %v803 = vadd.f32 %v802, %v147
    %v804 = vmax.f32 %v803, 0.0
    %v805 = vmul.f32 %v804, %v150
    %v806 = vadd.f32 %v797, %v805
    %v807 = vmul.f32 %v496, %v153
    %v808 = vmul.f32 %v642, %v155
    %v809 = vadd.f32 %v807, %v808
    %v810 = vmul.f32 %v788, %v158
    %v811 = vadd.f32 %v809, %v810
    %v812 = vadd.f32 %v811, %v161
    %v813 = vmax.f32 %v812, 0.0
    %v814 = vmul.f32 %v813, %v164
    %v815 = vadd.f32 %v806, %v814
    %v816 = vmul.f32 %v496, %v167
    %v817 = vmul.f32 %v642, %v169
    %v818 = vadd.f32 %v816, %v817
    %v819 = vmul.f32 %v788, %v172
    %v820 = vadd.f32 %v818, %v819
    %v821 = vadd.f32 %v820, %v175
    %v822 = vmax.f32 %v821, 0.0
    %v823 = vmul.f32 %v822, %v178
    %v824 = vadd.f32 %v815, %v823
    %v825 = vmul.f32 %v496, %v181
    %v826 = vmul.f32 %v642, %v183
    %v827 = vadd.f32 %v825, %v826
    %v828 = vmul.f32 %v788, %v186
    %v829 = vadd.f32 %v827, %v828
    %v830 = vadd.f32 %v829, %v189
    %v831 = vmax.f32 %v830, 0.0
    %v832 = vmul.f32 %v831, %v192
    %v833 = vadd.f32 %v824, %v832
    %v834 = vmul.f32 %v496, %v195
    %v835 = vmul.f32 %v642, %v197
    %v836 = vadd.f32 %v834, %v835
    %v837 = vmul.f32 %v788, %v200
    %v838 = vadd.f32 %v836, %v837
    %v839 = vadd.f32 %v838, %v203
    %v840 = vmax.f32 %v839, 0.0
    %v841 = vmul.f32 %v840, %v206
    %v842 = vadd.f32 %v833, %v841
    %v843 = vmul.f32 %v496, %v209
    %v844 = vmul.f32 %v642, %v211
    %v845 = vadd.f32 %v843, %v844
    %v846 = vmul.f32 %v788, %v214
    %v847 = vadd.f32 %v845, %v846
    %v848 = vadd.f32 %v847, %v217
    %v849 = vmax.f32 %v848, 0.0
    %v850 = vmul.f32 %v849, %v220
    %v851 = vadd.f32 %v842, %v850
    %v852 = vmul.f32 %v496, %v223
    %v853 = vmul.f32 %v642, %v225
    %v854 = vadd.f32 %v852, %v853
    %v855 = vmul.f32 %v788, %v228
    %v856 = vadd.f32 %v854, %v855
    %v857 = vadd.f32 %v856, %v231
    %v858 = vmax.f32 %v857, 0.0
    %v859 = vmul.f32 %v858, %v234
    %v860 = vadd.f32 %v851, %v859
    %v861 = vmul.f32 %v496, %v237
    %v862 = vmul.f32 %v642, %v239
    %v863 = vadd.f32 %v861, %v862
    %v864 = vmul.f32 %v788, %v242
    %v865 = vadd.f32 %v863, %v864
    %v866 = vadd.f32 %v865, %v245
    %v867 = vmax.f32 %v866, 0.0
    %v868 = vmul.f32 %v867, %v248
    %v869 = vadd.f32 %v860, %v868
    %v870 = vmul.f32 %v496, %v251
    %v871 = vmul.f32 %v642, %v253
    %v872 = vadd.f32 %v870, %v871
    %v873 = vmul.f32 %v788, %v256
    %v874 = vadd.f32 %v872, %v873
    %v875 = vadd.f32 %v874, %v259
    %v876 = vmax.f32 %v875, 0.0
    %v877 = vmul.f32 %v876, %v262
    %v878 = vadd.f32 %v869, %v877
    %v879 = vmul.f32 %v496, %v265
    %v880 = vmul.f32 %v642, %v267
    %v881 = vadd.f32 %v879, %v880
    %v882 = vmul.f32 %v788, %v270
    %v883 = vadd.f32 %v881, %v882
    %v884 = vadd.f32 %v883, %v273
    %v885 = vmax.f32 %v884, 0.0
    %v886 = vmul.f32 %v885, %v276
    %v887 = vadd.f32 %v878, %v886
    %v888 = vmul.f32 %v496, %v279
    %v889 = vmul.f32 %v642, %v281
    %v890 = vadd.f32 %v888, %v889
    %v891 = vmul.f32 %v788, %v284
    %v892 = vadd.f32 %v890, %v891
    %v893 = vadd.f32 %v892, %v287
    %v894 = vmax.f32 %v893, 0.0
    %v895 = vmul.f32 %v894, %v290
    %v896 = vadd.f32 %v887, %v895
    %v897 = vmul.f32 %v496, %v293
    %v898 = vmul.f32 %v642, %v295
    %v899 = vadd.f32 %v897, %v898
    %v900 = vmul.f32 %v788, %v298
    %v901 = vadd.f32 %v899, %v900
    %v902 = vadd.f32 %v901, %v301
    %v903 = vmax.f32 %v902, 0.0
    %v904 = vmul.f32 %v903, %v304
    %v905 = vadd.f32 %v896, %v904
    %v906 = vmul.f32 %v496, %v307
    %v907 = vmul.f32 %v642, %v309
    %v908 = vadd.f32 %v906, %v907
    %v909 = vmul.f32 %v788, %v312
    %v910 = vadd.f32 %v908, %v909
    %v911 = vadd.f32 %v910, %v315
    %v912 = vmax.f32 %v911, 0.0
    %v913 = vmul.f32 %v912, %v318
    %v914 = vadd.f32 %v905, %v913
    %v915 = vmul.f32 %v496, %v321
    %v916 = vmul.f32 %v642, %v323
    %v917 = vadd.f32 %v915, %v916
    %v918 = vmul.f32 %v788, %v326
    %v919 = vadd.f32 %v917, %v918
    %v920 = vadd.f32 %v919, %v329
    %v921 = vmax.f32 %v920, 0.0
    %v922 = vmul.f32 %v921, %v332
    %v923 = vadd.f32 %v914, %v922
    %v924 = vmul.f32 %v496, %v335
    %v925 = vmul.f32 %v642, %v337
    %v926 = vadd.f32 %v924, %v925
    %v927 = vmul.f32 %v788, %v340
    %v928 = vadd.f32 %v926, %v927
    %v929 = vadd.f32 %v928, %v343
    %v930 = vmax.f32 %v929, 0.0
    %v931 = vmul.f32 %v930, %v346
    %v932 = vadd.f32 %v923, %v931
    %s933 = scalar_lea.vmem [#allocation2], 56
    %v934 = vld [vmem:[%s933] sm:$0xff]
    %v935 = vmul.f32 %v642, %v125
    %v936 = vmul.f32 %v788, %v127
    %v937 = vadd.f32 %v935, %v936
    %v938 = vmul.f32 %v934, %v130
    %v939 = vadd.f32 %v937, %v938
    %v940 = vadd.f32 %v939, %v133
    %v941 = vmax.f32 %v940, 0.0
    %v942 = vmul.f32 %v941, %v136
    %v943 = vadd.f32 %v932, %v942
    %v944 = vmul.f32 %v642, %v139
    %v945 = vmul.f32 %v788, %v141
    %v946 = vadd.f32 %v944, %v945
    %v947 = vmul.f32 %v934, %v144
    %v948 = vadd.f32 %v946, %v947
    %v949 = vadd.f32 %v948, %v147
    %v950 = vmax.f32 %v949, 0.0
    %v951 = vmul.f32 %v950, %v150
    %v952 = vadd.f32 %v943, %v951
    %v953 = vmul.f32 %v642, %v153
    %v954 = vmul.f32 %v788, %v155
    %v955 = vadd.f32 %v953, %v954
    %v956 = vmul.f32 %v934, %v158
    %v957 = vadd.f32 %v955, %v956
    %v958 = vadd.f32 %v957, %v161
    %v959 = vmax.f32 %v958, 0.0
    %v960 = vmul.f32 %v959, %v164
    %v961 = vadd.f32 %v952, %v960
    %v962 = vmul.f32 %v642, %v167
    %v963 = vmul.f32 %v788, %v169
    %v964 = vadd.f32 %v962, %v963
    %v965 = vmul.f32 %v934, %v172
    %v966 = vadd.f32 %v964, %v965
    %v967 = vadd.f32 %v966, %v175
    %v968 = vmax.f32 %v967, 0.0
    %v969 = vmul.f32 %v968, %v178
    %v970 = vadd.f32 %v961, %v969
    %v971 = vmul.f32 %v642, %v181
    %v972 = vmul.f32 %v788, %v183
    %v973 = vadd.f32 %v971, %v972
    %v974 = vmul.f32 %v934, %v186
    %v975 = vadd.f32 %v973, %v974
    %v976 = vadd.f32 %v975, %v189
    %v977 = vmax.f32 %v976, 0.0
    %v978 = vmul.f32 %v977, %v192
    %v979 = vadd.f32 %v970, %v978
    %v980 = vmul.f32 %v642, %v195
    %v981 = vmul.f32 %v788, %v197
    %v982 = vadd.f32 %v980, %v981
    %v983 = vmul.f32 %v934, %v200
    %v984 = vadd.f32 %v982, %v983
    %v985 = vadd.f32 %v984, %v203
    %v986 = vmax.f32 %v985, 0.0
    %v987 = vmul.f32 %v986, %v206
    %v988 = vadd.f32 %v979, %v987
    %v989 = vmul.f32 %v642, %v209
    %v990 = vmul.f32 %v788, %v211
    %v991 = vadd.f32 %v989, %v990
    %v992 = vmul.f32 %v934, %v214
    %v993 = vadd.f32 %v991, %v992
    %v994 = vadd.f32 %v993, %v217
    %v995 = vmax.f32 %v994, 0.0
    %v996 = vmul.f32 %v995, %v220
    %v997 = vadd.f32 %v988, %v996
    %v998 = vmul.f32 %v642, %v223
    %v999 = vmul.f32 %v788, %v225
    %v1000 = vadd.f32 %v998, %v999
    %v1001 = vmul.f32 %v934, %v228
    %v1002 = vadd.f32 %v1000, %v1001
    %v1003 = vadd.f32 %v1002, %v231
    %v1004 = vmax.f32 %v1003, 0.0
    %v1005 = vmul.f32 %v1004, %v234
    %v1006 = vadd.f32 %v997, %v1005
    %v1007 = vmul.f32 %v642, %v237
    %v1008 = vmul.f32 %v788, %v239
    %v1009 = vadd.f32 %v1007, %v1008
    %v1010 = vmul.f32 %v934, %v242
    %v1011 = vadd.f32 %v1009, %v1010
    %v1012 = vadd.f32 %v1011, %v245
    %v1013 = vmax.f32 %v1012, 0.0
    %v1014 = vmul.f32 %v1013, %v248
    %v1015 = vadd.f32 %v1006, %v1014
    %v1016 = vmul.f32 %v642, %v251
    %v1017 = vmul.f32 %v788, %v253
    %v1018 = vadd.f32 %v1016, %v1017
    %v1019 = vmul.f32 %v934, %v256
    %v1020 = vadd.f32 %v1018, %v1019
    %v1021 = vadd.f32 %v1020, %v259
    %v1022 = vmax.f32 %v1021, 0.0
    %v1023 = vmul.f32 %v1022, %v262
    %v1024 = vadd.f32 %v1015, %v1023
    %v1025 = vmul.f32 %v642, %v265
    %v1026 = vmul.f32 %v788, %v267
    %v1027 = vadd.f32 %v1025, %v1026
    %v1028 = vmul.f32 %v934, %v270
    %v1029 = vadd.f32 %v1027, %v1028
    %v1030 = vadd.f32 %v1029, %v273
    %v1031 = vmax.f32 %v1030, 0.0
    %v1032 = vmul.f32 %v1031, %v276
    %v1033 = vadd.f32 %v1024, %v1032
    %v1034 = vmul.f32 %v642, %v279
    %v1035 = vmul.f32 %v788, %v281
    %v1036 = vadd.f32 %v1034, %v1035
    %v1037 = vmul.f32 %v934, %v284
    %v1038 = vadd.f32 %v1036, %v1037
    %v1039 = vadd.f32 %v1038, %v287
    %v1040 = vmax.f32 %v1039, 0.0
    %v1041 = vmul.f32 %v1040, %v290
    %v1042 = vadd.f32 %v1033, %v1041
    %v1043 = vmul.f32 %v642, %v293
    %v1044 = vmul.f32 %v788, %v295
    %v1045 = vadd.f32 %v1043, %v1044
    %v1046 = vmul.f32 %v934, %v298
    %v1047 = vadd.f32 %v1045, %v1046
    %v1048 = vadd.f32 %v1047, %v301
    %v1049 = vmax.f32 %v1048, 0.0
    %v1050 = vmul.f32 %v1049, %v304
    %v1051 = vadd.f32 %v1042, %v1050
    %v1052 = vmul.f32 %v642, %v307
    %v1053 = vmul.f32 %v788, %v309
    %v1054 = vadd.f32 %v1052, %v1053
    %v1055 = vmul.f32 %v934, %v312
    %v1056 = vadd.f32 %v1054, %v1055
    %v1057 = vadd.f32 %v1056, %v315
    %v1058 = vmax.f32 %v1057, 0.0
    %v1059 = vmul.f32 %v1058, %v318
    %v1060 = vadd.f32 %v1051, %v1059
    %v1061 = vmul.f32 %v642, %v321
    %v1062 = vmul.f32 %v788, %v323
    %v1063 = vadd.f32 %v1061, %v1062
    %v1064 = vmul.f32 %v934, %v326
    %v1065 = vadd.f32 %v1063, %v1064
    %v1066 = vadd.f32 %v1065, %v329
    %v1067 = vmax.f32 %v1066, 0.0
    %v1068 = vmul.f32 %v1067, %v332
    %v1069 = vadd.f32 %v1060, %v1068
    %v1070 = vmul.f32 %v642, %v335
    %v1071 = vmul.f32 %v788, %v337
    %v1072 = vadd.f32 %v1070, %v1071
    %v1073 = vmul.f32 %v934, %v340
    %v1074 = vadd.f32 %v1072, %v1073
    %v1075 = vadd.f32 %v1074, %v343
    %v1076 = vmax.f32 %v1075, 0.0
    %v1077 = vmul.f32 %v1076, %v346
    %v1078 = vadd.f32 %v1069, %v1077
    %s1079 = scalar_lea.vmem [#allocation2], 64
    %v1080 = vld [vmem:[%s1079] sm:$0xff]
    %v1081 = vmul.f32 %v788, %v125
    %v1082 = vmul.f32 %v934, %v127
    %v1083 = vadd.f32 %v1081, %v1082
    %v1084 = vmul.f32 %v1080, %v130
    %v1085 = vadd.f32 %v1083, %v1084
    %v1086 = vadd.f32 %v1085, %v133
    %v1087 = vmax.f32 %v1086, 0.0
    %v1088 = vmul.f32 %v1087, %v136
    %v1089 = vadd.f32 %v1078, %v1088
    %v1090 = vmul.f32 %v788, %v139
    %v1091 = vmul.f32 %v934, %v141
    %v1092 = vadd.f32 %v1090, %v1091
    %v1093 = vmul.f32 %v1080, %v144
    %v1094 = vadd.f32 %v1092, %v1093
    %v1095 = vadd.f32 %v1094, %v147
    %v1096 = vmax.f32 %v1095, 0.0
    %v1097 = vmul.f32 %v1096, %v150
    %v1098 = vadd.f32 %v1089, %v1097
    %v1099 = vmul.f32 %v788, %v153
    %v1100 = vmul.f32 %v934, %v155
    %v1101 = vadd.f32 %v1099, %v1100
    %v1102 = vmul.f32 %v1080, %v158
    %v1103 = vadd.f32 %v1101, %v1102
    %v1104 = vadd.f32 %v1103, %v161
    %v1105 = vmax.f32 %v1104, 0.0
    %v1106 = vmul.f32 %v1105, %v164
    %v1107 = vadd.f32 %v1098, %v1106
    %v1108 = vmul.f32 %v788, %v167
    %v1109 = vmul.f32 %v934, %v169
    %v1110 = vadd.f32 %v1108, %v1109
    %v1111 = vmul.f32 %v1080, %v172
    %v1112 = vadd.f32 %v1110, %v1111
    %v1113 = vadd.f32 %v1112, %v175
    %v1114 = vmax.f32 %v1113, 0.0
    %v1115 = vmul.f32 %v1114, %v178
    %v1116 = vadd.f32 %v1107, %v1115
    %v1117 = vmul.f32 %v788, %v181
    %v1118 = vmul.f32 %v934, %v183
    %v1119 = vadd.f32 %v1117, %v1118
    %v1120 = vmul.f32 %v1080, %v186
    %v1121 = vadd.f32 %v1119, %v1120
    %v1122 = vadd.f32 %v1121, %v189
    %v1123 = vmax.f32 %v1122, 0.0
    %v1124 = vmul.f32 %v1123, %v192
    %v1125 = vadd.f32 %v1116, %v1124
    %v1126 = vmul.f32 %v788, %v195
    %v1127 = vmul.f32 %v934, %v197
    %v1128 = vadd.f32 %v1126, %v1127
    %v1129 = vmul.f32 %v1080, %v200
    %v1130 = vadd.f32 %v1128, %v1129
    %v1131 = vadd.f32 %v1130, %v203
    %v1132 = vmax.f32 %v1131, 0.0
    %v1133 = vmul.f32 %v1132, %v206
    %v1134 = vadd.f32 %v1125, %v1133
    %v1135 = vmul.f32 %v788, %v209
    %v1136 = vmul.f32 %v934, %v211
    %v1137 = vadd.f32 %v1135, %v1136
    %v1138 = vmul.f32 %v1080, %v214
    %v1139 = vadd.f32 %v1137, %v1138
    %v1140 = vadd.f32 %v1139, %v217
    %v1141 = vmax.f32 %v1140, 0.0
    %v1142 = vmul.f32 %v1141, %v220
    %v1143 = vadd.f32 %v1134, %v1142
    %v1144 = vmul.f32 %v788, %v223
    %v1145 = vmul.f32 %v934, %v225
    %v1146 = vadd.f32 %v1144, %v1145
    %v1147 = vmul.f32 %v1080, %v228
    %v1148 = vadd.f32 %v1146, %v1147
    %v1149 = vadd.f32 %v1148, %v231
    %v1150 = vmax.f32 %v1149, 0.0
    %v1151 = vmul.f32 %v1150, %v234
    %v1152 = vadd.f32 %v1143, %v1151
    %v1153 = vmul.f32 %v788, %v237
    %v1154 = vmul.f32 %v934, %v239
    %v1155 = vadd.f32 %v1153, %v1154
    %v1156 = vmul.f32 %v1080, %v242
    %v1157 = vadd.f32 %v1155, %v1156
    %v1158 = vadd.f32 %v1157, %v245
    %v1159 = vmax.f32 %v1158, 0.0
    %v1160 = vmul.f32 %v1159, %v248
    %v1161 = vadd.f32 %v1152, %v1160
    %v1162 = vmul.f32 %v788, %v251
    %v1163 = vmul.f32 %v934, %v253
    %v1164 = vadd.f32 %v1162, %v1163
    %v1165 = vmul.f32 %v1080, %v256
    %v1166 = vadd.f32 %v1164, %v1165
    %v1167 = vadd.f32 %v1166, %v259
    %v1168 = vmax.f32 %v1167, 0.0
    %v1169 = vmul.f32 %v1168, %v262
    %v1170 = vadd.f32 %v1161, %v1169
    %v1171 = vmul.f32 %v788, %v265
    %v1172 = vmul.f32 %v934, %v267
    %v1173 = vadd.f32 %v1171, %v1172
    %v1174 = vmul.f32 %v1080, %v270
    %v1175 = vadd.f32 %v1173, %v1174
    %v1176 = vadd.f32 %v1175, %v273
    %v1177 = vmax.f32 %v1176, 0.0
    %v1178 = vmul.f32 %v1177, %v276
    %v1179 = vadd.f32 %v1170, %v1178
    %v1180 = vmul.f32 %v788, %v279
    %v1181 = vmul.f32 %v934, %v281
    %v1182 = vadd.f32 %v1180, %v1181
    %v1183 = vmul.f32 %v1080, %v284
    %v1184 = vadd.f32 %v1182, %v1183
    %v1185 = vadd.f32 %v1184, %v287
    %v1186 = vmax.f32 %v1185, 0.0
    %v1187 = vmul.f32 %v1186, %v290
    %v1188 = vadd.f32 %v1179, %v1187
    %v1189 = vmul.f32 %v788, %v293
    %v1190 = vmul.f32 %v934, %v295
    %v1191 = vadd.f32 %v1189, %v1190
    %v1192 = vmul.f32 %v1080, %v298
    %v1193 = vadd.f32 %v1191, %v1192
    %v1194 = vadd.f32 %v1193, %v301
    %v1195 = vmax.f32 %v1194, 0.0
    %v1196 = vmul.f32 %v1195, %v304
    %v1197 = vadd.f32 %v1188, %v1196
    %v1198 = vmul.f32 %v788, %v307
    %v1199 = vmul.f32 %v934, %v309
    %v1200 = vadd.f32 %v1198, %v1199
    %v1201 = vmul.f32 %v1080, %v312
    %v1202 = vadd.f32 %v1200, %v1201
    %v1203 = vadd.f32 %v1202, %v315
    %v1204 = vmax.f32 %v1203, 0.0
    %v1205 = vmul.f32 %v1204, %v318
    %v1206 = vadd.f32 %v1197, %v1205
    %v1207 = vmul.f32 %v788, %v321
    %v1208 = vmul.f32 %v934, %v323
    %v1209 = vadd.f32 %v1207, %v1208
    %v1210 = vmul.f32 %v1080, %v326
    %v1211 = vadd.f32 %v1209, %v1210
    %v1212 = vadd.f32 %v1211, %v329
    %v1213 = vmax.f32 %v1212, 0.0
    %v1214 = vmul.f32 %v1213, %v332
    %v1215 = vadd.f32 %v1206, %v1214
    %v1216 = vmul.f32 %v788, %v335
    %v1217 = vmul.f32 %v934, %v337
    %v1218 = vadd.f32 %v1216, %v1217
    %v1219 = vmul.f32 %v1080, %v340
    %v1220 = vadd.f32 %v1218, %v1219
    %v1221 = vadd.f32 %v1220, %v343
    %v1222 = vmax.f32 %v1221, 0.0
    %v1223 = vmul.f32 %v1222, %v346
    %v1224 = vadd.f32 %v1215, %v1223
    %s1225 = scalar_lea.vmem [#allocation2], 72
    %v1226 = vld [vmem:[%s1225] sm:$0xff]
    %v1227 = vmul.f32 %v934, %v125
    %v1228 = vmul.f32 %v1080, %v127
    %v1229 = vadd.f32 %v1227, %v1228
    %v1230 = vmul.f32 %v1226, %v130
    %v1231 = vadd.f32 %v1229, %v1230
    %v1232 = vadd.f32 %v1231, %v133
    %v1233 = vmax.f32 %v1232, 0.0
    %v1234 = vmul.f32 %v1233, %v136
    %v1235 = vadd.f32 %v1224, %v1234
    %v1236 = vmul.f32 %v934, %v139
    %v1237 = vmul.f32 %v1080, %v141
    %v1238 = vadd.f32 %v1236, %v1237
    %v1239 = vmul.f32 %v1226, %v144
    %v1240 = vadd.f32 %v1238, %v1239
    %v1241 = vadd.f32 %v1240, %v147
    %v1242 = vmax.f32 %v1241, 0.0
    %v1243 = vmul.f32 %v1242, %v150
    %v1244 = vadd.f32 %v1235, %v1243
    %v1245 = vmul.f32 %v934, %v153
    %v1246 = vmul.f32 %v1080, %v155
    %v1247 = vadd.f32 %v1245, %v1246
    %v1248 = vmul.f32 %v1226, %v158
    %v1249 = vadd.f32 %v1247, %v1248
    %v1250 = vadd.f32 %v1249, %v161
    %v1251 = vmax.f32 %v1250, 0.0
    %v1252 = vmul.f32 %v1251, %v164
    %v1253 = vadd.f32 %v1244, %v1252
    %v1254 = vmul.f32 %v934, %v167
    %v1255 = vmul.f32 %v1080, %v169
    %v1256 = vadd.f32 %v1254, %v1255
    %v1257 = vmul.f32 %v1226, %v172
    %v1258 = vadd.f32 %v1256, %v1257
    %v1259 = vadd.f32 %v1258, %v175
    %v1260 = vmax.f32 %v1259, 0.0
    %v1261 = vmul.f32 %v1260, %v178
    %v1262 = vadd.f32 %v1253, %v1261
    %v1263 = vmul.f32 %v934, %v181
    %v1264 = vmul.f32 %v1080, %v183
    %v1265 = vadd.f32 %v1263, %v1264
    %v1266 = vmul.f32 %v1226, %v186
    %v1267 = vadd.f32 %v1265, %v1266
    %v1268 = vadd.f32 %v1267, %v189
    %v1269 = vmax.f32 %v1268, 0.0
    %v1270 = vmul.f32 %v1269, %v192
    %v1271 = vadd.f32 %v1262, %v1270
    %v1272 = vmul.f32 %v934, %v195
    %v1273 = vmul.f32 %v1080, %v197
    %v1274 = vadd.f32 %v1272, %v1273
    %v1275 = vmul.f32 %v1226, %v200
    %v1276 = vadd.f32 %v1274, %v1275
    %v1277 = vadd.f32 %v1276, %v203
    %v1278 = vmax.f32 %v1277, 0.0
    %v1279 = vmul.f32 %v1278, %v206
    %v1280 = vadd.f32 %v1271, %v1279
    %v1281 = vmul.f32 %v934, %v209
    %v1282 = vmul.f32 %v1080, %v211
    %v1283 = vadd.f32 %v1281, %v1282
    %v1284 = vmul.f32 %v1226, %v214
    %v1285 = vadd.f32 %v1283, %v1284
    %v1286 = vadd.f32 %v1285, %v217
    %v1287 = vmax.f32 %v1286, 0.0
    %v1288 = vmul.f32 %v1287, %v220
    %v1289 = vadd.f32 %v1280, %v1288
    %v1290 = vmul.f32 %v934, %v223
    %v1291 = vmul.f32 %v1080, %v225
    %v1292 = vadd.f32 %v1290, %v1291
    %v1293 = vmul.f32 %v1226, %v228
    %v1294 = vadd.f32 %v1292, %v1293
    %v1295 = vadd.f32 %v1294, %v231
    %v1296 = vmax.f32 %v1295, 0.0
    %v1297 = vmul.f32 %v1296, %v234
    %v1298 = vadd.f32 %v1289, %v1297
    %v1299 = vmul.f32 %v934, %v237
    %v1300 = vmul.f32 %v1080, %v239
    %v1301 = vadd.f32 %v1299, %v1300
    %v1302 = vmul.f32 %v1226, %v242
    %v1303 = vadd.f32 %v1301, %v1302
    %v1304 = vadd.f32 %v1303, %v245
    %v1305 = vmax.f32 %v1304, 0.0
    %v1306 = vmul.f32 %v1305, %v248
    %v1307 = vadd.f32 %v1298, %v1306
    %v1308 = vmul.f32 %v934, %v251
    %v1309 = vmul.f32 %v1080, %v253
    %v1310 = vadd.f32 %v1308, %v1309
    %v1311 = vmul.f32 %v1226, %v256
    %v1312 = vadd.f32 %v1310, %v1311
    %v1313 = vadd.f32 %v1312, %v259
    %v1314 = vmax.f32 %v1313, 0.0
    %v1315 = vmul.f32 %v1314, %v262
    %v1316 = vadd.f32 %v1307, %v1315
    %v1317 = vmul.f32 %v934, %v265
    %v1318 = vmul.f32 %v1080, %v267
    %v1319 = vadd.f32 %v1317, %v1318
    %v1320 = vmul.f32 %v1226, %v270
    %v1321 = vadd.f32 %v1319, %v1320
    %v1322 = vadd.f32 %v1321, %v273
    %v1323 = vmax.f32 %v1322, 0.0
    %v1324 = vmul.f32 %v1323, %v276
    %v1325 = vadd.f32 %v1316, %v1324
    %v1326 = vmul.f32 %v934, %v279
    %v1327 = vmul.f32 %v1080, %v281
    %v1328 = vadd.f32 %v1326, %v1327
    %v1329 = vmul.f32 %v1226, %v284
    %v1330 = vadd.f32 %v1328, %v1329
    %v1331 = vadd.f32 %v1330, %v287
    %v1332 = vmax.f32 %v1331, 0.0
    %v1333 = vmul.f32 %v1332, %v290
    %v1334 = vadd.f32 %v1325, %v1333
    %v1335 = vmul.f32 %v934, %v293
    %v1336 = vmul.f32 %v1080, %v295
    %v1337 = vadd.f32 %v1335, %v1336
    %v1338 = vmul.f32 %v1226, %v298
    %v1339 = vadd.f32 %v1337, %v1338
    %v1340 = vadd.f32 %v1339, %v301
    %v1341 = vmax.f32 %v1340, 0.0
    %v1342 = vmul.f32 %v1341, %v304
    %v1343 = vadd.f32 %v1334, %v1342
    %v1344 = vmul.f32 %v934, %v307
    %v1345 = vmul.f32 %v1080, %v309
    %v1346 = vadd.f32 %v1344, %v1345
    %v1347 = vmul.f32 %v1226, %v312
    %v1348 = vadd.f32 %v1346, %v1347
    %v1349 = vadd.f32 %v1348, %v315
    %v1350 = vmax.f32 %v1349, 0.0
    %v1351 = vmul.f32 %v1350, %v318
    %v1352 = vadd.f32 %v1343, %v1351
    %v1353 = vmul.f32 %v934, %v321
    %v1354 = vmul.f32 %v1080, %v323
    %v1355 = vadd.f32 %v1353, %v1354
    %v1356 = vmul.f32 %v1226, %v326
    %v1357 = vadd.f32 %v1355, %v1356
    %v1358 = vadd.f32 %v1357, %v329
    %v1359 = vmax.f32 %v1358, 0.0
    %v1360 = vmul.f32 %v1359, %v332
    %v1361 = vadd.f32 %v1352, %v1360
    %v1362 = vmul.f32 %v934, %v335
    %v1363 = vmul.f32 %v1080, %v337
    %v1364 = vadd.f32 %v1362, %v1363
    %v1365 = vmul.f32 %v1226, %v340
    %v1366 = vadd.f32 %v1364, %v1365
    %v1367 = vadd.f32 %v1366, %v343
    %v1368 = vmax.f32 %v1367, 0.0
    %v1369 = vmul.f32 %v1368, %v346
    %v1370 = vadd.f32 %v1361, %v1369
    %s1371 = scalar_lea.vmem [#allocation2], 80
    %v1372 = vld [vmem:[%s1371] sm:$0xff]
    %v1373 = vmul.f32 %v1080, %v125
    %v1374 = vmul.f32 %v1226, %v127
    %v1375 = vadd.f32 %v1373, %v1374
    %v1376 = vmul.f32 %v1372, %v130
    %v1377 = vadd.f32 %v1375, %v1376
    %v1378 = vadd.f32 %v1377, %v133
    %v1379 = vmax.f32 %v1378, 0.0
    %v1380 = vmul.f32 %v1379, %v136
    %v1381 = vadd.f32 %v1370, %v1380
    %v1382 = vmul.f32 %v1080, %v139
    %v1383 = vmul.f32 %v1226, %v141
    %v1384 = vadd.f32 %v1382, %v1383
    %v1385 = vmul.f32 %v1372, %v144
    %v1386 = vadd.f32 %v1384, %v1385
    %v1387 = vadd.f32 %v1386, %v147
    %v1388 = vmax.f32 %v1387, 0.0
    %v1389 = vmul.f32 %v1388, %v150
    %v1390 = vadd.f32 %v1381, %v1389
    %v1391 = vmul.f32 %v1080, %v153
    %v1392 = vmul.f32 %v1226, %v155
    %v1393 = vadd.f32 %v1391, %v1392
    %v1394 = vmul.f32 %v1372, %v158
    %v1395 = vadd.f32 %v1393, %v1394
    %v1396 = vadd.f32 %v1395, %v161
    %v1397 = vmax.f32 %v1396, 0.0
    %v1398 = vmul.f32 %v1397, %v164
    %v1399 = vadd.f32 %v1390, %v1398
    %v1400 = vmul.f32 %v1080, %v167
    %v1401 = vmul.f32 %v1226, %v169
    %v1402 = vadd.f32 %v1400, %v1401
    %v1403 = vmul.f32 %v1372, %v172
    %v1404 = vadd.f32 %v1402, %v1403
    %v1405 = vadd.f32 %v1404, %v175
    %v1406 = vmax.f32 %v1405, 0.0
    %v1407 = vmul.f32 %v1406, %v178
    %v1408 = vadd.f32 %v1399, %v1407
    %v1409 = vmul.f32 %v1080, %v181
    %v1410 = vmul.f32 %v1226, %v183
    %v1411 = vadd.f32 %v1409, %v1410
    %v1412 = vmul.f32 %v1372, %v186
    %v1413 = vadd.f32 %v1411, %v1412
    %v1414 = vadd.f32 %v1413, %v189
    %v1415 = vmax.f32 %v1414, 0.0
    %v1416 = vmul.f32 %v1415, %v192
    %v1417 = vadd.f32 %v1408, %v1416
    %v1418 = vmul.f32 %v1080, %v195
    %v1419 = vmul.f32 %v1226, %v197
    %v1420 = vadd.f32 %v1418, %v1419
    %v1421 = vmul.f32 %v1372, %v200
    %v1422 = vadd.f32 %v1420, %v1421
    %v1423 = vadd.f32 %v1422, %v203
    %v1424 = vmax.f32 %v1423, 0.0
    %v1425 = vmul.f32 %v1424, %v206
    %v1426 = vadd.f32 %v1417, %v1425
    %v1427 = vmul.f32 %v1080, %v209
    %v1428 = vmul.f32 %v1226, %v211
    %v1429 = vadd.f32 %v1427, %v1428
    %v1430 = vmul.f32 %v1372, %v214
    %v1431 = vadd.f32 %v1429, %v1430
    %v1432 = vadd.f32 %v1431, %v217
    %v1433 = vmax.f32 %v1432, 0.0
    %v1434 = vmul.f32 %v1433, %v220
    %v1435 = vadd.f32 %v1426, %v1434
    %v1436 = vmul.f32 %v1080, %v223
    %v1437 = vmul.f32 %v1226, %v225
    %v1438 = vadd.f32 %v1436, %v1437
    %v1439 = vmul.f32 %v1372, %v228
    %v1440 = vadd.f32 %v1438, %v1439
    %v1441 = vadd.f32 %v1440, %v231
    %v1442 = vmax.f32 %v1441, 0.0
    %v1443 = vmul.f32 %v1442, %v234
    %v1444 = vadd.f32 %v1435, %v1443
    %v1445 = vmul.f32 %v1080, %v237
    %v1446 = vmul.f32 %v1226, %v239
    %v1447 = vadd.f32 %v1445, %v1446
    %v1448 = vmul.f32 %v1372, %v242
    %v1449 = vadd.f32 %v1447, %v1448
    %v1450 = vadd.f32 %v1449, %v245
    %v1451 = vmax.f32 %v1450, 0.0
    %v1452 = vmul.f32 %v1451, %v248
    %v1453 = vadd.f32 %v1444, %v1452
    %v1454 = vmul.f32 %v1080, %v251
    %v1455 = vmul.f32 %v1226, %v253
    %v1456 = vadd.f32 %v1454, %v1455
    %v1457 = vmul.f32 %v1372, %v256
    %v1458 = vadd.f32 %v1456, %v1457
    %v1459 = vadd.f32 %v1458, %v259
    %v1460 = vmax.f32 %v1459, 0.0
    %v1461 = vmul.f32 %v1460, %v262
    %v1462 = vadd.f32 %v1453, %v1461
    %v1463 = vmul.f32 %v1080, %v265
    %v1464 = vmul.f32 %v1226, %v267
    %v1465 = vadd.f32 %v1463, %v1464
    %v1466 = vmul.f32 %v1372, %v270
    %v1467 = vadd.f32 %v1465, %v1466
    %v1468 = vadd.f32 %v1467, %v273
    %v1469 = vmax.f32 %v1468, 0.0
    %v1470 = vmul.f32 %v1469, %v276
    %v1471 = vadd.f32 %v1462, %v1470
    %v1472 = vmul.f32 %v1080, %v279
    %v1473 = vmul.f32 %v1226, %v281
    %v1474 = vadd.f32 %v1472, %v1473
    %v1475 = vmul.f32 %v1372, %v284
    %v1476 = vadd.f32 %v1474, %v1475
    %v1477 = vadd.f32 %v1476, %v287
    %v1478 = vmax.f32 %v1477, 0.0
    %v1479 = vmul.f32 %v1478, %v290
    %v1480 = vadd.f32 %v1471, %v1479
    %v1481 = vmul.f32 %v1080, %v293
    %v1482 = vmul.f32 %v1226, %v295
    %v1483 = vadd.f32 %v1481, %v1482
    %v1484 = vmul.f32 %v1372, %v298
    %v1485 = vadd.f32 %v1483, %v1484
    %v1486 = vadd.f32 %v1485, %v301
    %v1487 = vmax.f32 %v1486, 0.0
    %v1488 = vmul.f32 %v1487, %v304
    %v1489 = vadd.f32 %v1480, %v1488
    %v1490 = vmul.f32 %v1080, %v307
    %v1491 = vmul.f32 %v1226, %v309
    %v1492 = vadd.f32 %v1490, %v1491
    %v1493 = vmul.f32 %v1372, %v312
    %v1494 = vadd.f32 %v1492, %v1493
    %v1495 = vadd.f32 %v1494, %v315
    %v1496 = vmax.f32 %v1495, 0.0
    %v1497 = vmul.f32 %v1496, %v318
    %v1498 = vadd.f32 %v1489, %v1497
    %v1499 = vmul.f32 %v1080, %v321
    %v1500 = vmul.f32 %v1226, %v323
    %v1501 = vadd.f32 %v1499, %v1500
    %v1502 = vmul.f32 %v1372, %v326
    %v1503 = vadd.f32 %v1501, %v1502
    %v1504 = vadd.f32 %v1503, %v329
    %v1505 = vmax.f32 %v1504, 0.0
    %v1506 = vmul.f32 %v1505, %v332
    %v1507 = vadd.f32 %v1498, %v1506
    %v1508 = vmul.f32 %v1080, %v335
    %v1509 = vmul.f32 %v1226, %v337
    %v1510 = vadd.f32 %v1508, %v1509
    %v1511 = vmul.f32 %v1372, %v340
    %v1512 = vadd.f32 %v1510, %v1511
    %v1513 = vadd.f32 %v1512, %v343
    %v1514 = vmax.f32 %v1513, 0.0
    %v1515 = vmul.f32 %v1514, %v346
    %v1516 = vadd.f32 %v1507, %v1515
    %s1517 = scalar_lea.vmem [#allocation2], 88
    %v1518 = vld [vmem:[%s1517] sm:$0xff]
    %v1519 = vmul.f32 %v1226, %v125
    %v1520 = vmul.f32 %v1372, %v127
    %v1521 = vadd.f32 %v1519, %v1520
    %v1522 = vmul.f32 %v1518, %v130
    %v1523 = vadd.f32 %v1521, %v1522
    %v1524 = vadd.f32 %v1523, %v133
    %v1525 = vmax.f32 %v1524, 0.0
    %v1526 = vmul.f32 %v1525, %v136
    %v1527 = vadd.f32 %v1516, %v1526
    %v1528 = vmul.f32 %v1226, %v139
    %v1529 = vmul.f32 %v1372, %v141
    %v1530 = vadd.f32 %v1528, %v1529
    %v1531 = vmul.f32 %v1518, %v144
    %v1532 = vadd.f32 %v1530, %v1531
    %v1533 = vadd.f32 %v1532, %v147
    %v1534 = vmax.f32 %v1533, 0.0
    %v1535 = vmul.f32 %v1534, %v150
    %v1536 = vadd.f32 %v1527, %v1535
    %v1537 = vmul.f32 %v1226, %v153
    %v1538 = vmul.f32 %v1372, %v155
    %v1539 = vadd.f32 %v1537, %v1538
    %v1540 = vmul.f32 %v1518, %v158
    %v1541 = vadd.f32 %v1539, %v1540
    %v1542 = vadd.f32 %v1541, %v161
    %v1543 = vmax.f32 %v1542, 0.0
    %v1544 = vmul.f32 %v1543, %v164
    %v1545 = vadd.f32 %v1536, %v1544
    %v1546 = vmul.f32 %v1226, %v167
    %v1547 = vmul.f32 %v1372, %v169
    %v1548 = vadd.f32 %v1546, %v1547
    %v1549 = vmul.f32 %v1518, %v172
    %v1550 = vadd.f32 %v1548, %v1549
    %v1551 = vadd.f32 %v1550, %v175
    %v1552 = vmax.f32 %v1551, 0.0
    %v1553 = vmul.f32 %v1552, %v178
    %v1554 = vadd.f32 %v1545, %v1553
    %v1555 = vmul.f32 %v1226, %v181
    %v1556 = vmul.f32 %v1372, %v183
    %v1557 = vadd.f32 %v1555, %v1556
    %v1558 = vmul.f32 %v1518, %v186
    %v1559 = vadd.f32 %v1557, %v1558
    %v1560 = vadd.f32 %v1559, %v189
    %v1561 = vmax.f32 %v1560, 0.0
    %v1562 = vmul.f32 %v1561, %v192
    %v1563 = vadd.f32 %v1554, %v1562
    %v1564 = vmul.f32 %v1226, %v195
    %v1565 = vmul.f32 %v1372, %v197
    %v1566 = vadd.f32 %v1564, %v1565
    %v1567 = vmul.f32 %v1518, %v200
    %v1568 = vadd.f32 %v1566, %v1567
    %v1569 = vadd.f32 %v1568, %v203
    %v1570 = vmax.f32 %v1569, 0.0
    %v1571 = vmul.f32 %v1570, %v206
    %v1572 = vadd.f32 %v1563, %v1571
    %v1573 = vmul.f32 %v1226, %v209
    %v1574 = vmul.f32 %v1372, %v211
    %v1575 = vadd.f32 %v1573, %v1574
    %v1576 = vmul.f32 %v1518, %v214
    %v1577 = vadd.f32 %v1575, %v1576
    %v1578 = vadd.f32 %v1577, %v217
    %v1579 = vmax.f32 %v1578, 0.0
    %v1580 = vmul.f32 %v1579, %v220
    %v1581 = vadd.f32 %v1572, %v1580
    %v1582 = vmul.f32 %v1226, %v223
    %v1583 = vmul.f32 %v1372, %v225
    %v1584 = vadd.f32 %v1582, %v1583
    %v1585 = vmul.f32 %v1518, %v228
    %v1586 = vadd.f32 %v1584, %v1585
    %v1587 = vadd.f32 %v1586, %v231
    %v1588 = vmax.f32 %v1587, 0.0
    %v1589 = vmul.f32 %v1588, %v234
    %v1590 = vadd.f32 %v1581, %v1589
    %v1591 = vmul.f32 %v1226, %v237
    %v1592 = vmul.f32 %v1372, %v239
    %v1593 = vadd.f32 %v1591, %v1592
    %v1594 = vmul.f32 %v1518, %v242
    %v1595 = vadd.f32 %v1593, %v1594
    %v1596 = vadd.f32 %v1595, %v245
    %v1597 = vmax.f32 %v1596, 0.0
    %v1598 = vmul.f32 %v1597, %v248
    %v1599 = vadd.f32 %v1590, %v1598
    %v1600 = vmul.f32 %v1226, %v251
    %v1601 = vmul.f32 %v1372, %v253
    %v1602 = vadd.f32 %v1600, %v1601
    %v1603 = vmul.f32 %v1518, %v256
    %v1604 = vadd.f32 %v1602, %v1603
    %v1605 = vadd.f32 %v1604, %v259
    %v1606 = vmax.f32 %v1605, 0.0
    %v1607 = vmul.f32 %v1606, %v262
    %v1608 = vadd.f32 %v1599, %v1607
    %v1609 = vmul.f32 %v1226, %v265
    %v1610 = vmul.f32 %v1372, %v267
    %v1611 = vadd.f32 %v1609, %v1610
    %v1612 = vmul.f32 %v1518, %v270
    %v1613 = vadd.f32 %v1611, %v1612
    %v1614 = vadd.f32 %v1613, %v273
    %v1615 = vmax.f32 %v1614, 0.0
    %v1616 = vmul.f32 %v1615, %v276
    %v1617 = vadd.f32 %v1608, %v1616
    %v1618 = vmul.f32 %v1226, %v279
    %v1619 = vmul.f32 %v1372, %v281
    %v1620 = vadd.f32 %v1618, %v1619
    %v1621 = vmul.f32 %v1518, %v284
    %v1622 = vadd.f32 %v1620, %v1621
    %v1623 = vadd.f32 %v1622, %v287
    %v1624 = vmax.f32 %v1623, 0.0
    %v1625 = vmul.f32 %v1624, %v290
    %v1626 = vadd.f32 %v1617, %v1625
    %v1627 = vmul.f32 %v1226, %v293
    %v1628 = vmul.f32 %v1372, %v295
    %v1629 = vadd.f32 %v1627, %v1628
    %v1630 = vmul.f32 %v1518, %v298
    %v1631 = vadd.f32 %v1629, %v1630
    %v1632 = vadd.f32 %v1631, %v301
    %v1633 = vmax.f32 %v1632, 0.0
    %v1634 = vmul.f32 %v1633, %v304
    %v1635 = vadd.f32 %v1626, %v1634
    %v1636 = vmul.f32 %v1226, %v307
    %v1637 = vmul.f32 %v1372, %v309
    %v1638 = vadd.f32 %v1636, %v1637
    %v1639 = vmul.f32 %v1518, %v312
    %v1640 = vadd.f32 %v1638, %v1639
    %v1641 = vadd.f32 %v1640, %v315
    %v1642 = vmax.f32 %v1641, 0.0
    %v1643 = vmul.f32 %v1642, %v318
    %v1644 = vadd.f32 %v1635, %v1643
    %v1645 = vmul.f32 %v1226, %v321
    %v1646 = vmul.f32 %v1372, %v323
    %v1647 = vadd.f32 %v1645, %v1646
    %v1648 = vmul.f32 %v1518, %v326
    %v1649 = vadd.f32 %v1647, %v1648
    %v1650 = vadd.f32 %v1649, %v329
    %v1651 = vmax.f32 %v1650, 0.0
    %v1652 = vmul.f32 %v1651, %v332
    %v1653 = vadd.f32 %v1644, %v1652
    %v1654 = vmul.f32 %v1226, %v335
    %v1655 = vmul.f32 %v1372, %v337
    %v1656 = vadd.f32 %v1654, %v1655
    %v1657 = vmul.f32 %v1518, %v340
    %v1658 = vadd.f32 %v1656, %v1657
    %v1659 = vadd.f32 %v1658, %v343
    %v1660 = vmax.f32 %v1659, 0.0
    %v1661 = vmul.f32 %v1660, %v346
    %v1662 = vadd.f32 %v1653, %v1661
    %s1663 = scalar_lea.vmem [#allocation2], 96
    %v1664 = vld [vmem:[%s1663] sm:$0xff]
    %v1665 = vmul.f32 %v1372, %v125
    %v1666 = vmul.f32 %v1518, %v127
    %v1667 = vadd.f32 %v1665, %v1666
    %v1668 = vmul.f32 %v1664, %v130
    %v1669 = vadd.f32 %v1667, %v1668
    %v1670 = vadd.f32 %v1669, %v133
    %v1671 = vmax.f32 %v1670, 0.0
    %v1672 = vmul.f32 %v1671, %v136
    %v1673 = vadd.f32 %v1662, %v1672
    %v1674 = vmul.f32 %v1372, %v139
    %v1675 = vmul.f32 %v1518, %v141
    %v1676 = vadd.f32 %v1674, %v1675
    %v1677 = vmul.f32 %v1664, %v144
    %v1678 = vadd.f32 %v1676, %v1677
    %v1679 = vadd.f32 %v1678, %v147
    %v1680 = vmax.f32 %v1679, 0.0
    %v1681 = vmul.f32 %v1680, %v150
    %v1682 = vadd.f32 %v1673, %v1681
    %v1683 = vmul.f32 %v1372, %v153
    %v1684 = vmul.f32 %v1518, %v155
    %v1685 = vadd.f32 %v1683, %v1684
    %v1686 = vmul.f32 %v1664, %v158
    %v1687 = vadd.f32 %v1685, %v1686
    %v1688 = vadd.f32 %v1687, %v161
    %v1689 = vmax.f32 %v1688, 0.0
    %v1690 = vmul.f32 %v1689, %v164
    %v1691 = vadd.f32 %v1682, %v1690
    %v1692 = vmul.f32 %v1372, %v167
    %v1693 = vmul.f32 %v1518, %v169
    %v1694 = vadd.f32 %v1692, %v1693
    %v1695 = vmul.f32 %v1664, %v172
    %v1696 = vadd.f32 %v1694, %v1695
    %v1697 = vadd.f32 %v1696, %v175
    %v1698 = vmax.f32 %v1697, 0.0
    %v1699 = vmul.f32 %v1698, %v178
    %v1700 = vadd.f32 %v1691, %v1699
    %v1701 = vmul.f32 %v1372, %v181
    %v1702 = vmul.f32 %v1518, %v183
    %v1703 = vadd.f32 %v1701, %v1702
    %v1704 = vmul.f32 %v1664, %v186
    %v1705 = vadd.f32 %v1703, %v1704
    %v1706 = vadd.f32 %v1705, %v189
    %v1707 = vmax.f32 %v1706, 0.0
    %v1708 = vmul.f32 %v1707, %v192
    %v1709 = vadd.f32 %v1700, %v1708
    %v1710 = vmul.f32 %v1372, %v195
    %v1711 = vmul.f32 %v1518, %v197
    %v1712 = vadd.f32 %v1710, %v1711
    %v1713 = vmul.f32 %v1664, %v200
    %v1714 = vadd.f32 %v1712, %v1713
    %v1715 = vadd.f32 %v1714, %v203
    %v1716 = vmax.f32 %v1715, 0.0
    %v1717 = vmul.f32 %v1716, %v206
    %v1718 = vadd.f32 %v1709, %v1717
    %v1719 = vmul.f32 %v1372, %v209
    %v1720 = vmul.f32 %v1518, %v211
    %v1721 = vadd.f32 %v1719, %v1720
    %v1722 = vmul.f32 %v1664, %v214
    %v1723 = vadd.f32 %v1721, %v1722
    %v1724 = vadd.f32 %v1723, %v217
    %v1725 = vmax.f32 %v1724, 0.0
    %v1726 = vmul.f32 %v1725, %v220
    %v1727 = vadd.f32 %v1718, %v1726
    %v1728 = vmul.f32 %v1372, %v223
    %v1729 = vmul.f32 %v1518, %v225
    %v1730 = vadd.f32 %v1728, %v1729
    %v1731 = vmul.f32 %v1664, %v228
    %v1732 = vadd.f32 %v1730, %v1731
    %v1733 = vadd.f32 %v1732, %v231
    %v1734 = vmax.f32 %v1733, 0.0
    %v1735 = vmul.f32 %v1734, %v234
    %v1736 = vadd.f32 %v1727, %v1735
    %v1737 = vmul.f32 %v1372, %v237
    %v1738 = vmul.f32 %v1518, %v239
    %v1739 = vadd.f32 %v1737, %v1738
    %v1740 = vmul.f32 %v1664, %v242
    %v1741 = vadd.f32 %v1739, %v1740
    %v1742 = vadd.f32 %v1741, %v245
    %v1743 = vmax.f32 %v1742, 0.0
    %v1744 = vmul.f32 %v1743, %v248
    %v1745 = vadd.f32 %v1736, %v1744
    %v1746 = vmul.f32 %v1372, %v251
    %v1747 = vmul.f32 %v1518, %v253
    %v1748 = vadd.f32 %v1746, %v1747
    %v1749 = vmul.f32 %v1664, %v256
    %v1750 = vadd.f32 %v1748, %v1749
    %v1751 = vadd.f32 %v1750, %v259
    %v1752 = vmax.f32 %v1751, 0.0
    %v1753 = vmul.f32 %v1752, %v262
    %v1754 = vadd.f32 %v1745, %v1753
    %v1755 = vmul.f32 %v1372, %v265
    %v1756 = vmul.f32 %v1518, %v267
    %v1757 = vadd.f32 %v1755, %v1756
    %v1758 = vmul.f32 %v1664, %v270
    %v1759 = vadd.f32 %v1757, %v1758
    %v1760 = vadd.f32 %v1759, %v273
    %v1761 = vmax.f32 %v1760, 0.0
    %v1762 = vmul.f32 %v1761, %v276
    %v1763 = vadd.f32 %v1754, %v1762
    %v1764 = vmul.f32 %v1372, %v279
    %v1765 = vmul.f32 %v1518, %v281
    %v1766 = vadd.f32 %v1764, %v1765
    %v1767 = vmul.f32 %v1664, %v284
    %v1768 = vadd.f32 %v1766, %v1767
    %v1769 = vadd.f32 %v1768, %v287
    %v1770 = vmax.f32 %v1769, 0.0
    %v1771 = vmul.f32 %v1770, %v290
    %v1772 = vadd.f32 %v1763, %v1771
    %v1773 = vmul.f32 %v1372, %v293
    %v1774 = vmul.f32 %v1518, %v295
    %v1775 = vadd.f32 %v1773, %v1774
    %v1776 = vmul.f32 %v1664, %v298
    %v1777 = vadd.f32 %v1775, %v1776
    %v1778 = vadd.f32 %v1777, %v301
    %v1779 = vmax.f32 %v1778, 0.0
    %v1780 = vmul.f32 %v1779, %v304
    %v1781 = vadd.f32 %v1772, %v1780
    %v1782 = vmul.f32 %v1372, %v307
    %v1783 = vmul.f32 %v1518, %v309
    %v1784 = vadd.f32 %v1782, %v1783
    %v1785 = vmul.f32 %v1664, %v312
    %v1786 = vadd.f32 %v1784, %v1785
    %v1787 = vadd.f32 %v1786, %v315
    %v1788 = vmax.f32 %v1787, 0.0
    %v1789 = vmul.f32 %v1788, %v318
    %v1790 = vadd.f32 %v1781, %v1789
    %v1791 = vmul.f32 %v1372, %v321
    %v1792 = vmul.f32 %v1518, %v323
    %v1793 = vadd.f32 %v1791, %v1792
    %v1794 = vmul.f32 %v1664, %v326
    %v1795 = vadd.f32 %v1793, %v1794
    %v1796 = vadd.f32 %v1795, %v329
    %v1797 = vmax.f32 %v1796, 0.0
    %v1798 = vmul.f32 %v1797, %v332
    %v1799 = vadd.f32 %v1790, %v1798
    %v1800 = vmul.f32 %v1372, %v335
    %v1801 = vmul.f32 %v1518, %v337
    %v1802 = vadd.f32 %v1800, %v1801
    %v1803 = vmul.f32 %v1664, %v340
    %v1804 = vadd.f32 %v1802, %v1803
    %v1805 = vadd.f32 %v1804, %v343
    %v1806 = vmax.f32 %v1805, 0.0
    %v1807 = vmul.f32 %v1806, %v346
    %v1808 = vadd.f32 %v1799, %v1807
    %s1809 = scalar_lea.vmem [#allocation2], 104
    %v1810 = vld [vmem:[%s1809] sm:$0xff]
    %v1811 = vmul.f32 %v1518, %v125
    %v1812 = vmul.f32 %v1664, %v127
    %v1813 = vadd.f32 %v1811, %v1812
    %v1814 = vmul.f32 %v1810, %v130
    %v1815 = vadd.f32 %v1813, %v1814
    %v1816 = vadd.f32 %v1815, %v133
    %v1817 = vmax.f32 %v1816, 0.0
    %v1818 = vmul.f32 %v1817, %v136
    %v1819 = vadd.f32 %v1808, %v1818
    %v1820 = vmul.f32 %v1518, %v139
    %v1821 = vmul.f32 %v1664, %v141
    %v1822 = vadd.f32 %v1820, %v1821
    %v1823 = vmul.f32 %v1810, %v144
    %v1824 = vadd.f32 %v1822, %v1823
    %v1825 = vadd.f32 %v1824, %v147
    %v1826 = vmax.f32 %v1825, 0.0
    %v1827 = vmul.f32 %v1826, %v150
    %v1828 = vadd.f32 %v1819, %v1827
    %v1829 = vmul.f32 %v1518, %v153
    %v1830 = vmul.f32 %v1664, %v155
    %v1831 = vadd.f32 %v1829, %v1830
    %v1832 = vmul.f32 %v1810, %v158
    %v1833 = vadd.f32 %v1831, %v1832
    %v1834 = vadd.f32 %v1833, %v161
    %v1835 = vmax.f32 %v1834, 0.0
    %v1836 = vmul.f32 %v1835, %v164
    %v1837 = vadd.f32 %v1828, %v1836
    %v1838 = vmul.f32 %v1518, %v167
    %v1839 = vmul.f32 %v1664, %v169
    %v1840 = vadd.f32 %v1838, %v1839
    %v1841 = vmul.f32 %v1810, %v172
    %v1842 = vadd.f32 %v1840, %v1841
    %v1843 = vadd.f32 %v1842, %v175
    %v1844 = vmax.f32 %v1843, 0.0
    %v1845 = vmul.f32 %v1844, %v178
    %v1846 = vadd.f32 %v1837, %v1845
    %v1847 = vmul.f32 %v1518, %v181
    %v1848 = vmul.f32 %v1664, %v183
    %v1849 = vadd.f32 %v1847, %v1848
    %v1850 = vmul.f32 %v1810, %v186
    %v1851 = vadd.f32 %v1849, %v1850
    %v1852 = vadd.f32 %v1851, %v189
    %v1853 = vmax.f32 %v1852, 0.0
    %v1854 = vmul.f32 %v1853, %v192
    %v1855 = vadd.f32 %v1846, %v1854
    %v1856 = vmul.f32 %v1518, %v195
    %v1857 = vmul.f32 %v1664, %v197
    %v1858 = vadd.f32 %v1856, %v1857
    %v1859 = vmul.f32 %v1810, %v200
    %v1860 = vadd.f32 %v1858, %v1859
    %v1861 = vadd.f32 %v1860, %v203
    %v1862 = vmax.f32 %v1861, 0.0
    %v1863 = vmul.f32 %v1862, %v206
    %v1864 = vadd.f32 %v1855, %v1863
    %v1865 = vmul.f32 %v1518, %v209
    %v1866 = vmul.f32 %v1664, %v211
    %v1867 = vadd.f32 %v1865, %v1866
    %v1868 = vmul.f32 %v1810, %v214
    %v1869 = vadd.f32 %v1867, %v1868
    %v1870 = vadd.f32 %v1869, %v217
    %v1871 = vmax.f32 %v1870, 0.0
    %v1872 = vmul.f32 %v1871, %v220
    %v1873 = vadd.f32 %v1864, %v1872
    %v1874 = vmul.f32 %v1518, %v223
    %v1875 = vmul.f32 %v1664, %v225
    %v1876 = vadd.f32 %v1874, %v1875
    %v1877 = vmul.f32 %v1810, %v228
    %v1878 = vadd.f32 %v1876, %v1877
    %v1879 = vadd.f32 %v1878, %v231
    %v1880 = vmax.f32 %v1879, 0.0
    %v1881 = vmul.f32 %v1880, %v234
    %v1882 = vadd.f32 %v1873, %v1881
    %v1883 = vmul.f32 %v1518, %v237
    %v1884 = vmul.f32 %v1664, %v239
    %v1885 = vadd.f32 %v1883, %v1884
    %v1886 = vmul.f32 %v1810, %v242
    %v1887 = vadd.f32 %v1885, %v1886
    %v1888 = vadd.f32 %v1887, %v245
    %v1889 = vmax.f32 %v1888, 0.0
    %v1890 = vmul.f32 %v1889, %v248
    %v1891 = vadd.f32 %v1882, %v1890
    %v1892 = vmul.f32 %v1518, %v251
    %v1893 = vmul.f32 %v1664, %v253
    %v1894 = vadd.f32 %v1892, %v1893
    %v1895 = vmul.f32 %v1810, %v256
    %v1896 = vadd.f32 %v1894, %v1895
    %v1897 = vadd.f32 %v1896, %v259
    %v1898 = vmax.f32 %v1897, 0.0
    %v1899 = vmul.f32 %v1898, %v262
    %v1900 = vadd.f32 %v1891, %v1899
    %v1901 = vmul.f32 %v1518, %v265
    %v1902 = vmul.f32 %v1664, %v267
    %v1903 = vadd.f32 %v1901, %v1902
    %v1904 = vmul.f32 %v1810, %v270
    %v1905 = vadd.f32 %v1903, %v1904
    %v1906 = vadd.f32 %v1905, %v273
    %v1907 = vmax.f32 %v1906, 0.0
    %v1908 = vmul.f32 %v1907, %v276
    %v1909 = vadd.f32 %v1900, %v1908
    %v1910 = vmul.f32 %v1518, %v279
    %v1911 = vmul.f32 %v1664, %v281
    %v1912 = vadd.f32 %v1910, %v1911
    %v1913 = vmul.f32 %v1810, %v284
    %v1914 = vadd.f32 %v1912, %v1913
    %v1915 = vadd.f32 %v1914, %v287
    %v1916 = vmax.f32 %v1915, 0.0
    %v1917 = vmul.f32 %v1916, %v290
    %v1918 = vadd.f32 %v1909, %v1917
    %v1919 = vmul.f32 %v1518, %v293
    %v1920 = vmul.f32 %v1664, %v295
    %v1921 = vadd.f32 %v1919, %v1920
    %v1922 = vmul.f32 %v1810, %v298
    %v1923 = vadd.f32 %v1921, %v1922
    %v1924 = vadd.f32 %v1923, %v301
    %v1925 = vmax.f32 %v1924, 0.0
    %v1926 = vmul.f32 %v1925, %v304
    %v1927 = vadd.f32 %v1918, %v1926
    %v1928 = vmul.f32 %v1518, %v307
    %v1929 = vmul.f32 %v1664, %v309
    %v1930 = vadd.f32 %v1928, %v1929
    %v1931 = vmul.f32 %v1810, %v312
    %v1932 = vadd.f32 %v1930, %v1931
    %v1933 = vadd.f32 %v1932, %v315
    %v1934 = vmax.f32 %v1933, 0.0
    %v1935 = vmul.f32 %v1934, %v318
    %v1936 = vadd.f32 %v1927, %v1935
    %v1937 = vmul.f32 %v1518, %v321
    %v1938 = vmul.f32 %v1664, %v323
    %v1939 = vadd.f32 %v1937, %v1938
    %v1940 = vmul.f32 %v1810, %v326
    %v1941 = vadd.f32 %v1939, %v1940
    %v1942 = vadd.f32 %v1941, %v329
    %v1943 = vmax.f32 %v1942, 0.0
    %v1944 = vmul.f32 %v1943, %v332
    %v1945 = vadd.f32 %v1936, %v1944
    %v1946 = vmul.f32 %v1518, %v335
    %v1947 = vmul.f32 %v1664, %v337
    %v1948 = vadd.f32 %v1946, %v1947
    %v1949 = vmul.f32 %v1810, %v340
    %v1950 = vadd.f32 %v1948, %v1949
    %v1951 = vadd.f32 %v1950, %v343
    %v1952 = vmax.f32 %v1951, 0.0
    %v1953 = vmul.f32 %v1952, %v346
    %v1954 = vadd.f32 %v1945, %v1953
    %s1955 = scalar_lea.vmem [#allocation2], 112
    %v1956 = vld [vmem:[%s1955] sm:$0xff]
    %v1957 = vmul.f32 %v1664, %v125
    %v1958 = vmul.f32 %v1810, %v127
    %v1959 = vadd.f32 %v1957, %v1958
    %v1960 = vmul.f32 %v1956, %v130
    %v1961 = vadd.f32 %v1959, %v1960
    %v1962 = vadd.f32 %v1961, %v133
    %v1963 = vmax.f32 %v1962, 0.0
    %v1964 = vmul.f32 %v1963, %v136
    %v1965 = vadd.f32 %v1954, %v1964
    %v1966 = vmul.f32 %v1664, %v139
    %v1967 = vmul.f32 %v1810, %v141
    %v1968 = vadd.f32 %v1966, %v1967
    %v1969 = vmul.f32 %v1956, %v144
    %v1970 = vadd.f32 %v1968, %v1969
    %v1971 = vadd.f32 %v1970, %v147
    %v1972 = vmax.f32 %v1971, 0.0
    %v1973 = vmul.f32 %v1972, %v150
    %v1974 = vadd.f32 %v1965, %v1973
    %v1975 = vmul.f32 %v1664, %v153
    %v1976 = vmul.f32 %v1810, %v155
    %v1977 = vadd.f32 %v1975, %v1976
    %v1978 = vmul.f32 %v1956, %v158
    %v1979 = vadd.f32 %v1977, %v1978
    %v1980 = vadd.f32 %v1979, %v161
    %v1981 = vmax.f32 %v1980, 0.0
    %v1982 = vmul.f32 %v1981, %v164
    %v1983 = vadd.f32 %v1974, %v1982
    %v1984 = vmul.f32 %v1664, %v167
    %v1985 = vmul.f32 %v1810, %v169
    %v1986 = vadd.f32 %v1984, %v1985
    %v1987 = vmul.f32 %v1956, %v172
    %v1988 = vadd.f32 %v1986, %v1987
    %v1989 = vadd.f32 %v1988, %v175
    %v1990 = vmax.f32 %v1989, 0.0
    %v1991 = vmul.f32 %v1990, %v178
    %v1992 = vadd.f32 %v1983, %v1991
    %v1993 = vmul.f32 %v1664, %v181
    %v1994 = vmul.f32 %v1810, %v183
    %v1995 = vadd.f32 %v1993, %v1994
    %v1996 = vmul.f32 %v1956, %v186
    %v1997 = vadd.f32 %v1995, %v1996
    %v1998 = vadd.f32 %v1997, %v189
    %v1999 = vmax.f32 %v1998, 0.0
    %v2000 = vmul.f32 %v1999, %v192
    %v2001 = vadd.f32 %v1992, %v2000
    %v2002 = vmul.f32 %v1664, %v195
    %v2003 = vmul.f32 %v1810, %v197
    %v2004 = vadd.f32 %v2002, %v2003
    %v2005 = vmul.f32 %v1956, %v200
    %v2006 = vadd.f32 %v2004, %v2005
    %v2007 = vadd.f32 %v2006, %v203
    %v2008 = vmax.f32 %v2007, 0.0
    %v2009 = vmul.f32 %v2008, %v206
    %v2010 = vadd.f32 %v2001, %v2009
    %v2011 = vmul.f32 %v1664, %v209
    %v2012 = vmul.f32 %v1810, %v211
    %v2013 = vadd.f32 %v2011, %v2012
    %v2014 = vmul.f32 %v1956, %v214
    %v2015 = vadd.f32 %v2013, %v2014
    %v2016 = vadd.f32 %v2015, %v217
    %v2017 = vmax.f32 %v2016, 0.0
    %v2018 = vmul.f32 %v2017, %v220
    %v2019 = vadd.f32 %v2010, %v2018
    %v2020 = vmul.f32 %v1664, %v223
    %v2021 = vmul.f32 %v1810, %v225
    %v2022 = vadd.f32 %v2020, %v2021
    %v2023 = vmul.f32 %v1956, %v228
    %v2024 = vadd.f32 %v2022, %v2023
    %v2025 = vadd.f32 %v2024, %v231
    %v2026 = vmax.f32 %v2025, 0.0
    %v2027 = vmul.f32 %v2026, %v234
    %v2028 = vadd.f32 %v2019, %v2027
    %v2029 = vmul.f32 %v1664, %v237
    %v2030 = vmul.f32 %v1810, %v239
    %v2031 = vadd.f32 %v2029, %v2030
    %v2032 = vmul.f32 %v1956, %v242
    %v2033 = vadd.f32 %v2031, %v2032
    %v2034 = vadd.f32 %v2033, %v245
    %v2035 = vmax.f32 %v2034, 0.0
    %v2036 = vmul.f32 %v2035, %v248
    %v2037 = vadd.f32 %v2028, %v2036
    %v2038 = vmul.f32 %v1664, %v251
    %v2039 = vmul.f32 %v1810, %v253
    %v2040 = vadd.f32 %v2038, %v2039
    %v2041 = vmul.f32 %v1956, %v256
    %v2042 = vadd.f32 %v2040, %v2041
    %v2043 = vadd.f32 %v2042, %v259
    %v2044 = vmax.f32 %v2043, 0.0
    %v2045 = vmul.f32 %v2044, %v262
    %v2046 = vadd.f32 %v2037, %v2045
    %v2047 = vmul.f32 %v1664, %v265
    %v2048 = vmul.f32 %v1810, %v267
    %v2049 = vadd.f32 %v2047, %v2048
    %v2050 = vmul.f32 %v1956, %v270
    %v2051 = vadd.f32 %v2049, %v2050
    %v2052 = vadd.f32 %v2051, %v273
    %v2053 = vmax.f32 %v2052, 0.0
    %v2054 = vmul.f32 %v2053, %v276
    %v2055 = vadd.f32 %v2046, %v2054
    %v2056 = vmul.f32 %v1664, %v279
    %v2057 = vmul.f32 %v1810, %v281
    %v2058 = vadd.f32 %v2056, %v2057
    %v2059 = vmul.f32 %v1956, %v284
    %v2060 = vadd.f32 %v2058, %v2059
    %v2061 = vadd.f32 %v2060, %v287
    %v2062 = vmax.f32 %v2061, 0.0
    %v2063 = vmul.f32 %v2062, %v290
    %v2064 = vadd.f32 %v2055, %v2063
    %v2065 = vmul.f32 %v1664, %v293
    %v2066 = vmul.f32 %v1810, %v295
    %v2067 = vadd.f32 %v2065, %v2066
    %v2068 = vmul.f32 %v1956, %v298
    %v2069 = vadd.f32 %v2067, %v2068
    %v2070 = vadd.f32 %v2069, %v301
    %v2071 = vmax.f32 %v2070, 0.0
    %v2072 = vmul.f32 %v2071, %v304
    %v2073 = vadd.f32 %v2064, %v2072
    %v2074 = vmul.f32 %v1664, %v307
    %v2075 = vmul.f32 %v1810, %v309
    %v2076 = vadd.f32 %v2074, %v2075
    %v2077 = vmul.f32 %v1956, %v312
    %v2078 = vadd.f32 %v2076, %v2077
    %v2079 = vadd.f32 %v2078, %v315
    %v2080 = vmax.f32 %v2079, 0.0
    %v2081 = vmul.f32 %v2080, %v318
    %v2082 = vadd.f32 %v2073, %v2081
    %v2083 = vmul.f32 %v1664, %v321
    %v2084 = vmul.f32 %v1810, %v323
    %v2085 = vadd.f32 %v2083, %v2084
    %v2086 = vmul.f32 %v1956, %v326
    %v2087 = vadd.f32 %v2085, %v2086
    %v2088 = vadd.f32 %v2087, %v329
    %v2089 = vmax.f32 %v2088, 0.0
    %v2090 = vmul.f32 %v2089, %v332
    %v2091 = vadd.f32 %v2082, %v2090
    %v2092 = vmul.f32 %v1664, %v335
    %v2093 = vmul.f32 %v1810, %v337
    %v2094 = vadd.f32 %v2092, %v2093
    %v2095 = vmul.f32 %v1956, %v340
    %v2096 = vadd.f32 %v2094, %v2095
    %v2097 = vadd.f32 %v2096, %v343
    %v2098 = vmax.f32 %v2097, 0.0
    %v2099 = vmul.f32 %v2098, %v346
    %v2100 = vadd.f32 %v2091, %v2099
    %s2101 = scalar_lea.vmem [#allocation2], 120
    %v2102 = vld [vmem:[%s2101] sm:$0xff]
    %v2103 = vmul.f32 %v1810, %v125
    %v2104 = vmul.f32 %v1956, %v127
    %v2105 = vadd.f32 %v2103, %v2104
    %v2106 = vmul.f32 %v2102, %v130
    %v2107 = vadd.f32 %v2105, %v2106
    %v2108 = vadd.f32 %v2107, %v133
    %v2109 = vmax.f32 %v2108, 0.0
    %v2110 = vmul.f32 %v2109, %v136
    %v2111 = vadd.f32 %v2100, %v2110
    %v2112 = vmul.f32 %v1810, %v139
    %v2113 = vmul.f32 %v1956, %v141
    %v2114 = vadd.f32 %v2112, %v2113
    %v2115 = vmul.f32 %v2102, %v144
    %v2116 = vadd.f32 %v2114, %v2115
    %v2117 = vadd.f32 %v2116, %v147
    %v2118 = vmax.f32 %v2117, 0.0
    %v2119 = vmul.f32 %v2118, %v150
    %v2120 = vadd.f32 %v2111, %v2119
    %v2121 = vmul.f32 %v1810, %v153
    %v2122 = vmul.f32 %v1956, %v155
    %v2123 = vadd.f32 %v2121, %v2122
    %v2124 = vmul.f32 %v2102, %v158
    %v2125 = vadd.f32 %v2123, %v2124
    %v2126 = vadd.f32 %v2125, %v161
    %v2127 = vmax.f32 %v2126, 0.0
    %v2128 = vmul.f32 %v2127, %v164
    %v2129 = vadd.f32 %v2120, %v2128
    %v2130 = vmul.f32 %v1810, %v167
    %v2131 = vmul.f32 %v1956, %v169
    %v2132 = vadd.f32 %v2130, %v2131
    %v2133 = vmul.f32 %v2102, %v172
    %v2134 = vadd.f32 %v2132, %v2133
    %v2135 = vadd.f32 %v2134, %v175
    %v2136 = vmax.f32 %v2135, 0.0
    %v2137 = vmul.f32 %v2136, %v178
    %v2138 = vadd.f32 %v2129, %v2137
    %v2139 = vmul.f32 %v1810, %v181
    %v2140 = vmul.f32 %v1956, %v183
    %v2141 = vadd.f32 %v2139, %v2140
    %v2142 = vmul.f32 %v2102, %v186
    %v2143 = vadd.f32 %v2141, %v2142
    %v2144 = vadd.f32 %v2143, %v189
    %v2145 = vmax.f32 %v2144, 0.0
    %v2146 = vmul.f32 %v2145, %v192
    %v2147 = vadd.f32 %v2138, %v2146
    %v2148 = vmul.f32 %v1810, %v195
    %v2149 = vmul.f32 %v1956, %v197
    %v2150 = vadd.f32 %v2148, %v2149
    %v2151 = vmul.f32 %v2102, %v200
    %v2152 = vadd.f32 %v2150, %v2151
    %v2153 = vadd.f32 %v2152, %v203
    %v2154 = vmax.f32 %v2153, 0.0
    %v2155 = vmul.f32 %v2154, %v206
    %v2156 = vadd.f32 %v2147, %v2155
    %v2157 = vmul.f32 %v1810, %v209
    %v2158 = vmul.f32 %v1956, %v211
    %v2159 = vadd.f32 %v2157, %v2158
    %v2160 = vmul.f32 %v2102, %v214
    %v2161 = vadd.f32 %v2159, %v2160
    %v2162 = vadd.f32 %v2161, %v217
    %v2163 = vmax.f32 %v2162, 0.0
    %v2164 = vmul.f32 %v2163, %v220
    %v2165 = vadd.f32 %v2156, %v2164
    %v2166 = vmul.f32 %v1810, %v223
    %v2167 = vmul.f32 %v1956, %v225
    %v2168 = vadd.f32 %v2166, %v2167
    %v2169 = vmul.f32 %v2102, %v228
    %v2170 = vadd.f32 %v2168, %v2169
    %v2171 = vadd.f32 %v2170, %v231
    %v2172 = vmax.f32 %v2171, 0.0
    %v2173 = vmul.f32 %v2172, %v234
    %v2174 = vadd.f32 %v2165, %v2173
    %v2175 = vmul.f32 %v1810, %v237
    %v2176 = vmul.f32 %v1956, %v239
    %v2177 = vadd.f32 %v2175, %v2176
    %v2178 = vmul.f32 %v2102, %v242
    %v2179 = vadd.f32 %v2177, %v2178
    %v2180 = vadd.f32 %v2179, %v245
    %v2181 = vmax.f32 %v2180, 0.0
    %v2182 = vmul.f32 %v2181, %v248
    %v2183 = vadd.f32 %v2174, %v2182
    %v2184 = vmul.f32 %v1810, %v251
    %v2185 = vmul.f32 %v1956, %v253
    %v2186 = vadd.f32 %v2184, %v2185
    %v2187 = vmul.f32 %v2102, %v256
    %v2188 = vadd.f32 %v2186, %v2187
    %v2189 = vadd.f32 %v2188, %v259
    %v2190 = vmax.f32 %v2189, 0.0
    %v2191 = vmul.f32 %v2190, %v262
    %v2192 = vadd.f32 %v2183, %v2191
    %v2193 = vmul.f32 %v1810, %v265
    %v2194 = vmul.f32 %v1956, %v267
    %v2195 = vadd.f32 %v2193, %v2194
    %v2196 = vmul.f32 %v2102, %v270
    %v2197 = vadd.f32 %v2195, %v2196
    %v2198 = vadd.f32 %v2197, %v273
    %v2199 = vmax.f32 %v2198, 0.0
    %v2200 = vmul.f32 %v2199, %v276
    %v2201 = vadd.f32 %v2192, %v2200
    %v2202 = vmul.f32 %v1810, %v279
    %v2203 = vmul.f32 %v1956, %v281
    %v2204 = vadd.f32 %v2202, %v2203
    %v2205 = vmul.f32 %v2102, %v284
    %v2206 = vadd.f32 %v2204, %v2205
    %v2207 = vadd.f32 %v2206, %v287
    %v2208 = vmax.f32 %v2207, 0.0
    %v2209 = vmul.f32 %v2208, %v290
    %v2210 = vadd.f32 %v2201, %v2209
    %v2211 = vmul.f32 %v1810, %v293
    %v2212 = vmul.f32 %v1956, %v295
    %v2213 = vadd.f32 %v2211, %v2212
    %v2214 = vmul.f32 %v2102, %v298
    %v2215 = vadd.f32 %v2213, %v2214
    %v2216 = vadd.f32 %v2215, %v301
    %v2217 = vmax.f32 %v2216, 0.0
    %v2218 = vmul.f32 %v2217, %v304
    %v2219 = vadd.f32 %v2210, %v2218
    %v2220 = vmul.f32 %v1810, %v307
    %v2221 = vmul.f32 %v1956, %v309
    %v2222 = vadd.f32 %v2220, %v2221
    %v2223 = vmul.f32 %v2102, %v312
    %v2224 = vadd.f32 %v2222, %v2223
    %v2225 = vadd.f32 %v2224, %v315
    %v2226 = vmax.f32 %v2225, 0.0
    %v2227 = vmul.f32 %v2226, %v318
    %v2228 = vadd.f32 %v2219, %v2227
    %v2229 = vmul.f32 %v1810, %v321
    %v2230 = vmul.f32 %v1956, %v323
    %v2231 = vadd.f32 %v2229, %v2230
    %v2232 = vmul.f32 %v2102, %v326
    %v2233 = vadd.f32 %v2231, %v2232
    %v2234 = vadd.f32 %v2233, %v329
    %v2235 = vmax.f32 %v2234, 0.0
    %v2236 = vmul.f32 %v2235, %v332
    %v2237 = vadd.f32 %v2228, %v2236
    %v2238 = vmul.f32 %v1810, %v335
    %v2239 = vmul.f32 %v1956, %v337
    %v2240 = vadd.f32 %v2238, %v2239
    %v2241 = vmul.f32 %v2102, %v340
    %v2242 = vadd.f32 %v2240, %v2241
    %v2243 = vadd.f32 %v2242, %v343
    %v2244 = vmax.f32 %v2243, 0.0
    %v2245 = vmul.f32 %v2244, %v346
    %v2246 = vadd.f32 %v2237, %v2245
    %v2247 = vstv %s119
    %v2248 = vadd.f32 %v2246, %v2247
    %2249 = vst [vmem:[#allocation7] sm:$0xff] %v2248
    // Predicated region
    $region18: #{tpu_custom_call.1} parent=1 // pred_check
      _
    $region19: #{tpu_custom_call.1} parent=1 // pred_check_branch
      %2251 = sbr.rel (0) target = $region21
    $region20: #{tpu_custom_call.1} parent=1 // pred_region
      %s2253 = ssub.s32 128, 128
      %2254 = vsyncadd [#allocation4], %s2253
      %s2256 = sshll.u32 [#allocation7], 4
      %s2257 = int_to_ptr.vmem [resolvable:$true] %s2256
      %2259 = dma.vmem_to_hbm [thread:$0]  %s2257, 128, %s2, [#allocation4]
    $region21: #{tpu_custom_call.1} parent=1 // pred_fallthru
      _
    // Predicated region
    $region22: #{tpu_custom_call.1} parent=1 // pred_check
      _
    $region23: #{tpu_custom_call.1} parent=1 // pred_check_branch
      %2261 = sbr.rel (0) target = $region25
    $region24: #{tpu_custom_call.1} parent=1 // pred_region
      %2262 = dma.done [#allocation4], 128
    $region25: #{tpu_custom_call.1} parent=1 // pred_fallthru
      _
    %2263 = vsyncpa [#allocation3], 1
    %2264 = vsyncpa [#allocation4], 1
    %2265 = vsyncpa [#allocation5], 1

</llo_original>
